<compile_context>
chip_gen: v5e
topology: v5e:2x2
jax: 0.10.0
libtpu: 0.0.40
codegen_flags: <defaults>
</compile_context>

<pallas_src>
import functools

import jax
import jax.numpy as jnp
from jax.experimental import pallas as pl
from jax.experimental.pallas import tpu as pltpu

LANES = 128
PATCH_LANES = 256          # padded im2col contraction for conv2 (9 * F <= 256)


def _round_up(n, m):
    return ((n + m - 1) // m) * m


# ----------------------------------------------------------------------------
# Fused detector kernel: conv1 -> ReLU -> conv2 -> spatial softmax -> COM
# ----------------------------------------------------------------------------
def _detector_kernel(x_ref, w1_ref, b1_ref, w2_ref, b2_ref, o_ref,
                     xb_ref, h_ref, patch_ref, *, H, W, F):
    """One image per grid step; everything between the image load and the
    (8, 128) keypoint slab store stays in VMEM.

    Flattened row-major layout over the zero-padded (H+2, W+2) grid:
      x_ref     : (Nx, 1)    padded image column, data at offset 2*S
      xb_ref    : (Nx, 128)  f32  scratch: x lane-broadcast ONCE (hoisted)
      h_ref     : (N1, 128)  bf16 scratch: hidden features, written ONCE
      patch_ref : (N2, 256)  bf16 scratch: conv2 im2col patch (9*F real cols)
      o_ref     : (8, 128)   row 0 = keypoint row coords, row 1 = col coords
    """
    Wp = W + 2
    L = (H + 2) * Wp
    S = Wp + 1
    Nx = xb_ref.shape[0]
    N1 = h_ref.shape[0]
    N2 = patch_ref.shape[0]
    inv_wp = 1.0 / Wp

    # ---- 0) ONE hoisted lane-broadcast of the flattened padded image --------
    xb_ref[...] = jnp.broadcast_to(x_ref[...], (Nx, LANES))

    # ---- 1) conv1 (3x3, 1 -> F): VPU shift-and-accumulate, row-chunked local
    #         accumulators, single bf16 store per chunk (no ref RMW) ----------
    w1 = w1_ref[...]                                   # (16, 128), rows 0..8 = taps
    w1_rows = [w1[t:t + 1, :] for t in range(9)]
    b1 = b1_ref[...]                                   # (1, 128)
    CH = 64                                            # rows/chunk: acc fits vregs
    for c0 in range(0, N1, CH):
        rows = min(CH, N1 - c0)
        acc = jnp.broadcast_to(b1, (rows, LANES))
        for t in range(9):
            off = (t // 3) * Wp + (t % 3)
            acc = acc + xb_ref[pl.ds(off + c0, rows), :] * w1_rows[t]
        # ReLU + zero the SAME-pad ring / margin rows (== conv2's zero padding).
        # Float div/floor is exact while flat indices stay << 2^23 (true here).
        j1 = (jax.lax.broadcasted_iota(jnp.int32, (rows, 1), 0)
              + (c0 - S)).astype(jnp.float32)
        r1 = jnp.floor((j1 + 0.5) * inv_wp)
        c1 = j1 - r1 * Wp
        inside1 = ((j1 >= 0) & (j1 < L) &
                   (r1 >= 1) & (r1 <= H) & (c1 >= 1) & (c1 <= W))
        h_ref[pl.ds(c0, rows), :] = jnp.where(
            inside1, jnp.maximum(acc, 0.0), 0.0).astype(jnp.bfloat16)

    # ---- 2) conv2 im2col patch: 9 shifted (N2, F) bf16 copies + zero tail ---
    patch_ref[:, 9 * F:] = jnp.zeros((N2, PATCH_LANES - 9 * F), jnp.bfloat16)
    for t in range(9):
        off = (t // 3) * Wp + (t % 3)
        patch_ref[:, t * F:(t + 1) * F] = h_ref[pl.ds(off, N2), pl.ds(0, F)]

    # ---- 3) conv2 as ONE MXU matmul: (N2,256)bf16 x (256,128)bf16 -> f32 ----
    logits = jnp.dot(patch_ref[...], w2_ref[...],
                     preferred_element_type=jnp.float32) + b2_ref[...]

    # ---- 4) spatial softmax + center-of-mass (values only, no extra refs) ---
    j2 = jax.lax.broadcasted_iota(jnp.int32, (N2, 1), 0).astype(jnp.float32)
    r2 = jnp.floor((j2 + 0.5) * inv_wp)
    c2 = j2 - r2 * Wp
    inside2 = (j2 < L) & (r2 >= 1) & (r2 <= H) & (c2 >= 1) & (c2 <= W)
    lg = jnp.where(inside2, logits, -1e30)
    mx = jnp.max(lg, axis=0, keepdims=True)                    # (1, 128)
    e = jnp.exp(lg - mx)
    den = jnp.sum(e, axis=0, keepdims=True)
    wr = jnp.sum(e * (r2 - 1.0), axis=0, keepdims=True)        # unnormalized row COM
    wc = jnp.sum(e * (c2 - 1.0), axis=0, keepdims=True)        # unnormalized col COM
    inv = 1.0 / den                                            # exact reciprocal
    # Single dense, unmasked (8, 128) store.
    o_ref[...] = jnp.concatenate(
        [wr * inv, wc * inv, jnp.zeros((6, LANES), jnp.float32)], axis=0)


def _fused_detector_call(x_store, w1t, b1p, w2p, b2p, *, B, H, W, F, Nx, N1, N2):
    kernel = functools.partial(_detector_kernel, H=H, W=W, F=F)
    out = pl.pallas_call(
        kernel,
        out_shape=jax.ShapeDtypeStruct((B * 8, LANES), jnp.float32),
        grid=(B,),
        in_specs=[
            pl.BlockSpec((Nx, 1), lambda i: (i, 0)),
            pl.BlockSpec((16, LANES), lambda i: (0, 0)),
            pl.BlockSpec((1, LANES), lambda i: (0, 0)),
            pl.BlockSpec((PATCH_LANES, LANES), lambda i: (0, 0)),
            pl.BlockSpec((1, LANES), lambda i: (0, 0)),
        ],
        out_specs=pl.BlockSpec((8, LANES), lambda i: (i, 0)),
        scratch_shapes=[
            pltpu.VMEM((Nx, LANES), jnp.float32),        # hoisted x broadcast
            pltpu.VMEM((N1, LANES), jnp.bfloat16),       # hidden features (bf16)
            pltpu.VMEM((N2, PATCH_LANES), jnp.bfloat16),  # conv2 im2col patch
        ],
        compiler_params=pltpu.CompilerParams(
            dimension_semantics=("parallel",),            # megacore / 2-TC over images
            vmem_limit_bytes=32 * 1024 * 1024,            # ~2 MiB used; safe v5e..v7x
        ),
    )(x_store, w1t, b1p, w2p, b2p)
    return out.reshape(B, 8, LANES)


# ----------------------------------------------------------------------------
# Detector wrapper: minimal layout prep + voxel -> world transform
# ----------------------------------------------------------------------------
def keypoint_detector_net(img, affine, params):
    """img: (B, 1, H, W) f32, affine: (B, 3, 3) f32 -> (B, K, 2) world keypoints.

    Keypoints are produced in (row, col) voxel order and the affine is applied
    to [row, col, 1] — a self-consistent convention for this instantiation.
    """
    B, C, H, W = img.shape
    assert C == 1  # TODO(synk): generalize to C > 1 (per-channel flat planes).
    F = params["w1"].shape[1]
    K = params["w2"].shape[1]
    assert params["w1"].shape[0] == 9 and params["w2"].shape[0] == 9 * F
    assert 9 * F <= PATCH_LANES and F <= LANES and K <= LANES

    Wp, Hp = W + 2, H + 2
    L = Hp * Wp
    S = Wp + 1
    N2 = _round_up(L, 8)                     # conv2 output / patch rows
    N1 = _round_up(N2 + 2 * S, 16)           # hidden rows (bf16 sublane packing)
    Nx = _round_up(N1 + 2 * S, 8)            # input column rows

    # Input prep: pad -> flatten -> front/back margins (two tiny fused copies).
    xpad = jnp.pad(img[:, 0].astype(jnp.float32), ((0, 0), (1, 1), (1, 1)))
    xflat = xpad.reshape(B, L)
    x_store = jnp.pad(xflat, ((0, 0), (2 * S, Nx - L - 2 * S)))
    x_store = x_store.reshape(B * Nx, 1)

    # Weights: lane-padded; conv2 packed for the single im2col matmul.
    w1t = jnp.zeros((16, LANES), jnp.float32).at[:9, :F].set(params["w1"])
    b1p = jnp.zeros((1, LANES), jnp.float32).at[0, :F].set(params["b1"])
    w2p = jnp.zeros((PATCH_LANES, LANES), jnp.bfloat16).at[:9 * F, :K].set(
        params["w2"].astype(jnp.bfloat16))
    b2p = jnp.zeros((1, LANES), jnp.float32).at[0, :K].set(params["b2"])

    out = _fused_detector_call(x_store, w1t, b1p, w2p, b2p,
                               B=B, H=H, W=W, F=F, Nx=Nx, N1=N1, N2=N2)
    kp_vox = jnp.stack([out[:, 0, :K], out[:, 1, :K]], axis=-1)   # (B, K, 2)

    # voxel (row, col) -> world coordinates via the image affine (tiny einsum).
    ones = jnp.ones((B, K, 1), jnp.float32)
    kp_hom = jnp.concatenate([kp_vox, ones], axis=-1)              # (B, K, 3)
    return jnp.einsum("bij,bkj->bki", affine[:, :2, :], kp_hom)    # (B, K, 2)


# ----------------------------------------------------------------------------
# Keypoint aligner: closed-form least-squares affine (pure JAX — the tiny
# per-batch 3x3 Gram/solve is launch-overhead-dominated as a Pallas kernel).
# ----------------------------------------------------------------------------
def align_keypoints(moving_kp, fixed_kp):
    """Returns T (B, 3, 3) s.t. fixed_hom ~= T @ moving_hom."""
    B, K, _ = moving_kp.shape
    ones = jnp.ones((B, K, 1), jnp.float32)
    m_hom = jnp.concatenate([moving_kp, ones], axis=-1)            # (B, K, 3)
    G = jnp.einsum("bki,bkj->bij", m_hom, m_hom)                   # (B, 3, 3)
    R = jnp.einsum("bki,bkj->bij", m_hom, fixed_kp)                # (B, 3, 2)
    A = jnp.linalg.solve(G + 1e-6 * jnp.eye(3, dtype=jnp.float32)[None], R)
    top = jnp.swapaxes(A, 1, 2)                                    # (B, 2, 3)
    bottom = jnp.broadcast_to(
        jnp.array([[[0.0, 0.0, 1.0]]], jnp.float32), (B, 1, 3))
    return jnp.concatenate([top, bottom], axis=1)                  # (B, 3, 3)


# ----------------------------------------------------------------------------
# RegistrationModel.forward
# ----------------------------------------------------------------------------
def registration_forward(moving_img, moving_affine, fixed_img, fixed_affine, params):
    B = moving_img.shape[0]
    # Batch moving + fixed into ONE detector kernel launch (grid = 2B, parallel).
    imgs = jnp.concatenate([moving_img, fixed_img], axis=0)
    affs = jnp.concatenate([moving_affine, fixed_affine], axis=0)
    kps = keypoint_detector_net(imgs, affs, params)                # (2B, K, 2)
    moving_kp, fixed_kp = kps[:B], kps[B:]
    transform = align_keypoints(moving_kp, fixed_kp)
    return transform, moving_kp, fixed_kp


# ----------------------------------------------------------------------------
if __name__ == "__main__":
    B, C, H, W = 2, 1, 16, 16        # small NCHW inputs
    F, K = 16, 8                     # hidden channels, number of keypoints

    key = jax.random.PRNGKey(0)
    k1, k2, k3, k4, k5, k6 = jax.random.split(key, 6)

    params = {
        "w1": 0.1 * jax.random.normal(k1, (C * 9, F), jnp.float32),   # tap-major
        "b1": 0.01 * jax.random.normal(k2, (F,), jnp.float32),
        "w2": 0.1 * jax.random.normal(k3, (9 * F, K), jnp.float32),   # (tap, f)-major
        "b2": 0.01 * jax.random.normal(k4, (K,), jnp.float32),
    }

    moving_img = jax.random.normal(k5, (B, C, H, W), jnp.float32)
    fixed_img = jax.random.normal(k6, (B, C, H, W), jnp.float32)
    moving_affine = jnp.tile(
        jnp.array([[1.0, 0.0, 2.0], [0.0, 1.0, -1.0], [0.0, 0.0, 1.0]], jnp.float32),
        (B, 1, 1))
    fixed_affine = jnp.tile(
        jnp.array([[1.1, 0.0, 0.5], [0.0, 0.9, 1.5], [0.0, 0.0, 1.0]], jnp.float32),
        (B, 1, 1))

    fwd = jax.jit(registration_forward)
    transform, moving_kp, fixed_kp = fwd(
        moving_img, moving_affine, fixed_img, fixed_affine, params)
    jax.block_until_ready((transform, moving_kp, fixed_kp))

    assert transform.shape == (B, 3, 3)
    assert moving_kp.shape == (B, K, 2) and fixed_kp.shape == (B, K, 2)
    assert bool(jnp.all(jnp.isfinite(transform)))
    assert bool(jnp.all(jnp.isfinite(moving_kp)))
    assert bool(jnp.all(jnp.isfinite(fixed_kp)))
    print("KERNEL_OK")
</pallas_src>

<mosaic_0001>
module attributes {stable_mosaic.version = 11 : i64} {
  func.func @_detector_kernel(%arg0: i32, %arg1: memref<408x1xf32, #tpu.memory_space<vmem>>, %arg2: memref<16x128xf32, #tpu.memory_space<vmem>>, %arg3: memref<1x128xf32, #tpu.memory_space<vmem>>, %arg4: memref<256x128xbf16, #tpu.memory_space<vmem>>, %arg5: memref<1x128xf32, #tpu.memory_space<vmem>>, %arg6: memref<8x128xf32, #tpu.memory_space<vmem>>, %arg7: memref<408x128xf32, #tpu.memory_space<vmem>>, %arg8: memref<368x128xbf16, #tpu.memory_space<vmem>>, %arg9: memref<328x256xbf16, #tpu.memory_space<vmem>>) attributes {dimension_semantics = [#tpu.dimension_semantics<parallel>], iteration_bounds = array<i64: 4>, scalar_prefetch = 0 : i64, scratch_operands = 3 : i64, tpu.core_type = #tpu.core_type<tc>, window_params = [{transform_indices = @transform_0, window_bounds = array<i64: 408, 1>}, {pipeline_mode = #tpu.pipeline_mode<synchronous>, transform_indices = @transform_1, window_bounds = array<i64: 16, 128>}, {pipeline_mode = #tpu.pipeline_mode<synchronous>, transform_indices = @transform_2, window_bounds = array<i64: 1, 128>}, {pipeline_mode = #tpu.pipeline_mode<synchronous>, transform_indices = @transform_3, window_bounds = array<i64: 256, 128>}, {pipeline_mode = #tpu.pipeline_mode<synchronous>, transform_indices = @transform_4, window_bounds = array<i64: 1, 128>}, {transform_indices = @transform_5, window_bounds = array<i64: 8, 128>}]} {
    %c0 = arith.constant 0 : index
    %c0_0 = arith.constant 0 : index
    %0 = vector.load %arg1[%c0, %c0_0] : memref<408x1xf32, #tpu.memory_space<vmem>>, vector<408x1xf32>
    %1 = vector.shape_cast %0 : vector<408x1xf32> to vector<408x1xf32>
    %2 = vector.broadcast %1 : vector<408x1xf32> to vector<408x128xf32>
    %c0_1 = arith.constant 0 : index
    %c0_2 = arith.constant 0 : index
    %3 = vector.load %arg7[%c0_1, %c0_2] : memref<408x128xf32, #tpu.memory_space<vmem>>, vector<408x128xf32>
    tpu.vector_store %arg7[%c0_1, %c0_2], %2 {strides = array<i32>} : memref<408x128xf32, #tpu.memory_space<vmem>>, vector<408x128xf32>,
    %c0_3 = arith.constant 0 : index
    %c0_4 = arith.constant 0 : index
    %4 = vector.load %arg2[%c0_3, %c0_4] : memref<16x128xf32, #tpu.memory_space<vmem>>, vector<16x128xf32>
    %5 = vector.extract_strided_slice %4 {offsets = [0, 0], sizes = [1, 128], strides = [1, 1]} : vector<16x128xf32> to vector<1x128xf32>
    %6 = vector.extract_strided_slice %4 {offsets = [1, 0], sizes = [1, 128], strides = [1, 1]} : vector<16x128xf32> to vector<1x128xf32>
    %7 = vector.extract_strided_slice %4 {offsets = [2, 0], sizes = [1, 128], strides = [1, 1]} : vector<16x128xf32> to vector<1x128xf32>
    %8 = vector.extract_strided_slice %4 {offsets = [3, 0], sizes = [1, 128], strides = [1, 1]} : vector<16x128xf32> to vector<1x128xf32>
    %9 = vector.extract_strided_slice %4 {offsets = [4, 0], sizes = [1, 128], strides = [1, 1]} : vector<16x128xf32> to vector<1x128xf32>
    %10 = vector.extract_strided_slice %4 {offsets = [5, 0], sizes = [1, 128], strides = [1, 1]} : vector<16x128xf32> to vector<1x128xf32>
    %11 = vector.extract_strided_slice %4 {offsets = [6, 0], sizes = [1, 128], strides = [1, 1]} : vector<16x128xf32> to vector<1x128xf32>
    %12 = vector.extract_strided_slice %4 {offsets = [7, 0], sizes = [1, 128], strides = [1, 1]} : vector<16x128xf32> to vector<1x128xf32>
    %13 = vector.extract_strided_slice %4 {offsets = [8, 0], sizes = [1, 128], strides = [1, 1]} : vector<16x128xf32> to vector<1x128xf32>
    %c0_5 = arith.constant 0 : index
    %c0_6 = arith.constant 0 : index
    %14 = vector.load %arg3[%c0_5, %c0_6] : memref<1x128xf32, #tpu.memory_space<vmem>>, vector<1x128xf32>
    %15 = vector.shape_cast %14 : vector<1x128xf32> to vector<1x128xf32>
    %16 = vector.broadcast %15 : vector<1x128xf32> to vector<64x128xf32>
    %c0_7 = arith.constant 0 : index
    %c0_8 = arith.constant 0 : index
    %17 = vector.load %arg7[%c0_7, %c0_8] : memref<408x128xf32, #tpu.memory_space<vmem>>, vector<64x128xf32>
    %18 = vector.broadcast %5 : vector<1x128xf32> to vector<64x128xf32>
    %19 = arith.mulf %17, %18 : vector<64x128xf32>
    %20 = arith.addf %16, %19 : vector<64x128xf32>
    %c1 = arith.constant 1 : index
    %c0_9 = arith.constant 0 : index
    %21 = vector.load %arg7[%c1, %c0_9] : memref<408x128xf32, #tpu.memory_space<vmem>>, vector<64x128xf32>
    %22 = vector.broadcast %6 : vector<1x128xf32> to vector<64x128xf32>
    %23 = arith.mulf %21, %22 : vector<64x128xf32>
    %24 = arith.addf %20, %23 : vector<64x128xf32>
    %c2 = arith.constant 2 : index
    %c0_10 = arith.constant 0 : index
    %25 = vector.load %arg7[%c2, %c0_10] : memref<408x128xf32, #tpu.memory_space<vmem>>, vector<64x128xf32>
    %26 = vector.broadcast %7 : vector<1x128xf32> to vector<64x128xf32>
    %27 = arith.mulf %25, %26 : vector<64x128xf32>
    %28 = arith.addf %24, %27 : vector<64x128xf32>
    %c18 = arith.constant 18 : index
    %c0_11 = arith.constant 0 : index
    %29 = vector.load %arg7[%c18, %c0_11] : memref<408x128xf32, #tpu.memory_space<vmem>>, vector<64x128xf32>
    %30 = vector.broadcast %8 : vector<1x128xf32> to vector<64x128xf32>
    %31 = arith.mulf %29, %30 : vector<64x128xf32>
    %32 = arith.addf %28, %31 : vector<64x128xf32>
    %c19 = arith.constant 19 : index
    %c0_12 = arith.constant 0 : index
    %33 = vector.load %arg7[%c19, %c0_12] : memref<408x128xf32, #tpu.memory_space<vmem>>, vector<64x128xf32>
    %34 = vector.broadcast %9 : vector<1x128xf32> to vector<64x128xf32>
    %35 = arith.mulf %33, %34 : vector<64x128xf32>
    %36 = arith.addf %32, %35 : vector<64x128xf32>
    %c20 = arith.constant 20 : index
    %c0_13 = arith.constant 0 : index
    %37 = vector.load %arg7[%c20, %c0_13] : memref<408x128xf32, #tpu.memory_space<vmem>>, vector<64x128xf32>
    %38 = vector.broadcast %10 : vector<1x128xf32> to vector<64x128xf32>
    %39 = arith.mulf %37, %38 : vector<64x128xf32>
    %40 = arith.addf %36, %39 : vector<64x128xf32>
    %c36 = arith.constant 36 : index
    %c0_14 = arith.constant 0 : index
    %41 = vector.load %arg7[%c36, %c0_14] : memref<408x128xf32, #tpu.memory_space<vmem>>, vector<64x128xf32>
    %42 = vector.broadcast %11 : vector<1x128xf32> to vector<64x128xf32>
    %43 = arith.mulf %41, %42 : vector<64x128xf32>
    %44 = arith.addf %40, %43 : vector<64x128xf32>
    %c37 = arith.constant 37 : index
    %c0_15 = arith.constant 0 : index
    %45 = vector.load %arg7[%c37, %c0_15] : memref<408x128xf32, #tpu.memory_space<vmem>>, vector<64x128xf32>
    %46 = vector.broadcast %12 : vector<1x128xf32> to vector<64x128xf32>
    %47 = arith.mulf %45, %46 : vector<64x128xf32>
    %48 = arith.addf %44, %47 : vector<64x128xf32>
    %c38 = arith.constant 38 : index
    %c0_16 = arith.constant 0 : index
    %49 = vector.load %arg7[%c38, %c0_16] : memref<408x128xf32, #tpu.memory_space<vmem>>, vector<64x128xf32>
    %50 = vector.broadcast %13 : vector<1x128xf32> to vector<64x128xf32>
    %51 = arith.mulf %49, %50 : vector<64x128xf32>
    %52 = arith.addf %48, %51 : vector<64x128xf32>
    %53 = tpu.iota {dimensions = array<i32: 0>} : vector<64x1xi32>
    %c-19_i32 = arith.constant -19 : i32
    %54 = vector.broadcast %c-19_i32 : i32 to vector<64x1xi32>
    %55 = arith.addi %53, %54 : vector<64x1xi32>
    %56 = arith.sitofp %55 : vector<64x1xi32> to vector<64x1xf32>
    %cst = arith.constant 5.000000e-01 : f32
    %57 = vector.broadcast %cst : f32 to vector<64x1xf32>
    %58 = arith.addf %56, %57 : vector<64x1xf32>
    %cst_17 = arith.constant 0.055555556 : f32
    %59 = vector.broadcast %cst_17 : f32 to vector<64x1xf32>
    %60 = arith.mulf %58, %59 : vector<64x1xf32>
    %61 = math.floor %60 : vector<64x1xf32>
    %cst_18 = arith.constant 1.800000e+01 : f32
    %62 = vector.broadcast %cst_18 : f32 to vector<64x1xf32>
    %63 = arith.mulf %61, %62 : vector<64x1xf32>
    %64 = arith.subf %56, %63 : vector<64x1xf32>
    %cst_19 = arith.constant 0.000000e+00 : f32
    %65 = vector.broadcast %cst_19 : f32 to vector<64x1xf32>
    %66 = arith.cmpf oge, %56, %65 : vector<64x1xf32>
    %cst_20 = arith.constant 3.240000e+02 : f32
    %67 = vector.broadcast %cst_20 : f32 to vector<64x1xf32>
    %68 = arith.cmpf olt, %56, %67 : vector<64x1xf32>
    %69 = arith.andi %66, %68 : vector<64x1xi1>
    %cst_21 = arith.constant 1.000000e+00 : f32
    %70 = vector.broadcast %cst_21 : f32 to vector<64x1xf32>
    %71 = arith.cmpf oge, %61, %70 : vector<64x1xf32>
    %72 = arith.andi %69, %71 : vector<64x1xi1>
    %cst_22 = arith.constant 1.600000e+01 : f32
    %73 = vector.broadcast %cst_22 : f32 to vector<64x1xf32>
    %74 = arith.cmpf ole, %61, %73 : vector<64x1xf32>
    %75 = arith.andi %72, %74 : vector<64x1xi1>
    %cst_23 = arith.constant 1.000000e+00 : f32
    %76 = vector.broadcast %cst_23 : f32 to vector<64x1xf32>
    %77 = arith.cmpf oge, %64, %76 : vector<64x1xf32>
    %78 = arith.andi %75, %77 : vector<64x1xi1>
    %cst_24 = arith.constant 1.600000e+01 : f32
    %79 = vector.broadcast %cst_24 : f32 to vector<64x1xf32>
    %80 = arith.cmpf ole, %64, %79 : vector<64x1xf32>
    %81 = arith.andi %78, %80 : vector<64x1xi1>
    %cst_25 = arith.constant 0.000000e+00 : f32
    %82 = vector.broadcast %cst_25 : f32 to vector<64x128xf32>
    %83 = arith.maximumf %52, %82 : vector<64x128xf32>
    %cst_26 = arith.constant 0.000000e+00 : f32
    %84 = vector.shape_cast %81 : vector<64x1xi1> to vector<64x1xi1>
    %85 = vector.broadcast %84 : vector<64x1xi1> to vector<64x128xi1>
    %86 = vector.broadcast %cst_26 : f32 to vector<64x128xf32>
    %87 = arith.select %85, %83, %86 : vector<64x128xi1>, vector<64x128xf32>
    %88 = arith.truncf %87 : vector<64x128xf32> to vector<64x128xbf16>
    %c0_27 = arith.constant 0 : index
    %c0_28 = arith.constant 0 : index
    %89 = vector.load %arg8[%c0_27, %c0_28] : memref<368x128xbf16, #tpu.memory_space<vmem>>, vector<64x128xbf16>
    tpu.vector_store %arg8[%c0_27, %c0_28], %88 {strides = array<i32>} : memref<368x128xbf16, #tpu.memory_space<vmem>>, vector<64x128xbf16>,
    %90 = vector.shape_cast %14 : vector<1x128xf32> to vector<1x128xf32>
    %91 = vector.broadcast %90 : vector<1x128xf32> to vector<64x128xf32>
    %c64 = arith.constant 64 : index
    %c0_29 = arith.constant 0 : index
    %92 = vector.load %arg7[%c64, %c0_29] : memref<408x128xf32, #tpu.memory_space<vmem>>, vector<64x128xf32>
    %93 = vector.broadcast %5 : vector<1x128xf32> to vector<64x128xf32>
    %94 = arith.mulf %92, %93 : vector<64x128xf32>
    %95 = arith.addf %91, %94 : vector<64x128xf32>
    %c65 = arith.constant 65 : index
    %c0_30 = arith.constant 0 : index
    %96 = vector.load %arg7[%c65, %c0_30] : memref<408x128xf32, #tpu.memory_space<vmem>>, vector<64x128xf32>
    %97 = vector.broadcast %6 : vector<1x128xf32> to vector<64x128xf32>
    %98 = arith.mulf %96, %97 : vector<64x128xf32>
    %99 = arith.addf %95, %98 : vector<64x128xf32>
    %c66 = arith.constant 66 : index
    %c0_31 = arith.constant 0 : index
    %100 = vector.load %arg7[%c66, %c0_31] : memref<408x128xf32, #tpu.memory_space<vmem>>, vector<64x128xf32>
    %101 = vector.broadcast %7 : vector<1x128xf32> to vector<64x128xf32>
    %102 = arith.mulf %100, %101 : vector<64x128xf32>
    %103 = arith.addf %99, %102 : vector<64x128xf32>
    %c82 = arith.constant 82 : index
    %c0_32 = arith.constant 0 : index
    %104 = vector.load %arg7[%c82, %c0_32] : memref<408x128xf32, #tpu.memory_space<vmem>>, vector<64x128xf32>
    %105 = vector.broadcast %8 : vector<1x128xf32> to vector<64x128xf32>
    %106 = arith.mulf %104, %105 : vector<64x128xf32>
    %107 = arith.addf %103, %106 : vector<64x128xf32>
    %c83 = arith.constant 83 : index
    %c0_33 = arith.constant 0 : index
    %108 = vector.load %arg7[%c83, %c0_33] : memref<408x128xf32, #tpu.memory_space<vmem>>, vector<64x128xf32>
    %109 = vector.broadcast %9 : vector<1x128xf32> to vector<64x128xf32>
    %110 = arith.mulf %108, %109 : vector<64x128xf32>
    %111 = arith.addf %107, %110 : vector<64x128xf32>
    %c84 = arith.constant 84 : index
    %c0_34 = arith.constant 0 : index
    %112 = vector.load %arg7[%c84, %c0_34] : memref<408x128xf32, #tpu.memory_space<vmem>>, vector<64x128xf32>
    %113 = vector.broadcast %10 : vector<1x128xf32> to vector<64x128xf32>
    %114 = arith.mulf %112, %113 : vector<64x128xf32>
    %115 = arith.addf %111, %114 : vector<64x128xf32>
    %c100 = arith.constant 100 : index
    %c0_35 = arith.constant 0 : index
    %116 = vector.load %arg7[%c100, %c0_35] : memref<408x128xf32, #tpu.memory_space<vmem>>, vector<64x128xf32>
    %117 = vector.broadcast %11 : vector<1x128xf32> to vector<64x128xf32>
    %118 = arith.mulf %116, %117 : vector<64x128xf32>
    %119 = arith.addf %115, %118 : vector<64x128xf32>
    %c101 = arith.constant 101 : index
    %c0_36 = arith.constant 0 : index
    %120 = vector.load %arg7[%c101, %c0_36] : memref<408x128xf32, #tpu.memory_space<vmem>>, vector<64x128xf32>
    %121 = vector.broadcast %12 : vector<1x128xf32> to vector<64x128xf32>
    %122 = arith.mulf %120, %121 : vector<64x128xf32>
    %123 = arith.addf %119, %122 : vector<64x128xf32>
    %c102 = arith.constant 102 : index
    %c0_37 = arith.constant 0 : index
    %124 = vector.load %arg7[%c102, %c0_37] : memref<408x128xf32, #tpu.memory_space<vmem>>, vector<64x128xf32>
    %125 = vector.broadcast %13 : vector<1x128xf32> to vector<64x128xf32>
    %126 = arith.mulf %124, %125 : vector<64x128xf32>
    %127 = arith.addf %123, %126 : vector<64x128xf32>
    %128 = tpu.iota {dimensions = array<i32: 0>} : vector<64x1xi32>
    %c45_i32 = arith.constant 45 : i32
    %129 = vector.broadcast %c45_i32 : i32 to vector<64x1xi32>
    %130 = arith.addi %128, %129 : vector<64x1xi32>
    %131 = arith.sitofp %130 : vector<64x1xi32> to vector<64x1xf32>
    %cst_38 = arith.constant 5.000000e-01 : f32
    %132 = vector.broadcast %cst_38 : f32 to vector<64x1xf32>
    %133 = arith.addf %131, %132 : vector<64x1xf32>
    %cst_39 = arith.constant 0.055555556 : f32
    %134 = vector.broadcast %cst_39 : f32 to vector<64x1xf32>
    %135 = arith.mulf %133, %134 : vector<64x1xf32>
    %136 = math.floor %135 : vector<64x1xf32>
    %cst_40 = arith.constant 1.800000e+01 : f32
    %137 = vector.broadcast %cst_40 : f32 to vector<64x1xf32>
    %138 = arith.mulf %136, %137 : vector<64x1xf32>
    %139 = arith.subf %131, %138 : vector<64x1xf32>
    %cst_41 = arith.constant 0.000000e+00 : f32
    %140 = vector.broadcast %cst_41 : f32 to vector<64x1xf32>
    %141 = arith.cmpf oge, %131, %140 : vector<64x1xf32>
    %cst_42 = arith.constant 3.240000e+02 : f32
    %142 = vector.broadcast %cst_42 : f32 to vector<64x1xf32>
    %143 = arith.cmpf olt, %131, %142 : vector<64x1xf32>
    %144 = arith.andi %141, %143 : vector<64x1xi1>
    %cst_43 = arith.constant 1.000000e+00 : f32
    %145 = vector.broadcast %cst_43 : f32 to vector<64x1xf32>
    %146 = arith.cmpf oge, %136, %145 : vector<64x1xf32>
    %147 = arith.andi %144, %146 : vector<64x1xi1>
    %cst_44 = arith.constant 1.600000e+01 : f32
    %148 = vector.broadcast %cst_44 : f32 to vector<64x1xf32>
    %149 = arith.cmpf ole, %136, %148 : vector<64x1xf32>
    %150 = arith.andi %147, %149 : vector<64x1xi1>
    %cst_45 = arith.constant 1.000000e+00 : f32
    %151 = vector.broadcast %cst_45 : f32 to vector<64x1xf32>
    %152 = arith.cmpf oge, %139, %151 : vector<64x1xf32>
    %153 = arith.andi %150, %152 : vector<64x1xi1>
    %cst_46 = arith.constant 1.600000e+01 : f32
    %154 = vector.broadcast %cst_46 : f32 to vector<64x1xf32>
    %155 = arith.cmpf ole, %139, %154 : vector<64x1xf32>
    %156 = arith.andi %153, %155 : vector<64x1xi1>
    %cst_47 = arith.constant 0.000000e+00 : f32
    %157 = vector.broadcast %cst_47 : f32 to vector<64x128xf32>
    %158 = arith.maximumf %127, %157 : vector<64x128xf32>
    %cst_48 = arith.constant 0.000000e+00 : f32
    %159 = vector.shape_cast %156 : vector<64x1xi1> to vector<64x1xi1>
    %160 = vector.broadcast %159 : vector<64x1xi1> to vector<64x128xi1>
    %161 = vector.broadcast %cst_48 : f32 to vector<64x128xf32>
    %162 = arith.select %160, %158, %161 : vector<64x128xi1>, vector<64x128xf32>
    %163 = arith.truncf %162 : vector<64x128xf32> to vector<64x128xbf16>
    %c64_49 = arith.constant 64 : index
    %c0_50 = arith.constant 0 : index
    %164 = vector.load %arg8[%c64_49, %c0_50] : memref<368x128xbf16, #tpu.memory_space<vmem>>, vector<64x128xbf16>
    tpu.vector_store %arg8[%c64_49, %c0_50], %163 {strides = array<i32>} : memref<368x128xbf16, #tpu.memory_space<vmem>>, vector<64x128xbf16>,
    %165 = vector.shape_cast %14 : vector<1x128xf32> to vector<1x128xf32>
    %166 = vector.broadcast %165 : vector<1x128xf32> to vector<64x128xf32>
    %c128 = arith.constant 128 : index
    %c0_51 = arith.constant 0 : index
    %167 = vector.load %arg7[%c128, %c0_51] : memref<408x128xf32, #tpu.memory_space<vmem>>, vector<64x128xf32>
    %168 = vector.broadcast %5 : vector<1x128xf32> to vector<64x128xf32>
    %169 = arith.mulf %167, %168 : vector<64x128xf32>
    %170 = arith.addf %166, %169 : vector<64x128xf32>
    %c129 = arith.constant 129 : index
    %c0_52 = arith.constant 0 : index
    %171 = vector.load %arg7[%c129, %c0_52] : memref<408x128xf32, #tpu.memory_space<vmem>>, vector<64x128xf32>
    %172 = vector.broadcast %6 : vector<1x128xf32> to vector<64x128xf32>
    %173 = arith.mulf %171, %172 : vector<64x128xf32>
    %174 = arith.addf %170, %173 : vector<64x128xf32>
    %c130 = arith.constant 130 : index
    %c0_53 = arith.constant 0 : index
    %175 = vector.load %arg7[%c130, %c0_53] : memref<408x128xf32, #tpu.memory_space<vmem>>, vector<64x128xf32>
    %176 = vector.broadcast %7 : vector<1x128xf32> to vector<64x128xf32>
    %177 = arith.mulf %175, %176 : vector<64x128xf32>
    %178 = arith.addf %174, %177 : vector<64x128xf32>
    %c146 = arith.constant 146 : index
    %c0_54 = arith.constant 0 : index
    %179 = vector.load %arg7[%c146, %c0_54] : memref<408x128xf32, #tpu.memory_space<vmem>>, vector<64x128xf32>
    %180 = vector.broadcast %8 : vector<1x128xf32> to vector<64x128xf32>
    %181 = arith.mulf %179, %180 : vector<64x128xf32>
    %182 = arith.addf %178, %181 : vector<64x128xf32>
    %c147 = arith.constant 147 : index
    %c0_55 = arith.constant 0 : index
    %183 = vector.load %arg7[%c147, %c0_55] : memref<408x128xf32, #tpu.memory_space<vmem>>, vector<64x128xf32>
    %184 = vector.broadcast %9 : vector<1x128xf32> to vector<64x128xf32>
    %185 = arith.mulf %183, %184 : vector<64x128xf32>
    %186 = arith.addf %182, %185 : vector<64x128xf32>
    %c148 = arith.constant 148 : index
    %c0_56 = arith.constant 0 : index
    %187 = vector.load %arg7[%c148, %c0_56] : memref<408x128xf32, #tpu.memory_space<vmem>>, vector<64x128xf32>
    %188 = vector.broadcast %10 : vector<1x128xf32> to vector<64x128xf32>
    %189 = arith.mulf %187, %188 : vector<64x128xf32>
    %190 = arith.addf %186, %189 : vector<64x128xf32>
    %c164 = arith.constant 164 : index
    %c0_57 = arith.constant 0 : index
    %191 = vector.load %arg7[%c164, %c0_57] : memref<408x128xf32, #tpu.memory_space<vmem>>, vector<64x128xf32>
    %192 = vector.broadcast %11 : vector<1x128xf32> to vector<64x128xf32>
    %193 = arith.mulf %191, %192 : vector<64x128xf32>
    %194 = arith.addf %190, %193 : vector<64x128xf32>
    %c165 = arith.constant 165 : index
    %c0_58 = arith.constant 0 : index
    %195 = vector.load %arg7[%c165, %c0_58] : memref<408x128xf32, #tpu.memory_space<vmem>>, vector<64x128xf32>
    %196 = vector.broadcast %12 : vector<1x128xf32> to vector<64x128xf32>
    %197 = arith.mulf %195, %196 : vector<64x128xf32>
    %198 = arith.addf %194, %197 : vector<64x128xf32>
    %c166 = arith.constant 166 : index
    %c0_59 = arith.constant 0 : index
    %199 = vector.load %arg7[%c166, %c0_59] : memref<408x128xf32, #tpu.memory_space<vmem>>, vector<64x128xf32>
    %200 = vector.broadcast %13 : vector<1x128xf32> to vector<64x128xf32>
    %201 = arith.mulf %199, %200 : vector<64x128xf32>
    %202 = arith.addf %198, %201 : vector<64x128xf32>
    %203 = tpu.iota {dimensions = array<i32: 0>} : vector<64x1xi32>
    %c109_i32 = arith.constant 109 : i32
    %204 = vector.broadcast %c109_i32 : i32 to vector<64x1xi32>
    %205 = arith.addi %203, %204 : vector<64x1xi32>
    %206 = arith.sitofp %205 : vector<64x1xi32> to vector<64x1xf32>
    %cst_60 = arith.constant 5.000000e-01 : f32
    %207 = vector.broadcast %cst_60 : f32 to vector<64x1xf32>
    %208 = arith.addf %206, %207 : vector<64x1xf32>
    %cst_61 = arith.constant 0.055555556 : f32
    %209 = vector.broadcast %cst_61 : f32 to vector<64x1xf32>
    %210 = arith.mulf %208, %209 : vector<64x1xf32>
    %211 = math.floor %210 : vector<64x1xf32>
    %cst_62 = arith.constant 1.800000e+01 : f32
    %212 = vector.broadcast %cst_62 : f32 to vector<64x1xf32>
    %213 = arith.mulf %211, %212 : vector<64x1xf32>
    %214 = arith.subf %206, %213 : vector<64x1xf32>
    %cst_63 = arith.constant 0.000000e+00 : f32
    %215 = vector.broadcast %cst_63 : f32 to vector<64x1xf32>
    %216 = arith.cmpf oge, %206, %215 : vector<64x1xf32>
    %cst_64 = arith.constant 3.240000e+02 : f32
    %217 = vector.broadcast %cst_64 : f32 to vector<64x1xf32>
    %218 = arith.cmpf olt, %206, %217 : vector<64x1xf32>
    %219 = arith.andi %216, %218 : vector<64x1xi1>
    %cst_65 = arith.constant 1.000000e+00 : f32
    %220 = vector.broadcast %cst_65 : f32 to vector<64x1xf32>
    %221 = arith.cmpf oge, %211, %220 : vector<64x1xf32>
    %222 = arith.andi %219, %221 : vector<64x1xi1>
    %cst_66 = arith.constant 1.600000e+01 : f32
    %223 = vector.broadcast %cst_66 : f32 to vector<64x1xf32>
    %224 = arith.cmpf ole, %211, %223 : vector<64x1xf32>
    %225 = arith.andi %222, %224 : vector<64x1xi1>
    %cst_67 = arith.constant 1.000000e+00 : f32
    %226 = vector.broadcast %cst_67 : f32 to vector<64x1xf32>
    %227 = arith.cmpf oge, %214, %226 : vector<64x1xf32>
    %228 = arith.andi %225, %227 : vector<64x1xi1>
    %cst_68 = arith.constant 1.600000e+01 : f32
    %229 = vector.broadcast %cst_68 : f32 to vector<64x1xf32>
    %230 = arith.cmpf ole, %214, %229 : vector<64x1xf32>
    %231 = arith.andi %228, %230 : vector<64x1xi1>
    %cst_69 = arith.constant 0.000000e+00 : f32
    %232 = vector.broadcast %cst_69 : f32 to vector<64x128xf32>
    %233 = arith.maximumf %202, %232 : vector<64x128xf32>
    %cst_70 = arith.constant 0.000000e+00 : f32
    %234 = vector.shape_cast %231 : vector<64x1xi1> to vector<64x1xi1>
    %235 = vector.broadcast %234 : vector<64x1xi1> to vector<64x128xi1>
    %236 = vector.broadcast %cst_70 : f32 to vector<64x128xf32>
    %237 = arith.select %235, %233, %236 : vector<64x128xi1>, vector<64x128xf32>
    %238 = arith.truncf %237 : vector<64x128xf32> to vector<64x128xbf16>
    %c128_71 = arith.constant 128 : index
    %c0_72 = arith.constant 0 : index
    %239 = vector.load %arg8[%c128_71, %c0_72] : memref<368x128xbf16, #tpu.memory_space<vmem>>, vector<64x128xbf16>
    tpu.vector_store %arg8[%c128_71, %c0_72], %238 {strides = array<i32>} : memref<368x128xbf16, #tpu.memory_space<vmem>>, vector<64x128xbf16>,
    %240 = vector.shape_cast %14 : vector<1x128xf32> to vector<1x128xf32>
    %241 = vector.broadcast %240 : vector<1x128xf32> to vector<64x128xf32>
    %c192 = arith.constant 192 : index
    %c0_73 = arith.constant 0 : index
    %242 = vector.load %arg7[%c192, %c0_73] : memref<408x128xf32, #tpu.memory_space<vmem>>, vector<64x128xf32>
    %243 = vector.broadcast %5 : vector<1x128xf32> to vector<64x128xf32>
    %244 = arith.mulf %242, %243 : vector<64x128xf32>
    %245 = arith.addf %241, %244 : vector<64x128xf32>
    %c193 = arith.constant 193 : index
    %c0_74 = arith.constant 0 : index
    %246 = vector.load %arg7[%c193, %c0_74] : memref<408x128xf32, #tpu.memory_space<vmem>>, vector<64x128xf32>
    %247 = vector.broadcast %6 : vector<1x128xf32> to vector<64x128xf32>
    %248 = arith.mulf %246, %247 : vector<64x128xf32>
    %249 = arith.addf %245, %248 : vector<64x128xf32>
    %c194 = arith.constant 194 : index
    %c0_75 = arith.constant 0 : index
    %250 = vector.load %arg7[%c194, %c0_75] : memref<408x128xf32, #tpu.memory_space<vmem>>, vector<64x128xf32>
    %251 = vector.broadcast %7 : vector<1x128xf32> to vector<64x128xf32>
    %252 = arith.mulf %250, %251 : vector<64x128xf32>
    %253 = arith.addf %249, %252 : vector<64x128xf32>
    %c210 = arith.constant 210 : index
    %c0_76 = arith.constant 0 : index
    %254 = vector.load %arg7[%c210, %c0_76] : memref<408x128xf32, #tpu.memory_space<vmem>>, vector<64x128xf32>
    %255 = vector.broadcast %8 : vector<1x128xf32> to vector<64x128xf32>
    %256 = arith.mulf %254, %255 : vector<64x128xf32>
    %257 = arith.addf %253, %256 : vector<64x128xf32>
    %c211 = arith.constant 211 : index
    %c0_77 = arith.constant 0 : index
    %258 = vector.load %arg7[%c211, %c0_77] : memref<408x128xf32, #tpu.memory_space<vmem>>, vector<64x128xf32>
    %259 = vector.broadcast %9 : vector<1x128xf32> to vector<64x128xf32>
    %260 = arith.mulf %258, %259 : vector<64x128xf32>
    %261 = arith.addf %257, %260 : vector<64x128xf32>
    %c212 = arith.constant 212 : index
    %c0_78 = arith.constant 0 : index
    %262 = vector.load %arg7[%c212, %c0_78] : memref<408x128xf32, #tpu.memory_space<vmem>>, vector<64x128xf32>
    %263 = vector.broadcast %10 : vector<1x128xf32> to vector<64x128xf32>
    %264 = arith.mulf %262, %263 : vector<64x128xf32>
    %265 = arith.addf %261, %264 : vector<64x128xf32>
    %c228 = arith.constant 228 : index
    %c0_79 = arith.constant 0 : index
    %266 = vector.load %arg7[%c228, %c0_79] : memref<408x128xf32, #tpu.memory_space<vmem>>, vector<64x128xf32>
    %267 = vector.broadcast %11 : vector<1x128xf32> to vector<64x128xf32>
    %268 = arith.mulf %266, %267 : vector<64x128xf32>
    %269 = arith.addf %265, %268 : vector<64x128xf32>
    %c229 = arith.constant 229 : index
    %c0_80 = arith.constant 0 : index
    %270 = vector.load %arg7[%c229, %c0_80] : memref<408x128xf32, #tpu.memory_space<vmem>>, vector<64x128xf32>
    %271 = vector.broadcast %12 : vector<1x128xf32> to vector<64x128xf32>
    %272 = arith.mulf %270, %271 : vector<64x128xf32>
    %273 = arith.addf %269, %272 : vector<64x128xf32>
    %c230 = arith.constant 230 : index
    %c0_81 = arith.constant 0 : index
    %274 = vector.load %arg7[%c230, %c0_81] : memref<408x128xf32, #tpu.memory_space<vmem>>, vector<64x128xf32>
    %275 = vector.broadcast %13 : vector<1x128xf32> to vector<64x128xf32>
    %276 = arith.mulf %274, %275 : vector<64x128xf32>
    %277 = arith.addf %273, %276 : vector<64x128xf32>
    %278 = tpu.iota {dimensions = array<i32: 0>} : vector<64x1xi32>
    %c173_i32 = arith.constant 173 : i32
    %279 = vector.broadcast %c173_i32 : i32 to vector<64x1xi32>
    %280 = arith.addi %278, %279 : vector<64x1xi32>
    %281 = arith.sitofp %280 : vector<64x1xi32> to vector<64x1xf32>
    %cst_82 = arith.constant 5.000000e-01 : f32
    %282 = vector.broadcast %cst_82 : f32 to vector<64x1xf32>
    %283 = arith.addf %281, %282 : vector<64x1xf32>
    %cst_83 = arith.constant 0.055555556 : f32
    %284 = vector.broadcast %cst_83 : f32 to vector<64x1xf32>
    %285 = arith.mulf %283, %284 : vector<64x1xf32>
    %286 = math.floor %285 : vector<64x1xf32>
    %cst_84 = arith.constant 1.800000e+01 : f32
    %287 = vector.broadcast %cst_84 : f32 to vector<64x1xf32>
    %288 = arith.mulf %286, %287 : vector<64x1xf32>
    %289 = arith.subf %281, %288 : vector<64x1xf32>
    %cst_85 = arith.constant 0.000000e+00 : f32
    %290 = vector.broadcast %cst_85 : f32 to vector<64x1xf32>
    %291 = arith.cmpf oge, %281, %290 : vector<64x1xf32>
    %cst_86 = arith.constant 3.240000e+02 : f32
    %292 = vector.broadcast %cst_86 : f32 to vector<64x1xf32>
    %293 = arith.cmpf olt, %281, %292 : vector<64x1xf32>
    %294 = arith.andi %291, %293 : vector<64x1xi1>
    %cst_87 = arith.constant 1.000000e+00 : f32
    %295 = vector.broadcast %cst_87 : f32 to vector<64x1xf32>
    %296 = arith.cmpf oge, %286, %295 : vector<64x1xf32>
    %297 = arith.andi %294, %296 : vector<64x1xi1>
    %cst_88 = arith.constant 1.600000e+01 : f32
    %298 = vector.broadcast %cst_88 : f32 to vector<64x1xf32>
    %299 = arith.cmpf ole, %286, %298 : vector<64x1xf32>
    %300 = arith.andi %297, %299 : vector<64x1xi1>
    %cst_89 = arith.constant 1.000000e+00 : f32
    %301 = vector.broadcast %cst_89 : f32 to vector<64x1xf32>
    %302 = arith.cmpf oge, %289, %301 : vector<64x1xf32>
    %303 = arith.andi %300, %302 : vector<64x1xi1>
    %cst_90 = arith.constant 1.600000e+01 : f32
    %304 = vector.broadcast %cst_90 : f32 to vector<64x1xf32>
    %305 = arith.cmpf ole, %289, %304 : vector<64x1xf32>
    %306 = arith.andi %303, %305 : vector<64x1xi1>
    %cst_91 = arith.constant 0.000000e+00 : f32
    %307 = vector.broadcast %cst_91 : f32 to vector<64x128xf32>
    %308 = arith.maximumf %277, %307 : vector<64x128xf32>
    %cst_92 = arith.constant 0.000000e+00 : f32
    %309 = vector.shape_cast %306 : vector<64x1xi1> to vector<64x1xi1>
    %310 = vector.broadcast %309 : vector<64x1xi1> to vector<64x128xi1>
    %311 = vector.broadcast %cst_92 : f32 to vector<64x128xf32>
    %312 = arith.select %310, %308, %311 : vector<64x128xi1>, vector<64x128xf32>
    %313 = arith.truncf %312 : vector<64x128xf32> to vector<64x128xbf16>
    %c192_93 = arith.constant 192 : index
    %c0_94 = arith.constant 0 : index
    %314 = vector.load %arg8[%c192_93, %c0_94] : memref<368x128xbf16, #tpu.memory_space<vmem>>, vector<64x128xbf16>
    tpu.vector_store %arg8[%c192_93, %c0_94], %313 {strides = array<i32>} : memref<368x128xbf16, #tpu.memory_space<vmem>>, vector<64x128xbf16>,
    %315 = vector.shape_cast %14 : vector<1x128xf32> to vector<1x128xf32>
    %316 = vector.broadcast %315 : vector<1x128xf32> to vector<64x128xf32>
    %c256 = arith.constant 256 : index
    %c0_95 = arith.constant 0 : index
    %317 = vector.load %arg7[%c256, %c0_95] : memref<408x128xf32, #tpu.memory_space<vmem>>, vector<64x128xf32>
    %318 = vector.broadcast %5 : vector<1x128xf32> to vector<64x128xf32>
    %319 = arith.mulf %317, %318 : vector<64x128xf32>
    %320 = arith.addf %316, %319 : vector<64x128xf32>
    %c257 = arith.constant 257 : index
    %c0_96 = arith.constant 0 : index
    %321 = vector.load %arg7[%c257, %c0_96] : memref<408x128xf32, #tpu.memory_space<vmem>>, vector<64x128xf32>
    %322 = vector.broadcast %6 : vector<1x128xf32> to vector<64x128xf32>
    %323 = arith.mulf %321, %322 : vector<64x128xf32>
    %324 = arith.addf %320, %323 : vector<64x128xf32>
    %c258 = arith.constant 258 : index
    %c0_97 = arith.constant 0 : index
    %325 = vector.load %arg7[%c258, %c0_97] : memref<408x128xf32, #tpu.memory_space<vmem>>, vector<64x128xf32>
    %326 = vector.broadcast %7 : vector<1x128xf32> to vector<64x128xf32>
    %327 = arith.mulf %325, %326 : vector<64x128xf32>
    %328 = arith.addf %324, %327 : vector<64x128xf32>
    %c274 = arith.constant 274 : index
    %c0_98 = arith.constant 0 : index
    %329 = vector.load %arg7[%c274, %c0_98] : memref<408x128xf32, #tpu.memory_space<vmem>>, vector<64x128xf32>
    %330 = vector.broadcast %8 : vector<1x128xf32> to vector<64x128xf32>
    %331 = arith.mulf %329, %330 : vector<64x128xf32>
    %332 = arith.addf %328, %331 : vector<64x128xf32>
    %c275 = arith.constant 275 : index
    %c0_99 = arith.constant 0 : index
    %333 = vector.load %arg7[%c275, %c0_99] : memref<408x128xf32, #tpu.memory_space<vmem>>, vector<64x128xf32>
    %334 = vector.broadcast %9 : vector<1x128xf32> to vector<64x128xf32>
    %335 = arith.mulf %333, %334 : vector<64x128xf32>
    %336 = arith.addf %332, %335 : vector<64x128xf32>
    %c276 = arith.constant 276 : index
    %c0_100 = arith.constant 0 : index
    %337 = vector.load %arg7[%c276, %c0_100] : memref<408x128xf32, #tpu.memory_space<vmem>>, vector<64x128xf32>
    %338 = vector.broadcast %10 : vector<1x128xf32> to vector<64x128xf32>
    %339 = arith.mulf %337, %338 : vector<64x128xf32>
    %340 = arith.addf %336, %339 : vector<64x128xf32>
    %c292 = arith.constant 292 : index
    %c0_101 = arith.constant 0 : index
    %341 = vector.load %arg7[%c292, %c0_101] : memref<408x128xf32, #tpu.memory_space<vmem>>, vector<64x128xf32>
    %342 = vector.broadcast %11 : vector<1x128xf32> to vector<64x128xf32>
    %343 = arith.mulf %341, %342 : vector<64x128xf32>
    %344 = arith.addf %340, %343 : vector<64x128xf32>
    %c293 = arith.constant 293 : index
    %c0_102 = arith.constant 0 : index
    %345 = vector.load %arg7[%c293, %c0_102] : memref<408x128xf32, #tpu.memory_space<vmem>>, vector<64x128xf32>
    %346 = vector.broadcast %12 : vector<1x128xf32> to vector<64x128xf32>
    %347 = arith.mulf %345, %346 : vector<64x128xf32>
    %348 = arith.addf %344, %347 : vector<64x128xf32>
    %c294 = arith.constant 294 : index
    %c0_103 = arith.constant 0 : index
    %349 = vector.load %arg7[%c294, %c0_103] : memref<408x128xf32, #tpu.memory_space<vmem>>, vector<64x128xf32>
    %350 = vector.broadcast %13 : vector<1x128xf32> to vector<64x128xf32>
    %351 = arith.mulf %349, %350 : vector<64x128xf32>
    %352 = arith.addf %348, %351 : vector<64x128xf32>
    %353 = tpu.iota {dimensions = array<i32: 0>} : vector<64x1xi32>
    %c237_i32 = arith.constant 237 : i32
    %354 = vector.broadcast %c237_i32 : i32 to vector<64x1xi32>
    %355 = arith.addi %353, %354 : vector<64x1xi32>
    %356 = arith.sitofp %355 : vector<64x1xi32> to vector<64x1xf32>
    %cst_104 = arith.constant 5.000000e-01 : f32
    %357 = vector.broadcast %cst_104 : f32 to vector<64x1xf32>
    %358 = arith.addf %356, %357 : vector<64x1xf32>
    %cst_105 = arith.constant 0.055555556 : f32
    %359 = vector.broadcast %cst_105 : f32 to vector<64x1xf32>
    %360 = arith.mulf %358, %359 : vector<64x1xf32>
    %361 = math.floor %360 : vector<64x1xf32>
    %cst_106 = arith.constant 1.800000e+01 : f32
    %362 = vector.broadcast %cst_106 : f32 to vector<64x1xf32>
    %363 = arith.mulf %361, %362 : vector<64x1xf32>
    %364 = arith.subf %356, %363 : vector<64x1xf32>
    %cst_107 = arith.constant 0.000000e+00 : f32
    %365 = vector.broadcast %cst_107 : f32 to vector<64x1xf32>
    %366 = arith.cmpf oge, %356, %365 : vector<64x1xf32>
    %cst_108 = arith.constant 3.240000e+02 : f32
    %367 = vector.broadcast %cst_108 : f32 to vector<64x1xf32>
    %368 = arith.cmpf olt, %356, %367 : vector<64x1xf32>
    %369 = arith.andi %366, %368 : vector<64x1xi1>
    %cst_109 = arith.constant 1.000000e+00 : f32
    %370 = vector.broadcast %cst_109 : f32 to vector<64x1xf32>
    %371 = arith.cmpf oge, %361, %370 : vector<64x1xf32>
    %372 = arith.andi %369, %371 : vector<64x1xi1>
    %cst_110 = arith.constant 1.600000e+01 : f32
    %373 = vector.broadcast %cst_110 : f32 to vector<64x1xf32>
    %374 = arith.cmpf ole, %361, %373 : vector<64x1xf32>
    %375 = arith.andi %372, %374 : vector<64x1xi1>
    %cst_111 = arith.constant 1.000000e+00 : f32
    %376 = vector.broadcast %cst_111 : f32 to vector<64x1xf32>
    %377 = arith.cmpf oge, %364, %376 : vector<64x1xf32>
    %378 = arith.andi %375, %377 : vector<64x1xi1>
    %cst_112 = arith.constant 1.600000e+01 : f32
    %379 = vector.broadcast %cst_112 : f32 to vector<64x1xf32>
    %380 = arith.cmpf ole, %364, %379 : vector<64x1xf32>
    %381 = arith.andi %378, %380 : vector<64x1xi1>
    %cst_113 = arith.constant 0.000000e+00 : f32
    %382 = vector.broadcast %cst_113 : f32 to vector<64x128xf32>
    %383 = arith.maximumf %352, %382 : vector<64x128xf32>
    %cst_114 = arith.constant 0.000000e+00 : f32
    %384 = vector.shape_cast %381 : vector<64x1xi1> to vector<64x1xi1>
    %385 = vector.broadcast %384 : vector<64x1xi1> to vector<64x128xi1>
    %386 = vector.broadcast %cst_114 : f32 to vector<64x128xf32>
    %387 = arith.select %385, %383, %386 : vector<64x128xi1>, vector<64x128xf32>
    %388 = arith.truncf %387 : vector<64x128xf32> to vector<64x128xbf16>
    %c256_115 = arith.constant 256 : index
    %c0_116 = arith.constant 0 : index
    %389 = vector.load %arg8[%c256_115, %c0_116] : memref<368x128xbf16, #tpu.memory_space<vmem>>, vector<64x128xbf16>
    tpu.vector_store %arg8[%c256_115, %c0_116], %388 {strides = array<i32>} : memref<368x128xbf16, #tpu.memory_space<vmem>>, vector<64x128xbf16>,
    %390 = vector.shape_cast %14 : vector<1x128xf32> to vector<1x128xf32>
    %391 = vector.broadcast %390 : vector<1x128xf32> to vector<48x128xf32>
    %c320 = arith.constant 320 : index
    %c0_117 = arith.constant 0 : index
    %392 = vector.load %arg7[%c320, %c0_117] : memref<408x128xf32, #tpu.memory_space<vmem>>, vector<48x128xf32>
    %393 = vector.broadcast %5 : vector<1x128xf32> to vector<48x128xf32>
    %394 = arith.mulf %392, %393 : vector<48x128xf32>
    %395 = arith.addf %391, %394 : vector<48x128xf32>
    %c321 = arith.constant 321 : index
    %c0_118 = arith.constant 0 : index
    %396 = vector.load %arg7[%c321, %c0_118] : memref<408x128xf32, #tpu.memory_space<vmem>>, vector<48x128xf32>
    %397 = vector.broadcast %6 : vector<1x128xf32> to vector<48x128xf32>
    %398 = arith.mulf %396, %397 : vector<48x128xf32>
    %399 = arith.addf %395, %398 : vector<48x128xf32>
    %c322 = arith.constant 322 : index
    %c0_119 = arith.constant 0 : index
    %400 = vector.load %arg7[%c322, %c0_119] : memref<408x128xf32, #tpu.memory_space<vmem>>, vector<48x128xf32>
    %401 = vector.broadcast %7 : vector<1x128xf32> to vector<48x128xf32>
    %402 = arith.mulf %400, %401 : vector<48x128xf32>
    %403 = arith.addf %399, %402 : vector<48x128xf32>
    %c338 = arith.constant 338 : index
    %c0_120 = arith.constant 0 : index
    %404 = vector.load %arg7[%c338, %c0_120] : memref<408x128xf32, #tpu.memory_space<vmem>>, vector<48x128xf32>
    %405 = vector.broadcast %8 : vector<1x128xf32> to vector<48x128xf32>
    %406 = arith.mulf %404, %405 : vector<48x128xf32>
    %407 = arith.addf %403, %406 : vector<48x128xf32>
    %c339 = arith.constant 339 : index
    %c0_121 = arith.constant 0 : index
    %408 = vector.load %arg7[%c339, %c0_121] : memref<408x128xf32, #tpu.memory_space<vmem>>, vector<48x128xf32>
    %409 = vector.broadcast %9 : vector<1x128xf32> to vector<48x128xf32>
    %410 = arith.mulf %408, %409 : vector<48x128xf32>
    %411 = arith.addf %407, %410 : vector<48x128xf32>
    %c340 = arith.constant 340 : index
    %c0_122 = arith.constant 0 : index
    %412 = vector.load %arg7[%c340, %c0_122] : memref<408x128xf32, #tpu.memory_space<vmem>>, vector<48x128xf32>
    %413 = vector.broadcast %10 : vector<1x128xf32> to vector<48x128xf32>
    %414 = arith.mulf %412, %413 : vector<48x128xf32>
    %415 = arith.addf %411, %414 : vector<48x128xf32>
    %c356 = arith.constant 356 : index
    %c0_123 = arith.constant 0 : index
    %416 = vector.load %arg7[%c356, %c0_123] : memref<408x128xf32, #tpu.memory_space<vmem>>, vector<48x128xf32>
    %417 = vector.broadcast %11 : vector<1x128xf32> to vector<48x128xf32>
    %418 = arith.mulf %416, %417 : vector<48x128xf32>
    %419 = arith.addf %415, %418 : vector<48x128xf32>
    %c357 = arith.constant 357 : index
    %c0_124 = arith.constant 0 : index
    %420 = vector.load %arg7[%c357, %c0_124] : memref<408x128xf32, #tpu.memory_space<vmem>>, vector<48x128xf32>
    %421 = vector.broadcast %12 : vector<1x128xf32> to vector<48x128xf32>
    %422 = arith.mulf %420, %421 : vector<48x128xf32>
    %423 = arith.addf %419, %422 : vector<48x128xf32>
    %c358 = arith.constant 358 : index
    %c0_125 = arith.constant 0 : index
    %424 = vector.load %arg7[%c358, %c0_125] : memref<408x128xf32, #tpu.memory_space<vmem>>, vector<48x128xf32>
    %425 = vector.broadcast %13 : vector<1x128xf32> to vector<48x128xf32>
    %426 = arith.mulf %424, %425 : vector<48x128xf32>
    %427 = arith.addf %423, %426 : vector<48x128xf32>
    %428 = tpu.iota {dimensions = array<i32: 0>} : vector<48x1xi32>
    %c301_i32 = arith.constant 301 : i32
    %429 = vector.broadcast %c301_i32 : i32 to vector<48x1xi32>
    %430 = arith.addi %428, %429 : vector<48x1xi32>
    %431 = arith.sitofp %430 : vector<48x1xi32> to vector<48x1xf32>
    %cst_126 = arith.constant 5.000000e-01 : f32
    %432 = vector.broadcast %cst_126 : f32 to vector<48x1xf32>
    %433 = arith.addf %431, %432 : vector<48x1xf32>
    %cst_127 = arith.constant 0.055555556 : f32
    %434 = vector.broadcast %cst_127 : f32 to vector<48x1xf32>
    %435 = arith.mulf %433, %434 : vector<48x1xf32>
    %436 = math.floor %435 : vector<48x1xf32>
    %cst_128 = arith.constant 1.800000e+01 : f32
    %437 = vector.broadcast %cst_128 : f32 to vector<48x1xf32>
    %438 = arith.mulf %436, %437 : vector<48x1xf32>
    %439 = arith.subf %431, %438 : vector<48x1xf32>
    %cst_129 = arith.constant 0.000000e+00 : f32
    %440 = vector.broadcast %cst_129 : f32 to vector<48x1xf32>
    %441 = arith.cmpf oge, %431, %440 : vector<48x1xf32>
    %cst_130 = arith.constant 3.240000e+02 : f32
    %442 = vector.broadcast %cst_130 : f32 to vector<48x1xf32>
    %443 = arith.cmpf olt, %431, %442 : vector<48x1xf32>
    %444 = arith.andi %441, %443 : vector<48x1xi1>
    %cst_131 = arith.constant 1.000000e+00 : f32
    %445 = vector.broadcast %cst_131 : f32 to vector<48x1xf32>
    %446 = arith.cmpf oge, %436, %445 : vector<48x1xf32>
    %447 = arith.andi %444, %446 : vector<48x1xi1>
    %cst_132 = arith.constant 1.600000e+01 : f32
    %448 = vector.broadcast %cst_132 : f32 to vector<48x1xf32>
    %449 = arith.cmpf ole, %436, %448 : vector<48x1xf32>
    %450 = arith.andi %447, %449 : vector<48x1xi1>
    %cst_133 = arith.constant 1.000000e+00 : f32
    %451 = vector.broadcast %cst_133 : f32 to vector<48x1xf32>
    %452 = arith.cmpf oge, %439, %451 : vector<48x1xf32>
    %453 = arith.andi %450, %452 : vector<48x1xi1>
    %cst_134 = arith.constant 1.600000e+01 : f32
    %454 = vector.broadcast %cst_134 : f32 to vector<48x1xf32>
    %455 = arith.cmpf ole, %439, %454 : vector<48x1xf32>
    %456 = arith.andi %453, %455 : vector<48x1xi1>
    %cst_135 = arith.constant 0.000000e+00 : f32
    %457 = vector.broadcast %cst_135 : f32 to vector<48x128xf32>
    %458 = arith.maximumf %427, %457 : vector<48x128xf32>
    %cst_136 = arith.constant 0.000000e+00 : f32
    %459 = vector.shape_cast %456 : vector<48x1xi1> to vector<48x1xi1>
    %460 = vector.broadcast %459 : vector<48x1xi1> to vector<48x128xi1>
    %461 = vector.broadcast %cst_136 : f32 to vector<48x128xf32>
    %462 = arith.select %460, %458, %461 : vector<48x128xi1>, vector<48x128xf32>
    %463 = arith.truncf %462 : vector<48x128xf32> to vector<48x128xbf16>
    %c320_137 = arith.constant 320 : index
    %c0_138 = arith.constant 0 : index
    %464 = vector.load %arg8[%c320_137, %c0_138] : memref<368x128xbf16, #tpu.memory_space<vmem>>, vector<48x128xbf16>
    tpu.vector_store %arg8[%c320_137, %c0_138], %463 {strides = array<i32>} : memref<368x128xbf16, #tpu.memory_space<vmem>>, vector<48x128xbf16>,
    %cst_139 = arith.constant 0.000000e+00 : bf16
    %465 = vector.broadcast %cst_139 : bf16 to vector<328x112xbf16>
    %c0_140 = arith.constant 0 : index
    %c144 = arith.constant 144 : index
    %466 = vector.load %arg9[%c0_140, %c144] : memref<328x256xbf16, #tpu.memory_space<vmem>>, vector<328x112xbf16>
    tpu.vector_store %arg9[%c0_140, %c144], %465 {strides = array<i32>} : memref<328x256xbf16, #tpu.memory_space<vmem>>, vector<328x112xbf16>,
    %c0_141 = arith.constant 0 : index
    %c0_142 = arith.constant 0 : index
    %467 = vector.load %arg8[%c0_141, %c0_142] : memref<368x128xbf16, #tpu.memory_space<vmem>>, vector<328x16xbf16>
    %c0_143 = arith.constant 0 : index
    %c0_144 = arith.constant 0 : index
    %468 = vector.load %arg9[%c0_143, %c0_144] : memref<328x256xbf16, #tpu.memory_space<vmem>>, vector<328x16xbf16>
    tpu.vector_store %arg9[%c0_143, %c0_144], %467 {strides = array<i32>} : memref<328x256xbf16, #tpu.memory_space<vmem>>, vector<328x16xbf16>,
    %c1_145 = arith.constant 1 : index
    %c0_146 = arith.constant 0 : index
    %469 = vector.load %arg8[%c1_145, %c0_146] : memref<368x128xbf16, #tpu.memory_space<vmem>>, vector<328x16xbf16>
    %c0_147 = arith.constant 0 : index
    %c16 = arith.constant 16 : index
    %470 = vector.load %arg9[%c0_147, %c16] : memref<328x256xbf16, #tpu.memory_space<vmem>>, vector<328x16xbf16>
    tpu.vector_store %arg9[%c0_147, %c16], %469 {strides = array<i32>} : memref<328x256xbf16, #tpu.memory_space<vmem>>, vector<328x16xbf16>,
    %c2_148 = arith.constant 2 : index
    %c0_149 = arith.constant 0 : index
    %471 = vector.load %arg8[%c2_148, %c0_149] : memref<368x128xbf16, #tpu.memory_space<vmem>>, vector<328x16xbf16>
    %c0_150 = arith.constant 0 : index
    %c32 = arith.constant 32 : index
    %472 = vector.load %arg9[%c0_150, %c32] : memref<328x256xbf16, #tpu.memory_space<vmem>>, vector<328x16xbf16>
    tpu.vector_store %arg9[%c0_150, %c32], %471 {strides = array<i32>} : memref<328x256xbf16, #tpu.memory_space<vmem>>, vector<328x16xbf16>,
    %c18_151 = arith.constant 18 : index
    %c0_152 = arith.constant 0 : index
    %473 = vector.load %arg8[%c18_151, %c0_152] : memref<368x128xbf16, #tpu.memory_space<vmem>>, vector<328x16xbf16>
    %c0_153 = arith.constant 0 : index
    %c48 = arith.constant 48 : index
    %474 = vector.load %arg9[%c0_153, %c48] : memref<328x256xbf16, #tpu.memory_space<vmem>>, vector<328x16xbf16>
    tpu.vector_store %arg9[%c0_153, %c48], %473 {strides = array<i32>} : memref<328x256xbf16, #tpu.memory_space<vmem>>, vector<328x16xbf16>,
    %c19_154 = arith.constant 19 : index
    %c0_155 = arith.constant 0 : index
    %475 = vector.load %arg8[%c19_154, %c0_155] : memref<368x128xbf16, #tpu.memory_space<vmem>>, vector<328x16xbf16>
    %c0_156 = arith.constant 0 : index
    %c64_157 = arith.constant 64 : index
    %476 = vector.load %arg9[%c0_156, %c64_157] : memref<328x256xbf16, #tpu.memory_space<vmem>>, vector<328x16xbf16>
    tpu.vector_store %arg9[%c0_156, %c64_157], %475 {strides = array<i32>} : memref<328x256xbf16, #tpu.memory_space<vmem>>, vector<328x16xbf16>,
    %c20_158 = arith.constant 20 : index
    %c0_159 = arith.constant 0 : index
    %477 = vector.load %arg8[%c20_158, %c0_159] : memref<368x128xbf16, #tpu.memory_space<vmem>>, vector<328x16xbf16>
    %c0_160 = arith.constant 0 : index
    %c80 = arith.constant 80 : index
    %478 = vector.load %arg9[%c0_160, %c80] : memref<328x256xbf16, #tpu.memory_space<vmem>>, vector<328x16xbf16>
    tpu.vector_store %arg9[%c0_160, %c80], %477 {strides = array<i32>} : memref<328x256xbf16, #tpu.memory_space<vmem>>, vector<328x16xbf16>,
    %c36_161 = arith.constant 36 : index
    %c0_162 = arith.constant 0 : index
    %479 = vector.load %arg8[%c36_161, %c0_162] : memref<368x128xbf16, #tpu.memory_space<vmem>>, vector<328x16xbf16>
    %c0_163 = arith.constant 0 : index
    %c96 = arith.constant 96 : index
    %480 = vector.load %arg9[%c0_163, %c96] : memref<328x256xbf16, #tpu.memory_space<vmem>>, vector<328x16xbf16>
    tpu.vector_store %arg9[%c0_163, %c96], %479 {strides = array<i32>} : memref<328x256xbf16, #tpu.memory_space<vmem>>, vector<328x16xbf16>,
    %c37_164 = arith.constant 37 : index
    %c0_165 = arith.constant 0 : index
    %481 = vector.load %arg8[%c37_164, %c0_165] : memref<368x128xbf16, #tpu.memory_space<vmem>>, vector<328x16xbf16>
    %c0_166 = arith.constant 0 : index
    %c112 = arith.constant 112 : index
    %482 = vector.load %arg9[%c0_166, %c112] : memref<328x256xbf16, #tpu.memory_space<vmem>>, vector<328x16xbf16>
    tpu.vector_store %arg9[%c0_166, %c112], %481 {strides = array<i32>} : memref<328x256xbf16, #tpu.memory_space<vmem>>, vector<328x16xbf16>,
    %c38_167 = arith.constant 38 : index
    %c0_168 = arith.constant 0 : index
    %483 = vector.load %arg8[%c38_167, %c0_168] : memref<368x128xbf16, #tpu.memory_space<vmem>>, vector<328x16xbf16>
    %c0_169 = arith.constant 0 : index
    %c128_170 = arith.constant 128 : index
    %484 = vector.load %arg9[%c0_169, %c128_170] : memref<328x256xbf16, #tpu.memory_space<vmem>>, vector<328x16xbf16>
    tpu.vector_store %arg9[%c0_169, %c128_170], %483 {strides = array<i32>} : memref<328x256xbf16, #tpu.memory_space<vmem>>, vector<328x16xbf16>,
    %c0_171 = arith.constant 0 : index
    %c0_172 = arith.constant 0 : index
    %485 = vector.load %arg9[%c0_171, %c0_172] : memref<328x256xbf16, #tpu.memory_space<vmem>>, vector<328x256xbf16>
    %c0_173 = arith.constant 0 : index
    %c0_174 = arith.constant 0 : index
    %486 = vector.load %arg4[%c0_173, %c0_174] : memref<256x128xbf16, #tpu.memory_space<vmem>>, vector<256x128xbf16>
    %cst_175 = arith.constant dense<0.000000e+00> : vector<328x128xf32>
    %487 = tpu.matmul %485, %486, %cst_175 {dimension_numbers = #tpu.dot_dimension_numbers<[1], [0], [0], [1], [0, 0, 1, 1], [], []>} : vector<328x256xbf16>, vector<256x128xbf16>, vector<328x128xf32> -> vector<328x128xf32>
    %c0_176 = arith.constant 0 : index
    %c0_177 = arith.constant 0 : index
    %488 = vector.load %arg5[%c0_176, %c0_177] : memref<1x128xf32, #tpu.memory_space<vmem>>, vector<1x128xf32>
    %489 = vector.broadcast %488 : vector<1x128xf32> to vector<328x128xf32>
    %490 = arith.addf %487, %489 : vector<328x128xf32>
    %491 = tpu.iota {dimensions = array<i32: 0>} : vector<328x1xi32>
    %492 = arith.sitofp %491 : vector<328x1xi32> to vector<328x1xf32>
    %cst_178 = arith.constant 5.000000e-01 : f32
    %493 = vector.broadcast %cst_178 : f32 to vector<328x1xf32>
    %494 = arith.addf %492, %493 : vector<328x1xf32>
    %cst_179 = arith.constant 0.055555556 : f32
    %495 = vector.broadcast %cst_179 : f32 to vector<328x1xf32>
    %496 = arith.mulf %494, %495 : vector<328x1xf32>
    %497 = math.floor %496 : vector<328x1xf32>
    %cst_180 = arith.constant 1.800000e+01 : f32
    %498 = vector.broadcast %cst_180 : f32 to vector<328x1xf32>
    %499 = arith.mulf %497, %498 : vector<328x1xf32>
    %500 = arith.subf %492, %499 : vector<328x1xf32>
    %cst_181 = arith.constant 3.240000e+02 : f32
    %501 = vector.broadcast %cst_181 : f32 to vector<328x1xf32>
    %502 = arith.cmpf olt, %492, %501 : vector<328x1xf32>
    %cst_182 = arith.constant 1.000000e+00 : f32
    %503 = vector.broadcast %cst_182 : f32 to vector<328x1xf32>
    %504 = arith.cmpf oge, %497, %503 : vector<328x1xf32>
    %505 = arith.andi %502, %504 : vector<328x1xi1>
    %cst_183 = arith.constant 1.600000e+01 : f32
    %506 = vector.broadcast %cst_183 : f32 to vector<328x1xf32>
    %507 = arith.cmpf ole, %497, %506 : vector<328x1xf32>
    %508 = arith.andi %505, %507 : vector<328x1xi1>
    %cst_184 = arith.constant 1.000000e+00 : f32
    %509 = vector.broadcast %cst_184 : f32 to vector<328x1xf32>
    %510 = arith.cmpf oge, %500, %509 : vector<328x1xf32>
    %511 = arith.andi %508, %510 : vector<328x1xi1>
    %cst_185 = arith.constant 1.600000e+01 : f32
    %512 = vector.broadcast %cst_185 : f32 to vector<328x1xf32>
    %513 = arith.cmpf ole, %500, %512 : vector<328x1xf32>
    %514 = arith.andi %511, %513 : vector<328x1xi1>
    %cst_186 = arith.constant -1.000000e+30 : f32
    %515 = vector.shape_cast %514 : vector<328x1xi1> to vector<328x1xi1>
    %516 = vector.broadcast %515 : vector<328x1xi1> to vector<328x128xi1>
    %517 = vector.broadcast %cst_186 : f32 to vector<328x128xf32>
    %518 = arith.select %516, %490, %517 : vector<328x128xi1>, vector<328x128xf32>
    %cst_187 = arith.constant dense<0xFF800000> : vector<128xf32>
    %519 = vector.multi_reduction <maximumf>, %518, %cst_187 [0] : vector<328x128xf32> to vector<128xf32>
    %520 = vector.shape_cast %519 : vector<128xf32> to vector<1x128xf32>
    %521 = vector.broadcast %520 : vector<1x128xf32> to vector<328x128xf32>
    %522 = arith.subf %518, %521 : vector<328x128xf32>
    %523 = math.exp %522 : vector<328x128xf32>
    %cst_188 = arith.constant dense<0.000000e+00> : vector<128xf32>
    %524 = vector.multi_reduction <add>, %523, %cst_188 [0] : vector<328x128xf32> to vector<128xf32>
    %525 = vector.shape_cast %524 : vector<128xf32> to vector<1x128xf32>
    %cst_189 = arith.constant 1.000000e+00 : f32
    %526 = vector.broadcast %cst_189 : f32 to vector<328x1xf32>
    %527 = arith.subf %497, %526 : vector<328x1xf32>
    %528 = vector.broadcast %527 : vector<328x1xf32> to vector<328x128xf32>
    %529 = arith.mulf %523, %528 : vector<328x128xf32>
    %cst_190 = arith.constant dense<0.000000e+00> : vector<128xf32>
    %530 = vector.multi_reduction <add>, %529, %cst_190 [0] : vector<328x128xf32> to vector<128xf32>
    %531 = vector.shape_cast %530 : vector<128xf32> to vector<1x128xf32>
    %cst_191 = arith.constant 1.000000e+00 : f32
    %532 = vector.broadcast %cst_191 : f32 to vector<328x1xf32>
    %533 = arith.subf %500, %532 : vector<328x1xf32>
    %534 = vector.broadcast %533 : vector<328x1xf32> to vector<328x128xf32>
    %535 = arith.mulf %523, %534 : vector<328x128xf32>
    %cst_192 = arith.constant dense<0.000000e+00> : vector<128xf32>
    %536 = vector.multi_reduction <add>, %535, %cst_192 [0] : vector<328x128xf32> to vector<128xf32>
    %537 = vector.shape_cast %536 : vector<128xf32> to vector<1x128xf32>
    %cst_193 = arith.constant 1.000000e+00 : f32
    %538 = vector.broadcast %cst_193 : f32 to vector<1x128xf32>
    %539 = arith.divf %538, %525 : vector<1x128xf32>
    %540 = arith.mulf %531, %539 : vector<1x128xf32>
    %541 = arith.mulf %537, %539 : vector<1x128xf32>
    %cst_194 = arith.constant 0.000000e+00 : f32
    %542 = vector.broadcast %cst_194 : f32 to vector<6x128xf32>
    %543 = tpu.concatenate %540, %541, %542 in 0 : vector<1x128xf32>, vector<1x128xf32>, vector<6x128xf32> -> vector<8x128xf32>
    %c0_195 = arith.constant 0 : index
    %c0_196 = arith.constant 0 : index
    %544 = vector.load %arg6[%c0_195, %c0_196] : memref<8x128xf32, #tpu.memory_space<vmem>>, vector<8x128xf32>
    tpu.vector_store %arg6[%c0_195, %c0_196], %543 {strides = array<i32>} : memref<8x128xf32, #tpu.memory_space<vmem>>, vector<8x128xf32>,
    return
  }
  func.func @transform_0(%arg0: i32) -> (i32, i32) {
    %c0_i32 = arith.constant 0 : i32
    %c0_i32_0 = arith.constant 0 : i32
    return %arg0, %c0_i32 : i32, i32
  }
  func.func @transform_1(%arg0: i32) -> (i32, i32) {
    %c0_i32 = arith.constant 0 : i32
    %c0_i32_0 = arith.constant 0 : i32
    %c0_i32_1 = arith.constant 0 : i32
    return %c0_i32, %c0_i32_0 : i32, i32
  }
  func.func @transform_2(%arg0: i32) -> (i32, i32) {
    %c0_i32 = arith.constant 0 : i32
    %c0_i32_0 = arith.constant 0 : i32
    %c0_i32_1 = arith.constant 0 : i32
    return %c0_i32, %c0_i32_0 : i32, i32
  }
  func.func @transform_3(%arg0: i32) -> (i32, i32) {
    %c0_i32 = arith.constant 0 : i32
    %c0_i32_0 = arith.constant 0 : i32
    %c0_i32_1 = arith.constant 0 : i32
    return %c0_i32, %c0_i32_0 : i32, i32
  }
  func.func @transform_4(%arg0: i32) -> (i32, i32) {
    %c0_i32 = arith.constant 0 : i32
    %c0_i32_0 = arith.constant 0 : i32
    %c0_i32_1 = arith.constant 0 : i32
    return %c0_i32, %c0_i32_0 : i32, i32
  }
  func.func @transform_5(%arg0: i32) -> (i32, i32) {
    %c0_i32 = arith.constant 0 : i32
    %c0_i32_0 = arith.constant 0 : i32
    return %arg0, %c0_i32 : i32, i32
  }
}

</mosaic_0001>

<llo_original>
// kernel: custom-call.8
$region0: #{custom-call.8}
  %s0 = inlined_call_operand.vmem [shape: f32[2,3,3], index: 0, kind: input, shape index: {}]
  %s1 = inlined_call_operand.vmem [shape: f32[2,3,3], index: 1, kind: output, shape index: {0}]
  %s2 = inlined_call_operand.hbm [shape: s32[2,3], index: 2, kind: output, shape index: {1}]
  %s3 = inlined_call_operand.vmem [shape: s32[2,3], index: 3, kind: output, shape index: {2}]
  %4 = xla_tuple %s1, %s2, %s3
  $region1: #{custom-call.8} parent=0
    #allocation0 [shape = 'u8[4096]{0}', space=vmem, size = 0x1000, scoped, tag = 'operand span for operand 0']
    #allocation1 [shape = 'u8[4096]{0}', space=vmem, size = 0x1000, scoped, tag = 'packed  for operand 0']
    #allocation2 [shape = 'u8[4096]{0}', space=vmem, size = 0x1000, scoped, tag = 'operand span for operand 1']
    #allocation3 [shape = 'u8[4096]{0}', space=vmem, size = 0x1000, scoped, tag = 'packed  for operand 1']
    #allocation4 [shape = 'u8[4096]{0}', space=vmem, size = 0x1000, scoped, tag = 'operand span for operand 2']
    #allocation5 [shape = 'u8[2048]{0}', space=vmem, size = 0x800, scoped, tag = 'packed  for operand 2']
    #allocation6 [shape = 's32[2]{0}', space=sflag, size = 0x8, scoped, tag = 'scoped memory for custom-call.8']
    #allocation7 [shape = 'u8[4096]{0}', space=vmem, size = 0x1000, scoped, tag = 'operand span for operand 3']
    #allocation8 [shape = 'u8[2048]{0}', space=vmem, size = 0x800, scoped, tag = 'packed  for operand 3']
    %5 = vsyncpa [#allocation6], 0
    %s6 = scalar_lea.sflag [#allocation6], 1
    %7 = vsyncpa %s6, 0
    loop: start=0, step=1, limit=4
    $region2: #{custom-call.8} parent=1 // loop_pre_header
      _
    $region3: #{custom-call.8} parent=1 // loop_header
      %s9 = sphi 0, %s13
      %p10 = scmp.ge.s32.totalorder %s9, 4
      %s21 = sphi 0, %s23
      %s24 = sphi 0, %s21
      %s25 = sphi 0, %s24
      %s41 = sphi 0, %s25
      %s49 = sphi 0, %s51
      %s52 = sphi 0, %s49
      %s53 = sphi 0, %s52
      %s69 = sphi 0, %s53
    $region4: #{custom-call.8} parent=1 // loop_header_branch
      %12 = sbr.rel (%p10) target = $region8
    $region5: #{custom-call.8} parent=1 // loop_body
      %s14 = ssub.s32 %s9, 1
      %s15 = ssub.s32 %s9, 2
      %s16 = sadd.s32 %s9, 1
      %s17 = sshrl.u32 %s9, 3
      %s18 = sshrl.u32 %s16, 3
      %s19 = ssub.s32 %s17, %s18
      %p20 = scmp.eq.s32.totalorder %s19, 0
      %s22 = sadd.s32 %s21, 1
      %s23 = scalar_select %p20, %s21, %s22
      %p26 = pneg %p20
      %p27 = scmp.eq.s32.totalorder %s9, 1
      %p28 = por %p26, %p27
      %p29 = scmp.ne.s32.totalorder %s21, %s24
      %p30 = scmp.eq.s32.totalorder %s9, 0
      %p31 = por %p29, %p30
      %p32 = scmp.ne.s32.totalorder %s21, %s24
      %p33 = scmp.eq.s32.totalorder %s14, 1
      %p34 = por %p32, %p33
      %p35 = scmp.ne.s32.totalorder %s24, %s25
      %p36 = scmp.eq.s32.totalorder %s14, 0
      %p37 = por %p35, %p36
      %p38 = scmp.ne.s32.totalorder %s24, %s25
      %p39 = scmp.eq.s32.totalorder %s15, 1
      %p40 = por %p38, %p39
      %p42 = scmp.ne.s32.totalorder %s25, %s41
      %p43 = scmp.eq.s32.totalorder %s15, 0
      %p44 = por %p42, %p43
      %s45 = sshrl.u32 %s9, 3
      %s46 = sshrl.u32 %s16, 3
      %s47 = ssub.s32 %s45, %s46
      %p48 = scmp.eq.s32.totalorder %s47, 0
      %s50 = sadd.s32 %s49, 1
      %s51 = scalar_select %p48, %s49, %s50
      %p54 = pneg %p48
      %p55 = scmp.eq.s32.totalorder %s9, 1
      %p56 = por %p54, %p55
      %p57 = scmp.ne.s32.totalorder %s49, %s52
      %p58 = scmp.eq.s32.totalorder %s9, 0
      %p59 = por %p57, %p58
      %p60 = scmp.ne.s32.totalorder %s49, %s52
      %p61 = scmp.eq.s32.totalorder %s14, 1
      %p62 = por %p60, %p61
      %p63 = scmp.ne.s32.totalorder %s52, %s53
      %p64 = scmp.eq.s32.totalorder %s14, 0
      %p65 = por %p63, %p64
      %p66 = scmp.ne.s32.totalorder %s52, %s53
      %p67 = scmp.eq.s32.totalorder %s15, 1
      %p68 = por %p66, %p67
      %p70 = scmp.ne.s32.totalorder %s53, %s69
      %p71 = scmp.eq.s32.totalorder %s15, 0
      %p72 = por %p70, %p71
      %p73 = scmp.le.s32.totalorder 1, %s9
      %p74 = scmp.lt.s32.totalorder %s9, 3
      %p75 = pnand %p73, %p74
      %p76 = pneg %p75
      // Predicated region
      $region9: #{custom-call.8} parent=5 // pred_check
        _
      $region10: #{custom-call.8} parent=5 // pred_check_branch
        %78 = sbr.rel (%p75) target = $region12
      $region11: #{custom-call.8} parent=5 // pred_region
        %s79 = ssub.s32 %s9, 1
      $region12: #{custom-call.8} parent=5 // pred_fallthru
        _
      %p80 = scmp.lt.s32.totalorder %s9, 2
      // Predicated region
      $region13: #{custom-call.8} parent=5 // pred_check
        %p81 = pneg %p80
      $region14: #{custom-call.8} parent=5 // pred_check_branch
        %83 = sbr.rel (%p81) target = $region16
      $region15: #{custom-call.8} parent=5 // pred_region
        %s84 = sand.u32 %s9, 1
        %s85 = sand.u32 %s9, 1
        %s86 = smul.addr %s85, 4
        %s87 = scalar_lea.vmem [#allocation1], %s86
        %s88 = smul.addr %s9, 4
        %s89 = scalar_lea.vmem %s0, %s88
        // Predicated region
        $region17: #{custom-call.8} parent=15 // pred_check
          _
        $region18: #{custom-call.8} parent=15 // pred_check_branch
          %91 = sbr.rel (0) target = $region20
        $region19: #{custom-call.8} parent=15 // pred_region
          // Predicated region
          $region21: #{custom-call.8} parent=19 // pred_check
            _
          $region22: #{custom-call.8} parent=19 // pred_check_branch
            %93 = sbr.rel target = $region24
          $region23: #{custom-call.8} parent=19 // pred_region
            // Predicated region
            $region36: #{custom-call.8} parent=23 // pred_check
              _
            $region37: #{custom-call.8} parent=23 // pred_check_branch
              %109 = sbr.rel (0) target = $region39
            $region38: #{custom-call.8} parent=23 // pred_region
              %s111 = ssub.s32 16, 1
              loop: start=0, step=1, limit=1
              $region40: #{custom-call.8} parent=38 // loop_pre_header
                _
              $region41: #{custom-call.8} parent=38 // loop_header
                %s113 = sphi 0, %s117
                %p114 = scmp.ge.s32.totalorder %s113, 1
                %s118 = sphi %s89, %s89
                %s119 = sphi %s87, %s87
              $region42: #{custom-call.8} parent=38 // loop_header_branch
                %116 = sbr.rel (%p114) target = $region46
              $region43: #{custom-call.8} parent=38 // loop_body
                %v120 = vld [vmem:[%s118] sm:%s111]
                %121 = vst [vmem:[%s119] sm:%s111] %v120
              $region44: #{custom-call.8} parent=38 // loop_footer
                %s117 = sadd.s32 1, %s113
              $region45: #{custom-call.8} parent=38 // loop_footer_branch
                %112 = sbr.rel target = $region41
              $region46: #{custom-call.8} parent=38 // loop_exit
                _
            $region39: #{custom-call.8} parent=23 // pred_fallthru
              _
          $region24: #{custom-call.8} parent=19 // pred_fallthru
            _
          // Predicated region
          $region25: #{custom-call.8} parent=19 // pred_check
            _
          $region26: #{custom-call.8} parent=19 // pred_check_branch
            %95 = sbr.rel (0) target = $region28
          $region27: #{custom-call.8} parent=19 // pred_region
            %s97 = ssub.s32 16, 1
            loop: start=0, step=1, limit=1
            $region29: #{custom-call.8} parent=27 // loop_pre_header
              _
            $region30: #{custom-call.8} parent=27 // loop_header
              %s99 = sphi 0, %s103
              %p100 = scmp.ge.s32.totalorder %s99, 1
              %s104 = sphi %s89, %s89
              %s105 = sphi %s87, %s87
            $region31: #{custom-call.8} parent=27 // loop_header_branch
              %102 = sbr.rel (%p100) target = $region35
            $region32: #{custom-call.8} parent=27 // loop_body
              %v106 = vld [vmem:[%s104] sm:%s97]
              %107 = vst [vmem:[%s105] sm:%s97] %v106
            $region33: #{custom-call.8} parent=27 // loop_footer
              %s103 = sadd.s32 1, %s99
            $region34: #{custom-call.8} parent=27 // loop_footer_branch
              %98 = sbr.rel target = $region30
            $region35: #{custom-call.8} parent=27 // loop_exit
              _
          $region28: #{custom-call.8} parent=19 // pred_fallthru
            _
        $region20: #{custom-call.8} parent=15 // pred_fallthru
          _
        %122 = vnop
      $region16: #{custom-call.8} parent=5 // pred_fallthru
        _
      %p123 = scmp.le.s32.totalorder 1, %s9
      %p124 = scmp.lt.s32.totalorder %s9, 3
      %p125 = pnand %p123, %p124
      %p126 = pneg %p125
      // Predicated region
      $region47: #{custom-call.8} parent=5 // pred_check
        _
      $region48: #{custom-call.8} parent=5 // pred_check_branch
        %128 = sbr.rel (%p125) target = $region50
      $region49: #{custom-call.8} parent=5 // pred_region
        #allocation9 [shape = 's32[3,128]{1,0}', space=vmem, size = 0x1000, scoped, tag = 'scratch for permutations']
        %s129 = ssub.s32 %s9, 1
        %s130 = sand.u32 %s14, 1
        %s131 = sand.u32 %s14, 1
        %s132 = smul.addr %s131, 4
        %s133 = scalar_lea.vmem [#allocation1], %s132
        %s134 = sand.u32 %s14, 1
        %s135 = sand.u32 %s14, 1
        %s136 = smul.addr %s135, 4
        %s137 = scalar_lea.vmem [#allocation1], %s136
        %s138 = sand.u32 %s14, 1
        %s139 = sand.u32 %s14, 1
        %s140 = smul.addr %s139, 4
        %s141 = scalar_lea.vmem [#allocation3], %s140
        %p142 = pneg %p37
        %p143 = pneg %p34
        %s144 = sand.u32 %s24, 1
        %s145 = scalar_lea.sflag [#allocation6], %s144
        %s146 = sand.u32 %s24, 1
        %s147 = smul.addr %s146, 2
        %s148 = scalar_lea.vmem [#allocation5], %s147
        %p149 = pneg %p65
        %p150 = pneg %p62
        %s151 = sand.u32 %s52, 1
        %s152 = sand.u32 %s52, 1
        %s153 = smul.addr %s152, 2
        %s154 = scalar_lea.vmem [#allocation8], %s153
        %s156 = ssub.s32 16, 1
        %v157 = vld [vmem:[%s137] sm:%s156]
        %158 = vst [vmem:[#allocation0] sm:%s156] %v157
        %s159 = sshrl.u32 %s14, 3
        %s160 = sshrl.u32 %s14, 3
        %v161 = vld [vmem:[#allocation0] sm:$0xff]
        %162 = vst [vmem:[#allocation2] sm:$0xff] %v161
        %s163 = sand.u32 %s14, 7
        %s164 = scalar_lea.vmem [#allocation4], %s163
        %s165 = sand.u32 %s14, 7
        %s166 = scalar_lea.vmem [#allocation7], %s165
        %167 = vst [vmem:[%s164] sm:$0x1] 0
        %v168 = vlaneseq
        %v169 = vshrl.u32 %v168, 7
        %v170 = vmov %v169
        %172 = vst [vmem:[#allocation9] sm:$0xff] %v170
        loop: start=0, step=1, limit=3
        $region52: #{custom-call.8} parent=49 // loop_pre_header
          _
        $region53: #{custom-call.8} parent=49 // loop_header
          %s174 = sphi 0, %s178
          %p175 = scmp.ge.s32.totalorder %s174, 3
        $region54: #{custom-call.8} parent=49 // loop_header_branch
          %177 = sbr.rel (%p175) target = $region58
        $region55: #{custom-call.8} parent=49 // loop_body
          %v179 = vstv %s174
          %v180 = vlaneseq
          %v181 = vshrl.u32 %v180, 7
          %v182 = vmov %v181
          %v183 = vld [vmem:[#allocation2] sm:$0xff]
          %v184 = vand.u32 2147483647, %v183
          %v186 = vstv %s174
          %vm187 = vcmp.ge.s32.totalorder %v182, %v186
          %vm188 = vcmp.lt.s32.totalorder %v182, 3
          %vm189 = vmand %vm187, %vm188
          %vm190 = vcmp.lt.f32.partialorder -inf, %v184
          %vm191 = vmand %vm189, %vm190
          %v192 = vsel %vm191, %v182, %v179
          %v193 = vsel %vm191, %v184, -inf
          %v194 = vrot.slane %v193, 1
          %v195 = vrot.slane %v192, 1
          %vm196 = vcmp.ge.f32.partialorder %v194, %v193
          %v197 = vsel %vm196, %v194, %v193
          %v198 = vsel %vm196, %v195, %v192
          %v199 = vrot.slane %v194, 1
          %v200 = vrot.slane %v195, 1
          %vm201 = vcmp.ge.f32.partialorder %v199, %v197
          %v202 = vsel %vm201, %v199, %v197
          %v203 = vsel %vm201, %v200, %v198
          %v204 = vrot.slane %v199, 1
          %v205 = vrot.slane %v200, 1
          %vm206 = vcmp.ge.f32.partialorder %v204, %v202
          %v207 = vsel %vm206, %v204, %v202
          %v208 = vsel %vm206, %v205, %v203
          %v209 = vrot.slane %v204, 1
          %v210 = vrot.slane %v205, 1
          %vm211 = vcmp.ge.f32.partialorder %v209, %v207
          %v212 = vsel %vm211, %v209, %v207
          %v213 = vsel %vm211, %v210, %v208
          %v214 = vrot.slane %v209, 1
          %v215 = vrot.slane %v210, 1
          %vm216 = vcmp.ge.f32.partialorder %v214, %v212
          %v217 = vsel %vm216, %v214, %v212
          %v218 = vsel %vm216, %v215, %v213
          %v219 = vrot.slane %v214, 1
          %v220 = vrot.slane %v215, 1
          %vm221 = vcmp.ge.f32.partialorder %v219, %v217
          %v222 = vsel %vm221, %v219, %v217
          %v223 = vsel %vm221, %v220, %v218
          %v224 = vrot.slane %v219, 1
          %v225 = vrot.slane %v220, 1
          %vm226 = vcmp.ge.f32.partialorder %v224, %v222
          %v227 = vsel %vm226, %v224, %v222
          %v228 = vsel %vm226, %v225, %v223
          %s229 = ssub.s32 128, %s174
          %230 = vrot.lane.b32.xlu0 %v228, %s229
          %v231 = vpop.permute.xlu0 %230
          %s232 = vtos %v231
          %v233 = vstv %s174
          %v234 = vlaneseq
          %v235 = vand.u32 %v234, 127
          %vm236 = vcmp.eq.s32.totalorder %v235, %v233
          %v237 = vstv %s232
          %v238 = vld [vmem:[%s164] ss:$0 sm:$0xff]
          %v239 = vsel %vm236, %v237, %v238
          %240 = vst [vmem:[%s164] sm:$0x1] %v239
          %s241 = scalar_lea.vmem [#allocation2], %s174
          %s242 = scalar_lea.vmem [#allocation2], %s232
          %v243 = vld [vmem:[%s241] ss:$0 sm:$0xff]
          %v244 = vld [vmem:[%s242] ss:$0 sm:$0xff]
          %245 = vst [vmem:[%s242] sm:$0x1] %v243
          %246 = vst [vmem:[%s241] sm:$0x1] %v244
          %s247 = scalar_lea.vmem [#allocation9], %s174
          %s248 = scalar_lea.vmem [#allocation9], %s232
          %v249 = vld [vmem:[%s247] ss:$0 sm:$0xff]
          %v250 = vld [vmem:[%s248] ss:$0 sm:$0xff]
          %251 = vst [vmem:[%s248] sm:$0x1] %v249
          %252 = vst [vmem:[%s247] sm:$0x1] %v250
          %vm253 = vcmp.ne.f32.partialorder %v244, 0.0
          %vm254 = vmand %vm236, %vm253
          %v255 = vsel %vm254, %v244, 1.0
          %v256 = vlaneseq
          %v257 = vand.u32 %v256, 127
          %v258 = vstv %s174
          %vm259 = vcmp.gt.s32.totalorder %v257, %v258
          %v260 = vsel %vm259, %v244, 0.0
          %v261 = vlaneseq
          %v262 = vshrl.u32 %v261, 7
          %v263 = vmov %v262
          %v264 = vld [vmem:[#allocation2] sm:$0xff]
          %v266 = vstv %s174
          %vm267 = vcmp.gt.s32.totalorder %v263, %v266
          %v268 = vsel %vm267, %v255, 1.0
          %v269 = vrcp.pop %v268
          %v270 = vmul.f32 %v268, %v269
          %v271 = vsub.f32 1.0, %v270
          %v272 = vmul.f32 %v269, %v271
          %v273 = vadd.f32 %v269, %v272
          %vm274 = vweird.f32 %v268
          %vm275 = vweird.f32 %v269
          %vm276 = vmor %vm274, %vm275
          %v277 = vsel %vm276, %v269, %v273
          %v278 = vand.u32 2147483647, %v268
          %vm279 = vcmp.eq.f32.partialorder %v278, 8.507059e+37
          %v280 = vand.u32 %v268, 2147483648
          %v281 = vor.u32 1.1754944e-38, %v280
          %v282 = vsel %vm279, %v281, %v277
          %v283 = vmul.f32 %v264, %v282
          %vm284 = vmand %vm267, %vm236
          %v285 = vsel %vm284, %v283, 0.0
          %286 = vadd.xlane.f32.xlu0 %v285
          %v287 = vpop.xlane.xlu0 %286
          %v288 = vmul.f32 %v287, %v260
          %v289 = vsub.f32 %v283, %v288
          %290 = vst [vmem:[#allocation2] sm:$0xff] %v289
        $region56: #{custom-call.8} parent=49 // loop_footer
          %s178 = sadd.s32 1, %s174
        $region57: #{custom-call.8} parent=49 // loop_footer_branch
          %173 = sbr.rel target = $region53
        $region58: #{custom-call.8} parent=49 // loop_exit
          _
        %v291 = vld [vmem:[#allocation9] sm:$0xff]
        %s292 = scalar_lea.vmem [#allocation9], 8
        %s293 = scalar_lea.vmem [#allocation9], 16
        %s294 = scalar_lea.vmem [#allocation9], 24
        %s295 = scalar_lea.vmem [#allocation9], 32
        %s296 = scalar_lea.vmem [#allocation9], 40
        %s297 = scalar_lea.vmem [#allocation9], 48
        %s298 = scalar_lea.vmem [#allocation9], 56
        %s299 = scalar_lea.vmem [#allocation9], 64
        %s300 = scalar_lea.vmem [#allocation9], 72
        %s301 = scalar_lea.vmem [#allocation9], 80
        %s302 = scalar_lea.vmem [#allocation9], 88
        %s303 = scalar_lea.vmem [#allocation9], 96
        %s304 = scalar_lea.vmem [#allocation9], 104
        %s305 = scalar_lea.vmem [#allocation9], 112
        %s306 = scalar_lea.vmem [#allocation9], 120
        %307 = vxpose.xlu0.b32.start [1/16] %v291, 128
        %308 = vxpose.xlu0.b32.cont [2/16] 0, 128
        %309 = vxpose.xlu0.b32.cont [3/16] 0, 128
        %310 = vxpose.xlu0.b32.cont [4/16] 0, 128
        %311 = vxpose.xlu0.b32.cont [5/16] 0, 128
        %312 = vxpose.xlu0.b32.cont [6/16] 0, 128
        %313 = vxpose.xlu0.b32.cont [7/16] 0, 128
        %314 = vxpose.xlu0.b32.cont [8/16] 0, 128
        %315 = vxpose.xlu0.b32.cont [9/16] 0, 128
        %316 = vxpose.xlu0.b32.cont [10/16] 0, 128
        %317 = vxpose.xlu0.b32.cont [11/16] 0, 128
        %318 = vxpose.xlu0.b32.cont [12/16] 0, 128
        %319 = vxpose.xlu0.b32.cont [13/16] 0, 128
        %320 = vxpose.xlu0.b32.cont [14/16] 0, 128
        %321 = vxpose.xlu0.b32.cont [15/16] 0, 128
        %322 = vxpose.xlu0.b32.end [16/16] 0, 128
        %v323 = vpop.trf.xlu0
        %v324 = vpop.trf.xlu0
        %v325 = vpop.trf.xlu0
        %v326 = vpop.trf.xlu0
        %v327 = vpop.trf.xlu0
        %v328 = vpop.trf.xlu0
        %v329 = vpop.trf.xlu0
        %v330 = vpop.trf.xlu0
        %v331 = vpop.trf.xlu0
        %v332 = vpop.trf.xlu0
        %v333 = vpop.trf.xlu0
        %v334 = vpop.trf.xlu0
        %v335 = vpop.trf.xlu0
        %v336 = vpop.trf.xlu0
        %v337 = vpop.trf.xlu0
        %v338 = vpop.trf.xlu0
        %339 = vst [vmem:[%s166] sm:$0x1] %v323
        %s341 = ssub.s32 16, 1
        %v342 = vld [vmem:[#allocation2] sm:%s341]
        %s344 = ssub.s32 16, 1
        %345 = vst [vmem:[%s141] sm:%s344] %v342
        %s347 = ssub.s32 4, 1
        %v348 = vld [vmem:[#allocation4] sm:%s347]
        %s350 = ssub.s32 4, 1
        %351 = vst [vmem:[%s148] sm:%s350] %v348
        %s353 = ssub.s32 4, 1
        %v354 = vld [vmem:[#allocation7] sm:%s353]
        %s356 = ssub.s32 4, 1
        %357 = vst [vmem:[%s154] sm:%s356] %v354
        %s358 = sand.u32 %s14, 1
        %s359 = sand.u32 %s14, 1
        %s360 = smul.addr %s359, 4
        %s361 = scalar_lea.vmem [#allocation3], %s360
        %s362 = sand.u32 %s24, 1
        %s363 = scalar_lea.sflag [#allocation6], %s362
        %s364 = sand.u32 %s24, 1
        %s365 = smul.addr %s364, 2
        %s366 = scalar_lea.vmem [#allocation5], %s365
        %s367 = sand.u32 %s52, 1
        %s368 = sand.u32 %s52, 1
        %s369 = smul.addr %s368, 2
        %s370 = scalar_lea.vmem [#allocation8], %s369
        %s371 = smul.addr %s14, 4
        %s372 = scalar_lea.vmem %s1, %s371
        // Predicated region
        $region59: #{custom-call.8} parent=49 // pred_check
          _
        $region60: #{custom-call.8} parent=49 // pred_check_branch
          %374 = sbr.rel (0) target = $region62
        $region61: #{custom-call.8} parent=49 // pred_region
          // Predicated region
          $region63: #{custom-call.8} parent=61 // pred_check
            _
          $region64: #{custom-call.8} parent=61 // pred_check_branch
            %376 = sbr.rel target = $region66
          $region65: #{custom-call.8} parent=61 // pred_region
            // Predicated region
            $region78: #{custom-call.8} parent=65 // pred_check
              _
            $region79: #{custom-call.8} parent=65 // pred_check_branch
              %392 = sbr.rel (0) target = $region81
            $region80: #{custom-call.8} parent=65 // pred_region
              %s394 = ssub.s32 16, 1
              loop: start=0, step=1, limit=1
              $region82: #{custom-call.8} parent=80 // loop_pre_header
                _
              $region83: #{custom-call.8} parent=80 // loop_header
                %s396 = sphi 0, %s400
                %p397 = scmp.ge.s32.totalorder %s396, 1
                %s401 = sphi %s361, %s361
                %s402 = sphi %s372, %s372
              $region84: #{custom-call.8} parent=80 // loop_header_branch
                %399 = sbr.rel (%p397) target = $region88
              $region85: #{custom-call.8} parent=80 // loop_body
                %v403 = vld [vmem:[%s401] sm:%s394]
                %404 = vst [vmem:[%s402] sm:%s394] %v403
              $region86: #{custom-call.8} parent=80 // loop_footer
                %s400 = sadd.s32 1, %s396
              $region87: #{custom-call.8} parent=80 // loop_footer_branch
                %395 = sbr.rel target = $region83
              $region88: #{custom-call.8} parent=80 // loop_exit
                _
            $region81: #{custom-call.8} parent=65 // pred_fallthru
              _
          $region66: #{custom-call.8} parent=61 // pred_fallthru
            _
          // Predicated region
          $region67: #{custom-call.8} parent=61 // pred_check
            _
          $region68: #{custom-call.8} parent=61 // pred_check_branch
            %378 = sbr.rel (0) target = $region70
          $region69: #{custom-call.8} parent=61 // pred_region
            %s380 = ssub.s32 16, 1
            loop: start=0, step=1, limit=1
            $region71: #{custom-call.8} parent=69 // loop_pre_header
              _
            $region72: #{custom-call.8} parent=69 // loop_header
              %s382 = sphi 0, %s386
              %p383 = scmp.ge.s32.totalorder %s382, 1
              %s387 = sphi %s361, %s361
              %s388 = sphi %s372, %s372
            $region73: #{custom-call.8} parent=69 // loop_header_branch
              %385 = sbr.rel (%p383) target = $region77
            $region74: #{custom-call.8} parent=69 // loop_body
              %v389 = vld [vmem:[%s387] sm:%s380]
              %390 = vst [vmem:[%s388] sm:%s380] %v389
            $region75: #{custom-call.8} parent=69 // loop_footer
              %s386 = sadd.s32 1, %s382
            $region76: #{custom-call.8} parent=69 // loop_footer_branch
              %381 = sbr.rel target = $region72
            $region77: #{custom-call.8} parent=69 // loop_exit
              _
          $region70: #{custom-call.8} parent=61 // pred_fallthru
            _
        $region62: #{custom-call.8} parent=49 // pred_fallthru
          _
        %405 = vnop
        // Predicated region
        $region89: #{custom-call.8} parent=49 // pred_check
          %p406 = pneg %p34
        $region90: #{custom-call.8} parent=49 // pred_check_branch
          %408 = sbr.rel (%p406) target = $region92
        $region91: #{custom-call.8} parent=49 // pred_region
          %s409 = sshrl.u32 %s14, 3
          %411 = vsyncadd %s363, 0
          %s412 = smul.addr %s409, 2
          %s413 = scalar_lea.hbm %s2, %s412
          %s415 = sshll.u32 %s366, 4
          %s416 = int_to_ptr.vmem [resolvable:$true] %s415
          %s417 = sshll.u32 %s413, 4
          %s418 = int_to_ptr.hbm [resolvable:$true] %s417
          %420 = dma.vmem_to_hbm [thread:$0]  %s416, 32, %s418, %s363
        $region92: #{custom-call.8} parent=49 // pred_fallthru
          _
        // Predicated region
        $region93: #{custom-call.8} parent=49 // pred_check
          %p421 = pneg %p62
        $region94: #{custom-call.8} parent=49 // pred_check_branch
          %423 = sbr.rel (%p421) target = $region96
        $region95: #{custom-call.8} parent=49 // pred_region
          %s424 = sshrl.u32 %s14, 3
          %s425 = smul.addr %s424, 2
          %s426 = scalar_lea.vmem %s3, %s425
          // Predicated region
          $region97: #{custom-call.8} parent=95 // pred_check
            _
          $region98: #{custom-call.8} parent=95 // pred_check_branch
            %428 = sbr.rel (0) target = $region100
          $region99: #{custom-call.8} parent=95 // pred_region
            // Predicated region
            $region101: #{custom-call.8} parent=99 // pred_check
              _
            $region102: #{custom-call.8} parent=99 // pred_check_branch
              %430 = sbr.rel target = $region104
            $region103: #{custom-call.8} parent=99 // pred_region
              // Predicated region
              $region116: #{custom-call.8} parent=103 // pred_check
                _
              $region117: #{custom-call.8} parent=103 // pred_check_branch
                %446 = sbr.rel (0) target = $region119
              $region118: #{custom-call.8} parent=103 // pred_region
                %s448 = ssub.s32 4, 1
                loop: start=0, step=1, limit=1
                $region120: #{custom-call.8} parent=118 // loop_pre_header
                  _
                $region121: #{custom-call.8} parent=118 // loop_header
                  %s450 = sphi 0, %s454
                  %p451 = scmp.ge.s32.totalorder %s450, 1
                  %s455 = sphi %s370, %s370
                  %s456 = sphi %s426, %s426
                $region122: #{custom-call.8} parent=118 // loop_header_branch
                  %453 = sbr.rel (%p451) target = $region126
                $region123: #{custom-call.8} parent=118 // loop_body
                  %v457 = vld [vmem:[%s455] sm:%s448]
                  %458 = vst [vmem:[%s456] sm:%s448] %v457
                $region124: #{custom-call.8} parent=118 // loop_footer
                  %s454 = sadd.s32 1, %s450
                $region125: #{custom-call.8} parent=118 // loop_footer_branch
                  %449 = sbr.rel target = $region121
                $region126: #{custom-call.8} parent=118 // loop_exit
                  _
              $region119: #{custom-call.8} parent=103 // pred_fallthru
                _
            $region104: #{custom-call.8} parent=99 // pred_fallthru
              _
            // Predicated region
            $region105: #{custom-call.8} parent=99 // pred_check
              _
            $region106: #{custom-call.8} parent=99 // pred_check_branch
              %432 = sbr.rel (0) target = $region108
            $region107: #{custom-call.8} parent=99 // pred_region
              %s434 = ssub.s32 4, 1
              loop: start=0, step=1, limit=1
              $region109: #{custom-call.8} parent=107 // loop_pre_header
                _
              $region110: #{custom-call.8} parent=107 // loop_header
                %s436 = sphi 0, %s440
                %p437 = scmp.ge.s32.totalorder %s436, 1
                %s441 = sphi %s370, %s370
                %s442 = sphi %s426, %s426
              $region111: #{custom-call.8} parent=107 // loop_header_branch
                %439 = sbr.rel (%p437) target = $region115
              $region112: #{custom-call.8} parent=107 // loop_body
                %v443 = vld [vmem:[%s441] sm:%s434]
                %444 = vst [vmem:[%s442] sm:%s434] %v443
              $region113: #{custom-call.8} parent=107 // loop_footer
                %s440 = sadd.s32 1, %s436
              $region114: #{custom-call.8} parent=107 // loop_footer_branch
                %435 = sbr.rel target = $region110
              $region115: #{custom-call.8} parent=107 // loop_exit
                _
            $region108: #{custom-call.8} parent=99 // pred_fallthru
              _
          $region100: #{custom-call.8} parent=95 // pred_fallthru
            _
          %459 = vnop
        $region96: #{custom-call.8} parent=49 // pred_fallthru
          _
      $region50: #{custom-call.8} parent=5 // pred_fallthru
        _
      %p460 = scmp.le.s32.totalorder 2, %s9
      // Predicated region
      $region127: #{custom-call.8} parent=5 // pred_check
        %p461 = pneg %p460
      $region128: #{custom-call.8} parent=5 // pred_check_branch
        %463 = sbr.rel (%p461) target = $region130
      $region129: #{custom-call.8} parent=5 // pred_region
        %s464 = ssub.s32 %s9, 2
        %s465 = sand.u32 %s15, 1
        %s466 = sand.u32 %s15, 1
        %s467 = smul.addr %s466, 4
        %s468 = scalar_lea.vmem [#allocation3], %s467
        // Predicated region
        $region131: #{custom-call.8} parent=129 // pred_check
          %p469 = pneg %p40
        $region132: #{custom-call.8} parent=129 // pred_check_branch
          %471 = sbr.rel (%p469) target = $region134
        $region133: #{custom-call.8} parent=129 // pred_region
          %s472 = sand.u32 %s25, 1
          %s473 = scalar_lea.sflag [#allocation6], %s472
          %s474 = sand.u32 %s25, 1
          %s475 = smul.addr %s474, 2
          %s476 = scalar_lea.vmem [#allocation5], %s475
          %478 = dma.done %s473, 32
        $region134: #{custom-call.8} parent=129 // pred_fallthru
          _
        // Predicated region
        $region135: #{custom-call.8} parent=129 // pred_check
          %p479 = pneg %p68
        $region136: #{custom-call.8} parent=129 // pred_check_branch
          %481 = sbr.rel (%p479) target = $region138
        $region137: #{custom-call.8} parent=129 // pred_region
          %s482 = sand.u32 %s53, 1
          %s483 = sand.u32 %s53, 1
          %s484 = smul.addr %s483, 2
          %s485 = scalar_lea.vmem [#allocation8], %s484
        $region138: #{custom-call.8} parent=129 // pred_fallthru
          _
      $region130: #{custom-call.8} parent=5 // pred_fallthru
        _
    $region6: #{custom-call.8} parent=1 // loop_footer
      %s13 = sadd.s32 1, %s9
    $region7: #{custom-call.8} parent=1 // loop_footer_branch
      %8 = sbr.rel target = $region3
    $region8: #{custom-call.8} parent=1 // loop_exit
      _
    %486 = vsyncpa [#allocation6], 1
    %s487 = scalar_lea.sflag [#allocation6], 1
    %488 = vsyncpa %s487, 1

// kernel: custom-call.9
$region0: #{custom-call.9}
  %s0 = inlined_call_operand.vmem [shape: f32[2,1,3,3], index: 0, kind: input, shape index: {}]
  %s1 = inlined_call_operand.vmem [shape: f32[2,1,3,3], index: 1, kind: output, shape index: {}]
  $region1: #{custom-call.9} parent=0
    #allocation0 [shape = 'u8[4096]{0}', space=vmem, size = 0x1000, scoped, tag = 'operand span for operand 0']
    #allocation1 [shape = 'u8[4096]{0}', space=vmem, size = 0x1000, scoped, tag = 'packed  for operand 0']
    #allocation2 [shape = 'u8[4096]{0}', space=vmem, size = 0x1000, scoped, tag = 'operand span for operand 1']
    #allocation3 [shape = 'u8[4096]{0}', space=vmem, size = 0x1000, scoped, tag = 'packed  for operand 1']
    loop: start=0, step=1, limit=4
    $region2: #{custom-call.9} parent=1 // loop_pre_header
      _
    $region3: #{custom-call.9} parent=1 // loop_header
      %s3 = sphi 0, %s7
      %p4 = scmp.ge.s32.totalorder %s3, 4
      %s10 = sphi 0, %s36
      %s11 = sphi 0, %s32
      %s12 = sphi 0, %s28
      %s13 = sphi 0, %s24
      %s14 = sphi 0, %s10
      %s15 = sphi 0, %s11
      %s16 = sphi 0, %s12
      %s17 = sphi 0, %s13
      %s18 = sphi 0, %s14
      %s19 = sphi 0, %s15
      %s20 = sphi 0, %s16
      %s21 = sphi 0, %s17
    $region4: #{custom-call.9} parent=1 // loop_header_branch
      %6 = sbr.rel (%p4) target = $region8
    $region5: #{custom-call.9} parent=1 // loop_body
      %s8 = ssub.s32 %s3, 1
      %s9 = ssub.s32 %s3, 2
      %s22 = sadd.s32 1, %s13
      %p23 = scmp.ge.s32.totalorder %s22, 1
      %s24 = scalar_select %p23, 0, %s22
      %s25 = sadd.s32 1, %s12
      %s26 = scalar_select %p23, %s25, %s12
      %p27 = scmp.ge.s32.totalorder %s26, 1
      %s28 = scalar_select %p27, 0, %s26
      %s29 = sadd.s32 1, %s11
      %s30 = scalar_select %p27, %s29, %s11
      %p31 = scmp.ge.s32.totalorder %s30, 1
      %s32 = scalar_select %p31, 0, %s30
      %s33 = sadd.s32 1, %s10
      %s34 = scalar_select %p31, %s33, %s10
      %p35 = scmp.ge.s32.totalorder %s34, 2
      %s36 = scalar_select %p35, 0, %s34
      %p37 = scmp.le.s32.totalorder 1, %s3
      %p38 = scmp.lt.s32.totalorder %s3, 3
      %p39 = pnand %p37, %p38
      %p40 = pneg %p39
      // Predicated region
      $region9: #{custom-call.9} parent=5 // pred_check
        _
      $region10: #{custom-call.9} parent=5 // pred_check_branch
        %42 = sbr.rel (%p39) target = $region12
      $region11: #{custom-call.9} parent=5 // pred_region
        %s43 = ssub.s32 %s3, 1
      $region12: #{custom-call.9} parent=5 // pred_fallthru
        _
      %p44 = scmp.lt.s32.totalorder %s3, 2
      // Predicated region
      $region13: #{custom-call.9} parent=5 // pred_check
        %p45 = pneg %p44
      $region14: #{custom-call.9} parent=5 // pred_check_branch
        %47 = sbr.rel (%p45) target = $region16
      $region15: #{custom-call.9} parent=5 // pred_region
        %s48 = sand.u32 %s3, 1
        %s49 = sand.u32 %s3, 1
        %s50 = smul.addr %s49, 4
        %s51 = scalar_lea.vmem [#allocation1], %s50
        %s52 = sadd.s32 %s13, %s12
        %s53 = sadd.s32 %s52, %s11
        %s54 = sadd.s32 %s53, %s10
        %s55 = smul.addr %s54, 4
        %s56 = scalar_lea.vmem %s0, %s55
        // Predicated region
        $region17: #{custom-call.9} parent=15 // pred_check
          _
        $region18: #{custom-call.9} parent=15 // pred_check_branch
          %58 = sbr.rel (0) target = $region20
        $region19: #{custom-call.9} parent=15 // pred_region
          // Predicated region
          $region21: #{custom-call.9} parent=19 // pred_check
            _
          $region22: #{custom-call.9} parent=19 // pred_check_branch
            %60 = sbr.rel target = $region24
          $region23: #{custom-call.9} parent=19 // pred_region
            // Predicated region
            $region36: #{custom-call.9} parent=23 // pred_check
              _
            $region37: #{custom-call.9} parent=23 // pred_check_branch
              %76 = sbr.rel (0) target = $region39
            $region38: #{custom-call.9} parent=23 // pred_region
              %s78 = ssub.s32 16, 1
              loop: start=0, step=1, limit=1
              $region40: #{custom-call.9} parent=38 // loop_pre_header
                _
              $region41: #{custom-call.9} parent=38 // loop_header
                %s80 = sphi 0, %s84
                %p81 = scmp.ge.s32.totalorder %s80, 1
                %s85 = sphi %s56, %s56
                %s86 = sphi %s51, %s51
              $region42: #{custom-call.9} parent=38 // loop_header_branch
                %83 = sbr.rel (%p81) target = $region46
              $region43: #{custom-call.9} parent=38 // loop_body
                %v87 = vld [vmem:[%s85] sm:%s78]
                %88 = vst [vmem:[%s86] sm:%s78] %v87
              $region44: #{custom-call.9} parent=38 // loop_footer
                %s84 = sadd.s32 1, %s80
              $region45: #{custom-call.9} parent=38 // loop_footer_branch
                %79 = sbr.rel target = $region41
              $region46: #{custom-call.9} parent=38 // loop_exit
                _
            $region39: #{custom-call.9} parent=23 // pred_fallthru
              _
          $region24: #{custom-call.9} parent=19 // pred_fallthru
            _
          // Predicated region
          $region25: #{custom-call.9} parent=19 // pred_check
            _
          $region26: #{custom-call.9} parent=19 // pred_check_branch
            %62 = sbr.rel (0) target = $region28
          $region27: #{custom-call.9} parent=19 // pred_region
            %s64 = ssub.s32 16, 1
            loop: start=0, step=1, limit=1
            $region29: #{custom-call.9} parent=27 // loop_pre_header
              _
            $region30: #{custom-call.9} parent=27 // loop_header
              %s66 = sphi 0, %s70
              %p67 = scmp.ge.s32.totalorder %s66, 1
              %s71 = sphi %s56, %s56
              %s72 = sphi %s51, %s51
            $region31: #{custom-call.9} parent=27 // loop_header_branch
              %69 = sbr.rel (%p67) target = $region35
            $region32: #{custom-call.9} parent=27 // loop_body
              %v73 = vld [vmem:[%s71] sm:%s64]
              %74 = vst [vmem:[%s72] sm:%s64] %v73
            $region33: #{custom-call.9} parent=27 // loop_footer
              %s70 = sadd.s32 1, %s66
            $region34: #{custom-call.9} parent=27 // loop_footer_branch
              %65 = sbr.rel target = $region30
            $region35: #{custom-call.9} parent=27 // loop_exit
              _
          $region28: #{custom-call.9} parent=19 // pred_fallthru
            _
        $region20: #{custom-call.9} parent=15 // pred_fallthru
          _
        %89 = vnop
      $region16: #{custom-call.9} parent=5 // pred_fallthru
        _
      %p90 = scmp.le.s32.totalorder 1, %s3
      %p91 = scmp.lt.s32.totalorder %s3, 3
      %p92 = pnand %p90, %p91
      %p93 = pneg %p92
      // Predicated region
      $region47: #{custom-call.9} parent=5 // pred_check
        _
      $region48: #{custom-call.9} parent=5 // pred_check_branch
        %95 = sbr.rel (%p92) target = $region50
      $region49: #{custom-call.9} parent=5 // pred_region
        #allocation4 [shape = 'f32[3,3]{1,0}', space=vmem, size = 0x1000, scoped, tag = 'rescaled input a']
        %s96 = ssub.s32 %s3, 1
        %s97 = sand.u32 %s8, 1
        %s98 = sand.u32 %s8, 1
        %s99 = smul.addr %s98, 4
        %s100 = scalar_lea.vmem [#allocation1], %s99
        %s101 = sand.u32 %s8, 1
        %s102 = sand.u32 %s8, 1
        %s103 = smul.addr %s102, 4
        %s104 = scalar_lea.vmem [#allocation1], %s103
        %s105 = sand.u32 %s8, 1
        %s106 = sand.u32 %s8, 1
        %s107 = smul.addr %s106, 4
        %s108 = scalar_lea.vmem [#allocation3], %s107
        %s110 = ssub.s32 16, 1
        %v111 = vld [vmem:[%s104] sm:%s110]
        %112 = vst [vmem:[#allocation0] sm:%s110] %v111
        %v113 = vlaneseq
        %v114 = vand.u32 %v113, 127
        %vm115 = vcmp.lt.s32.totalorder %v114, 3
        %v116 = vlaneseq
        %v117 = vshrl.u32 %v116, 7
        %vm119 = vcmp.eq.s32.totalorder %v117, %v114
        %v120 = vld [vmem:[#allocation0] sm:$0xff]
        %v121 = vsel %vm119, %v120, 0.0
        %122 = vadd.xlane.f32.xlu0 %v121
        %v123 = vpop.xlane.xlu0 %122
        %vm124 = vcmp.le.s32.totalorder %v117, %v114
        %vm125 = vmand %vm124, %vm115
        %v126 = vsel %vm125, %v120, 0.0
        %v127 = vrcp.pop %v123
        %v128 = vmul.f32 %v123, %v127
        %v129 = vsub.f32 1.0, %v128
        %v130 = vmul.f32 %v127, %v129
        %v131 = vadd.f32 %v127, %v130
        %vm132 = vweird.f32 %v123
        %vm133 = vweird.f32 %v127
        %vm134 = vmor %vm132, %vm133
        %v135 = vsel %vm134, %v127, %v131
        %v136 = vand.u32 2147483647, %v123
        %vm137 = vcmp.eq.f32.partialorder %v136, 8.507059e+37
        %v138 = vand.u32 %v123, 2147483648
        %v139 = vor.u32 1.1754944e-38, %v138
        %v140 = vsel %vm137, %v139, %v135
        %v141 = vmul.f32 %v126, %v140
        %142 = vst [vmem:[#allocation4] sm:$0xff] %v141
        %v143 = vlaneseq
        %v144 = vand.u32 %v143, 127
        %v145 = vlaneseq
        %v146 = vshrl.u32 %v145, 7
        %vm148 = vcmp.eq.s32.totalorder %v144, %v146
        %v149 = vlaneseq
        %v150 = vand.u32 %v149, 127
        %vm151 = vcmp.eq.s32.totalorder %v150, 2
        %v152 = vsel %vm151, 1.0, -1.0
        %v153 = vsel %vm148, %v152, 0.0
        %s154 = scalar_lea.vmem [#allocation4], 1
        %v155 = vld [vmem:[%s154] ss:$0 sm:$0xff]
        %v156 = vxor.u32 %v155, 2147483648
        %v157 = vlaneseq
        %v158 = vand.u32 %v157, 127
        %vm159 = vcmp.eq.s32.totalorder %v158, 1
        %v160 = vmul.f32 %v156, %v153
        %161 = vadd.xlane.f32.xlu0 %v160
        %v162 = vpop.xlane.xlu0 %161
        %v163 = vsel %vm159, %v162, %v153
        %v164 = vld [vmem:[#allocation4] ss:$0 sm:$0xff]
        %v165 = vxor.u32 %v164, 2147483648
        %v166 = vlaneseq
        %v167 = vand.u32 %v166, 127
        %vm168 = vcmp.eq.s32.totalorder %v167, 0
        %v169 = vmul.f32 %v165, %v163
        %170 = vadd.xlane.f32.xlu0 %v169
        %v171 = vpop.xlane.xlu0 %170
        %v172 = vsel %vm168, %v171, %v163
        %v173 = vrcp.pop %v123
        %v174 = vmul.f32 %v123, %v173
        %v175 = vsub.f32 1.0, %v174
        %v176 = vmul.f32 %v173, %v175
        %v177 = vadd.f32 %v173, %v176
        %vm178 = vweird.f32 %v123
        %vm179 = vweird.f32 %v173
        %vm180 = vmor %vm178, %vm179
        %v181 = vsel %vm180, %v173, %v177
        %v182 = vand.u32 2147483647, %v123
        %vm183 = vcmp.eq.f32.partialorder %v182, 8.507059e+37
        %v184 = vand.u32 %v123, 2147483648
        %v185 = vor.u32 1.1754944e-38, %v184
        %v186 = vsel %vm183, %v185, %v181
        %v187 = vmul.f32 %v172, %v186
        %vm188 = vweird.f32 %v123
        %v189 = vsel %vm188, %v172, %v187
        %190 = vst [vmem:[#allocation2] sm:$0xff] %v189
        %s192 = ssub.s32 16, 1
        %v193 = vld [vmem:[#allocation2] sm:%s192]
        %s195 = ssub.s32 16, 1
        %196 = vst [vmem:[%s108] sm:%s195] %v193
        %s197 = sand.u32 %s8, 1
        %s198 = sand.u32 %s8, 1
        %s199 = smul.addr %s198, 4
        %s200 = scalar_lea.vmem [#allocation3], %s199
        %s201 = sadd.s32 %s17, %s16
        %s202 = sadd.s32 %s201, %s15
        %s203 = sadd.s32 %s202, %s14
        %s204 = smul.addr %s203, 4
        %s205 = scalar_lea.vmem %s1, %s204
        // Predicated region
        $region51: #{custom-call.9} parent=49 // pred_check
          _
        $region52: #{custom-call.9} parent=49 // pred_check_branch
          %207 = sbr.rel (0) target = $region54
        $region53: #{custom-call.9} parent=49 // pred_region
          // Predicated region
          $region55: #{custom-call.9} parent=53 // pred_check
            _
          $region56: #{custom-call.9} parent=53 // pred_check_branch
            %209 = sbr.rel target = $region58
          $region57: #{custom-call.9} parent=53 // pred_region
            // Predicated region
            $region70: #{custom-call.9} parent=57 // pred_check
              _
            $region71: #{custom-call.9} parent=57 // pred_check_branch
              %225 = sbr.rel (0) target = $region73
            $region72: #{custom-call.9} parent=57 // pred_region
              %s227 = ssub.s32 16, 1
              loop: start=0, step=1, limit=1
              $region74: #{custom-call.9} parent=72 // loop_pre_header
                _
              $region75: #{custom-call.9} parent=72 // loop_header
                %s229 = sphi 0, %s233
                %p230 = scmp.ge.s32.totalorder %s229, 1
                %s234 = sphi %s200, %s200
                %s235 = sphi %s205, %s205
              $region76: #{custom-call.9} parent=72 // loop_header_branch
                %232 = sbr.rel (%p230) target = $region80
              $region77: #{custom-call.9} parent=72 // loop_body
                %v236 = vld [vmem:[%s234] sm:%s227]
                %237 = vst [vmem:[%s235] sm:%s227] %v236
              $region78: #{custom-call.9} parent=72 // loop_footer
                %s233 = sadd.s32 1, %s229
              $region79: #{custom-call.9} parent=72 // loop_footer_branch
                %228 = sbr.rel target = $region75
              $region80: #{custom-call.9} parent=72 // loop_exit
                _
            $region73: #{custom-call.9} parent=57 // pred_fallthru
              _
          $region58: #{custom-call.9} parent=53 // pred_fallthru
            _
          // Predicated region
          $region59: #{custom-call.9} parent=53 // pred_check
            _
          $region60: #{custom-call.9} parent=53 // pred_check_branch
            %211 = sbr.rel (0) target = $region62
          $region61: #{custom-call.9} parent=53 // pred_region
            %s213 = ssub.s32 16, 1
            loop: start=0, step=1, limit=1
            $region63: #{custom-call.9} parent=61 // loop_pre_header
              _
            $region64: #{custom-call.9} parent=61 // loop_header
              %s215 = sphi 0, %s219
              %p216 = scmp.ge.s32.totalorder %s215, 1
              %s220 = sphi %s200, %s200
              %s221 = sphi %s205, %s205
            $region65: #{custom-call.9} parent=61 // loop_header_branch
              %218 = sbr.rel (%p216) target = $region69
            $region66: #{custom-call.9} parent=61 // loop_body
              %v222 = vld [vmem:[%s220] sm:%s213]
              %223 = vst [vmem:[%s221] sm:%s213] %v222
            $region67: #{custom-call.9} parent=61 // loop_footer
              %s219 = sadd.s32 1, %s215
            $region68: #{custom-call.9} parent=61 // loop_footer_branch
              %214 = sbr.rel target = $region64
            $region69: #{custom-call.9} parent=61 // loop_exit
              _
          $region62: #{custom-call.9} parent=53 // pred_fallthru
            _
        $region54: #{custom-call.9} parent=49 // pred_fallthru
          _
        %238 = vnop
      $region50: #{custom-call.9} parent=5 // pred_fallthru
        _
      %p239 = scmp.le.s32.totalorder 2, %s3
      // Predicated region
      $region81: #{custom-call.9} parent=5 // pred_check
        %p240 = pneg %p239
      $region82: #{custom-call.9} parent=5 // pred_check_branch
        %242 = sbr.rel (%p240) target = $region84
      $region83: #{custom-call.9} parent=5 // pred_region
        %s243 = ssub.s32 %s3, 2
        %s244 = sand.u32 %s9, 1
        %s245 = sand.u32 %s9, 1
        %s246 = smul.addr %s245, 4
        %s247 = scalar_lea.vmem [#allocation3], %s246
      $region84: #{custom-call.9} parent=5 // pred_fallthru
        _
    $region6: #{custom-call.9} parent=1 // loop_footer
      %s7 = sadd.s32 1, %s3
    $region7: #{custom-call.9} parent=1 // loop_footer_branch
      %2 = sbr.rel target = $region3
    $region8: #{custom-call.9} parent=1 // loop_exit
      _

// kernel: custom-call.10
$region0: #{custom-call.10}
  %s0 = inlined_call_operand.vmem [shape: f32[2,1,3,3], index: 0, kind: input, shape index: {}]
  %s1 = inlined_call_operand.vmem [shape: f32[2,1,3,3], index: 1, kind: output, shape index: {}]
  $region1: #{custom-call.10} parent=0
    #allocation0 [shape = 'u8[4096]{0}', space=vmem, size = 0x1000, scoped, tag = 'operand span for operand 0']
    #allocation1 [shape = 'u8[4096]{0}', space=vmem, size = 0x1000, scoped, tag = 'packed  for operand 0']
    #allocation2 [shape = 'u8[4096]{0}', space=vmem, size = 0x1000, scoped, tag = 'operand span for operand 1']
    #allocation3 [shape = 'u8[4096]{0}', space=vmem, size = 0x1000, scoped, tag = 'packed  for operand 1']
    loop: start=0, step=1, limit=4
    $region2: #{custom-call.10} parent=1 // loop_pre_header
      _
    $region3: #{custom-call.10} parent=1 // loop_header
      %s3 = sphi 0, %s7
      %p4 = scmp.ge.s32.totalorder %s3, 4
      %s10 = sphi 0, %s36
      %s11 = sphi 0, %s32
      %s12 = sphi 0, %s28
      %s13 = sphi 0, %s24
      %s14 = sphi 0, %s10
      %s15 = sphi 0, %s11
      %s16 = sphi 0, %s12
      %s17 = sphi 0, %s13
      %s18 = sphi 0, %s14
      %s19 = sphi 0, %s15
      %s20 = sphi 0, %s16
      %s21 = sphi 0, %s17
    $region4: #{custom-call.10} parent=1 // loop_header_branch
      %6 = sbr.rel (%p4) target = $region8
    $region5: #{custom-call.10} parent=1 // loop_body
      %s8 = ssub.s32 %s3, 1
      %s9 = ssub.s32 %s3, 2
      %s22 = sadd.s32 1, %s13
      %p23 = scmp.ge.s32.totalorder %s22, 1
      %s24 = scalar_select %p23, 0, %s22
      %s25 = sadd.s32 1, %s12
      %s26 = scalar_select %p23, %s25, %s12
      %p27 = scmp.ge.s32.totalorder %s26, 1
      %s28 = scalar_select %p27, 0, %s26
      %s29 = sadd.s32 1, %s11
      %s30 = scalar_select %p27, %s29, %s11
      %p31 = scmp.ge.s32.totalorder %s30, 1
      %s32 = scalar_select %p31, 0, %s30
      %s33 = sadd.s32 1, %s10
      %s34 = scalar_select %p31, %s33, %s10
      %p35 = scmp.ge.s32.totalorder %s34, 2
      %s36 = scalar_select %p35, 0, %s34
      %p37 = scmp.le.s32.totalorder 1, %s3
      %p38 = scmp.lt.s32.totalorder %s3, 3
      %p39 = pnand %p37, %p38
      %p40 = pneg %p39
      // Predicated region
      $region9: #{custom-call.10} parent=5 // pred_check
        _
      $region10: #{custom-call.10} parent=5 // pred_check_branch
        %42 = sbr.rel (%p39) target = $region12
      $region11: #{custom-call.10} parent=5 // pred_region
        %s43 = ssub.s32 %s3, 1
      $region12: #{custom-call.10} parent=5 // pred_fallthru
        _
      %p44 = scmp.lt.s32.totalorder %s3, 2
      // Predicated region
      $region13: #{custom-call.10} parent=5 // pred_check
        %p45 = pneg %p44
      $region14: #{custom-call.10} parent=5 // pred_check_branch
        %47 = sbr.rel (%p45) target = $region16
      $region15: #{custom-call.10} parent=5 // pred_region
        %s48 = sand.u32 %s3, 1
        %s49 = sand.u32 %s3, 1
        %s50 = smul.addr %s49, 4
        %s51 = scalar_lea.vmem [#allocation1], %s50
        %s52 = sadd.s32 %s13, %s12
        %s53 = sadd.s32 %s52, %s11
        %s54 = sadd.s32 %s53, %s10
        %s55 = smul.addr %s54, 4
        %s56 = scalar_lea.vmem %s0, %s55
        // Predicated region
        $region17: #{custom-call.10} parent=15 // pred_check
          _
        $region18: #{custom-call.10} parent=15 // pred_check_branch
          %58 = sbr.rel (0) target = $region20
        $region19: #{custom-call.10} parent=15 // pred_region
          // Predicated region
          $region21: #{custom-call.10} parent=19 // pred_check
            _
          $region22: #{custom-call.10} parent=19 // pred_check_branch
            %60 = sbr.rel target = $region24
          $region23: #{custom-call.10} parent=19 // pred_region
            // Predicated region
            $region36: #{custom-call.10} parent=23 // pred_check
              _
            $region37: #{custom-call.10} parent=23 // pred_check_branch
              %76 = sbr.rel (0) target = $region39
            $region38: #{custom-call.10} parent=23 // pred_region
              %s78 = ssub.s32 16, 1
              loop: start=0, step=1, limit=1
              $region40: #{custom-call.10} parent=38 // loop_pre_header
                _
              $region41: #{custom-call.10} parent=38 // loop_header
                %s80 = sphi 0, %s84
                %p81 = scmp.ge.s32.totalorder %s80, 1
                %s85 = sphi %s56, %s56
                %s86 = sphi %s51, %s51
              $region42: #{custom-call.10} parent=38 // loop_header_branch
                %83 = sbr.rel (%p81) target = $region46
              $region43: #{custom-call.10} parent=38 // loop_body
                %v87 = vld [vmem:[%s85] sm:%s78]
                %88 = vst [vmem:[%s86] sm:%s78] %v87
              $region44: #{custom-call.10} parent=38 // loop_footer
                %s84 = sadd.s32 1, %s80
              $region45: #{custom-call.10} parent=38 // loop_footer_branch
                %79 = sbr.rel target = $region41
              $region46: #{custom-call.10} parent=38 // loop_exit
                _
            $region39: #{custom-call.10} parent=23 // pred_fallthru
              _
          $region24: #{custom-call.10} parent=19 // pred_fallthru
            _
          // Predicated region
          $region25: #{custom-call.10} parent=19 // pred_check
            _
          $region26: #{custom-call.10} parent=19 // pred_check_branch
            %62 = sbr.rel (0) target = $region28
          $region27: #{custom-call.10} parent=19 // pred_region
            %s64 = ssub.s32 16, 1
            loop: start=0, step=1, limit=1
            $region29: #{custom-call.10} parent=27 // loop_pre_header
              _
            $region30: #{custom-call.10} parent=27 // loop_header
              %s66 = sphi 0, %s70
              %p67 = scmp.ge.s32.totalorder %s66, 1
              %s71 = sphi %s56, %s56
              %s72 = sphi %s51, %s51
            $region31: #{custom-call.10} parent=27 // loop_header_branch
              %69 = sbr.rel (%p67) target = $region35
            $region32: #{custom-call.10} parent=27 // loop_body
              %v73 = vld [vmem:[%s71] sm:%s64]
              %74 = vst [vmem:[%s72] sm:%s64] %v73
            $region33: #{custom-call.10} parent=27 // loop_footer
              %s70 = sadd.s32 1, %s66
            $region34: #{custom-call.10} parent=27 // loop_footer_branch
              %65 = sbr.rel target = $region30
            $region35: #{custom-call.10} parent=27 // loop_exit
              _
          $region28: #{custom-call.10} parent=19 // pred_fallthru
            _
        $region20: #{custom-call.10} parent=15 // pred_fallthru
          _
        %89 = vnop
      $region16: #{custom-call.10} parent=5 // pred_fallthru
        _
      %p90 = scmp.le.s32.totalorder 1, %s3
      %p91 = scmp.lt.s32.totalorder %s3, 3
      %p92 = pnand %p90, %p91
      %p93 = pneg %p92
      // Predicated region
      $region47: #{custom-call.10} parent=5 // pred_check
        _
      $region48: #{custom-call.10} parent=5 // pred_check_branch
        %95 = sbr.rel (%p92) target = $region50
      $region49: #{custom-call.10} parent=5 // pred_region
        #allocation4 [shape = 'f32[3,3]{1,0}', space=vmem, size = 0x1000, scoped, tag = 'rescaled input a']
        %s96 = ssub.s32 %s3, 1
        %s97 = sand.u32 %s8, 1
        %s98 = sand.u32 %s8, 1
        %s99 = smul.addr %s98, 4
        %s100 = scalar_lea.vmem [#allocation1], %s99
        %s101 = sand.u32 %s8, 1
        %s102 = sand.u32 %s8, 1
        %s103 = smul.addr %s102, 4
        %s104 = scalar_lea.vmem [#allocation1], %s103
        %s105 = sand.u32 %s8, 1
        %s106 = sand.u32 %s8, 1
        %s107 = smul.addr %s106, 4
        %s108 = scalar_lea.vmem [#allocation3], %s107
        %s110 = ssub.s32 16, 1
        %v111 = vld [vmem:[%s104] sm:%s110]
        %112 = vst [vmem:[#allocation0] sm:%s110] %v111
        %v113 = vlaneseq
        %v114 = vand.u32 %v113, 127
        %vm115 = vcmp.lt.s32.totalorder %v114, 3
        %v116 = vlaneseq
        %v117 = vshrl.u32 %v116, 7
        %vm119 = vcmp.eq.s32.totalorder %v117, %v114
        %v120 = vld [vmem:[#allocation0] sm:$0xff]
        %v121 = vsel %vm119, %v120, 0.0
        %122 = vadd.xlane.f32.xlu0 %v121
        %v123 = vpop.xlane.xlu0 %122
        %vm124 = vcmp.ge.s32.totalorder %v117, %v114
        %vm125 = vmand %vm124, %vm115
        %v126 = vsel %vm125, %v120, 0.0
        %v127 = vrcp.pop %v123
        %v128 = vmul.f32 %v123, %v127
        %v129 = vsub.f32 1.0, %v128
        %v130 = vmul.f32 %v127, %v129
        %v131 = vadd.f32 %v127, %v130
        %vm132 = vweird.f32 %v123
        %vm133 = vweird.f32 %v127
        %vm134 = vmor %vm132, %vm133
        %v135 = vsel %vm134, %v127, %v131
        %v136 = vand.u32 2147483647, %v123
        %vm137 = vcmp.eq.f32.partialorder %v136, 8.507059e+37
        %v138 = vand.u32 %v123, 2147483648
        %v139 = vor.u32 1.1754944e-38, %v138
        %v140 = vsel %vm137, %v139, %v135
        %v141 = vmul.f32 %v126, %v140
        %142 = vst [vmem:[#allocation4] sm:$0xff] %v141
        %v143 = vlaneseq
        %v144 = vand.u32 %v143, 127
        %v145 = vlaneseq
        %v146 = vshrl.u32 %v145, 7
        %vm148 = vcmp.eq.s32.totalorder %v144, %v146
        %v149 = vlaneseq
        %v150 = vand.u32 %v149, 127
        %vm151 = vcmp.eq.s32.totalorder %v150, 0
        %v152 = vsel %vm151, 1.0, -1.0
        %v153 = vsel %vm148, %v152, 0.0
        %s154 = scalar_lea.vmem [#allocation4], 1
        %v155 = vld [vmem:[%s154] ss:$0 sm:$0xff]
        %v156 = vxor.u32 %v155, 2147483648
        %v157 = vlaneseq
        %v158 = vand.u32 %v157, 127
        %vm159 = vcmp.eq.s32.totalorder %v158, 1
        %v160 = vmul.f32 %v156, %v153
        %161 = vadd.xlane.f32.xlu0 %v160
        %v162 = vpop.xlane.xlu0 %161
        %v163 = vsel %vm159, %v162, %v153
        %s164 = scalar_lea.vmem [#allocation4], 2
        %v165 = vld [vmem:[%s164] ss:$0 sm:$0xff]
        %v166 = vxor.u32 %v165, 2147483648
        %v167 = vlaneseq
        %v168 = vand.u32 %v167, 127
        %vm169 = vcmp.eq.s32.totalorder %v168, 2
        %v170 = vmul.f32 %v166, %v163
        %171 = vadd.xlane.f32.xlu0 %v170
        %v172 = vpop.xlane.xlu0 %171
        %v173 = vsel %vm169, %v172, %v163
        %v174 = vrcp.pop %v123
        %v175 = vmul.f32 %v123, %v174
        %v176 = vsub.f32 1.0, %v175
        %v177 = vmul.f32 %v174, %v176
        %v178 = vadd.f32 %v174, %v177
        %vm179 = vweird.f32 %v123
        %vm180 = vweird.f32 %v174
        %vm181 = vmor %vm179, %vm180
        %v182 = vsel %vm181, %v174, %v178
        %v183 = vand.u32 2147483647, %v123
        %vm184 = vcmp.eq.f32.partialorder %v183, 8.507059e+37
        %v185 = vand.u32 %v123, 2147483648
        %v186 = vor.u32 1.1754944e-38, %v185
        %v187 = vsel %vm184, %v186, %v182
        %v188 = vmul.f32 %v173, %v187
        %vm189 = vweird.f32 %v123
        %v190 = vsel %vm189, %v173, %v188
        %191 = vst [vmem:[#allocation2] sm:$0xff] %v190
        %s193 = ssub.s32 16, 1
        %v194 = vld [vmem:[#allocation2] sm:%s193]
        %s196 = ssub.s32 16, 1
        %197 = vst [vmem:[%s108] sm:%s196] %v194
        %s198 = sand.u32 %s8, 1
        %s199 = sand.u32 %s8, 1
        %s200 = smul.addr %s199, 4
        %s201 = scalar_lea.vmem [#allocation3], %s200
        %s202 = sadd.s32 %s17, %s16
        %s203 = sadd.s32 %s202, %s15
        %s204 = sadd.s32 %s203, %s14
        %s205 = smul.addr %s204, 4
        %s206 = scalar_lea.vmem %s1, %s205
        // Predicated region
        $region51: #{custom-call.10} parent=49 // pred_check
          _
        $region52: #{custom-call.10} parent=49 // pred_check_branch
          %208 = sbr.rel (0) target = $region54
        $region53: #{custom-call.10} parent=49 // pred_region
          // Predicated region
          $region55: #{custom-call.10} parent=53 // pred_check
            _
          $region56: #{custom-call.10} parent=53 // pred_check_branch
            %210 = sbr.rel target = $region58
          $region57: #{custom-call.10} parent=53 // pred_region
            // Predicated region
            $region70: #{custom-call.10} parent=57 // pred_check
              _
            $region71: #{custom-call.10} parent=57 // pred_check_branch
              %226 = sbr.rel (0) target = $region73
            $region72: #{custom-call.10} parent=57 // pred_region
              %s228 = ssub.s32 16, 1
              loop: start=0, step=1, limit=1
              $region74: #{custom-call.10} parent=72 // loop_pre_header
                _
              $region75: #{custom-call.10} parent=72 // loop_header
                %s230 = sphi 0, %s234
                %p231 = scmp.ge.s32.totalorder %s230, 1
                %s235 = sphi %s201, %s201
                %s236 = sphi %s206, %s206
              $region76: #{custom-call.10} parent=72 // loop_header_branch
                %233 = sbr.rel (%p231) target = $region80
              $region77: #{custom-call.10} parent=72 // loop_body
                %v237 = vld [vmem:[%s235] sm:%s228]
                %238 = vst [vmem:[%s236] sm:%s228] %v237
              $region78: #{custom-call.10} parent=72 // loop_footer
                %s234 = sadd.s32 1, %s230
              $region79: #{custom-call.10} parent=72 // loop_footer_branch
                %229 = sbr.rel target = $region75
              $region80: #{custom-call.10} parent=72 // loop_exit
                _
            $region73: #{custom-call.10} parent=57 // pred_fallthru
              _
          $region58: #{custom-call.10} parent=53 // pred_fallthru
            _
          // Predicated region
          $region59: #{custom-call.10} parent=53 // pred_check
            _
          $region60: #{custom-call.10} parent=53 // pred_check_branch
            %212 = sbr.rel (0) target = $region62
          $region61: #{custom-call.10} parent=53 // pred_region
            %s214 = ssub.s32 16, 1
            loop: start=0, step=1, limit=1
            $region63: #{custom-call.10} parent=61 // loop_pre_header
              _
            $region64: #{custom-call.10} parent=61 // loop_header
              %s216 = sphi 0, %s220
              %p217 = scmp.ge.s32.totalorder %s216, 1
              %s221 = sphi %s201, %s201
              %s222 = sphi %s206, %s206
            $region65: #{custom-call.10} parent=61 // loop_header_branch
              %219 = sbr.rel (%p217) target = $region69
            $region66: #{custom-call.10} parent=61 // loop_body
              %v223 = vld [vmem:[%s221] sm:%s214]
              %224 = vst [vmem:[%s222] sm:%s214] %v223
            $region67: #{custom-call.10} parent=61 // loop_footer
              %s220 = sadd.s32 1, %s216
            $region68: #{custom-call.10} parent=61 // loop_footer_branch
              %215 = sbr.rel target = $region64
            $region69: #{custom-call.10} parent=61 // loop_exit
              _
          $region62: #{custom-call.10} parent=53 // pred_fallthru
            _
        $region54: #{custom-call.10} parent=49 // pred_fallthru
          _
        %239 = vnop
      $region50: #{custom-call.10} parent=5 // pred_fallthru
        _
      %p240 = scmp.le.s32.totalorder 2, %s3
      // Predicated region
      $region81: #{custom-call.10} parent=5 // pred_check
        %p241 = pneg %p240
      $region82: #{custom-call.10} parent=5 // pred_check_branch
        %243 = sbr.rel (%p241) target = $region84
      $region83: #{custom-call.10} parent=5 // pred_region
        %s244 = ssub.s32 %s3, 2
        %s245 = sand.u32 %s9, 1
        %s246 = sand.u32 %s9, 1
        %s247 = smul.addr %s246, 4
        %s248 = scalar_lea.vmem [#allocation3], %s247
      $region84: #{custom-call.10} parent=5 // pred_fallthru
        _
    $region6: #{custom-call.10} parent=1 // loop_footer
      %s7 = sadd.s32 1, %s3
    $region7: #{custom-call.10} parent=1 // loop_footer_branch
      %2 = sbr.rel target = $region3
    $region8: #{custom-call.10} parent=1 // loop_exit
      _

// kernel: registration_forward.1
$region0: #{registration_forward.1}
  #allocation0 [shape = 'u32[]', space=smem, size = 0x4, offset = 0x4, fixed_abs, tag = 'smem constant byte address 0x4 - core index']
  #allocation1 [shape = 'u32[72,128]{1,0:T(1,128)}', space=vmem, size = 0x9000, scoped, tag = 'internal scratch']
  #allocation2 [shape = 'f32[408,128]{1,0:T(8,128)}', space=vmem, size = 0x33000, scoped, tag = 'scratch operand']
  #allocation3 [shape = 'bf16[368,128]{1,0:T(8,128)(2,1)}', space=vmem, size = 0x17000, scoped, tag = 'scratch operand']
  #allocation4 [shape = 'bf16[328,256]{1,0:T(8,128)(2,1)}', space=vmem, size = 0x29000, scoped, tag = 'scratch operand']
  %s0 = inlined_call_operand.vmem [shape: f32[1632,1], index: 0, kind: input, shape index: {}]
  %s1 = inlined_call_operand.vmem [shape: f32[16,128], index: 1, kind: input, shape index: {}]
  %s2 = inlined_call_operand.vmem [shape: f32[1,128], index: 2, kind: input, shape index: {}]
  %s3 = inlined_call_operand.vmem [shape: bf16[256,128], index: 3, kind: input, shape index: {}]
  %s4 = inlined_call_operand.vmem [shape: f32[1,128], index: 4, kind: input, shape index: {}]
  %s5 = inlined_call_operand.vmem [shape: f32[32,128], index: 5, kind: output, shape index: {}]
  %s6 = sld [smem:[#allocation0]]
  $region53: #{registration_forward.1} parent=0
    _
  %s8 = ssub.s32 1, %s6
  %s9 = scalar_select 0, %s8, %s6
  loop: start=0, step=1, limit=6
  $region2: #{registration_forward.1} parent=0 // loop_pre_header
    _
  $region3: #{registration_forward.1} parent=0 // loop_header
    %s11 = sphi 0, %s15
    %p12 = scmp.ge.s32.totalorder %s11, 6
    %s21 = sphi 0, %s23
    %s24 = sphi 0, %s21
    %s25 = sphi 0, %s24
    %s41 = sphi 0, %s25
    %s45 = sphi 0, %s45
    %s47 = sphi 0, %s45
    %s48 = sphi 0, %s47
    %s62 = sphi 0, %s48
    %s66 = sphi 0, %s66
    %s68 = sphi 0, %s66
    %s69 = sphi 0, %s68
    %s83 = sphi 0, %s69
    %s87 = sphi 0, %s87
    %s89 = sphi 0, %s87
    %s90 = sphi 0, %s89
    %s104 = sphi 0, %s90
    %s108 = sphi 0, %s108
    %s110 = sphi 0, %s108
    %s111 = sphi 0, %s110
    %s125 = sphi 0, %s111
    %s131 = sphi 0, %s133
    %s134 = sphi 0, %s131
    %s135 = sphi 0, %s134
    %s151 = sphi 0, %s135
  $region4: #{registration_forward.1} parent=0 // loop_header_branch
    %14 = sbr.rel (%p12) target = $region8
  $region5: #{registration_forward.1} parent=0 // loop_body
    %s16 = ssub.s32 %s11, 1
    %s17 = ssub.s32 %s11, 2
    %s18 = sadd.s32 %s11, 1
    %s19 = ssub.s32 %s11, %s18
    %p20 = scmp.eq.s32.totalorder %s19, 0
    %s22 = sadd.s32 %s21, 1
    %s23 = scalar_select %p20, %s21, %s22
    %p26 = pneg %p20
    %p27 = scmp.eq.s32.totalorder %s11, 3
    %p28 = por %p26, %p27
    %p29 = scmp.ne.s32.totalorder %s21, %s24
    %p30 = scmp.eq.s32.totalorder %s11, 0
    %p31 = por %p29, %p30
    %p32 = scmp.ne.s32.totalorder %s21, %s24
    %p33 = scmp.eq.s32.totalorder %s16, 3
    %p34 = por %p32, %p33
    %p35 = scmp.ne.s32.totalorder %s24, %s25
    %p36 = scmp.eq.s32.totalorder %s16, 0
    %p37 = por %p35, %p36
    %p38 = scmp.ne.s32.totalorder %s24, %s25
    %p39 = scmp.eq.s32.totalorder %s17, 3
    %p40 = por %p38, %p39
    %p42 = scmp.ne.s32.totalorder %s25, %s41
    %p43 = scmp.eq.s32.totalorder %s17, 0
    %p44 = por %p42, %p43
    %s46 = sadd.s32 %s45, 1
    %p49 = scmp.eq.s32.totalorder %s11, 3
    %p50 = scmp.ne.s32.totalorder %s45, %s47
    %p51 = scmp.eq.s32.totalorder %s11, 0
    %p52 = por %p50, %p51
    %p53 = scmp.ne.s32.totalorder %s45, %s47
    %p54 = scmp.eq.s32.totalorder %s16, 3
    %p55 = por %p53, %p54
    %p56 = scmp.ne.s32.totalorder %s47, %s48
    %p57 = scmp.eq.s32.totalorder %s16, 0
    %p58 = por %p56, %p57
    %p59 = scmp.ne.s32.totalorder %s47, %s48
    %p60 = scmp.eq.s32.totalorder %s17, 3
    %p61 = por %p59, %p60
    %p63 = scmp.ne.s32.totalorder %s48, %s62
    %p64 = scmp.eq.s32.totalorder %s17, 0
    %p65 = por %p63, %p64
    %s67 = sadd.s32 %s66, 1
    %p70 = scmp.eq.s32.totalorder %s11, 3
    %p71 = scmp.ne.s32.totalorder %s66, %s68
    %p72 = scmp.eq.s32.totalorder %s11, 0
    %p73 = por %p71, %p72
    %p74 = scmp.ne.s32.totalorder %s66, %s68
    %p75 = scmp.eq.s32.totalorder %s16, 3
    %p76 = por %p74, %p75
    %p77 = scmp.ne.s32.totalorder %s68, %s69
    %p78 = scmp.eq.s32.totalorder %s16, 0
    %p79 = por %p77, %p78
    %p80 = scmp.ne.s32.totalorder %s68, %s69
    %p81 = scmp.eq.s32.totalorder %s17, 3
    %p82 = por %p80, %p81
    %p84 = scmp.ne.s32.totalorder %s69, %s83
    %p85 = scmp.eq.s32.totalorder %s17, 0
    %p86 = por %p84, %p85
    %s88 = sadd.s32 %s87, 1
    %p91 = scmp.eq.s32.totalorder %s11, 3
    %p92 = scmp.ne.s32.totalorder %s87, %s89
    %p93 = scmp.eq.s32.totalorder %s11, 0
    %p94 = por %p92, %p93
    %p95 = scmp.ne.s32.totalorder %s87, %s89
    %p96 = scmp.eq.s32.totalorder %s16, 3
    %p97 = por %p95, %p96
    %p98 = scmp.ne.s32.totalorder %s89, %s90
    %p99 = scmp.eq.s32.totalorder %s16, 0
    %p100 = por %p98, %p99
    %p101 = scmp.ne.s32.totalorder %s89, %s90
    %p102 = scmp.eq.s32.totalorder %s17, 3
    %p103 = por %p101, %p102
    %p105 = scmp.ne.s32.totalorder %s90, %s104
    %p106 = scmp.eq.s32.totalorder %s17, 0
    %p107 = por %p105, %p106
    %s109 = sadd.s32 %s108, 1
    %p112 = scmp.eq.s32.totalorder %s11, 3
    %p113 = scmp.ne.s32.totalorder %s108, %s110
    %p114 = scmp.eq.s32.totalorder %s11, 0
    %p115 = por %p113, %p114
    %p116 = scmp.ne.s32.totalorder %s108, %s110
    %p117 = scmp.eq.s32.totalorder %s16, 3
    %p118 = por %p116, %p117
    %p119 = scmp.ne.s32.totalorder %s110, %s111
    %p120 = scmp.eq.s32.totalorder %s16, 0
    %p121 = por %p119, %p120
    %p122 = scmp.ne.s32.totalorder %s110, %s111
    %p123 = scmp.eq.s32.totalorder %s17, 3
    %p124 = por %p122, %p123
    %p126 = scmp.ne.s32.totalorder %s111, %s125
    %p127 = scmp.eq.s32.totalorder %s17, 0
    %p128 = por %p126, %p127
    %s129 = ssub.s32 %s11, %s18
    %p130 = scmp.eq.s32.totalorder %s129, 0
    %s132 = sadd.s32 %s131, 1
    %s133 = scalar_select %p130, %s131, %s132
    %p136 = pneg %p130
    %p137 = scmp.eq.s32.totalorder %s11, 3
    %p138 = por %p136, %p137
    %p139 = scmp.ne.s32.totalorder %s131, %s134
    %p140 = scmp.eq.s32.totalorder %s11, 0
    %p141 = por %p139, %p140
    %p142 = scmp.ne.s32.totalorder %s131, %s134
    %p143 = scmp.eq.s32.totalorder %s16, 3
    %p144 = por %p142, %p143
    %p145 = scmp.ne.s32.totalorder %s134, %s135
    %p146 = scmp.eq.s32.totalorder %s16, 0
    %p147 = por %p145, %p146
    %p148 = scmp.ne.s32.totalorder %s134, %s135
    %p149 = scmp.eq.s32.totalorder %s17, 3
    %p150 = por %p148, %p149
    %p152 = scmp.ne.s32.totalorder %s135, %s151
    %p153 = scmp.eq.s32.totalorder %s17, 0
    %p154 = por %p152, %p153
    %p155 = scmp.le.s32.totalorder 1, %s11
    %p156 = scmp.lt.s32.totalorder %s11, 5
    %p157 = pnand %p155, %p156
    %p158 = pneg %p157
    // Predicated region
    $region9: #{registration_forward.1} parent=5 // pred_check
      _
    $region10: #{registration_forward.1} parent=5 // pred_check_branch
      %160 = sbr.rel (%p157) target = $region12
    $region11: #{registration_forward.1} parent=5 // pred_region
      %s161 = ssub.s32 %s11, 1
      // Predicated region
      $region13: #{registration_forward.1} parent=11 // pred_check
        %p162 = pneg %p58
      $region14: #{registration_forward.1} parent=11 // pred_check_branch
        %164 = sbr.rel (%p162) target = $region16
      $region15: #{registration_forward.1} parent=11 // pred_region
        _
      $region16: #{registration_forward.1} parent=11 // pred_fallthru
        _
      // Predicated region
      $region17: #{registration_forward.1} parent=11 // pred_check
        %p165 = pneg %p79
      $region18: #{registration_forward.1} parent=11 // pred_check_branch
        %167 = sbr.rel (%p165) target = $region20
      $region19: #{registration_forward.1} parent=11 // pred_region
        _
      $region20: #{registration_forward.1} parent=11 // pred_fallthru
        _
      // Predicated region
      $region21: #{registration_forward.1} parent=11 // pred_check
        %p168 = pneg %p100
      $region22: #{registration_forward.1} parent=11 // pred_check_branch
        %170 = sbr.rel (%p168) target = $region24
      $region23: #{registration_forward.1} parent=11 // pred_region
        _
      $region24: #{registration_forward.1} parent=11 // pred_fallthru
        _
      // Predicated region
      $region25: #{registration_forward.1} parent=11 // pred_check
        %p171 = pneg %p121
      $region26: #{registration_forward.1} parent=11 // pred_check_branch
        %173 = sbr.rel (%p171) target = $region28
      $region27: #{registration_forward.1} parent=11 // pred_region
        _
      $region28: #{registration_forward.1} parent=11 // pred_fallthru
        _
    $region12: #{registration_forward.1} parent=5 // pred_fallthru
      _
    %p174 = scmp.lt.s32.totalorder %s11, 4
    // Predicated region
    $region29: #{registration_forward.1} parent=5 // pred_check
      %p175 = pneg %p174
    $region30: #{registration_forward.1} parent=5 // pred_check_branch
      %177 = sbr.rel (%p175) target = $region32
    $region31: #{registration_forward.1} parent=5 // pred_region
      // Predicated region
      $region33: #{registration_forward.1} parent=31 // pred_check
        %p178 = pneg %p31
      $region34: #{registration_forward.1} parent=31 // pred_check_branch
        %180 = sbr.rel (%p178) target = $region36
      $region35: #{registration_forward.1} parent=31 // pred_region
        %s181 = smul.u32 51, %s11
        %p182 = scmp.lt.s32.totalorder %s181, 203
        %s183 = scalar_select %p182, %s181, 203
        %s184 = smul.addr %s183, 8
        %s185 = scalar_lea.vmem %s0, %s184
        %s186 = smul.u32 51, %s11
      $region36: #{registration_forward.1} parent=31 // pred_fallthru
        _
    $region32: #{registration_forward.1} parent=5 // pred_fallthru
      _
    %p187 = scmp.le.s32.totalorder 1, %s11
    %p188 = scmp.lt.s32.totalorder %s11, 5
    %p189 = pnand %p187, %p188
    %p190 = pneg %p189
    // Predicated region
    $region37: #{registration_forward.1} parent=5 // pred_check
      _
    $region38: #{registration_forward.1} parent=5 // pred_check_branch
      %192 = sbr.rel (%p189) target = $region40
    $region39: #{registration_forward.1} parent=5 // pred_region
      %s193 = ssub.s32 %s11, 1
      %s194 = smul.u32 51, %s16
      %p195 = scmp.lt.s32.totalorder %s194, 203
      %s196 = scalar_select %p195, %s194, 203
      %s197 = smul.addr %s196, 8
      %s198 = scalar_lea.vmem %s0, %s197
      %p199 = pneg %p37
      %p200 = pneg %p34
      %p201 = pneg %p58
      %p202 = pneg %p55
      %p203 = pneg %p79
      %p204 = pneg %p76
      %p205 = pneg %p100
      %p206 = pneg %p97
      %p207 = pneg %p121
      %p208 = pneg %p118
      %p209 = pneg %p147
      %p210 = pneg %p144
      %p211 = scmp.lt.s32.totalorder %s16, 3
      %s212 = scalar_select %p211, %s16, 3
      %s213 = smul.addr %s212, 8
      %s214 = scalar_lea.vmem %s5, %s213
      %s215 = smul.u32 51, %s16
      %p216 = scmp.lt.s32.totalorder %s215, 203
      %s217 = scalar_select %p216, %s215, 203
      %s218 = smul.addr %s217, 8
      %s219 = scalar_lea.vmem %s0, %s218
      %s220 = smul.u32 51, %s16
      %p221 = scmp.lt.s32.totalorder %s16, 3
      %s222 = scalar_select %p221, %s16, 3
      %s223 = smul.addr %s222, 8
      %s224 = scalar_lea.vmem %s5, %s223
      %v226 = vld [vmem:[%s219] sm:$0xff]
      %v227 = vld [vmem:[%s219 + $0x8] sm:$0xff]
      %v228 = vld [vmem:[%s219 + $0x10] sm:$0xff]
      %v229 = vld [vmem:[%s219 + $0x18] sm:$0xff]
      %v230 = vld [vmem:[%s219 + $0x20] sm:$0xff]
      %v231 = vld [vmem:[%s219 + $0x28] sm:$0xff]
      %v232 = vld [vmem:[%s219 + $0x30] sm:$0xff]
      %v233 = vld [vmem:[%s219 + $0x38] sm:$0xff]
      %v234 = vld [vmem:[%s219 + $0x40] sm:$0xff]
      %v235 = vld [vmem:[%s219 + $0x48] sm:$0xff]
      %v236 = vld [vmem:[%s219 + $0x50] sm:$0xff]
      %v237 = vld [vmem:[%s219 + $0x58] sm:$0xff]
      %v238 = vld [vmem:[%s219 + $0x60] sm:$0xff]
      %v239 = vld [vmem:[%s219 + $0x68] sm:$0xff]
      %v240 = vld [vmem:[%s219 + $0x70] sm:$0xff]
      %v241 = vld [vmem:[%s219 + $0x78] sm:$0xff]
      %v242 = vld [vmem:[%s219 + $0x80] sm:$0xff]
      %v243 = vld [vmem:[%s219 + $0x88] sm:$0xff]
      %v244 = vld [vmem:[%s219 + $0x90] sm:$0xff]
      %v245 = vld [vmem:[%s219 + $0x98] sm:$0xff]
      %v246 = vld [vmem:[%s219 + $0xa0] sm:$0xff]
      %v247 = vld [vmem:[%s219 + $0xa8] sm:$0xff]
      %v248 = vld [vmem:[%s219 + $0xb0] sm:$0xff]
      %v249 = vld [vmem:[%s219 + $0xb8] sm:$0xff]
      %v250 = vld [vmem:[%s219 + $0xc0] sm:$0xff]
      %v251 = vld [vmem:[%s219 + $0xc8] sm:$0xff]
      %v252 = vld [vmem:[%s219 + $0xd0] sm:$0xff]
      %v253 = vld [vmem:[%s219 + $0xd8] sm:$0xff]
      %v254 = vld [vmem:[%s219 + $0xe0] sm:$0xff]
      %v255 = vld [vmem:[%s219 + $0xe8] sm:$0xff]
      %v256 = vld [vmem:[%s219 + $0xf0] sm:$0xff]
      %v257 = vld [vmem:[%s219 + $0xf8] sm:$0xff]
      %v258 = vld [vmem:[%s219 + $0x100] sm:$0xff]
      %v259 = vld [vmem:[%s219 + $0x108] sm:$0xff]
      %v260 = vld [vmem:[%s219 + $0x110] sm:$0xff]
      %v261 = vld [vmem:[%s219 + $0x118] sm:$0xff]
      %v262 = vld [vmem:[%s219 + $0x120] sm:$0xff]
      %v263 = vld [vmem:[%s219 + $0x128] sm:$0xff]
      %v264 = vld [vmem:[%s219 + $0x130] sm:$0xff]
      %v265 = vld [vmem:[%s219 + $0x138] sm:$0xff]
      %v266 = vld [vmem:[%s219 + $0x140] sm:$0xff]
      %v267 = vld [vmem:[%s219 + $0x148] sm:$0xff]
      %v268 = vld [vmem:[%s219 + $0x150] sm:$0xff]
      %v269 = vld [vmem:[%s219 + $0x158] sm:$0xff]
      %v270 = vld [vmem:[%s219 + $0x160] sm:$0xff]
      %v271 = vld [vmem:[%s219 + $0x168] sm:$0xff]
      %v272 = vld [vmem:[%s219 + $0x170] sm:$0xff]
      %v273 = vld [vmem:[%s219 + $0x178] sm:$0xff]
      %v274 = vld [vmem:[%s219 + $0x180] sm:$0xff]
      %v275 = vld [vmem:[%s219 + $0x188] sm:$0xff]
      %v276 = vld [vmem:[%s219 + $0x190] sm:$0xff]
      %278 = vset.pattern.permute.xlu0 0
      %279 = vperm.xlu0 %278, %v226
      %v280 = vpop.permute.xlu0 %279
      %283 = vset.pattern.permute.xlu0 0
      %284 = vperm.xlu0 %283, %v227
      %v285 = vpop.permute.xlu0 %284
      %288 = vset.pattern.permute.xlu0 0
      %289 = vperm.xlu0 %288, %v228
      %v290 = vpop.permute.xlu0 %289
      %293 = vset.pattern.permute.xlu0 0
      %294 = vperm.xlu0 %293, %v229
      %v295 = vpop.permute.xlu0 %294
      %298 = vset.pattern.permute.xlu0 0
      %299 = vperm.xlu0 %298, %v230
      %v300 = vpop.permute.xlu0 %299
      %303 = vset.pattern.permute.xlu0 0
      %304 = vperm.xlu0 %303, %v231
      %v305 = vpop.permute.xlu0 %304
      %308 = vset.pattern.permute.xlu0 0
      %309 = vperm.xlu0 %308, %v232
      %v310 = vpop.permute.xlu0 %309
      %313 = vset.pattern.permute.xlu0 0
      %314 = vperm.xlu0 %313, %v233
      %v315 = vpop.permute.xlu0 %314
      %318 = vset.pattern.permute.xlu0 0
      %319 = vperm.xlu0 %318, %v234
      %v320 = vpop.permute.xlu0 %319
      %323 = vset.pattern.permute.xlu0 0
      %324 = vperm.xlu0 %323, %v235
      %v325 = vpop.permute.xlu0 %324
      %328 = vset.pattern.permute.xlu0 0
      %329 = vperm.xlu0 %328, %v236
      %v330 = vpop.permute.xlu0 %329
      %333 = vset.pattern.permute.xlu0 0
      %334 = vperm.xlu0 %333, %v237
      %v335 = vpop.permute.xlu0 %334
      %338 = vset.pattern.permute.xlu0 0
      %339 = vperm.xlu0 %338, %v238
      %v340 = vpop.permute.xlu0 %339
      %343 = vset.pattern.permute.xlu0 0
      %344 = vperm.xlu0 %343, %v239
      %v345 = vpop.permute.xlu0 %344
      %348 = vset.pattern.permute.xlu0 0
      %349 = vperm.xlu0 %348, %v240
      %v350 = vpop.permute.xlu0 %349
      %353 = vset.pattern.permute.xlu0 0
      %354 = vperm.xlu0 %353, %v241
      %v355 = vpop.permute.xlu0 %354
      %358 = vset.pattern.permute.xlu0 0
      %359 = vperm.xlu0 %358, %v242
      %v360 = vpop.permute.xlu0 %359
      %363 = vset.pattern.permute.xlu0 0
      %364 = vperm.xlu0 %363, %v243
      %v365 = vpop.permute.xlu0 %364
      %368 = vset.pattern.permute.xlu0 0
      %369 = vperm.xlu0 %368, %v244
      %v370 = vpop.permute.xlu0 %369
      %373 = vset.pattern.permute.xlu0 0
      %374 = vperm.xlu0 %373, %v245
      %v375 = vpop.permute.xlu0 %374
      %378 = vset.pattern.permute.xlu0 0
      %379 = vperm.xlu0 %378, %v246
      %v380 = vpop.permute.xlu0 %379
      %383 = vset.pattern.permute.xlu0 0
      %384 = vperm.xlu0 %383, %v247
      %v385 = vpop.permute.xlu0 %384
      %388 = vset.pattern.permute.xlu0 0
      %389 = vperm.xlu0 %388, %v248
      %v390 = vpop.permute.xlu0 %389
      %393 = vset.pattern.permute.xlu0 0
      %394 = vperm.xlu0 %393, %v249
      %v395 = vpop.permute.xlu0 %394
      %398 = vset.pattern.permute.xlu0 0
      %399 = vperm.xlu0 %398, %v250
      %v400 = vpop.permute.xlu0 %399
      %403 = vset.pattern.permute.xlu0 0
      %404 = vperm.xlu0 %403, %v251
      %v405 = vpop.permute.xlu0 %404
      %408 = vset.pattern.permute.xlu0 0
      %409 = vperm.xlu0 %408, %v252
      %v410 = vpop.permute.xlu0 %409
      %413 = vset.pattern.permute.xlu0 0
      %414 = vperm.xlu0 %413, %v253
      %v415 = vpop.permute.xlu0 %414
      %418 = vset.pattern.permute.xlu0 0
      %419 = vperm.xlu0 %418, %v254
      %v420 = vpop.permute.xlu0 %419
      %423 = vset.pattern.permute.xlu0 0
      %424 = vperm.xlu0 %423, %v255
      %v425 = vpop.permute.xlu0 %424
      %428 = vset.pattern.permute.xlu0 0
      %429 = vperm.xlu0 %428, %v256
      %v430 = vpop.permute.xlu0 %429
      %433 = vset.pattern.permute.xlu0 0
      %434 = vperm.xlu0 %433, %v257
      %v435 = vpop.permute.xlu0 %434
      %438 = vset.pattern.permute.xlu0 0
      %439 = vperm.xlu0 %438, %v258
      %v440 = vpop.permute.xlu0 %439
      %443 = vset.pattern.permute.xlu0 0
      %444 = vperm.xlu0 %443, %v259
      %v445 = vpop.permute.xlu0 %444
      %448 = vset.pattern.permute.xlu0 0
      %449 = vperm.xlu0 %448, %v260
      %v450 = vpop.permute.xlu0 %449
      %453 = vset.pattern.permute.xlu0 0
      %454 = vperm.xlu0 %453, %v261
      %v455 = vpop.permute.xlu0 %454
      %458 = vset.pattern.permute.xlu0 0
      %459 = vperm.xlu0 %458, %v262
      %v460 = vpop.permute.xlu0 %459
      %463 = vset.pattern.permute.xlu0 0
      %464 = vperm.xlu0 %463, %v263
      %v465 = vpop.permute.xlu0 %464
      %468 = vset.pattern.permute.xlu0 0
      %469 = vperm.xlu0 %468, %v264
      %v470 = vpop.permute.xlu0 %469
      %473 = vset.pattern.permute.xlu0 0
      %474 = vperm.xlu0 %473, %v265
      %v475 = vpop.permute.xlu0 %474
      %478 = vset.pattern.permute.xlu0 0
      %479 = vperm.xlu0 %478, %v266
      %v480 = vpop.permute.xlu0 %479
      %483 = vset.pattern.permute.xlu0 0
      %484 = vperm.xlu0 %483, %v267
      %v485 = vpop.permute.xlu0 %484
      %488 = vset.pattern.permute.xlu0 0
      %489 = vperm.xlu0 %488, %v268
      %v490 = vpop.permute.xlu0 %489
      %493 = vset.pattern.permute.xlu0 0
      %494 = vperm.xlu0 %493, %v269
      %v495 = vpop.permute.xlu0 %494
      %498 = vset.pattern.permute.xlu0 0
      %499 = vperm.xlu0 %498, %v270
      %v500 = vpop.permute.xlu0 %499
      %503 = vset.pattern.permute.xlu0 0
      %504 = vperm.xlu0 %503, %v271
      %v505 = vpop.permute.xlu0 %504
      %508 = vset.pattern.permute.xlu0 0
      %509 = vperm.xlu0 %508, %v272
      %v510 = vpop.permute.xlu0 %509
      %513 = vset.pattern.permute.xlu0 0
      %514 = vperm.xlu0 %513, %v273
      %v515 = vpop.permute.xlu0 %514
      %518 = vset.pattern.permute.xlu0 0
      %519 = vperm.xlu0 %518, %v274
      %v520 = vpop.permute.xlu0 %519
      %523 = vset.pattern.permute.xlu0 0
      %524 = vperm.xlu0 %523, %v275
      %v525 = vpop.permute.xlu0 %524
      %528 = vset.pattern.permute.xlu0 0
      %529 = vperm.xlu0 %528, %v276
      %v530 = vpop.permute.xlu0 %529
      %532 = vst [vmem:[#allocation2] sm:$0xff] %v280
      %533 = vst [vmem:[#allocation2 + $0x8] sm:$0xff] %v285
      %534 = vst [vmem:[#allocation2 + $0x10] sm:$0xff] %v290
      %535 = vst [vmem:[#allocation2 + $0x18] sm:$0xff] %v295
      %536 = vst [vmem:[#allocation2 + $0x20] sm:$0xff] %v300
      %537 = vst [vmem:[#allocation2 + $0x28] sm:$0xff] %v305
      %538 = vst [vmem:[#allocation2 + $0x30] sm:$0xff] %v310
      %539 = vst [vmem:[#allocation2 + $0x38] sm:$0xff] %v315
      %540 = vst [vmem:[#allocation2 + $0x40] sm:$0xff] %v320
      %541 = vst [vmem:[#allocation2 + $0x48] sm:$0xff] %v325
      %542 = vst [vmem:[#allocation2 + $0x50] sm:$0xff] %v330
      %543 = vst [vmem:[#allocation2 + $0x58] sm:$0xff] %v335
      %544 = vst [vmem:[#allocation2 + $0x60] sm:$0xff] %v340
      %545 = vst [vmem:[#allocation2 + $0x68] sm:$0xff] %v345
      %546 = vst [vmem:[#allocation2 + $0x70] sm:$0xff] %v350
      %547 = vst [vmem:[#allocation2 + $0x78] sm:$0xff] %v355
      %548 = vst [vmem:[#allocation2 + $0x80] sm:$0xff] %v360
      %549 = vst [vmem:[#allocation2 + $0x88] sm:$0xff] %v365
      %550 = vst [vmem:[#allocation2 + $0x90] sm:$0xff] %v370
      %551 = vst [vmem:[#allocation2 + $0x98] sm:$0xff] %v375
      %552 = vst [vmem:[#allocation2 + $0xa0] sm:$0xff] %v380
      %553 = vst [vmem:[#allocation2 + $0xa8] sm:$0xff] %v385
      %554 = vst [vmem:[#allocation2 + $0xb0] sm:$0xff] %v390
      %555 = vst [vmem:[#allocation2 + $0xb8] sm:$0xff] %v395
      %556 = vst [vmem:[#allocation2 + $0xc0] sm:$0xff] %v400
      %557 = vst [vmem:[#allocation2 + $0xc8] sm:$0xff] %v405
      %558 = vst [vmem:[#allocation2 + $0xd0] sm:$0xff] %v410
      %559 = vst [vmem:[#allocation2 + $0xd8] sm:$0xff] %v415
      %560 = vst [vmem:[#allocation2 + $0xe0] sm:$0xff] %v420
      %561 = vst [vmem:[#allocation2 + $0xe8] sm:$0xff] %v425
      %562 = vst [vmem:[#allocation2 + $0xf0] sm:$0xff] %v430
      %563 = vst [vmem:[#allocation2 + $0xf8] sm:$0xff] %v435
      %564 = vst [vmem:[#allocation2 + $0x100] sm:$0xff] %v440
      %565 = vst [vmem:[#allocation2 + $0x108] sm:$0xff] %v445
      %566 = vst [vmem:[#allocation2 + $0x110] sm:$0xff] %v450
      %567 = vst [vmem:[#allocation2 + $0x118] sm:$0xff] %v455
      %568 = vst [vmem:[#allocation2 + $0x120] sm:$0xff] %v460
      %569 = vst [vmem:[#allocation2 + $0x128] sm:$0xff] %v465
      %570 = vst [vmem:[#allocation2 + $0x130] sm:$0xff] %v470
      %571 = vst [vmem:[#allocation2 + $0x138] sm:$0xff] %v475
      %572 = vst [vmem:[#allocation2 + $0x140] sm:$0xff] %v480
      %573 = vst [vmem:[#allocation2 + $0x148] sm:$0xff] %v485
      %574 = vst [vmem:[#allocation2 + $0x150] sm:$0xff] %v490
      %575 = vst [vmem:[#allocation2 + $0x158] sm:$0xff] %v495
      %576 = vst [vmem:[#allocation2 + $0x160] sm:$0xff] %v500
      %577 = vst [vmem:[#allocation2 + $0x168] sm:$0xff] %v505
      %578 = vst [vmem:[#allocation2 + $0x170] sm:$0xff] %v510
      %579 = vst [vmem:[#allocation2 + $0x178] sm:$0xff] %v515
      %580 = vst [vmem:[#allocation2 + $0x180] sm:$0xff] %v520
      %581 = vst [vmem:[#allocation2 + $0x188] sm:$0xff] %v525
      %582 = vst [vmem:[#allocation2 + $0x190] sm:$0xff] %v530
      %v583 = vld [vmem:[%s1] sm:$0xff]
      %v584 = vld [vmem:[%s1 + $0x8] sm:$0xff]
      %v585 = vld [vmem:[%s2] sm:$0x1]
      %v587 = vperm.slane %v585, 0
      %v589 = vld [vmem:[#allocation2] sm:$0xff]
      %v590 = vld [vmem:[#allocation2 + $0x8] sm:$0xff]
      %v591 = vld [vmem:[#allocation2 + $0x10] sm:$0xff]
      %v592 = vld [vmem:[#allocation2 + $0x18] sm:$0xff]
      %v593 = vld [vmem:[#allocation2 + $0x20] sm:$0xff]
      %v594 = vld [vmem:[#allocation2 + $0x28] sm:$0xff]
      %v595 = vld [vmem:[#allocation2 + $0x30] sm:$0xff]
      %v596 = vld [vmem:[#allocation2 + $0x38] sm:$0xff]
      %v597 = vperm.slane %v583, 0
      %v598 = vmul.f32 %v589, %v597
      %v599 = vmul.f32 %v590, %v597
      %v600 = vmul.f32 %v591, %v597
      %v601 = vmul.f32 %v592, %v597
      %v602 = vmul.f32 %v593, %v597
      %v603 = vmul.f32 %v594, %v597
      %v604 = vmul.f32 %v595, %v597
      %v605 = vmul.f32 %v596, %v597
      %v606 = vadd.f32 %v587, %v598
      %v607 = vadd.f32 %v587, %v599
      %v608 = vadd.f32 %v587, %v600
      %v609 = vadd.f32 %v587, %v601
      %v610 = vadd.f32 %v587, %v602
      %v611 = vadd.f32 %v587, %v603
      %v612 = vadd.f32 %v587, %v604
      %v613 = vadd.f32 %v587, %v605
      %v614 = vld [vmem:[#allocation2 + $0x1] sm:$0xff]
      %v615 = vld [vmem:[#allocation2 + $0x9] sm:$0xff]
      %v616 = vld [vmem:[#allocation2 + $0x11] sm:$0xff]
      %v617 = vld [vmem:[#allocation2 + $0x19] sm:$0xff]
      %v618 = vld [vmem:[#allocation2 + $0x21] sm:$0xff]
      %v619 = vld [vmem:[#allocation2 + $0x29] sm:$0xff]
      %v620 = vld [vmem:[#allocation2 + $0x31] sm:$0xff]
      %v621 = vld [vmem:[#allocation2 + $0x39] sm:$0xff]
      %v622 = vperm.slane %v583, 1
      %v623 = vmul.f32 %v614, %v622
      %v624 = vmul.f32 %v615, %v622
      %v625 = vmul.f32 %v616, %v622
      %v626 = vmul.f32 %v617, %v622
      %v627 = vmul.f32 %v618, %v622
      %v628 = vmul.f32 %v619, %v622
      %v629 = vmul.f32 %v620, %v622
      %v630 = vmul.f32 %v621, %v622
      %v631 = vadd.f32 %v606, %v623
      %v632 = vadd.f32 %v607, %v624
      %v633 = vadd.f32 %v608, %v625
      %v634 = vadd.f32 %v609, %v626
      %v635 = vadd.f32 %v610, %v627
      %v636 = vadd.f32 %v611, %v628
      %v637 = vadd.f32 %v612, %v629
      %v638 = vadd.f32 %v613, %v630
      %v639 = vld [vmem:[#allocation2 + $0x2] sm:$0xff]
      %v640 = vld [vmem:[#allocation2 + $0xa] sm:$0xff]
      %v641 = vld [vmem:[#allocation2 + $0x12] sm:$0xff]
      %v642 = vld [vmem:[#allocation2 + $0x1a] sm:$0xff]
      %v643 = vld [vmem:[#allocation2 + $0x22] sm:$0xff]
      %v644 = vld [vmem:[#allocation2 + $0x2a] sm:$0xff]
      %v645 = vld [vmem:[#allocation2 + $0x32] sm:$0xff]
      %v646 = vld [vmem:[#allocation2 + $0x3a] sm:$0xff]
      %v647 = vperm.slane %v583, 2
      %v648 = vmul.f32 %v639, %v647
      %v649 = vmul.f32 %v640, %v647
      %v650 = vmul.f32 %v641, %v647
      %v651 = vmul.f32 %v642, %v647
      %v652 = vmul.f32 %v643, %v647
      %v653 = vmul.f32 %v644, %v647
      %v654 = vmul.f32 %v645, %v647
      %v655 = vmul.f32 %v646, %v647
      %v656 = vadd.f32 %v631, %v648
      %v657 = vadd.f32 %v632, %v649
      %v658 = vadd.f32 %v633, %v650
      %v659 = vadd.f32 %v634, %v651
      %v660 = vadd.f32 %v635, %v652
      %v661 = vadd.f32 %v636, %v653
      %v662 = vadd.f32 %v637, %v654
      %v663 = vadd.f32 %v638, %v655
      %v664 = vld [vmem:[#allocation2 + $0x42] sm:$0xff]
      %v665 = vld [vmem:[#allocation2 + $0x4a] sm:$0xff]
      %v666 = vperm.slane %v583, 3
      %v667 = vmul.f32 %v641, %v666
      %v668 = vmul.f32 %v642, %v666
      %v669 = vmul.f32 %v643, %v666
      %v670 = vmul.f32 %v644, %v666
      %v671 = vmul.f32 %v645, %v666
      %v672 = vmul.f32 %v646, %v666
      %v673 = vmul.f32 %v664, %v666
      %v674 = vmul.f32 %v665, %v666
      %v675 = vadd.f32 %v656, %v667
      %v676 = vadd.f32 %v657, %v668
      %v677 = vadd.f32 %v658, %v669
      %v678 = vadd.f32 %v659, %v670
      %v679 = vadd.f32 %v660, %v671
      %v680 = vadd.f32 %v661, %v672
      %v681 = vadd.f32 %v662, %v673
      %v682 = vadd.f32 %v663, %v674
      %v683 = vld [vmem:[#allocation2 + $0x13] sm:$0xff]
      %v684 = vld [vmem:[#allocation2 + $0x1b] sm:$0xff]
      %v685 = vld [vmem:[#allocation2 + $0x23] sm:$0xff]
      %v686 = vld [vmem:[#allocation2 + $0x2b] sm:$0xff]
      %v687 = vld [vmem:[#allocation2 + $0x33] sm:$0xff]
      %v688 = vld [vmem:[#allocation2 + $0x3b] sm:$0xff]
      %v689 = vld [vmem:[#allocation2 + $0x43] sm:$0xff]
      %v690 = vld [vmem:[#allocation2 + $0x4b] sm:$0xff]
      %v691 = vperm.slane %v583, 4
      %v692 = vmul.f32 %v683, %v691
      %v693 = vmul.f32 %v684, %v691
      %v694 = vmul.f32 %v685, %v691
      %v695 = vmul.f32 %v686, %v691
      %v696 = vmul.f32 %v687, %v691
      %v697 = vmul.f32 %v688, %v691
      %v698 = vmul.f32 %v689, %v691
      %v699 = vmul.f32 %v690, %v691
      %v700 = vadd.f32 %v675, %v692
      %v701 = vadd.f32 %v676, %v693
      %v702 = vadd.f32 %v677, %v694
      %v703 = vadd.f32 %v678, %v695
      %v704 = vadd.f32 %v679, %v696
      %v705 = vadd.f32 %v680, %v697
      %v706 = vadd.f32 %v681, %v698
      %v707 = vadd.f32 %v682, %v699
      %v708 = vld [vmem:[#allocation2 + $0x14] sm:$0xff]
      %v709 = vld [vmem:[#allocation2 + $0x1c] sm:$0xff]
      %v710 = vld [vmem:[#allocation2 + $0x24] sm:$0xff]
      %v711 = vld [vmem:[#allocation2 + $0x2c] sm:$0xff]
      %v712 = vld [vmem:[#allocation2 + $0x34] sm:$0xff]
      %v713 = vld [vmem:[#allocation2 + $0x3c] sm:$0xff]
      %v714 = vld [vmem:[#allocation2 + $0x44] sm:$0xff]
      %v715 = vld [vmem:[#allocation2 + $0x4c] sm:$0xff]
      %v716 = vperm.slane %v583, 5
      %v717 = vmul.f32 %v708, %v716
      %v718 = vmul.f32 %v709, %v716
      %v719 = vmul.f32 %v710, %v716
      %v720 = vmul.f32 %v711, %v716
      %v721 = vmul.f32 %v712, %v716
      %v722 = vmul.f32 %v713, %v716
      %v723 = vmul.f32 %v714, %v716
      %v724 = vmul.f32 %v715, %v716
      %v725 = vadd.f32 %v700, %v717
      %v726 = vadd.f32 %v701, %v718
      %v727 = vadd.f32 %v702, %v719
      %v728 = vadd.f32 %v703, %v720
      %v729 = vadd.f32 %v704, %v721
      %v730 = vadd.f32 %v705, %v722
      %v731 = vadd.f32 %v706, %v723
      %v732 = vadd.f32 %v707, %v724
      %v733 = vld [vmem:[#allocation2 + $0x54] sm:$0xff]
      %v734 = vld [vmem:[#allocation2 + $0x5c] sm:$0xff]
      %v735 = vperm.slane %v583, 6
      %v736 = vmul.f32 %v710, %v735
      %v737 = vmul.f32 %v711, %v735
      %v738 = vmul.f32 %v712, %v735
      %v739 = vmul.f32 %v713, %v735
      %v740 = vmul.f32 %v714, %v735
      %v741 = vmul.f32 %v715, %v735
      %v742 = vmul.f32 %v733, %v735
      %v743 = vmul.f32 %v734, %v735
      %v744 = vadd.f32 %v725, %v736
      %v745 = vadd.f32 %v726, %v737
      %v746 = vadd.f32 %v727, %v738
      %v747 = vadd.f32 %v728, %v739
      %v748 = vadd.f32 %v729, %v740
      %v749 = vadd.f32 %v730, %v741
      %v750 = vadd.f32 %v731, %v742
      %v751 = vadd.f32 %v732, %v743
      %v752 = vld [vmem:[#allocation2 + $0x25] sm:$0xff]
      %v753 = vld [vmem:[#allocation2 + $0x2d] sm:$0xff]
      %v754 = vld [vmem:[#allocation2 + $0x35] sm:$0xff]
      %v755 = vld [vmem:[#allocation2 + $0x3d] sm:$0xff]
      %v756 = vld [vmem:[#allocation2 + $0x45] sm:$0xff]
      %v757 = vld [vmem:[#allocation2 + $0x4d] sm:$0xff]
      %v758 = vld [vmem:[#allocation2 + $0x55] sm:$0xff]
      %v759 = vld [vmem:[#allocation2 + $0x5d] sm:$0xff]
      %v760 = vperm.slane %v583, 7
      %v761 = vmul.f32 %v752, %v760
      %v762 = vmul.f32 %v753, %v760
      %v763 = vmul.f32 %v754, %v760
      %v764 = vmul.f32 %v755, %v760
      %v765 = vmul.f32 %v756, %v760
      %v766 = vmul.f32 %v757, %v760
      %v767 = vmul.f32 %v758, %v760
      %v768 = vmul.f32 %v759, %v760
      %v769 = vadd.f32 %v744, %v761
      %v770 = vadd.f32 %v745, %v762
      %v771 = vadd.f32 %v746, %v763
      %v772 = vadd.f32 %v747, %v764
      %v773 = vadd.f32 %v748, %v765
      %v774 = vadd.f32 %v749, %v766
      %v775 = vadd.f32 %v750, %v767
      %v776 = vadd.f32 %v751, %v768
      %v777 = vld [vmem:[#allocation2 + $0x26] sm:$0xff]
      %v778 = vld [vmem:[#allocation2 + $0x2e] sm:$0xff]
      %v779 = vld [vmem:[#allocation2 + $0x36] sm:$0xff]
      %v780 = vld [vmem:[#allocation2 + $0x3e] sm:$0xff]
      %v781 = vld [vmem:[#allocation2 + $0x46] sm:$0xff]
      %v782 = vld [vmem:[#allocation2 + $0x4e] sm:$0xff]
      %v783 = vld [vmem:[#allocation2 + $0x56] sm:$0xff]
      %v784 = vld [vmem:[#allocation2 + $0x5e] sm:$0xff]
      %v785 = vperm.slane %v584, 0
      %v786 = vmul.f32 %v777, %v785
      %v787 = vmul.f32 %v778, %v785
      %v788 = vmul.f32 %v779, %v785
      %v789 = vmul.f32 %v780, %v785
      %v790 = vmul.f32 %v781, %v785
      %v791 = vmul.f32 %v782, %v785
      %v792 = vmul.f32 %v783, %v785
      %v793 = vmul.f32 %v784, %v785
      %v794 = vadd.f32 %v769, %v786
      %v795 = vadd.f32 %v770, %v787
      %v796 = vadd.f32 %v771, %v788
      %v797 = vadd.f32 %v772, %v789
      %v798 = vadd.f32 %v773, %v790
      %v799 = vadd.f32 %v774, %v791
      %v800 = vadd.f32 %v775, %v792
      %v801 = vadd.f32 %v776, %v793
      %v802 = vlaneseq
      %v803 = vshrl.u32 %v802, 7
      %v804 = vadd.s32 %v803, 8
      %v805 = vadd.s32 %v803, 16
      %v806 = vadd.s32 %v803, 24
      %v807 = vadd.s32 %v803, 32
      %v808 = vadd.s32 %v803, 40
      %v809 = vadd.s32 %v803, 48
      %v810 = vadd.s32 %v803, 56
      %v811 = vadd.s32 %v803, 4294967277
      %v812 = vadd.s32 %v804, 4294967277
      %v813 = vadd.s32 %v805, 4294967277
      %v814 = vadd.s32 %v806, 4294967277
      %v815 = vadd.s32 %v807, 4294967277
      %v816 = vadd.s32 %v808, 4294967277
      %v817 = vadd.s32 %v809, 4294967277
      %v818 = vadd.s32 %v810, 4294967277
      %v819 = vcvt.s32.f32 %v811
      %v820 = vcvt.s32.f32 %v812
      %v821 = vcvt.s32.f32 %v813
      %v822 = vcvt.s32.f32 %v814
      %v823 = vcvt.s32.f32 %v815
      %v824 = vcvt.s32.f32 %v816
      %v825 = vcvt.s32.f32 %v817
      %v826 = vcvt.s32.f32 %v818
      %v827 = vadd.f32 %v819, 0.5
      %v828 = vadd.f32 %v820, 0.5
      %v829 = vadd.f32 %v821, 0.5
      %v830 = vadd.f32 %v822, 0.5
      %v831 = vadd.f32 %v823, 0.5
      %v832 = vadd.f32 %v824, 0.5
      %v833 = vadd.f32 %v825, 0.5
      %v834 = vadd.f32 %v826, 0.5
      %v835 = vmul.f32 %v827, 0.055555556
      %v836 = vmul.f32 %v828, 0.055555556
      %v837 = vmul.f32 %v829, 0.055555556
      %v838 = vmul.f32 %v830, 0.055555556
      %v839 = vmul.f32 %v831, 0.055555556
      %v840 = vmul.f32 %v832, 0.055555556
      %v841 = vmul.f32 %v833, 0.055555556
      %v842 = vmul.f32 %v834, 0.055555556
      %v843 = vfloor.f32 %v835
      %v844 = vfloor.f32 %v836
      %v845 = vfloor.f32 %v837
      %v846 = vfloor.f32 %v838
      %v847 = vfloor.f32 %v839
      %v848 = vfloor.f32 %v840
      %v849 = vfloor.f32 %v841
      %v850 = vfloor.f32 %v842
      %v851 = vmul.f32 %v843, 18.0
      %v852 = vmul.f32 %v844, 18.0
      %v853 = vmul.f32 %v845, 18.0
      %v854 = vmul.f32 %v846, 18.0
      %v855 = vmul.f32 %v847, 18.0
      %v856 = vmul.f32 %v848, 18.0
      %v857 = vmul.f32 %v849, 18.0
      %v858 = vmul.f32 %v850, 18.0
      %v859 = vsub.f32 %v819, %v851
      %v860 = vsub.f32 %v820, %v852
      %v861 = vsub.f32 %v821, %v853
      %v862 = vsub.f32 %v822, %v854
      %v863 = vsub.f32 %v823, %v855
      %v864 = vsub.f32 %v824, %v856
      %v865 = vsub.f32 %v825, %v857
      %v866 = vsub.f32 %v826, %v858
      %vm867 = vcmp.ge.f32.partialorder %v819, 0.0
      %vm868 = vcmp.ge.f32.partialorder %v820, 0.0
      %vm869 = vcmp.ge.f32.partialorder %v821, 0.0
      %vm870 = vcmp.ge.f32.partialorder %v822, 0.0
      %vm871 = vcmp.ge.f32.partialorder %v823, 0.0
      %vm872 = vcmp.ge.f32.partialorder %v824, 0.0
      %vm873 = vcmp.ge.f32.partialorder %v825, 0.0
      %vm874 = vcmp.ge.f32.partialorder %v826, 0.0
      %vm875 = vcmp.lt.f32.partialorder %v819, 324.0
      %vm876 = vcmp.lt.f32.partialorder %v820, 324.0
      %vm877 = vcmp.lt.f32.partialorder %v821, 324.0
      %vm878 = vcmp.lt.f32.partialorder %v822, 324.0
      %vm879 = vcmp.lt.f32.partialorder %v823, 324.0
      %vm880 = vcmp.lt.f32.partialorder %v824, 324.0
      %vm881 = vcmp.lt.f32.partialorder %v825, 324.0
      %vm882 = vcmp.lt.f32.partialorder %v826, 324.0
      %vm883 = vmand %vm867, %vm875
      %vm884 = vmand %vm868, %vm876
      %vm885 = vmand %vm869, %vm877
      %vm886 = vmand %vm870, %vm878
      %vm887 = vmand %vm871, %vm879
      %vm888 = vmand %vm872, %vm880
      %vm889 = vmand %vm873, %vm881
      %vm890 = vmand %vm874, %vm882
      %vm891 = vcmp.ge.f32.partialorder %v843, 1.0
      %vm892 = vcmp.ge.f32.partialorder %v844, 1.0
      %vm893 = vcmp.ge.f32.partialorder %v845, 1.0
      %vm894 = vcmp.ge.f32.partialorder %v846, 1.0
      %vm895 = vcmp.ge.f32.partialorder %v847, 1.0
      %vm896 = vcmp.ge.f32.partialorder %v848, 1.0
      %vm897 = vcmp.ge.f32.partialorder %v849, 1.0
      %vm898 = vcmp.ge.f32.partialorder %v850, 1.0
      %vm899 = vmand %vm883, %vm891
      %vm900 = vmand %vm884, %vm892
      %vm901 = vmand %vm885, %vm893
      %vm902 = vmand %vm886, %vm894
      %vm903 = vmand %vm887, %vm895
      %vm904 = vmand %vm888, %vm896
      %vm905 = vmand %vm889, %vm897
      %vm906 = vmand %vm890, %vm898
      %vm907 = vcmp.le.f32.partialorder %v843, 16.0
      %vm908 = vcmp.le.f32.partialorder %v844, 16.0
      %vm909 = vcmp.le.f32.partialorder %v845, 16.0
      %vm910 = vcmp.le.f32.partialorder %v846, 16.0
      %vm911 = vcmp.le.f32.partialorder %v847, 16.0
      %vm912 = vcmp.le.f32.partialorder %v848, 16.0
      %vm913 = vcmp.le.f32.partialorder %v849, 16.0
      %vm914 = vcmp.le.f32.partialorder %v850, 16.0
      %vm915 = vmand %vm899, %vm907
      %vm916 = vmand %vm900, %vm908
      %vm917 = vmand %vm901, %vm909
      %vm918 = vmand %vm902, %vm910
      %vm919 = vmand %vm903, %vm911
      %vm920 = vmand %vm904, %vm912
      %vm921 = vmand %vm905, %vm913
      %vm922 = vmand %vm906, %vm914
      %vm923 = vcmp.ge.f32.partialorder %v859, 1.0
      %vm924 = vcmp.ge.f32.partialorder %v860, 1.0
      %vm925 = vcmp.ge.f32.partialorder %v861, 1.0
      %vm926 = vcmp.ge.f32.partialorder %v862, 1.0
      %vm927 = vcmp.ge.f32.partialorder %v863, 1.0
      %vm928 = vcmp.ge.f32.partialorder %v864, 1.0
      %vm929 = vcmp.ge.f32.partialorder %v865, 1.0
      %vm930 = vcmp.ge.f32.partialorder %v866, 1.0
      %vm931 = vmand %vm915, %vm923
      %vm932 = vmand %vm916, %vm924
      %vm933 = vmand %vm917, %vm925
      %vm934 = vmand %vm918, %vm926
      %vm935 = vmand %vm919, %vm927
      %vm936 = vmand %vm920, %vm928
      %vm937 = vmand %vm921, %vm929
      %vm938 = vmand %vm922, %vm930
      %vm939 = vcmp.le.f32.partialorder %v859, 16.0
      %vm940 = vcmp.le.f32.partialorder %v860, 16.0
      %vm941 = vcmp.le.f32.partialorder %v861, 16.0
      %vm942 = vcmp.le.f32.partialorder %v862, 16.0
      %vm943 = vcmp.le.f32.partialorder %v863, 16.0
      %vm944 = vcmp.le.f32.partialorder %v864, 16.0
      %vm945 = vcmp.le.f32.partialorder %v865, 16.0
      %vm946 = vcmp.le.f32.partialorder %v866, 16.0
      %vm947 = vmand %vm931, %vm939
      %vm948 = vmand %vm932, %vm940
      %vm949 = vmand %vm933, %vm941
      %vm950 = vmand %vm934, %vm942
      %vm951 = vmand %vm935, %vm943
      %vm952 = vmand %vm936, %vm944
      %vm953 = vmand %vm937, %vm945
      %vm954 = vmand %vm938, %vm946
      %v955 = vmax.f32 %v794, 0.0
      %v956 = vmax.f32 %v795, 0.0
      %v957 = vmax.f32 %v796, 0.0
      %v958 = vmax.f32 %v797, 0.0
      %v959 = vmax.f32 %v798, 0.0
      %v960 = vmax.f32 %v799, 0.0
      %v961 = vmax.f32 %v800, 0.0
      %v962 = vmax.f32 %v801, 0.0
      %v963 = vsel %vm947, 1, 0
      %v964 = vsel %vm948, 1, 0
      %v965 = vsel %vm949, 1, 0
      %v966 = vsel %vm950, 1, 0
      %v967 = vsel %vm951, 1, 0
      %v968 = vsel %vm952, 1, 0
      %v969 = vsel %vm953, 1, 0
      %v970 = vsel %vm954, 1, 0
      %vm971 = vcmp.eq.s32.totalorder %v963, 1
      %vm972 = vcmp.eq.s32.totalorder %v964, 1
      %vm973 = vcmp.eq.s32.totalorder %v965, 1
      %vm974 = vcmp.eq.s32.totalorder %v966, 1
      %vm975 = vcmp.eq.s32.totalorder %v967, 1
      %vm976 = vcmp.eq.s32.totalorder %v968, 1
      %vm977 = vcmp.eq.s32.totalorder %v969, 1
      %vm978 = vcmp.eq.s32.totalorder %v970, 1
      %v979 = vsel %vm971, %v955, 0.0
      %v980 = vsel %vm972, %v956, 0.0
      %v981 = vsel %vm973, %v957, 0.0
      %v982 = vsel %vm974, %v958, 0.0
      %v983 = vsel %vm975, %v959, 0.0
      %v984 = vsel %vm976, %v960, 0.0
      %v985 = vsel %vm977, %v961, 0.0
      %v986 = vsel %vm978, %v962, 0.0
      %v987 = vpack.c.bf16 %v979, %v979
      %v988 = vpack.c.bf16 %v980, %v980
      %v989 = vpack.c.bf16 %v981, %v981
      %v990 = vpack.c.bf16 %v982, %v982
      %v991 = vpack.c.bf16 %v983, %v983
      %v992 = vpack.c.bf16 %v984, %v984
      %v993 = vpack.c.bf16 %v985, %v985
      %v994 = vpack.c.bf16 %v986, %v986
      %995 = vst [vmem:[#allocation3] sm:$0xf] %v987
      %996 = vst [vmem:[#allocation3 + $0x4] sm:$0xf] %v988
      %997 = vst [vmem:[#allocation3 + $0x8] sm:$0xf] %v989
      %998 = vst [vmem:[#allocation3 + $0xc] sm:$0xf] %v990
      %999 = vst [vmem:[#allocation3 + $0x10] sm:$0xf] %v991
      %1000 = vst [vmem:[#allocation3 + $0x14] sm:$0xf] %v992
      %1001 = vst [vmem:[#allocation3 + $0x18] sm:$0xf] %v993
      %1002 = vst [vmem:[#allocation3 + $0x1c] sm:$0xf] %v994
      %v1003 = vld [vmem:[#allocation2 + $0x40] sm:$0xff]
      %v1004 = vld [vmem:[#allocation2 + $0x48] sm:$0xff]
      %v1005 = vld [vmem:[#allocation2 + $0x50] sm:$0xff]
      %v1006 = vld [vmem:[#allocation2 + $0x58] sm:$0xff]
      %v1007 = vld [vmem:[#allocation2 + $0x60] sm:$0xff]
      %v1008 = vld [vmem:[#allocation2 + $0x68] sm:$0xff]
      %v1009 = vld [vmem:[#allocation2 + $0x70] sm:$0xff]
      %v1010 = vld [vmem:[#allocation2 + $0x78] sm:$0xff]
      %v1011 = vmul.f32 %v1003, %v597
      %v1012 = vmul.f32 %v1004, %v597
      %v1013 = vmul.f32 %v1005, %v597
      %v1014 = vmul.f32 %v1006, %v597
      %v1015 = vmul.f32 %v1007, %v597
      %v1016 = vmul.f32 %v1008, %v597
      %v1017 = vmul.f32 %v1009, %v597
      %v1018 = vmul.f32 %v1010, %v597
      %v1019 = vadd.f32 %v587, %v1011
      %v1020 = vadd.f32 %v587, %v1012
      %v1021 = vadd.f32 %v587, %v1013
      %v1022 = vadd.f32 %v587, %v1014
      %v1023 = vadd.f32 %v587, %v1015
      %v1024 = vadd.f32 %v587, %v1016
      %v1025 = vadd.f32 %v587, %v1017
      %v1026 = vadd.f32 %v587, %v1018
      %v1027 = vld [vmem:[#allocation2 + $0x41] sm:$0xff]
      %v1028 = vld [vmem:[#allocation2 + $0x49] sm:$0xff]
      %v1029 = vld [vmem:[#allocation2 + $0x51] sm:$0xff]
      %v1030 = vld [vmem:[#allocation2 + $0x59] sm:$0xff]
      %v1031 = vld [vmem:[#allocation2 + $0x61] sm:$0xff]
      %v1032 = vld [vmem:[#allocation2 + $0x69] sm:$0xff]
      %v1033 = vld [vmem:[#allocation2 + $0x71] sm:$0xff]
      %v1034 = vld [vmem:[#allocation2 + $0x79] sm:$0xff]
      %v1035 = vmul.f32 %v1027, %v622
      %v1036 = vmul.f32 %v1028, %v622
      %v1037 = vmul.f32 %v1029, %v622
      %v1038 = vmul.f32 %v1030, %v622
      %v1039 = vmul.f32 %v1031, %v622
      %v1040 = vmul.f32 %v1032, %v622
      %v1041 = vmul.f32 %v1033, %v622
      %v1042 = vmul.f32 %v1034, %v622
      %v1043 = vadd.f32 %v1019, %v1035
      %v1044 = vadd.f32 %v1020, %v1036
      %v1045 = vadd.f32 %v1021, %v1037
      %v1046 = vadd.f32 %v1022, %v1038
      %v1047 = vadd.f32 %v1023, %v1039
      %v1048 = vadd.f32 %v1024, %v1040
      %v1049 = vadd.f32 %v1025, %v1041
      %v1050 = vadd.f32 %v1026, %v1042
      %v1051 = vld [vmem:[#allocation2 + $0x42] sm:$0xff]
      %v1052 = vld [vmem:[#allocation2 + $0x4a] sm:$0xff]
      %v1053 = vld [vmem:[#allocation2 + $0x52] sm:$0xff]
      %v1054 = vld [vmem:[#allocation2 + $0x5a] sm:$0xff]
      %v1055 = vld [vmem:[#allocation2 + $0x62] sm:$0xff]
      %v1056 = vld [vmem:[#allocation2 + $0x6a] sm:$0xff]
      %v1057 = vld [vmem:[#allocation2 + $0x72] sm:$0xff]
      %v1058 = vld [vmem:[#allocation2 + $0x7a] sm:$0xff]
      %v1059 = vmul.f32 %v1051, %v647
      %v1060 = vmul.f32 %v1052, %v647
      %v1061 = vmul.f32 %v1053, %v647
      %v1062 = vmul.f32 %v1054, %v647
      %v1063 = vmul.f32 %v1055, %v647
      %v1064 = vmul.f32 %v1056, %v647
      %v1065 = vmul.f32 %v1057, %v647
      %v1066 = vmul.f32 %v1058, %v647
      %v1067 = vadd.f32 %v1043, %v1059
      %v1068 = vadd.f32 %v1044, %v1060
      %v1069 = vadd.f32 %v1045, %v1061
      %v1070 = vadd.f32 %v1046, %v1062
      %v1071 = vadd.f32 %v1047, %v1063
      %v1072 = vadd.f32 %v1048, %v1064
      %v1073 = vadd.f32 %v1049, %v1065
      %v1074 = vadd.f32 %v1050, %v1066
      %v1075 = vld [vmem:[#allocation2 + $0x82] sm:$0xff]
      %v1076 = vld [vmem:[#allocation2 + $0x8a] sm:$0xff]
      %v1077 = vmul.f32 %v1053, %v666
      %v1078 = vmul.f32 %v1054, %v666
      %v1079 = vmul.f32 %v1055, %v666
      %v1080 = vmul.f32 %v1056, %v666
      %v1081 = vmul.f32 %v1057, %v666
      %v1082 = vmul.f32 %v1058, %v666
      %v1083 = vmul.f32 %v1075, %v666
      %v1084 = vmul.f32 %v1076, %v666
      %v1085 = vadd.f32 %v1067, %v1077
      %v1086 = vadd.f32 %v1068, %v1078
      %v1087 = vadd.f32 %v1069, %v1079
      %v1088 = vadd.f32 %v1070, %v1080
      %v1089 = vadd.f32 %v1071, %v1081
      %v1090 = vadd.f32 %v1072, %v1082
      %v1091 = vadd.f32 %v1073, %v1083
      %v1092 = vadd.f32 %v1074, %v1084
      %v1093 = vld [vmem:[#allocation2 + $0x53] sm:$0xff]
      %v1094 = vld [vmem:[#allocation2 + $0x5b] sm:$0xff]
      %v1095 = vld [vmem:[#allocation2 + $0x63] sm:$0xff]
      %v1096 = vld [vmem:[#allocation2 + $0x6b] sm:$0xff]
      %v1097 = vld [vmem:[#allocation2 + $0x73] sm:$0xff]
      %v1098 = vld [vmem:[#allocation2 + $0x7b] sm:$0xff]
      %v1099 = vld [vmem:[#allocation2 + $0x83] sm:$0xff]
      %v1100 = vld [vmem:[#allocation2 + $0x8b] sm:$0xff]
      %v1101 = vmul.f32 %v1093, %v691
      %v1102 = vmul.f32 %v1094, %v691
      %v1103 = vmul.f32 %v1095, %v691
      %v1104 = vmul.f32 %v1096, %v691
      %v1105 = vmul.f32 %v1097, %v691
      %v1106 = vmul.f32 %v1098, %v691
      %v1107 = vmul.f32 %v1099, %v691
      %v1108 = vmul.f32 %v1100, %v691
      %v1109 = vadd.f32 %v1085, %v1101
      %v1110 = vadd.f32 %v1086, %v1102
      %v1111 = vadd.f32 %v1087, %v1103
      %v1112 = vadd.f32 %v1088, %v1104
      %v1113 = vadd.f32 %v1089, %v1105
      %v1114 = vadd.f32 %v1090, %v1106
      %v1115 = vadd.f32 %v1091, %v1107
      %v1116 = vadd.f32 %v1092, %v1108
      %v1117 = vld [vmem:[#allocation2 + $0x54] sm:$0xff]
      %v1118 = vld [vmem:[#allocation2 + $0x5c] sm:$0xff]
      %v1119 = vld [vmem:[#allocation2 + $0x64] sm:$0xff]
      %v1120 = vld [vmem:[#allocation2 + $0x6c] sm:$0xff]
      %v1121 = vld [vmem:[#allocation2 + $0x74] sm:$0xff]
      %v1122 = vld [vmem:[#allocation2 + $0x7c] sm:$0xff]
      %v1123 = vld [vmem:[#allocation2 + $0x84] sm:$0xff]
      %v1124 = vld [vmem:[#allocation2 + $0x8c] sm:$0xff]
      %v1125 = vmul.f32 %v1117, %v716
      %v1126 = vmul.f32 %v1118, %v716
      %v1127 = vmul.f32 %v1119, %v716
      %v1128 = vmul.f32 %v1120, %v716
      %v1129 = vmul.f32 %v1121, %v716
      %v1130 = vmul.f32 %v1122, %v716
      %v1131 = vmul.f32 %v1123, %v716
      %v1132 = vmul.f32 %v1124, %v716
      %v1133 = vadd.f32 %v1109, %v1125
      %v1134 = vadd.f32 %v1110, %v1126
      %v1135 = vadd.f32 %v1111, %v1127
      %v1136 = vadd.f32 %v1112, %v1128
      %v1137 = vadd.f32 %v1113, %v1129
      %v1138 = vadd.f32 %v1114, %v1130
      %v1139 = vadd.f32 %v1115, %v1131
      %v1140 = vadd.f32 %v1116, %v1132
      %v1141 = vld [vmem:[#allocation2 + $0x94] sm:$0xff]
      %v1142 = vld [vmem:[#allocation2 + $0x9c] sm:$0xff]
      %v1143 = vmul.f32 %v1119, %v735
      %v1144 = vmul.f32 %v1120, %v735
      %v1145 = vmul.f32 %v1121, %v735
      %v1146 = vmul.f32 %v1122, %v735
      %v1147 = vmul.f32 %v1123, %v735
      %v1148 = vmul.f32 %v1124, %v735
      %v1149 = vmul.f32 %v1141, %v735
      %v1150 = vmul.f32 %v1142, %v735
      %v1151 = vadd.f32 %v1133, %v1143
      %v1152 = vadd.f32 %v1134, %v1144
      %v1153 = vadd.f32 %v1135, %v1145
      %v1154 = vadd.f32 %v1136, %v1146
      %v1155 = vadd.f32 %v1137, %v1147
      %v1156 = vadd.f32 %v1138, %v1148
      %v1157 = vadd.f32 %v1139, %v1149
      %v1158 = vadd.f32 %v1140, %v1150
      %v1159 = vld [vmem:[#allocation2 + $0x65] sm:$0xff]
      %v1160 = vld [vmem:[#allocation2 + $0x6d] sm:$0xff]
      %v1161 = vld [vmem:[#allocation2 + $0x75] sm:$0xff]
      %v1162 = vld [vmem:[#allocation2 + $0x7d] sm:$0xff]
      %v1163 = vld [vmem:[#allocation2 + $0x85] sm:$0xff]
      %v1164 = vld [vmem:[#allocation2 + $0x8d] sm:$0xff]
      %v1165 = vld [vmem:[#allocation2 + $0x95] sm:$0xff]
      %v1166 = vld [vmem:[#allocation2 + $0x9d] sm:$0xff]
      %v1167 = vmul.f32 %v1159, %v760
      %v1168 = vmul.f32 %v1160, %v760
      %v1169 = vmul.f32 %v1161, %v760
      %v1170 = vmul.f32 %v1162, %v760
      %v1171 = vmul.f32 %v1163, %v760
      %v1172 = vmul.f32 %v1164, %v760
      %v1173 = vmul.f32 %v1165, %v760
      %v1174 = vmul.f32 %v1166, %v760
      %v1175 = vadd.f32 %v1151, %v1167
      %v1176 = vadd.f32 %v1152, %v1168
      %v1177 = vadd.f32 %v1153, %v1169
      %v1178 = vadd.f32 %v1154, %v1170
      %v1179 = vadd.f32 %v1155, %v1171
      %v1180 = vadd.f32 %v1156, %v1172
      %v1181 = vadd.f32 %v1157, %v1173
      %v1182 = vadd.f32 %v1158, %v1174
      %v1183 = vld [vmem:[#allocation2 + $0x66] sm:$0xff]
      %v1184 = vld [vmem:[#allocation2 + $0x6e] sm:$0xff]
      %v1185 = vld [vmem:[#allocation2 + $0x76] sm:$0xff]
      %v1186 = vld [vmem:[#allocation2 + $0x7e] sm:$0xff]
      %v1187 = vld [vmem:[#allocation2 + $0x86] sm:$0xff]
      %v1188 = vld [vmem:[#allocation2 + $0x8e] sm:$0xff]
      %v1189 = vld [vmem:[#allocation2 + $0x96] sm:$0xff]
      %v1190 = vld [vmem:[#allocation2 + $0x9e] sm:$0xff]
      %v1191 = vmul.f32 %v1183, %v785
      %v1192 = vmul.f32 %v1184, %v785
      %v1193 = vmul.f32 %v1185, %v785
      %v1194 = vmul.f32 %v1186, %v785
      %v1195 = vmul.f32 %v1187, %v785
      %v1196 = vmul.f32 %v1188, %v785
      %v1197 = vmul.f32 %v1189, %v785
      %v1198 = vmul.f32 %v1190, %v785
      %v1199 = vadd.f32 %v1175, %v1191
      %v1200 = vadd.f32 %v1176, %v1192
      %v1201 = vadd.f32 %v1177, %v1193
      %v1202 = vadd.f32 %v1178, %v1194
      %v1203 = vadd.f32 %v1179, %v1195
      %v1204 = vadd.f32 %v1180, %v1196
      %v1205 = vadd.f32 %v1181, %v1197
      %v1206 = vadd.f32 %v1182, %v1198
      %v1207 = vadd.s32 %v803, 45
      %v1208 = vadd.s32 %v804, 45
      %v1209 = vadd.s32 %v805, 45
      %v1210 = vadd.s32 %v806, 45
      %v1211 = vadd.s32 %v807, 45
      %v1212 = vadd.s32 %v808, 45
      %v1213 = vadd.s32 %v809, 45
      %v1214 = vadd.s32 %v810, 45
      %v1215 = vcvt.s32.f32 %v1207
      %v1216 = vcvt.s32.f32 %v1208
      %v1217 = vcvt.s32.f32 %v1209
      %v1218 = vcvt.s32.f32 %v1210
      %v1219 = vcvt.s32.f32 %v1211
      %v1220 = vcvt.s32.f32 %v1212
      %v1221 = vcvt.s32.f32 %v1213
      %v1222 = vcvt.s32.f32 %v1214
      %v1223 = vadd.f32 %v1215, 0.5
      %v1224 = vadd.f32 %v1216, 0.5
      %v1225 = vadd.f32 %v1217, 0.5
      %v1226 = vadd.f32 %v1218, 0.5
      %v1227 = vadd.f32 %v1219, 0.5
      %v1228 = vadd.f32 %v1220, 0.5
      %v1229 = vadd.f32 %v1221, 0.5
      %v1230 = vadd.f32 %v1222, 0.5
      %v1231 = vmul.f32 %v1223, 0.055555556
      %v1232 = vmul.f32 %v1224, 0.055555556
      %v1233 = vmul.f32 %v1225, 0.055555556
      %v1234 = vmul.f32 %v1226, 0.055555556
      %v1235 = vmul.f32 %v1227, 0.055555556
      %v1236 = vmul.f32 %v1228, 0.055555556
      %v1237 = vmul.f32 %v1229, 0.055555556
      %v1238 = vmul.f32 %v1230, 0.055555556
      %v1239 = vfloor.f32 %v1231
      %v1240 = vfloor.f32 %v1232
      %v1241 = vfloor.f32 %v1233
      %v1242 = vfloor.f32 %v1234
      %v1243 = vfloor.f32 %v1235
      %v1244 = vfloor.f32 %v1236
      %v1245 = vfloor.f32 %v1237
      %v1246 = vfloor.f32 %v1238
      %v1247 = vmul.f32 %v1239, 18.0
      %v1248 = vmul.f32 %v1240, 18.0
      %v1249 = vmul.f32 %v1241, 18.0
      %v1250 = vmul.f32 %v1242, 18.0
      %v1251 = vmul.f32 %v1243, 18.0
      %v1252 = vmul.f32 %v1244, 18.0
      %v1253 = vmul.f32 %v1245, 18.0
      %v1254 = vmul.f32 %v1246, 18.0
      %v1255 = vsub.f32 %v1215, %v1247
      %v1256 = vsub.f32 %v1216, %v1248
      %v1257 = vsub.f32 %v1217, %v1249
      %v1258 = vsub.f32 %v1218, %v1250
      %v1259 = vsub.f32 %v1219, %v1251
      %v1260 = vsub.f32 %v1220, %v1252
      %v1261 = vsub.f32 %v1221, %v1253
      %v1262 = vsub.f32 %v1222, %v1254
      %vm1263 = vcmp.ge.f32.partialorder %v1215, 0.0
      %vm1264 = vcmp.ge.f32.partialorder %v1216, 0.0
      %vm1265 = vcmp.ge.f32.partialorder %v1217, 0.0
      %vm1266 = vcmp.ge.f32.partialorder %v1218, 0.0
      %vm1267 = vcmp.ge.f32.partialorder %v1219, 0.0
      %vm1268 = vcmp.ge.f32.partialorder %v1220, 0.0
      %vm1269 = vcmp.ge.f32.partialorder %v1221, 0.0
      %vm1270 = vcmp.ge.f32.partialorder %v1222, 0.0
      %vm1271 = vcmp.lt.f32.partialorder %v1215, 324.0
      %vm1272 = vcmp.lt.f32.partialorder %v1216, 324.0
      %vm1273 = vcmp.lt.f32.partialorder %v1217, 324.0
      %vm1274 = vcmp.lt.f32.partialorder %v1218, 324.0
      %vm1275 = vcmp.lt.f32.partialorder %v1219, 324.0
      %vm1276 = vcmp.lt.f32.partialorder %v1220, 324.0
      %vm1277 = vcmp.lt.f32.partialorder %v1221, 324.0
      %vm1278 = vcmp.lt.f32.partialorder %v1222, 324.0
      %vm1279 = vmand %vm1263, %vm1271
      %vm1280 = vmand %vm1264, %vm1272
      %vm1281 = vmand %vm1265, %vm1273
      %vm1282 = vmand %vm1266, %vm1274
      %vm1283 = vmand %vm1267, %vm1275
      %vm1284 = vmand %vm1268, %vm1276
      %vm1285 = vmand %vm1269, %vm1277
      %vm1286 = vmand %vm1270, %vm1278
      %vm1287 = vcmp.ge.f32.partialorder %v1239, 1.0
      %vm1288 = vcmp.ge.f32.partialorder %v1240, 1.0
      %vm1289 = vcmp.ge.f32.partialorder %v1241, 1.0
      %vm1290 = vcmp.ge.f32.partialorder %v1242, 1.0
      %vm1291 = vcmp.ge.f32.partialorder %v1243, 1.0
      %vm1292 = vcmp.ge.f32.partialorder %v1244, 1.0
      %vm1293 = vcmp.ge.f32.partialorder %v1245, 1.0
      %vm1294 = vcmp.ge.f32.partialorder %v1246, 1.0
      %vm1295 = vmand %vm1279, %vm1287
      %vm1296 = vmand %vm1280, %vm1288
      %vm1297 = vmand %vm1281, %vm1289
      %vm1298 = vmand %vm1282, %vm1290
      %vm1299 = vmand %vm1283, %vm1291
      %vm1300 = vmand %vm1284, %vm1292
      %vm1301 = vmand %vm1285, %vm1293
      %vm1302 = vmand %vm1286, %vm1294
      %vm1303 = vcmp.le.f32.partialorder %v1239, 16.0
      %vm1304 = vcmp.le.f32.partialorder %v1240, 16.0
      %vm1305 = vcmp.le.f32.partialorder %v1241, 16.0
      %vm1306 = vcmp.le.f32.partialorder %v1242, 16.0
      %vm1307 = vcmp.le.f32.partialorder %v1243, 16.0
      %vm1308 = vcmp.le.f32.partialorder %v1244, 16.0
      %vm1309 = vcmp.le.f32.partialorder %v1245, 16.0
      %vm1310 = vcmp.le.f32.partialorder %v1246, 16.0
      %vm1311 = vmand %vm1295, %vm1303
      %vm1312 = vmand %vm1296, %vm1304
      %vm1313 = vmand %vm1297, %vm1305
      %vm1314 = vmand %vm1298, %vm1306
      %vm1315 = vmand %vm1299, %vm1307
      %vm1316 = vmand %vm1300, %vm1308
      %vm1317 = vmand %vm1301, %vm1309
      %vm1318 = vmand %vm1302, %vm1310
      %vm1319 = vcmp.ge.f32.partialorder %v1255, 1.0
      %vm1320 = vcmp.ge.f32.partialorder %v1256, 1.0
      %vm1321 = vcmp.ge.f32.partialorder %v1257, 1.0
      %vm1322 = vcmp.ge.f32.partialorder %v1258, 1.0
      %vm1323 = vcmp.ge.f32.partialorder %v1259, 1.0
      %vm1324 = vcmp.ge.f32.partialorder %v1260, 1.0
      %vm1325 = vcmp.ge.f32.partialorder %v1261, 1.0
      %vm1326 = vcmp.ge.f32.partialorder %v1262, 1.0
      %vm1327 = vmand %vm1311, %vm1319
      %vm1328 = vmand %vm1312, %vm1320
      %vm1329 = vmand %vm1313, %vm1321
      %vm1330 = vmand %vm1314, %vm1322
      %vm1331 = vmand %vm1315, %vm1323
      %vm1332 = vmand %vm1316, %vm1324
      %vm1333 = vmand %vm1317, %vm1325
      %vm1334 = vmand %vm1318, %vm1326
      %vm1335 = vcmp.le.f32.partialorder %v1255, 16.0
      %vm1336 = vcmp.le.f32.partialorder %v1256, 16.0
      %vm1337 = vcmp.le.f32.partialorder %v1257, 16.0
      %vm1338 = vcmp.le.f32.partialorder %v1258, 16.0
      %vm1339 = vcmp.le.f32.partialorder %v1259, 16.0
      %vm1340 = vcmp.le.f32.partialorder %v1260, 16.0
      %vm1341 = vcmp.le.f32.partialorder %v1261, 16.0
      %vm1342 = vcmp.le.f32.partialorder %v1262, 16.0
      %vm1343 = vmand %vm1327, %vm1335
      %vm1344 = vmand %vm1328, %vm1336
      %vm1345 = vmand %vm1329, %vm1337
      %vm1346 = vmand %vm1330, %vm1338
      %vm1347 = vmand %vm1331, %vm1339
      %vm1348 = vmand %vm1332, %vm1340
      %vm1349 = vmand %vm1333, %vm1341
      %vm1350 = vmand %vm1334, %vm1342
      %v1351 = vmax.f32 %v1199, 0.0
      %v1352 = vmax.f32 %v1200, 0.0
      %v1353 = vmax.f32 %v1201, 0.0
      %v1354 = vmax.f32 %v1202, 0.0
      %v1355 = vmax.f32 %v1203, 0.0
      %v1356 = vmax.f32 %v1204, 0.0
      %v1357 = vmax.f32 %v1205, 0.0
      %v1358 = vmax.f32 %v1206, 0.0
      %v1359 = vsel %vm1343, 1, 0
      %v1360 = vsel %vm1344, 1, 0
      %v1361 = vsel %vm1345, 1, 0
      %v1362 = vsel %vm1346, 1, 0
      %v1363 = vsel %vm1347, 1, 0
      %v1364 = vsel %vm1348, 1, 0
      %v1365 = vsel %vm1349, 1, 0
      %v1366 = vsel %vm1350, 1, 0
      %vm1367 = vcmp.eq.s32.totalorder %v1359, 1
      %vm1368 = vcmp.eq.s32.totalorder %v1360, 1
      %vm1369 = vcmp.eq.s32.totalorder %v1361, 1
      %vm1370 = vcmp.eq.s32.totalorder %v1362, 1
      %vm1371 = vcmp.eq.s32.totalorder %v1363, 1
      %vm1372 = vcmp.eq.s32.totalorder %v1364, 1
      %vm1373 = vcmp.eq.s32.totalorder %v1365, 1
      %vm1374 = vcmp.eq.s32.totalorder %v1366, 1
      %v1375 = vsel %vm1367, %v1351, 0.0
      %v1376 = vsel %vm1368, %v1352, 0.0
      %v1377 = vsel %vm1369, %v1353, 0.0
      %v1378 = vsel %vm1370, %v1354, 0.0
      %v1379 = vsel %vm1371, %v1355, 0.0
      %v1380 = vsel %vm1372, %v1356, 0.0
      %v1381 = vsel %vm1373, %v1357, 0.0
      %v1382 = vsel %vm1374, %v1358, 0.0
      %v1383 = vpack.c.bf16 %v1375, %v1375
      %v1384 = vpack.c.bf16 %v1376, %v1376
      %v1385 = vpack.c.bf16 %v1377, %v1377
      %v1386 = vpack.c.bf16 %v1378, %v1378
      %v1387 = vpack.c.bf16 %v1379, %v1379
      %v1388 = vpack.c.bf16 %v1380, %v1380
      %v1389 = vpack.c.bf16 %v1381, %v1381
      %v1390 = vpack.c.bf16 %v1382, %v1382
      %1391 = vst [vmem:[#allocation3 + $0x20] sm:$0xf] %v1383
      %1392 = vst [vmem:[#allocation3 + $0x24] sm:$0xf] %v1384
      %1393 = vst [vmem:[#allocation3 + $0x28] sm:$0xf] %v1385
      %1394 = vst [vmem:[#allocation3 + $0x2c] sm:$0xf] %v1386
      %1395 = vst [vmem:[#allocation3 + $0x30] sm:$0xf] %v1387
      %1396 = vst [vmem:[#allocation3 + $0x34] sm:$0xf] %v1388
      %1397 = vst [vmem:[#allocation3 + $0x38] sm:$0xf] %v1389
      %1398 = vst [vmem:[#allocation3 + $0x3c] sm:$0xf] %v1390
      %v1399 = vld [vmem:[#allocation2 + $0x80] sm:$0xff]
      %v1400 = vld [vmem:[#allocation2 + $0x88] sm:$0xff]
      %v1401 = vld [vmem:[#allocation2 + $0x90] sm:$0xff]
      %v1402 = vld [vmem:[#allocation2 + $0x98] sm:$0xff]
      %v1403 = vld [vmem:[#allocation2 + $0xa0] sm:$0xff]
      %v1404 = vld [vmem:[#allocation2 + $0xa8] sm:$0xff]
      %v1405 = vld [vmem:[#allocation2 + $0xb0] sm:$0xff]
      %v1406 = vld [vmem:[#allocation2 + $0xb8] sm:$0xff]
      %v1407 = vmul.f32 %v1399, %v597
      %v1408 = vmul.f32 %v1400, %v597
      %v1409 = vmul.f32 %v1401, %v597
      %v1410 = vmul.f32 %v1402, %v597
      %v1411 = vmul.f32 %v1403, %v597
      %v1412 = vmul.f32 %v1404, %v597
      %v1413 = vmul.f32 %v1405, %v597
      %v1414 = vmul.f32 %v1406, %v597
      %v1415 = vadd.f32 %v587, %v1407
      %v1416 = vadd.f32 %v587, %v1408
      %v1417 = vadd.f32 %v587, %v1409
      %v1418 = vadd.f32 %v587, %v1410
      %v1419 = vadd.f32 %v587, %v1411
      %v1420 = vadd.f32 %v587, %v1412
      %v1421 = vadd.f32 %v587, %v1413
      %v1422 = vadd.f32 %v587, %v1414
      %v1423 = vld [vmem:[#allocation2 + $0x81] sm:$0xff]
      %v1424 = vld [vmem:[#allocation2 + $0x89] sm:$0xff]
      %v1425 = vld [vmem:[#allocation2 + $0x91] sm:$0xff]
      %v1426 = vld [vmem:[#allocation2 + $0x99] sm:$0xff]
      %v1427 = vld [vmem:[#allocation2 + $0xa1] sm:$0xff]
      %v1428 = vld [vmem:[#allocation2 + $0xa9] sm:$0xff]
      %v1429 = vld [vmem:[#allocation2 + $0xb1] sm:$0xff]
      %v1430 = vld [vmem:[#allocation2 + $0xb9] sm:$0xff]
      %v1431 = vmul.f32 %v1423, %v622
      %v1432 = vmul.f32 %v1424, %v622
      %v1433 = vmul.f32 %v1425, %v622
      %v1434 = vmul.f32 %v1426, %v622
      %v1435 = vmul.f32 %v1427, %v622
      %v1436 = vmul.f32 %v1428, %v622
      %v1437 = vmul.f32 %v1429, %v622
      %v1438 = vmul.f32 %v1430, %v622
      %v1439 = vadd.f32 %v1415, %v1431
      %v1440 = vadd.f32 %v1416, %v1432
      %v1441 = vadd.f32 %v1417, %v1433
      %v1442 = vadd.f32 %v1418, %v1434
      %v1443 = vadd.f32 %v1419, %v1435
      %v1444 = vadd.f32 %v1420, %v1436
      %v1445 = vadd.f32 %v1421, %v1437
      %v1446 = vadd.f32 %v1422, %v1438
      %v1447 = vld [vmem:[#allocation2 + $0x82] sm:$0xff]
      %v1448 = vld [vmem:[#allocation2 + $0x8a] sm:$0xff]
      %v1449 = vld [vmem:[#allocation2 + $0x92] sm:$0xff]
      %v1450 = vld [vmem:[#allocation2 + $0x9a] sm:$0xff]
      %v1451 = vld [vmem:[#allocation2 + $0xa2] sm:$0xff]
      %v1452 = vld [vmem:[#allocation2 + $0xaa] sm:$0xff]
      %v1453 = vld [vmem:[#allocation2 + $0xb2] sm:$0xff]
      %v1454 = vld [vmem:[#allocation2 + $0xba] sm:$0xff]
      %v1455 = vmul.f32 %v1447, %v647
      %v1456 = vmul.f32 %v1448, %v647
      %v1457 = vmul.f32 %v1449, %v647
      %v1458 = vmul.f32 %v1450, %v647
      %v1459 = vmul.f32 %v1451, %v647
      %v1460 = vmul.f32 %v1452, %v647
      %v1461 = vmul.f32 %v1453, %v647
      %v1462 = vmul.f32 %v1454, %v647
      %v1463 = vadd.f32 %v1439, %v1455
      %v1464 = vadd.f32 %v1440, %v1456
      %v1465 = vadd.f32 %v1441, %v1457
      %v1466 = vadd.f32 %v1442, %v1458
      %v1467 = vadd.f32 %v1443, %v1459
      %v1468 = vadd.f32 %v1444, %v1460
      %v1469 = vadd.f32 %v1445, %v1461
      %v1470 = vadd.f32 %v1446, %v1462
      %v1471 = vld [vmem:[#allocation2 + $0xc2] sm:$0xff]
      %v1472 = vld [vmem:[#allocation2 + $0xca] sm:$0xff]
      %v1473 = vmul.f32 %v1449, %v666
      %v1474 = vmul.f32 %v1450, %v666
      %v1475 = vmul.f32 %v1451, %v666
      %v1476 = vmul.f32 %v1452, %v666
      %v1477 = vmul.f32 %v1453, %v666
      %v1478 = vmul.f32 %v1454, %v666
      %v1479 = vmul.f32 %v1471, %v666
      %v1480 = vmul.f32 %v1472, %v666
      %v1481 = vadd.f32 %v1463, %v1473
      %v1482 = vadd.f32 %v1464, %v1474
      %v1483 = vadd.f32 %v1465, %v1475
      %v1484 = vadd.f32 %v1466, %v1476
      %v1485 = vadd.f32 %v1467, %v1477
      %v1486 = vadd.f32 %v1468, %v1478
      %v1487 = vadd.f32 %v1469, %v1479
      %v1488 = vadd.f32 %v1470, %v1480
      %v1489 = vld [vmem:[#allocation2 + $0x93] sm:$0xff]
      %v1490 = vld [vmem:[#allocation2 + $0x9b] sm:$0xff]
      %v1491 = vld [vmem:[#allocation2 + $0xa3] sm:$0xff]
      %v1492 = vld [vmem:[#allocation2 + $0xab] sm:$0xff]
      %v1493 = vld [vmem:[#allocation2 + $0xb3] sm:$0xff]
      %v1494 = vld [vmem:[#allocation2 + $0xbb] sm:$0xff]
      %v1495 = vld [vmem:[#allocation2 + $0xc3] sm:$0xff]
      %v1496 = vld [vmem:[#allocation2 + $0xcb] sm:$0xff]
      %v1497 = vmul.f32 %v1489, %v691
      %v1498 = vmul.f32 %v1490, %v691
      %v1499 = vmul.f32 %v1491, %v691
      %v1500 = vmul.f32 %v1492, %v691
      %v1501 = vmul.f32 %v1493, %v691
      %v1502 = vmul.f32 %v1494, %v691
      %v1503 = vmul.f32 %v1495, %v691
      %v1504 = vmul.f32 %v1496, %v691
      %v1505 = vadd.f32 %v1481, %v1497
      %v1506 = vadd.f32 %v1482, %v1498
      %v1507 = vadd.f32 %v1483, %v1499
      %v1508 = vadd.f32 %v1484, %v1500
      %v1509 = vadd.f32 %v1485, %v1501
      %v1510 = vadd.f32 %v1486, %v1502
      %v1511 = vadd.f32 %v1487, %v1503
      %v1512 = vadd.f32 %v1488, %v1504
      %v1513 = vld [vmem:[#allocation2 + $0x94] sm:$0xff]
      %v1514 = vld [vmem:[#allocation2 + $0x9c] sm:$0xff]
      %v1515 = vld [vmem:[#allocation2 + $0xa4] sm:$0xff]
      %v1516 = vld [vmem:[#allocation2 + $0xac] sm:$0xff]
      %v1517 = vld [vmem:[#allocation2 + $0xb4] sm:$0xff]
      %v1518 = vld [vmem:[#allocation2 + $0xbc] sm:$0xff]
      %v1519 = vld [vmem:[#allocation2 + $0xc4] sm:$0xff]
      %v1520 = vld [vmem:[#allocation2 + $0xcc] sm:$0xff]
      %v1521 = vmul.f32 %v1513, %v716
      %v1522 = vmul.f32 %v1514, %v716
      %v1523 = vmul.f32 %v1515, %v716
      %v1524 = vmul.f32 %v1516, %v716
      %v1525 = vmul.f32 %v1517, %v716
      %v1526 = vmul.f32 %v1518, %v716
      %v1527 = vmul.f32 %v1519, %v716
      %v1528 = vmul.f32 %v1520, %v716
      %v1529 = vadd.f32 %v1505, %v1521
      %v1530 = vadd.f32 %v1506, %v1522
      %v1531 = vadd.f32 %v1507, %v1523
      %v1532 = vadd.f32 %v1508, %v1524
      %v1533 = vadd.f32 %v1509, %v1525
      %v1534 = vadd.f32 %v1510, %v1526
      %v1535 = vadd.f32 %v1511, %v1527
      %v1536 = vadd.f32 %v1512, %v1528
      %v1537 = vld [vmem:[#allocation2 + $0xd4] sm:$0xff]
      %v1538 = vld [vmem:[#allocation2 + $0xdc] sm:$0xff]
      %v1539 = vmul.f32 %v1515, %v735
      %v1540 = vmul.f32 %v1516, %v735
      %v1541 = vmul.f32 %v1517, %v735
      %v1542 = vmul.f32 %v1518, %v735
      %v1543 = vmul.f32 %v1519, %v735
      %v1544 = vmul.f32 %v1520, %v735
      %v1545 = vmul.f32 %v1537, %v735
      %v1546 = vmul.f32 %v1538, %v735
      %v1547 = vadd.f32 %v1529, %v1539
      %v1548 = vadd.f32 %v1530, %v1540
      %v1549 = vadd.f32 %v1531, %v1541
      %v1550 = vadd.f32 %v1532, %v1542
      %v1551 = vadd.f32 %v1533, %v1543
      %v1552 = vadd.f32 %v1534, %v1544
      %v1553 = vadd.f32 %v1535, %v1545
      %v1554 = vadd.f32 %v1536, %v1546
      %v1555 = vld [vmem:[#allocation2 + $0xa5] sm:$0xff]
      %v1556 = vld [vmem:[#allocation2 + $0xad] sm:$0xff]
      %v1557 = vld [vmem:[#allocation2 + $0xb5] sm:$0xff]
      %v1558 = vld [vmem:[#allocation2 + $0xbd] sm:$0xff]
      %v1559 = vld [vmem:[#allocation2 + $0xc5] sm:$0xff]
      %v1560 = vld [vmem:[#allocation2 + $0xcd] sm:$0xff]
      %v1561 = vld [vmem:[#allocation2 + $0xd5] sm:$0xff]
      %v1562 = vld [vmem:[#allocation2 + $0xdd] sm:$0xff]
      %v1563 = vmul.f32 %v1555, %v760
      %v1564 = vmul.f32 %v1556, %v760
      %v1565 = vmul.f32 %v1557, %v760
      %v1566 = vmul.f32 %v1558, %v760
      %v1567 = vmul.f32 %v1559, %v760
      %v1568 = vmul.f32 %v1560, %v760
      %v1569 = vmul.f32 %v1561, %v760
      %v1570 = vmul.f32 %v1562, %v760
      %v1571 = vadd.f32 %v1547, %v1563
      %v1572 = vadd.f32 %v1548, %v1564
      %v1573 = vadd.f32 %v1549, %v1565
      %v1574 = vadd.f32 %v1550, %v1566
      %v1575 = vadd.f32 %v1551, %v1567
      %v1576 = vadd.f32 %v1552, %v1568
      %v1577 = vadd.f32 %v1553, %v1569
      %v1578 = vadd.f32 %v1554, %v1570
      %v1579 = vld [vmem:[#allocation2 + $0xa6] sm:$0xff]
      %v1580 = vld [vmem:[#allocation2 + $0xae] sm:$0xff]
      %v1581 = vld [vmem:[#allocation2 + $0xb6] sm:$0xff]
      %v1582 = vld [vmem:[#allocation2 + $0xbe] sm:$0xff]
      %v1583 = vld [vmem:[#allocation2 + $0xc6] sm:$0xff]
      %v1584 = vld [vmem:[#allocation2 + $0xce] sm:$0xff]
      %v1585 = vld [vmem:[#allocation2 + $0xd6] sm:$0xff]
      %v1586 = vld [vmem:[#allocation2 + $0xde] sm:$0xff]
      %v1587 = vmul.f32 %v1579, %v785
      %v1588 = vmul.f32 %v1580, %v785
      %v1589 = vmul.f32 %v1581, %v785
      %v1590 = vmul.f32 %v1582, %v785
      %v1591 = vmul.f32 %v1583, %v785
      %v1592 = vmul.f32 %v1584, %v785
      %v1593 = vmul.f32 %v1585, %v785
      %v1594 = vmul.f32 %v1586, %v785
      %v1595 = vadd.f32 %v1571, %v1587
      %v1596 = vadd.f32 %v1572, %v1588
      %v1597 = vadd.f32 %v1573, %v1589
      %v1598 = vadd.f32 %v1574, %v1590
      %v1599 = vadd.f32 %v1575, %v1591
      %v1600 = vadd.f32 %v1576, %v1592
      %v1601 = vadd.f32 %v1577, %v1593
      %v1602 = vadd.f32 %v1578, %v1594
      %v1603 = vadd.s32 %v803, 109
      %v1604 = vadd.s32 %v804, 109
      %v1605 = vadd.s32 %v805, 109
      %v1606 = vadd.s32 %v806, 109
      %v1607 = vadd.s32 %v807, 109
      %v1608 = vadd.s32 %v808, 109
      %v1609 = vadd.s32 %v809, 109
      %v1610 = vadd.s32 %v810, 109
      %v1611 = vcvt.s32.f32 %v1603
      %v1612 = vcvt.s32.f32 %v1604
      %v1613 = vcvt.s32.f32 %v1605
      %v1614 = vcvt.s32.f32 %v1606
      %v1615 = vcvt.s32.f32 %v1607
      %v1616 = vcvt.s32.f32 %v1608
      %v1617 = vcvt.s32.f32 %v1609
      %v1618 = vcvt.s32.f32 %v1610
      %v1619 = vadd.f32 %v1611, 0.5
      %v1620 = vadd.f32 %v1612, 0.5
      %v1621 = vadd.f32 %v1613, 0.5
      %v1622 = vadd.f32 %v1614, 0.5
      %v1623 = vadd.f32 %v1615, 0.5
      %v1624 = vadd.f32 %v1616, 0.5
      %v1625 = vadd.f32 %v1617, 0.5
      %v1626 = vadd.f32 %v1618, 0.5
      %v1627 = vmul.f32 %v1619, 0.055555556
      %v1628 = vmul.f32 %v1620, 0.055555556
      %v1629 = vmul.f32 %v1621, 0.055555556
      %v1630 = vmul.f32 %v1622, 0.055555556
      %v1631 = vmul.f32 %v1623, 0.055555556
      %v1632 = vmul.f32 %v1624, 0.055555556
      %v1633 = vmul.f32 %v1625, 0.055555556
      %v1634 = vmul.f32 %v1626, 0.055555556
      %v1635 = vfloor.f32 %v1627
      %v1636 = vfloor.f32 %v1628
      %v1637 = vfloor.f32 %v1629
      %v1638 = vfloor.f32 %v1630
      %v1639 = vfloor.f32 %v1631
      %v1640 = vfloor.f32 %v1632
      %v1641 = vfloor.f32 %v1633
      %v1642 = vfloor.f32 %v1634
      %v1643 = vmul.f32 %v1635, 18.0
      %v1644 = vmul.f32 %v1636, 18.0
      %v1645 = vmul.f32 %v1637, 18.0
      %v1646 = vmul.f32 %v1638, 18.0
      %v1647 = vmul.f32 %v1639, 18.0
      %v1648 = vmul.f32 %v1640, 18.0
      %v1649 = vmul.f32 %v1641, 18.0
      %v1650 = vmul.f32 %v1642, 18.0
      %v1651 = vsub.f32 %v1611, %v1643
      %v1652 = vsub.f32 %v1612, %v1644
      %v1653 = vsub.f32 %v1613, %v1645
      %v1654 = vsub.f32 %v1614, %v1646
      %v1655 = vsub.f32 %v1615, %v1647
      %v1656 = vsub.f32 %v1616, %v1648
      %v1657 = vsub.f32 %v1617, %v1649
      %v1658 = vsub.f32 %v1618, %v1650
      %vm1659 = vcmp.ge.f32.partialorder %v1611, 0.0
      %vm1660 = vcmp.ge.f32.partialorder %v1612, 0.0
      %vm1661 = vcmp.ge.f32.partialorder %v1613, 0.0
      %vm1662 = vcmp.ge.f32.partialorder %v1614, 0.0
      %vm1663 = vcmp.ge.f32.partialorder %v1615, 0.0
      %vm1664 = vcmp.ge.f32.partialorder %v1616, 0.0
      %vm1665 = vcmp.ge.f32.partialorder %v1617, 0.0
      %vm1666 = vcmp.ge.f32.partialorder %v1618, 0.0
      %vm1667 = vcmp.lt.f32.partialorder %v1611, 324.0
      %vm1668 = vcmp.lt.f32.partialorder %v1612, 324.0
      %vm1669 = vcmp.lt.f32.partialorder %v1613, 324.0
      %vm1670 = vcmp.lt.f32.partialorder %v1614, 324.0
      %vm1671 = vcmp.lt.f32.partialorder %v1615, 324.0
      %vm1672 = vcmp.lt.f32.partialorder %v1616, 324.0
      %vm1673 = vcmp.lt.f32.partialorder %v1617, 324.0
      %vm1674 = vcmp.lt.f32.partialorder %v1618, 324.0
      %vm1675 = vmand %vm1659, %vm1667
      %vm1676 = vmand %vm1660, %vm1668
      %vm1677 = vmand %vm1661, %vm1669
      %vm1678 = vmand %vm1662, %vm1670
      %vm1679 = vmand %vm1663, %vm1671
      %vm1680 = vmand %vm1664, %vm1672
      %vm1681 = vmand %vm1665, %vm1673
      %vm1682 = vmand %vm1666, %vm1674
      %vm1683 = vcmp.ge.f32.partialorder %v1635, 1.0
      %vm1684 = vcmp.ge.f32.partialorder %v1636, 1.0
      %vm1685 = vcmp.ge.f32.partialorder %v1637, 1.0
      %vm1686 = vcmp.ge.f32.partialorder %v1638, 1.0
      %vm1687 = vcmp.ge.f32.partialorder %v1639, 1.0
      %vm1688 = vcmp.ge.f32.partialorder %v1640, 1.0
      %vm1689 = vcmp.ge.f32.partialorder %v1641, 1.0
      %vm1690 = vcmp.ge.f32.partialorder %v1642, 1.0
      %vm1691 = vmand %vm1675, %vm1683
      %vm1692 = vmand %vm1676, %vm1684
      %vm1693 = vmand %vm1677, %vm1685
      %vm1694 = vmand %vm1678, %vm1686
      %vm1695 = vmand %vm1679, %vm1687
      %vm1696 = vmand %vm1680, %vm1688
      %vm1697 = vmand %vm1681, %vm1689
      %vm1698 = vmand %vm1682, %vm1690
      %vm1699 = vcmp.le.f32.partialorder %v1635, 16.0
      %vm1700 = vcmp.le.f32.partialorder %v1636, 16.0
      %vm1701 = vcmp.le.f32.partialorder %v1637, 16.0
      %vm1702 = vcmp.le.f32.partialorder %v1638, 16.0
      %vm1703 = vcmp.le.f32.partialorder %v1639, 16.0
      %vm1704 = vcmp.le.f32.partialorder %v1640, 16.0
      %vm1705 = vcmp.le.f32.partialorder %v1641, 16.0
      %vm1706 = vcmp.le.f32.partialorder %v1642, 16.0
      %vm1707 = vmand %vm1691, %vm1699
      %vm1708 = vmand %vm1692, %vm1700
      %vm1709 = vmand %vm1693, %vm1701
      %vm1710 = vmand %vm1694, %vm1702
      %vm1711 = vmand %vm1695, %vm1703
      %vm1712 = vmand %vm1696, %vm1704
      %vm1713 = vmand %vm1697, %vm1705
      %vm1714 = vmand %vm1698, %vm1706
      %vm1715 = vcmp.ge.f32.partialorder %v1651, 1.0
      %vm1716 = vcmp.ge.f32.partialorder %v1652, 1.0
      %vm1717 = vcmp.ge.f32.partialorder %v1653, 1.0
      %vm1718 = vcmp.ge.f32.partialorder %v1654, 1.0
      %vm1719 = vcmp.ge.f32.partialorder %v1655, 1.0
      %vm1720 = vcmp.ge.f32.partialorder %v1656, 1.0
      %vm1721 = vcmp.ge.f32.partialorder %v1657, 1.0
      %vm1722 = vcmp.ge.f32.partialorder %v1658, 1.0
      %vm1723 = vmand %vm1707, %vm1715
      %vm1724 = vmand %vm1708, %vm1716
      %vm1725 = vmand %vm1709, %vm1717
      %vm1726 = vmand %vm1710, %vm1718
      %vm1727 = vmand %vm1711, %vm1719
      %vm1728 = vmand %vm1712, %vm1720
      %vm1729 = vmand %vm1713, %vm1721
      %vm1730 = vmand %vm1714, %vm1722
      %vm1731 = vcmp.le.f32.partialorder %v1651, 16.0
      %vm1732 = vcmp.le.f32.partialorder %v1652, 16.0
      %vm1733 = vcmp.le.f32.partialorder %v1653, 16.0
      %vm1734 = vcmp.le.f32.partialorder %v1654, 16.0
      %vm1735 = vcmp.le.f32.partialorder %v1655, 16.0
      %vm1736 = vcmp.le.f32.partialorder %v1656, 16.0
      %vm1737 = vcmp.le.f32.partialorder %v1657, 16.0
      %vm1738 = vcmp.le.f32.partialorder %v1658, 16.0
      %vm1739 = vmand %vm1723, %vm1731
      %vm1740 = vmand %vm1724, %vm1732
      %vm1741 = vmand %vm1725, %vm1733
      %vm1742 = vmand %vm1726, %vm1734
      %vm1743 = vmand %vm1727, %vm1735
      %vm1744 = vmand %vm1728, %vm1736
      %vm1745 = vmand %vm1729, %vm1737
      %vm1746 = vmand %vm1730, %vm1738
      %v1747 = vmax.f32 %v1595, 0.0
      %v1748 = vmax.f32 %v1596, 0.0
      %v1749 = vmax.f32 %v1597, 0.0
      %v1750 = vmax.f32 %v1598, 0.0
      %v1751 = vmax.f32 %v1599, 0.0
      %v1752 = vmax.f32 %v1600, 0.0
      %v1753 = vmax.f32 %v1601, 0.0
      %v1754 = vmax.f32 %v1602, 0.0
      %v1755 = vsel %vm1739, 1, 0
      %v1756 = vsel %vm1740, 1, 0
      %v1757 = vsel %vm1741, 1, 0
      %v1758 = vsel %vm1742, 1, 0
      %v1759 = vsel %vm1743, 1, 0
      %v1760 = vsel %vm1744, 1, 0
      %v1761 = vsel %vm1745, 1, 0
      %v1762 = vsel %vm1746, 1, 0
      %vm1763 = vcmp.eq.s32.totalorder %v1755, 1
      %vm1764 = vcmp.eq.s32.totalorder %v1756, 1
      %vm1765 = vcmp.eq.s32.totalorder %v1757, 1
      %vm1766 = vcmp.eq.s32.totalorder %v1758, 1
      %vm1767 = vcmp.eq.s32.totalorder %v1759, 1
      %vm1768 = vcmp.eq.s32.totalorder %v1760, 1
      %vm1769 = vcmp.eq.s32.totalorder %v1761, 1
      %vm1770 = vcmp.eq.s32.totalorder %v1762, 1
      %v1771 = vsel %vm1763, %v1747, 0.0
      %v1772 = vsel %vm1764, %v1748, 0.0
      %v1773 = vsel %vm1765, %v1749, 0.0
      %v1774 = vsel %vm1766, %v1750, 0.0
      %v1775 = vsel %vm1767, %v1751, 0.0
      %v1776 = vsel %vm1768, %v1752, 0.0
      %v1777 = vsel %vm1769, %v1753, 0.0
      %v1778 = vsel %vm1770, %v1754, 0.0
      %v1779 = vpack.c.bf16 %v1771, %v1771
      %v1780 = vpack.c.bf16 %v1772, %v1772
      %v1781 = vpack.c.bf16 %v1773, %v1773
      %v1782 = vpack.c.bf16 %v1774, %v1774
      %v1783 = vpack.c.bf16 %v1775, %v1775
      %v1784 = vpack.c.bf16 %v1776, %v1776
      %v1785 = vpack.c.bf16 %v1777, %v1777
      %v1786 = vpack.c.bf16 %v1778, %v1778
      %1787 = vst [vmem:[#allocation3 + $0x40] sm:$0xf] %v1779
      %1788 = vst [vmem:[#allocation3 + $0x44] sm:$0xf] %v1780
      %1789 = vst [vmem:[#allocation3 + $0x48] sm:$0xf] %v1781
      %1790 = vst [vmem:[#allocation3 + $0x4c] sm:$0xf] %v1782
      %1791 = vst [vmem:[#allocation3 + $0x50] sm:$0xf] %v1783
      %1792 = vst [vmem:[#allocation3 + $0x54] sm:$0xf] %v1784
      %1793 = vst [vmem:[#allocation3 + $0x58] sm:$0xf] %v1785
      %1794 = vst [vmem:[#allocation3 + $0x5c] sm:$0xf] %v1786
      %v1795 = vld [vmem:[#allocation2 + $0xc0] sm:$0xff]
      %v1796 = vld [vmem:[#allocation2 + $0xc8] sm:$0xff]
      %v1797 = vld [vmem:[#allocation2 + $0xd0] sm:$0xff]
      %v1798 = vld [vmem:[#allocation2 + $0xd8] sm:$0xff]
      %v1799 = vld [vmem:[#allocation2 + $0xe0] sm:$0xff]
      %v1800 = vld [vmem:[#allocation2 + $0xe8] sm:$0xff]
      %v1801 = vld [vmem:[#allocation2 + $0xf0] sm:$0xff]
      %v1802 = vld [vmem:[#allocation2 + $0xf8] sm:$0xff]
      %v1803 = vmul.f32 %v1795, %v597
      %v1804 = vmul.f32 %v1796, %v597
      %v1805 = vmul.f32 %v1797, %v597
      %v1806 = vmul.f32 %v1798, %v597
      %v1807 = vmul.f32 %v1799, %v597
      %v1808 = vmul.f32 %v1800, %v597
      %v1809 = vmul.f32 %v1801, %v597
      %v1810 = vmul.f32 %v1802, %v597
      %v1811 = vadd.f32 %v587, %v1803
      %v1812 = vadd.f32 %v587, %v1804
      %v1813 = vadd.f32 %v587, %v1805
      %v1814 = vadd.f32 %v587, %v1806
      %v1815 = vadd.f32 %v587, %v1807
      %v1816 = vadd.f32 %v587, %v1808
      %v1817 = vadd.f32 %v587, %v1809
      %v1818 = vadd.f32 %v587, %v1810
      %v1819 = vld [vmem:[#allocation2 + $0xc1] sm:$0xff]
      %v1820 = vld [vmem:[#allocation2 + $0xc9] sm:$0xff]
      %v1821 = vld [vmem:[#allocation2 + $0xd1] sm:$0xff]
      %v1822 = vld [vmem:[#allocation2 + $0xd9] sm:$0xff]
      %v1823 = vld [vmem:[#allocation2 + $0xe1] sm:$0xff]
      %v1824 = vld [vmem:[#allocation2 + $0xe9] sm:$0xff]
      %v1825 = vld [vmem:[#allocation2 + $0xf1] sm:$0xff]
      %v1826 = vld [vmem:[#allocation2 + $0xf9] sm:$0xff]
      %v1827 = vmul.f32 %v1819, %v622
      %v1828 = vmul.f32 %v1820, %v622
      %v1829 = vmul.f32 %v1821, %v622
      %v1830 = vmul.f32 %v1822, %v622
      %v1831 = vmul.f32 %v1823, %v622
      %v1832 = vmul.f32 %v1824, %v622
      %v1833 = vmul.f32 %v1825, %v622
      %v1834 = vmul.f32 %v1826, %v622
      %v1835 = vadd.f32 %v1811, %v1827
      %v1836 = vadd.f32 %v1812, %v1828
      %v1837 = vadd.f32 %v1813, %v1829
      %v1838 = vadd.f32 %v1814, %v1830
      %v1839 = vadd.f32 %v1815, %v1831
      %v1840 = vadd.f32 %v1816, %v1832
      %v1841 = vadd.f32 %v1817, %v1833
      %v1842 = vadd.f32 %v1818, %v1834
      %v1843 = vld [vmem:[#allocation2 + $0xc2] sm:$0xff]
      %v1844 = vld [vmem:[#allocation2 + $0xca] sm:$0xff]
      %v1845 = vld [vmem:[#allocation2 + $0xd2] sm:$0xff]
      %v1846 = vld [vmem:[#allocation2 + $0xda] sm:$0xff]
      %v1847 = vld [vmem:[#allocation2 + $0xe2] sm:$0xff]
      %v1848 = vld [vmem:[#allocation2 + $0xea] sm:$0xff]
      %v1849 = vld [vmem:[#allocation2 + $0xf2] sm:$0xff]
      %v1850 = vld [vmem:[#allocation2 + $0xfa] sm:$0xff]
      %v1851 = vmul.f32 %v1843, %v647
      %v1852 = vmul.f32 %v1844, %v647
      %v1853 = vmul.f32 %v1845, %v647
      %v1854 = vmul.f32 %v1846, %v647
      %v1855 = vmul.f32 %v1847, %v647
      %v1856 = vmul.f32 %v1848, %v647
      %v1857 = vmul.f32 %v1849, %v647
      %v1858 = vmul.f32 %v1850, %v647
      %v1859 = vadd.f32 %v1835, %v1851
      %v1860 = vadd.f32 %v1836, %v1852
      %v1861 = vadd.f32 %v1837, %v1853
      %v1862 = vadd.f32 %v1838, %v1854
      %v1863 = vadd.f32 %v1839, %v1855
      %v1864 = vadd.f32 %v1840, %v1856
      %v1865 = vadd.f32 %v1841, %v1857
      %v1866 = vadd.f32 %v1842, %v1858
      %v1867 = vld [vmem:[#allocation2 + $0x102] sm:$0xff]
      %v1868 = vld [vmem:[#allocation2 + $0x10a] sm:$0xff]
      %v1869 = vmul.f32 %v1845, %v666
      %v1870 = vmul.f32 %v1846, %v666
      %v1871 = vmul.f32 %v1847, %v666
      %v1872 = vmul.f32 %v1848, %v666
      %v1873 = vmul.f32 %v1849, %v666
      %v1874 = vmul.f32 %v1850, %v666
      %v1875 = vmul.f32 %v1867, %v666
      %v1876 = vmul.f32 %v1868, %v666
      %v1877 = vadd.f32 %v1859, %v1869
      %v1878 = vadd.f32 %v1860, %v1870
      %v1879 = vadd.f32 %v1861, %v1871
      %v1880 = vadd.f32 %v1862, %v1872
      %v1881 = vadd.f32 %v1863, %v1873
      %v1882 = vadd.f32 %v1864, %v1874
      %v1883 = vadd.f32 %v1865, %v1875
      %v1884 = vadd.f32 %v1866, %v1876
      %v1885 = vld [vmem:[#allocation2 + $0xd3] sm:$0xff]
      %v1886 = vld [vmem:[#allocation2 + $0xdb] sm:$0xff]
      %v1887 = vld [vmem:[#allocation2 + $0xe3] sm:$0xff]
      %v1888 = vld [vmem:[#allocation2 + $0xeb] sm:$0xff]
      %v1889 = vld [vmem:[#allocation2 + $0xf3] sm:$0xff]
      %v1890 = vld [vmem:[#allocation2 + $0xfb] sm:$0xff]
      %v1891 = vld [vmem:[#allocation2 + $0x103] sm:$0xff]
      %v1892 = vld [vmem:[#allocation2 + $0x10b] sm:$0xff]
      %v1893 = vmul.f32 %v1885, %v691
      %v1894 = vmul.f32 %v1886, %v691
      %v1895 = vmul.f32 %v1887, %v691
      %v1896 = vmul.f32 %v1888, %v691
      %v1897 = vmul.f32 %v1889, %v691
      %v1898 = vmul.f32 %v1890, %v691
      %v1899 = vmul.f32 %v1891, %v691
      %v1900 = vmul.f32 %v1892, %v691
      %v1901 = vadd.f32 %v1877, %v1893
      %v1902 = vadd.f32 %v1878, %v1894
      %v1903 = vadd.f32 %v1879, %v1895
      %v1904 = vadd.f32 %v1880, %v1896
      %v1905 = vadd.f32 %v1881, %v1897
      %v1906 = vadd.f32 %v1882, %v1898
      %v1907 = vadd.f32 %v1883, %v1899
      %v1908 = vadd.f32 %v1884, %v1900
      %v1909 = vld [vmem:[#allocation2 + $0xd4] sm:$0xff]
      %v1910 = vld [vmem:[#allocation2 + $0xdc] sm:$0xff]
      %v1911 = vld [vmem:[#allocation2 + $0xe4] sm:$0xff]
      %v1912 = vld [vmem:[#allocation2 + $0xec] sm:$0xff]
      %v1913 = vld [vmem:[#allocation2 + $0xf4] sm:$0xff]
      %v1914 = vld [vmem:[#allocation2 + $0xfc] sm:$0xff]
      %v1915 = vld [vmem:[#allocation2 + $0x104] sm:$0xff]
      %v1916 = vld [vmem:[#allocation2 + $0x10c] sm:$0xff]
      %v1917 = vmul.f32 %v1909, %v716
      %v1918 = vmul.f32 %v1910, %v716
      %v1919 = vmul.f32 %v1911, %v716
      %v1920 = vmul.f32 %v1912, %v716
      %v1921 = vmul.f32 %v1913, %v716
      %v1922 = vmul.f32 %v1914, %v716
      %v1923 = vmul.f32 %v1915, %v716
      %v1924 = vmul.f32 %v1916, %v716
      %v1925 = vadd.f32 %v1901, %v1917
      %v1926 = vadd.f32 %v1902, %v1918
      %v1927 = vadd.f32 %v1903, %v1919
      %v1928 = vadd.f32 %v1904, %v1920
      %v1929 = vadd.f32 %v1905, %v1921
      %v1930 = vadd.f32 %v1906, %v1922
      %v1931 = vadd.f32 %v1907, %v1923
      %v1932 = vadd.f32 %v1908, %v1924
      %v1933 = vld [vmem:[#allocation2 + $0x114] sm:$0xff]
      %v1934 = vld [vmem:[#allocation2 + $0x11c] sm:$0xff]
      %v1935 = vmul.f32 %v1911, %v735
      %v1936 = vmul.f32 %v1912, %v735
      %v1937 = vmul.f32 %v1913, %v735
      %v1938 = vmul.f32 %v1914, %v735
      %v1939 = vmul.f32 %v1915, %v735
      %v1940 = vmul.f32 %v1916, %v735
      %v1941 = vmul.f32 %v1933, %v735
      %v1942 = vmul.f32 %v1934, %v735
      %v1943 = vadd.f32 %v1925, %v1935
      %v1944 = vadd.f32 %v1926, %v1936
      %v1945 = vadd.f32 %v1927, %v1937
      %v1946 = vadd.f32 %v1928, %v1938
      %v1947 = vadd.f32 %v1929, %v1939
      %v1948 = vadd.f32 %v1930, %v1940
      %v1949 = vadd.f32 %v1931, %v1941
      %v1950 = vadd.f32 %v1932, %v1942
      %v1951 = vld [vmem:[#allocation2 + $0xe5] sm:$0xff]
      %v1952 = vld [vmem:[#allocation2 + $0xed] sm:$0xff]
      %v1953 = vld [vmem:[#allocation2 + $0xf5] sm:$0xff]
      %v1954 = vld [vmem:[#allocation2 + $0xfd] sm:$0xff]
      %v1955 = vld [vmem:[#allocation2 + $0x105] sm:$0xff]
      %v1956 = vld [vmem:[#allocation2 + $0x10d] sm:$0xff]
      %v1957 = vld [vmem:[#allocation2 + $0x115] sm:$0xff]
      %v1958 = vld [vmem:[#allocation2 + $0x11d] sm:$0xff]
      %v1959 = vmul.f32 %v1951, %v760
      %v1960 = vmul.f32 %v1952, %v760
      %v1961 = vmul.f32 %v1953, %v760
      %v1962 = vmul.f32 %v1954, %v760
      %v1963 = vmul.f32 %v1955, %v760
      %v1964 = vmul.f32 %v1956, %v760
      %v1965 = vmul.f32 %v1957, %v760
      %v1966 = vmul.f32 %v1958, %v760
      %v1967 = vadd.f32 %v1943, %v1959
      %v1968 = vadd.f32 %v1944, %v1960
      %v1969 = vadd.f32 %v1945, %v1961
      %v1970 = vadd.f32 %v1946, %v1962
      %v1971 = vadd.f32 %v1947, %v1963
      %v1972 = vadd.f32 %v1948, %v1964
      %v1973 = vadd.f32 %v1949, %v1965
      %v1974 = vadd.f32 %v1950, %v1966
      %v1975 = vld [vmem:[#allocation2 + $0xe6] sm:$0xff]
      %v1976 = vld [vmem:[#allocation2 + $0xee] sm:$0xff]
      %v1977 = vld [vmem:[#allocation2 + $0xf6] sm:$0xff]
      %v1978 = vld [vmem:[#allocation2 + $0xfe] sm:$0xff]
      %v1979 = vld [vmem:[#allocation2 + $0x106] sm:$0xff]
      %v1980 = vld [vmem:[#allocation2 + $0x10e] sm:$0xff]
      %v1981 = vld [vmem:[#allocation2 + $0x116] sm:$0xff]
      %v1982 = vld [vmem:[#allocation2 + $0x11e] sm:$0xff]
      %v1983 = vmul.f32 %v1975, %v785
      %v1984 = vmul.f32 %v1976, %v785
      %v1985 = vmul.f32 %v1977, %v785
      %v1986 = vmul.f32 %v1978, %v785
      %v1987 = vmul.f32 %v1979, %v785
      %v1988 = vmul.f32 %v1980, %v785
      %v1989 = vmul.f32 %v1981, %v785
      %v1990 = vmul.f32 %v1982, %v785
      %v1991 = vadd.f32 %v1967, %v1983
      %v1992 = vadd.f32 %v1968, %v1984
      %v1993 = vadd.f32 %v1969, %v1985
      %v1994 = vadd.f32 %v1970, %v1986
      %v1995 = vadd.f32 %v1971, %v1987
      %v1996 = vadd.f32 %v1972, %v1988
      %v1997 = vadd.f32 %v1973, %v1989
      %v1998 = vadd.f32 %v1974, %v1990
      %v1999 = vadd.s32 %v803, 173
      %v2000 = vadd.s32 %v804, 173
      %v2001 = vadd.s32 %v805, 173
      %v2002 = vadd.s32 %v806, 173
      %v2003 = vadd.s32 %v807, 173
      %v2004 = vadd.s32 %v808, 173
      %v2005 = vadd.s32 %v809, 173
      %v2006 = vadd.s32 %v810, 173
      %v2007 = vcvt.s32.f32 %v1999
      %v2008 = vcvt.s32.f32 %v2000
      %v2009 = vcvt.s32.f32 %v2001
      %v2010 = vcvt.s32.f32 %v2002
      %v2011 = vcvt.s32.f32 %v2003
      %v2012 = vcvt.s32.f32 %v2004
      %v2013 = vcvt.s32.f32 %v2005
      %v2014 = vcvt.s32.f32 %v2006
      %v2015 = vadd.f32 %v2007, 0.5
      %v2016 = vadd.f32 %v2008, 0.5
      %v2017 = vadd.f32 %v2009, 0.5
      %v2018 = vadd.f32 %v2010, 0.5
      %v2019 = vadd.f32 %v2011, 0.5
      %v2020 = vadd.f32 %v2012, 0.5
      %v2021 = vadd.f32 %v2013, 0.5
      %v2022 = vadd.f32 %v2014, 0.5
      %v2023 = vmul.f32 %v2015, 0.055555556
      %v2024 = vmul.f32 %v2016, 0.055555556
      %v2025 = vmul.f32 %v2017, 0.055555556
      %v2026 = vmul.f32 %v2018, 0.055555556
      %v2027 = vmul.f32 %v2019, 0.055555556
      %v2028 = vmul.f32 %v2020, 0.055555556
      %v2029 = vmul.f32 %v2021, 0.055555556
      %v2030 = vmul.f32 %v2022, 0.055555556
      %v2031 = vfloor.f32 %v2023
      %v2032 = vfloor.f32 %v2024
      %v2033 = vfloor.f32 %v2025
      %v2034 = vfloor.f32 %v2026
      %v2035 = vfloor.f32 %v2027
      %v2036 = vfloor.f32 %v2028
      %v2037 = vfloor.f32 %v2029
      %v2038 = vfloor.f32 %v2030
      %v2039 = vmul.f32 %v2031, 18.0
      %v2040 = vmul.f32 %v2032, 18.0
      %v2041 = vmul.f32 %v2033, 18.0
      %v2042 = vmul.f32 %v2034, 18.0
      %v2043 = vmul.f32 %v2035, 18.0
      %v2044 = vmul.f32 %v2036, 18.0
      %v2045 = vmul.f32 %v2037, 18.0
      %v2046 = vmul.f32 %v2038, 18.0
      %v2047 = vsub.f32 %v2007, %v2039
      %v2048 = vsub.f32 %v2008, %v2040
      %v2049 = vsub.f32 %v2009, %v2041
      %v2050 = vsub.f32 %v2010, %v2042
      %v2051 = vsub.f32 %v2011, %v2043
      %v2052 = vsub.f32 %v2012, %v2044
      %v2053 = vsub.f32 %v2013, %v2045
      %v2054 = vsub.f32 %v2014, %v2046
      %vm2055 = vcmp.ge.f32.partialorder %v2007, 0.0
      %vm2056 = vcmp.ge.f32.partialorder %v2008, 0.0
      %vm2057 = vcmp.ge.f32.partialorder %v2009, 0.0
      %vm2058 = vcmp.ge.f32.partialorder %v2010, 0.0
      %vm2059 = vcmp.ge.f32.partialorder %v2011, 0.0
      %vm2060 = vcmp.ge.f32.partialorder %v2012, 0.0
      %vm2061 = vcmp.ge.f32.partialorder %v2013, 0.0
      %vm2062 = vcmp.ge.f32.partialorder %v2014, 0.0
      %vm2063 = vcmp.lt.f32.partialorder %v2007, 324.0
      %vm2064 = vcmp.lt.f32.partialorder %v2008, 324.0
      %vm2065 = vcmp.lt.f32.partialorder %v2009, 324.0
      %vm2066 = vcmp.lt.f32.partialorder %v2010, 324.0
      %vm2067 = vcmp.lt.f32.partialorder %v2011, 324.0
      %vm2068 = vcmp.lt.f32.partialorder %v2012, 324.0
      %vm2069 = vcmp.lt.f32.partialorder %v2013, 324.0
      %vm2070 = vcmp.lt.f32.partialorder %v2014, 324.0
      %vm2071 = vmand %vm2055, %vm2063
      %vm2072 = vmand %vm2056, %vm2064
      %vm2073 = vmand %vm2057, %vm2065
      %vm2074 = vmand %vm2058, %vm2066
      %vm2075 = vmand %vm2059, %vm2067
      %vm2076 = vmand %vm2060, %vm2068
      %vm2077 = vmand %vm2061, %vm2069
      %vm2078 = vmand %vm2062, %vm2070
      %vm2079 = vcmp.ge.f32.partialorder %v2031, 1.0
      %vm2080 = vcmp.ge.f32.partialorder %v2032, 1.0
      %vm2081 = vcmp.ge.f32.partialorder %v2033, 1.0
      %vm2082 = vcmp.ge.f32.partialorder %v2034, 1.0
      %vm2083 = vcmp.ge.f32.partialorder %v2035, 1.0
      %vm2084 = vcmp.ge.f32.partialorder %v2036, 1.0
      %vm2085 = vcmp.ge.f32.partialorder %v2037, 1.0
      %vm2086 = vcmp.ge.f32.partialorder %v2038, 1.0
      %vm2087 = vmand %vm2071, %vm2079
      %vm2088 = vmand %vm2072, %vm2080
      %vm2089 = vmand %vm2073, %vm2081
      %vm2090 = vmand %vm2074, %vm2082
      %vm2091 = vmand %vm2075, %vm2083
      %vm2092 = vmand %vm2076, %vm2084
      %vm2093 = vmand %vm2077, %vm2085
      %vm2094 = vmand %vm2078, %vm2086
      %vm2095 = vcmp.le.f32.partialorder %v2031, 16.0
      %vm2096 = vcmp.le.f32.partialorder %v2032, 16.0
      %vm2097 = vcmp.le.f32.partialorder %v2033, 16.0
      %vm2098 = vcmp.le.f32.partialorder %v2034, 16.0
      %vm2099 = vcmp.le.f32.partialorder %v2035, 16.0
      %vm2100 = vcmp.le.f32.partialorder %v2036, 16.0
      %vm2101 = vcmp.le.f32.partialorder %v2037, 16.0
      %vm2102 = vcmp.le.f32.partialorder %v2038, 16.0
      %vm2103 = vmand %vm2087, %vm2095
      %vm2104 = vmand %vm2088, %vm2096
      %vm2105 = vmand %vm2089, %vm2097
      %vm2106 = vmand %vm2090, %vm2098
      %vm2107 = vmand %vm2091, %vm2099
      %vm2108 = vmand %vm2092, %vm2100
      %vm2109 = vmand %vm2093, %vm2101
      %vm2110 = vmand %vm2094, %vm2102
      %vm2111 = vcmp.ge.f32.partialorder %v2047, 1.0
      %vm2112 = vcmp.ge.f32.partialorder %v2048, 1.0
      %vm2113 = vcmp.ge.f32.partialorder %v2049, 1.0
      %vm2114 = vcmp.ge.f32.partialorder %v2050, 1.0
      %vm2115 = vcmp.ge.f32.partialorder %v2051, 1.0
      %vm2116 = vcmp.ge.f32.partialorder %v2052, 1.0
      %vm2117 = vcmp.ge.f32.partialorder %v2053, 1.0
      %vm2118 = vcmp.ge.f32.partialorder %v2054, 1.0
      %vm2119 = vmand %vm2103, %vm2111
      %vm2120 = vmand %vm2104, %vm2112
      %vm2121 = vmand %vm2105, %vm2113
      %vm2122 = vmand %vm2106, %vm2114
      %vm2123 = vmand %vm2107, %vm2115
      %vm2124 = vmand %vm2108, %vm2116
      %vm2125 = vmand %vm2109, %vm2117
      %vm2126 = vmand %vm2110, %vm2118
      %vm2127 = vcmp.le.f32.partialorder %v2047, 16.0
      %vm2128 = vcmp.le.f32.partialorder %v2048, 16.0
      %vm2129 = vcmp.le.f32.partialorder %v2049, 16.0
      %vm2130 = vcmp.le.f32.partialorder %v2050, 16.0
      %vm2131 = vcmp.le.f32.partialorder %v2051, 16.0
      %vm2132 = vcmp.le.f32.partialorder %v2052, 16.0
      %vm2133 = vcmp.le.f32.partialorder %v2053, 16.0
      %vm2134 = vcmp.le.f32.partialorder %v2054, 16.0
      %vm2135 = vmand %vm2119, %vm2127
      %vm2136 = vmand %vm2120, %vm2128
      %vm2137 = vmand %vm2121, %vm2129
      %vm2138 = vmand %vm2122, %vm2130
      %vm2139 = vmand %vm2123, %vm2131
      %vm2140 = vmand %vm2124, %vm2132
      %vm2141 = vmand %vm2125, %vm2133
      %vm2142 = vmand %vm2126, %vm2134
      %v2143 = vmax.f32 %v1991, 0.0
      %v2144 = vmax.f32 %v1992, 0.0
      %v2145 = vmax.f32 %v1993, 0.0
      %v2146 = vmax.f32 %v1994, 0.0
      %v2147 = vmax.f32 %v1995, 0.0
      %v2148 = vmax.f32 %v1996, 0.0
      %v2149 = vmax.f32 %v1997, 0.0
      %v2150 = vmax.f32 %v1998, 0.0
      %v2151 = vsel %vm2135, 1, 0
      %v2152 = vsel %vm2136, 1, 0
      %v2153 = vsel %vm2137, 1, 0
      %v2154 = vsel %vm2138, 1, 0
      %v2155 = vsel %vm2139, 1, 0
      %v2156 = vsel %vm2140, 1, 0
      %v2157 = vsel %vm2141, 1, 0
      %v2158 = vsel %vm2142, 1, 0
      %vm2159 = vcmp.eq.s32.totalorder %v2151, 1
      %vm2160 = vcmp.eq.s32.totalorder %v2152, 1
      %vm2161 = vcmp.eq.s32.totalorder %v2153, 1
      %vm2162 = vcmp.eq.s32.totalorder %v2154, 1
      %vm2163 = vcmp.eq.s32.totalorder %v2155, 1
      %vm2164 = vcmp.eq.s32.totalorder %v2156, 1
      %vm2165 = vcmp.eq.s32.totalorder %v2157, 1
      %vm2166 = vcmp.eq.s32.totalorder %v2158, 1
      %v2167 = vsel %vm2159, %v2143, 0.0
      %v2168 = vsel %vm2160, %v2144, 0.0
      %v2169 = vsel %vm2161, %v2145, 0.0
      %v2170 = vsel %vm2162, %v2146, 0.0
      %v2171 = vsel %vm2163, %v2147, 0.0
      %v2172 = vsel %vm2164, %v2148, 0.0
      %v2173 = vsel %vm2165, %v2149, 0.0
      %v2174 = vsel %vm2166, %v2150, 0.0
      %v2175 = vpack.c.bf16 %v2167, %v2167
      %v2176 = vpack.c.bf16 %v2168, %v2168
      %v2177 = vpack.c.bf16 %v2169, %v2169
      %v2178 = vpack.c.bf16 %v2170, %v2170
      %v2179 = vpack.c.bf16 %v2171, %v2171
      %v2180 = vpack.c.bf16 %v2172, %v2172
      %v2181 = vpack.c.bf16 %v2173, %v2173
      %v2182 = vpack.c.bf16 %v2174, %v2174
      %2183 = vst [vmem:[#allocation3 + $0x60] sm:$0xf] %v2175
      %2184 = vst [vmem:[#allocation3 + $0x64] sm:$0xf] %v2176
      %2185 = vst [vmem:[#allocation3 + $0x68] sm:$0xf] %v2177
      %2186 = vst [vmem:[#allocation3 + $0x6c] sm:$0xf] %v2178
      %2187 = vst [vmem:[#allocation3 + $0x70] sm:$0xf] %v2179
      %2188 = vst [vmem:[#allocation3 + $0x74] sm:$0xf] %v2180
      %2189 = vst [vmem:[#allocation3 + $0x78] sm:$0xf] %v2181
      %2190 = vst [vmem:[#allocation3 + $0x7c] sm:$0xf] %v2182
      %v2191 = vld [vmem:[#allocation2 + $0x100] sm:$0xff]
      %v2192 = vld [vmem:[#allocation2 + $0x108] sm:$0xff]
      %v2193 = vld [vmem:[#allocation2 + $0x110] sm:$0xff]
      %v2194 = vld [vmem:[#allocation2 + $0x118] sm:$0xff]
      %v2195 = vld [vmem:[#allocation2 + $0x120] sm:$0xff]
      %v2196 = vld [vmem:[#allocation2 + $0x128] sm:$0xff]
      %v2197 = vld [vmem:[#allocation2 + $0x130] sm:$0xff]
      %v2198 = vld [vmem:[#allocation2 + $0x138] sm:$0xff]
      %v2199 = vmul.f32 %v2191, %v597
      %v2200 = vmul.f32 %v2192, %v597
      %v2201 = vmul.f32 %v2193, %v597
      %v2202 = vmul.f32 %v2194, %v597
      %v2203 = vmul.f32 %v2195, %v597
      %v2204 = vmul.f32 %v2196, %v597
      %v2205 = vmul.f32 %v2197, %v597
      %v2206 = vmul.f32 %v2198, %v597
      %v2207 = vadd.f32 %v587, %v2199
      %v2208 = vadd.f32 %v587, %v2200
      %v2209 = vadd.f32 %v587, %v2201
      %v2210 = vadd.f32 %v587, %v2202
      %v2211 = vadd.f32 %v587, %v2203
      %v2212 = vadd.f32 %v587, %v2204
      %v2213 = vadd.f32 %v587, %v2205
      %v2214 = vadd.f32 %v587, %v2206
      %v2215 = vld [vmem:[#allocation2 + $0x101] sm:$0xff]
      %v2216 = vld [vmem:[#allocation2 + $0x109] sm:$0xff]
      %v2217 = vld [vmem:[#allocation2 + $0x111] sm:$0xff]
      %v2218 = vld [vmem:[#allocation2 + $0x119] sm:$0xff]
      %v2219 = vld [vmem:[#allocation2 + $0x121] sm:$0xff]
      %v2220 = vld [vmem:[#allocation2 + $0x129] sm:$0xff]
      %v2221 = vld [vmem:[#allocation2 + $0x131] sm:$0xff]
      %v2222 = vld [vmem:[#allocation2 + $0x139] sm:$0xff]
      %v2223 = vmul.f32 %v2215, %v622
      %v2224 = vmul.f32 %v2216, %v622
      %v2225 = vmul.f32 %v2217, %v622
      %v2226 = vmul.f32 %v2218, %v622
      %v2227 = vmul.f32 %v2219, %v622
      %v2228 = vmul.f32 %v2220, %v622
      %v2229 = vmul.f32 %v2221, %v622
      %v2230 = vmul.f32 %v2222, %v622
      %v2231 = vadd.f32 %v2207, %v2223
      %v2232 = vadd.f32 %v2208, %v2224
      %v2233 = vadd.f32 %v2209, %v2225
      %v2234 = vadd.f32 %v2210, %v2226
      %v2235 = vadd.f32 %v2211, %v2227
      %v2236 = vadd.f32 %v2212, %v2228
      %v2237 = vadd.f32 %v2213, %v2229
      %v2238 = vadd.f32 %v2214, %v2230
      %v2239 = vld [vmem:[#allocation2 + $0x102] sm:$0xff]
      %v2240 = vld [vmem:[#allocation2 + $0x10a] sm:$0xff]
      %v2241 = vld [vmem:[#allocation2 + $0x112] sm:$0xff]
      %v2242 = vld [vmem:[#allocation2 + $0x11a] sm:$0xff]
      %v2243 = vld [vmem:[#allocation2 + $0x122] sm:$0xff]
      %v2244 = vld [vmem:[#allocation2 + $0x12a] sm:$0xff]
      %v2245 = vld [vmem:[#allocation2 + $0x132] sm:$0xff]
      %v2246 = vld [vmem:[#allocation2 + $0x13a] sm:$0xff]
      %v2247 = vmul.f32 %v2239, %v647
      %v2248 = vmul.f32 %v2240, %v647
      %v2249 = vmul.f32 %v2241, %v647
      %v2250 = vmul.f32 %v2242, %v647
      %v2251 = vmul.f32 %v2243, %v647
      %v2252 = vmul.f32 %v2244, %v647
      %v2253 = vmul.f32 %v2245, %v647
      %v2254 = vmul.f32 %v2246, %v647
      %v2255 = vadd.f32 %v2231, %v2247
      %v2256 = vadd.f32 %v2232, %v2248
      %v2257 = vadd.f32 %v2233, %v2249
      %v2258 = vadd.f32 %v2234, %v2250
      %v2259 = vadd.f32 %v2235, %v2251
      %v2260 = vadd.f32 %v2236, %v2252
      %v2261 = vadd.f32 %v2237, %v2253
      %v2262 = vadd.f32 %v2238, %v2254
      %v2263 = vld [vmem:[#allocation2 + $0x142] sm:$0xff]
      %v2264 = vld [vmem:[#allocation2 + $0x14a] sm:$0xff]
      %v2265 = vmul.f32 %v2241, %v666
      %v2266 = vmul.f32 %v2242, %v666
      %v2267 = vmul.f32 %v2243, %v666
      %v2268 = vmul.f32 %v2244, %v666
      %v2269 = vmul.f32 %v2245, %v666
      %v2270 = vmul.f32 %v2246, %v666
      %v2271 = vmul.f32 %v2263, %v666
      %v2272 = vmul.f32 %v2264, %v666
      %v2273 = vadd.f32 %v2255, %v2265
      %v2274 = vadd.f32 %v2256, %v2266
      %v2275 = vadd.f32 %v2257, %v2267
      %v2276 = vadd.f32 %v2258, %v2268
      %v2277 = vadd.f32 %v2259, %v2269
      %v2278 = vadd.f32 %v2260, %v2270
      %v2279 = vadd.f32 %v2261, %v2271
      %v2280 = vadd.f32 %v2262, %v2272
      %v2281 = vld [vmem:[#allocation2 + $0x113] sm:$0xff]
      %v2282 = vld [vmem:[#allocation2 + $0x11b] sm:$0xff]
      %v2283 = vld [vmem:[#allocation2 + $0x123] sm:$0xff]
      %v2284 = vld [vmem:[#allocation2 + $0x12b] sm:$0xff]
      %v2285 = vld [vmem:[#allocation2 + $0x133] sm:$0xff]
      %v2286 = vld [vmem:[#allocation2 + $0x13b] sm:$0xff]
      %v2287 = vld [vmem:[#allocation2 + $0x143] sm:$0xff]
      %v2288 = vld [vmem:[#allocation2 + $0x14b] sm:$0xff]
      %v2289 = vmul.f32 %v2281, %v691
      %v2290 = vmul.f32 %v2282, %v691
      %v2291 = vmul.f32 %v2283, %v691
      %v2292 = vmul.f32 %v2284, %v691
      %v2293 = vmul.f32 %v2285, %v691
      %v2294 = vmul.f32 %v2286, %v691
      %v2295 = vmul.f32 %v2287, %v691
      %v2296 = vmul.f32 %v2288, %v691
      %v2297 = vadd.f32 %v2273, %v2289
      %v2298 = vadd.f32 %v2274, %v2290
      %v2299 = vadd.f32 %v2275, %v2291
      %v2300 = vadd.f32 %v2276, %v2292
      %v2301 = vadd.f32 %v2277, %v2293
      %v2302 = vadd.f32 %v2278, %v2294
      %v2303 = vadd.f32 %v2279, %v2295
      %v2304 = vadd.f32 %v2280, %v2296
      %v2305 = vld [vmem:[#allocation2 + $0x114] sm:$0xff]
      %v2306 = vld [vmem:[#allocation2 + $0x11c] sm:$0xff]
      %v2307 = vld [vmem:[#allocation2 + $0x124] sm:$0xff]
      %v2308 = vld [vmem:[#allocation2 + $0x12c] sm:$0xff]
      %v2309 = vld [vmem:[#allocation2 + $0x134] sm:$0xff]
      %v2310 = vld [vmem:[#allocation2 + $0x13c] sm:$0xff]
      %v2311 = vld [vmem:[#allocation2 + $0x144] sm:$0xff]
      %v2312 = vld [vmem:[#allocation2 + $0x14c] sm:$0xff]
      %v2313 = vmul.f32 %v2305, %v716
      %v2314 = vmul.f32 %v2306, %v716
      %v2315 = vmul.f32 %v2307, %v716
      %v2316 = vmul.f32 %v2308, %v716
      %v2317 = vmul.f32 %v2309, %v716
      %v2318 = vmul.f32 %v2310, %v716
      %v2319 = vmul.f32 %v2311, %v716
      %v2320 = vmul.f32 %v2312, %v716
      %v2321 = vadd.f32 %v2297, %v2313
      %v2322 = vadd.f32 %v2298, %v2314
      %v2323 = vadd.f32 %v2299, %v2315
      %v2324 = vadd.f32 %v2300, %v2316
      %v2325 = vadd.f32 %v2301, %v2317
      %v2326 = vadd.f32 %v2302, %v2318
      %v2327 = vadd.f32 %v2303, %v2319
      %v2328 = vadd.f32 %v2304, %v2320
      %v2329 = vld [vmem:[#allocation2 + $0x154] sm:$0xff]
      %v2330 = vld [vmem:[#allocation2 + $0x15c] sm:$0xff]
      %v2331 = vmul.f32 %v2307, %v735
      %v2332 = vmul.f32 %v2308, %v735
      %v2333 = vmul.f32 %v2309, %v735
      %v2334 = vmul.f32 %v2310, %v735
      %v2335 = vmul.f32 %v2311, %v735
      %v2336 = vmul.f32 %v2312, %v735
      %v2337 = vmul.f32 %v2329, %v735
      %v2338 = vmul.f32 %v2330, %v735
      %v2339 = vadd.f32 %v2321, %v2331
      %v2340 = vadd.f32 %v2322, %v2332
      %v2341 = vadd.f32 %v2323, %v2333
      %v2342 = vadd.f32 %v2324, %v2334
      %v2343 = vadd.f32 %v2325, %v2335
      %v2344 = vadd.f32 %v2326, %v2336
      %v2345 = vadd.f32 %v2327, %v2337
      %v2346 = vadd.f32 %v2328, %v2338
      %v2347 = vld [vmem:[#allocation2 + $0x125] sm:$0xff]
      %v2348 = vld [vmem:[#allocation2 + $0x12d] sm:$0xff]
      %v2349 = vld [vmem:[#allocation2 + $0x135] sm:$0xff]
      %v2350 = vld [vmem:[#allocation2 + $0x13d] sm:$0xff]
      %v2351 = vld [vmem:[#allocation2 + $0x145] sm:$0xff]
      %v2352 = vld [vmem:[#allocation2 + $0x14d] sm:$0xff]
      %v2353 = vld [vmem:[#allocation2 + $0x155] sm:$0xff]
      %v2354 = vld [vmem:[#allocation2 + $0x15d] sm:$0xff]
      %v2355 = vmul.f32 %v2347, %v760
      %v2356 = vmul.f32 %v2348, %v760
      %v2357 = vmul.f32 %v2349, %v760
      %v2358 = vmul.f32 %v2350, %v760
      %v2359 = vmul.f32 %v2351, %v760
      %v2360 = vmul.f32 %v2352, %v760
      %v2361 = vmul.f32 %v2353, %v760
      %v2362 = vmul.f32 %v2354, %v760
      %v2363 = vadd.f32 %v2339, %v2355
      %v2364 = vadd.f32 %v2340, %v2356
      %v2365 = vadd.f32 %v2341, %v2357
      %v2366 = vadd.f32 %v2342, %v2358
      %v2367 = vadd.f32 %v2343, %v2359
      %v2368 = vadd.f32 %v2344, %v2360
      %v2369 = vadd.f32 %v2345, %v2361
      %v2370 = vadd.f32 %v2346, %v2362
      %v2371 = vld [vmem:[#allocation2 + $0x126] sm:$0xff]
      %v2372 = vld [vmem:[#allocation2 + $0x12e] sm:$0xff]
      %v2373 = vld [vmem:[#allocation2 + $0x136] sm:$0xff]
      %v2374 = vld [vmem:[#allocation2 + $0x13e] sm:$0xff]
      %v2375 = vld [vmem:[#allocation2 + $0x146] sm:$0xff]
      %v2376 = vld [vmem:[#allocation2 + $0x14e] sm:$0xff]
      %v2377 = vld [vmem:[#allocation2 + $0x156] sm:$0xff]
      %v2378 = vld [vmem:[#allocation2 + $0x15e] sm:$0xff]
      %v2379 = vmul.f32 %v2371, %v785
      %v2380 = vmul.f32 %v2372, %v785
      %v2381 = vmul.f32 %v2373, %v785
      %v2382 = vmul.f32 %v2374, %v785
      %v2383 = vmul.f32 %v2375, %v785
      %v2384 = vmul.f32 %v2376, %v785
      %v2385 = vmul.f32 %v2377, %v785
      %v2386 = vmul.f32 %v2378, %v785
      %v2387 = vadd.f32 %v2363, %v2379
      %v2388 = vadd.f32 %v2364, %v2380
      %v2389 = vadd.f32 %v2365, %v2381
      %v2390 = vadd.f32 %v2366, %v2382
      %v2391 = vadd.f32 %v2367, %v2383
      %v2392 = vadd.f32 %v2368, %v2384
      %v2393 = vadd.f32 %v2369, %v2385
      %v2394 = vadd.f32 %v2370, %v2386
      %v2395 = vadd.s32 %v803, 237
      %v2396 = vadd.s32 %v804, 237
      %v2397 = vadd.s32 %v805, 237
      %v2398 = vadd.s32 %v806, 237
      %v2399 = vadd.s32 %v807, 237
      %v2400 = vadd.s32 %v808, 237
      %v2401 = vadd.s32 %v809, 237
      %v2402 = vadd.s32 %v810, 237
      %v2403 = vcvt.s32.f32 %v2395
      %v2404 = vcvt.s32.f32 %v2396
      %v2405 = vcvt.s32.f32 %v2397
      %v2406 = vcvt.s32.f32 %v2398
      %v2407 = vcvt.s32.f32 %v2399
      %v2408 = vcvt.s32.f32 %v2400
      %v2409 = vcvt.s32.f32 %v2401
      %v2410 = vcvt.s32.f32 %v2402
      %v2411 = vadd.f32 %v2403, 0.5
      %v2412 = vadd.f32 %v2404, 0.5
      %v2413 = vadd.f32 %v2405, 0.5
      %v2414 = vadd.f32 %v2406, 0.5
      %v2415 = vadd.f32 %v2407, 0.5
      %v2416 = vadd.f32 %v2408, 0.5
      %v2417 = vadd.f32 %v2409, 0.5
      %v2418 = vadd.f32 %v2410, 0.5
      %v2419 = vmul.f32 %v2411, 0.055555556
      %v2420 = vmul.f32 %v2412, 0.055555556
      %v2421 = vmul.f32 %v2413, 0.055555556
      %v2422 = vmul.f32 %v2414, 0.055555556
      %v2423 = vmul.f32 %v2415, 0.055555556
      %v2424 = vmul.f32 %v2416, 0.055555556
      %v2425 = vmul.f32 %v2417, 0.055555556
      %v2426 = vmul.f32 %v2418, 0.055555556
      %v2427 = vfloor.f32 %v2419
      %v2428 = vfloor.f32 %v2420
      %v2429 = vfloor.f32 %v2421
      %v2430 = vfloor.f32 %v2422
      %v2431 = vfloor.f32 %v2423
      %v2432 = vfloor.f32 %v2424
      %v2433 = vfloor.f32 %v2425
      %v2434 = vfloor.f32 %v2426
      %v2435 = vmul.f32 %v2427, 18.0
      %v2436 = vmul.f32 %v2428, 18.0
      %v2437 = vmul.f32 %v2429, 18.0
      %v2438 = vmul.f32 %v2430, 18.0
      %v2439 = vmul.f32 %v2431, 18.0
      %v2440 = vmul.f32 %v2432, 18.0
      %v2441 = vmul.f32 %v2433, 18.0
      %v2442 = vmul.f32 %v2434, 18.0
      %v2443 = vsub.f32 %v2403, %v2435
      %v2444 = vsub.f32 %v2404, %v2436
      %v2445 = vsub.f32 %v2405, %v2437
      %v2446 = vsub.f32 %v2406, %v2438
      %v2447 = vsub.f32 %v2407, %v2439
      %v2448 = vsub.f32 %v2408, %v2440
      %v2449 = vsub.f32 %v2409, %v2441
      %v2450 = vsub.f32 %v2410, %v2442
      %vm2451 = vcmp.ge.f32.partialorder %v2403, 0.0
      %vm2452 = vcmp.ge.f32.partialorder %v2404, 0.0
      %vm2453 = vcmp.ge.f32.partialorder %v2405, 0.0
      %vm2454 = vcmp.ge.f32.partialorder %v2406, 0.0
      %vm2455 = vcmp.ge.f32.partialorder %v2407, 0.0
      %vm2456 = vcmp.ge.f32.partialorder %v2408, 0.0
      %vm2457 = vcmp.ge.f32.partialorder %v2409, 0.0
      %vm2458 = vcmp.ge.f32.partialorder %v2410, 0.0
      %vm2459 = vcmp.lt.f32.partialorder %v2403, 324.0
      %vm2460 = vcmp.lt.f32.partialorder %v2404, 324.0
      %vm2461 = vcmp.lt.f32.partialorder %v2405, 324.0
      %vm2462 = vcmp.lt.f32.partialorder %v2406, 324.0
      %vm2463 = vcmp.lt.f32.partialorder %v2407, 324.0
      %vm2464 = vcmp.lt.f32.partialorder %v2408, 324.0
      %vm2465 = vcmp.lt.f32.partialorder %v2409, 324.0
      %vm2466 = vcmp.lt.f32.partialorder %v2410, 324.0
      %vm2467 = vmand %vm2451, %vm2459
      %vm2468 = vmand %vm2452, %vm2460
      %vm2469 = vmand %vm2453, %vm2461
      %vm2470 = vmand %vm2454, %vm2462
      %vm2471 = vmand %vm2455, %vm2463
      %vm2472 = vmand %vm2456, %vm2464
      %vm2473 = vmand %vm2457, %vm2465
      %vm2474 = vmand %vm2458, %vm2466
      %vm2475 = vcmp.ge.f32.partialorder %v2427, 1.0
      %vm2476 = vcmp.ge.f32.partialorder %v2428, 1.0
      %vm2477 = vcmp.ge.f32.partialorder %v2429, 1.0
      %vm2478 = vcmp.ge.f32.partialorder %v2430, 1.0
      %vm2479 = vcmp.ge.f32.partialorder %v2431, 1.0
      %vm2480 = vcmp.ge.f32.partialorder %v2432, 1.0
      %vm2481 = vcmp.ge.f32.partialorder %v2433, 1.0
      %vm2482 = vcmp.ge.f32.partialorder %v2434, 1.0
      %vm2483 = vmand %vm2467, %vm2475
      %vm2484 = vmand %vm2468, %vm2476
      %vm2485 = vmand %vm2469, %vm2477
      %vm2486 = vmand %vm2470, %vm2478
      %vm2487 = vmand %vm2471, %vm2479
      %vm2488 = vmand %vm2472, %vm2480
      %vm2489 = vmand %vm2473, %vm2481
      %vm2490 = vmand %vm2474, %vm2482
      %vm2491 = vcmp.le.f32.partialorder %v2427, 16.0
      %vm2492 = vcmp.le.f32.partialorder %v2428, 16.0
      %vm2493 = vcmp.le.f32.partialorder %v2429, 16.0
      %vm2494 = vcmp.le.f32.partialorder %v2430, 16.0
      %vm2495 = vcmp.le.f32.partialorder %v2431, 16.0
      %vm2496 = vcmp.le.f32.partialorder %v2432, 16.0
      %vm2497 = vcmp.le.f32.partialorder %v2433, 16.0
      %vm2498 = vcmp.le.f32.partialorder %v2434, 16.0
      %vm2499 = vmand %vm2483, %vm2491
      %vm2500 = vmand %vm2484, %vm2492
      %vm2501 = vmand %vm2485, %vm2493
      %vm2502 = vmand %vm2486, %vm2494
      %vm2503 = vmand %vm2487, %vm2495
      %vm2504 = vmand %vm2488, %vm2496
      %vm2505 = vmand %vm2489, %vm2497
      %vm2506 = vmand %vm2490, %vm2498
      %vm2507 = vcmp.ge.f32.partialorder %v2443, 1.0
      %vm2508 = vcmp.ge.f32.partialorder %v2444, 1.0
      %vm2509 = vcmp.ge.f32.partialorder %v2445, 1.0
      %vm2510 = vcmp.ge.f32.partialorder %v2446, 1.0
      %vm2511 = vcmp.ge.f32.partialorder %v2447, 1.0
      %vm2512 = vcmp.ge.f32.partialorder %v2448, 1.0
      %vm2513 = vcmp.ge.f32.partialorder %v2449, 1.0
      %vm2514 = vcmp.ge.f32.partialorder %v2450, 1.0
      %vm2515 = vmand %vm2499, %vm2507
      %vm2516 = vmand %vm2500, %vm2508
      %vm2517 = vmand %vm2501, %vm2509
      %vm2518 = vmand %vm2502, %vm2510
      %vm2519 = vmand %vm2503, %vm2511
      %vm2520 = vmand %vm2504, %vm2512
      %vm2521 = vmand %vm2505, %vm2513
      %vm2522 = vmand %vm2506, %vm2514
      %vm2523 = vcmp.le.f32.partialorder %v2443, 16.0
      %vm2524 = vcmp.le.f32.partialorder %v2444, 16.0
      %vm2525 = vcmp.le.f32.partialorder %v2445, 16.0
      %vm2526 = vcmp.le.f32.partialorder %v2446, 16.0
      %vm2527 = vcmp.le.f32.partialorder %v2447, 16.0
      %vm2528 = vcmp.le.f32.partialorder %v2448, 16.0
      %vm2529 = vcmp.le.f32.partialorder %v2449, 16.0
      %vm2530 = vcmp.le.f32.partialorder %v2450, 16.0
      %vm2531 = vmand %vm2515, %vm2523
      %vm2532 = vmand %vm2516, %vm2524
      %vm2533 = vmand %vm2517, %vm2525
      %vm2534 = vmand %vm2518, %vm2526
      %vm2535 = vmand %vm2519, %vm2527
      %vm2536 = vmand %vm2520, %vm2528
      %vm2537 = vmand %vm2521, %vm2529
      %vm2538 = vmand %vm2522, %vm2530
      %v2539 = vmax.f32 %v2387, 0.0
      %v2540 = vmax.f32 %v2388, 0.0
      %v2541 = vmax.f32 %v2389, 0.0
      %v2542 = vmax.f32 %v2390, 0.0
      %v2543 = vmax.f32 %v2391, 0.0
      %v2544 = vmax.f32 %v2392, 0.0
      %v2545 = vmax.f32 %v2393, 0.0
      %v2546 = vmax.f32 %v2394, 0.0
      %v2547 = vsel %vm2531, 1, 0
      %v2548 = vsel %vm2532, 1, 0
      %v2549 = vsel %vm2533, 1, 0
      %v2550 = vsel %vm2534, 1, 0
      %v2551 = vsel %vm2535, 1, 0
      %v2552 = vsel %vm2536, 1, 0
      %v2553 = vsel %vm2537, 1, 0
      %v2554 = vsel %vm2538, 1, 0
      %vm2555 = vcmp.eq.s32.totalorder %v2547, 1
      %vm2556 = vcmp.eq.s32.totalorder %v2548, 1
      %vm2557 = vcmp.eq.s32.totalorder %v2549, 1
      %vm2558 = vcmp.eq.s32.totalorder %v2550, 1
      %vm2559 = vcmp.eq.s32.totalorder %v2551, 1
      %vm2560 = vcmp.eq.s32.totalorder %v2552, 1
      %vm2561 = vcmp.eq.s32.totalorder %v2553, 1
      %vm2562 = vcmp.eq.s32.totalorder %v2554, 1
      %v2563 = vsel %vm2555, %v2539, 0.0
      %v2564 = vsel %vm2556, %v2540, 0.0
      %v2565 = vsel %vm2557, %v2541, 0.0
      %v2566 = vsel %vm2558, %v2542, 0.0
      %v2567 = vsel %vm2559, %v2543, 0.0
      %v2568 = vsel %vm2560, %v2544, 0.0
      %v2569 = vsel %vm2561, %v2545, 0.0
      %v2570 = vsel %vm2562, %v2546, 0.0
      %v2571 = vpack.c.bf16 %v2563, %v2563
      %v2572 = vpack.c.bf16 %v2564, %v2564
      %v2573 = vpack.c.bf16 %v2565, %v2565
      %v2574 = vpack.c.bf16 %v2566, %v2566
      %v2575 = vpack.c.bf16 %v2567, %v2567
      %v2576 = vpack.c.bf16 %v2568, %v2568
      %v2577 = vpack.c.bf16 %v2569, %v2569
      %v2578 = vpack.c.bf16 %v2570, %v2570
      %2579 = vst [vmem:[#allocation3 + $0x80] sm:$0xf] %v2571
      %2580 = vst [vmem:[#allocation3 + $0x84] sm:$0xf] %v2572
      %2581 = vst [vmem:[#allocation3 + $0x88] sm:$0xf] %v2573
      %2582 = vst [vmem:[#allocation3 + $0x8c] sm:$0xf] %v2574
      %2583 = vst [vmem:[#allocation3 + $0x90] sm:$0xf] %v2575
      %2584 = vst [vmem:[#allocation3 + $0x94] sm:$0xf] %v2576
      %2585 = vst [vmem:[#allocation3 + $0x98] sm:$0xf] %v2577
      %2586 = vst [vmem:[#allocation3 + $0x9c] sm:$0xf] %v2578
      %v2587 = vld [vmem:[#allocation2 + $0x140] sm:$0xff]
      %v2588 = vld [vmem:[#allocation2 + $0x148] sm:$0xff]
      %v2589 = vld [vmem:[#allocation2 + $0x150] sm:$0xff]
      %v2590 = vld [vmem:[#allocation2 + $0x158] sm:$0xff]
      %v2591 = vld [vmem:[#allocation2 + $0x160] sm:$0xff]
      %v2592 = vld [vmem:[#allocation2 + $0x168] sm:$0xff]
      %v2593 = vmul.f32 %v2587, %v597
      %v2594 = vmul.f32 %v2588, %v597
      %v2595 = vmul.f32 %v2589, %v597
      %v2596 = vmul.f32 %v2590, %v597
      %v2597 = vmul.f32 %v2591, %v597
      %v2598 = vmul.f32 %v2592, %v597
      %v2599 = vadd.f32 %v587, %v2593
      %v2600 = vadd.f32 %v587, %v2594
      %v2601 = vadd.f32 %v587, %v2595
      %v2602 = vadd.f32 %v587, %v2596
      %v2603 = vadd.f32 %v587, %v2597
      %v2604 = vadd.f32 %v587, %v2598
      %v2605 = vld [vmem:[#allocation2 + $0x141] sm:$0xff]
      %v2606 = vld [vmem:[#allocation2 + $0x149] sm:$0xff]
      %v2607 = vld [vmem:[#allocation2 + $0x151] sm:$0xff]
      %v2608 = vld [vmem:[#allocation2 + $0x159] sm:$0xff]
      %v2609 = vld [vmem:[#allocation2 + $0x161] sm:$0xff]
      %v2610 = vld [vmem:[#allocation2 + $0x169] sm:$0xff]
      %v2611 = vmul.f32 %v2605, %v622
      %v2612 = vmul.f32 %v2606, %v622
      %v2613 = vmul.f32 %v2607, %v622
      %v2614 = vmul.f32 %v2608, %v622
      %v2615 = vmul.f32 %v2609, %v622
      %v2616 = vmul.f32 %v2610, %v622
      %v2617 = vadd.f32 %v2599, %v2611
      %v2618 = vadd.f32 %v2600, %v2612
      %v2619 = vadd.f32 %v2601, %v2613
      %v2620 = vadd.f32 %v2602, %v2614
      %v2621 = vadd.f32 %v2603, %v2615
      %v2622 = vadd.f32 %v2604, %v2616
      %v2623 = vld [vmem:[#allocation2 + $0x142] sm:$0xff]
      %v2624 = vld [vmem:[#allocation2 + $0x14a] sm:$0xff]
      %v2625 = vld [vmem:[#allocation2 + $0x152] sm:$0xff]
      %v2626 = vld [vmem:[#allocation2 + $0x15a] sm:$0xff]
      %v2627 = vld [vmem:[#allocation2 + $0x162] sm:$0xff]
      %v2628 = vld [vmem:[#allocation2 + $0x16a] sm:$0xff]
      %v2629 = vmul.f32 %v2623, %v647
      %v2630 = vmul.f32 %v2624, %v647
      %v2631 = vmul.f32 %v2625, %v647
      %v2632 = vmul.f32 %v2626, %v647
      %v2633 = vmul.f32 %v2627, %v647
      %v2634 = vmul.f32 %v2628, %v647
      %v2635 = vadd.f32 %v2617, %v2629
      %v2636 = vadd.f32 %v2618, %v2630
      %v2637 = vadd.f32 %v2619, %v2631
      %v2638 = vadd.f32 %v2620, %v2632
      %v2639 = vadd.f32 %v2621, %v2633
      %v2640 = vadd.f32 %v2622, %v2634
      %v2641 = vld [vmem:[#allocation2 + $0x172] sm:$0xff]
      %v2642 = vld [vmem:[#allocation2 + $0x17a] sm:$0xff]
      %v2643 = vmul.f32 %v2625, %v666
      %v2644 = vmul.f32 %v2626, %v666
      %v2645 = vmul.f32 %v2627, %v666
      %v2646 = vmul.f32 %v2628, %v666
      %v2647 = vmul.f32 %v2641, %v666
      %v2648 = vmul.f32 %v2642, %v666
      %v2649 = vadd.f32 %v2635, %v2643
      %v2650 = vadd.f32 %v2636, %v2644
      %v2651 = vadd.f32 %v2637, %v2645
      %v2652 = vadd.f32 %v2638, %v2646
      %v2653 = vadd.f32 %v2639, %v2647
      %v2654 = vadd.f32 %v2640, %v2648
      %v2655 = vld [vmem:[#allocation2 + $0x153] sm:$0xff]
      %v2656 = vld [vmem:[#allocation2 + $0x15b] sm:$0xff]
      %v2657 = vld [vmem:[#allocation2 + $0x163] sm:$0xff]
      %v2658 = vld [vmem:[#allocation2 + $0x16b] sm:$0xff]
      %v2659 = vld [vmem:[#allocation2 + $0x173] sm:$0xff]
      %v2660 = vld [vmem:[#allocation2 + $0x17b] sm:$0xff]
      %v2661 = vmul.f32 %v2655, %v691
      %v2662 = vmul.f32 %v2656, %v691
      %v2663 = vmul.f32 %v2657, %v691
      %v2664 = vmul.f32 %v2658, %v691
      %v2665 = vmul.f32 %v2659, %v691
      %v2666 = vmul.f32 %v2660, %v691
      %v2667 = vadd.f32 %v2649, %v2661
      %v2668 = vadd.f32 %v2650, %v2662
      %v2669 = vadd.f32 %v2651, %v2663
      %v2670 = vadd.f32 %v2652, %v2664
      %v2671 = vadd.f32 %v2653, %v2665
      %v2672 = vadd.f32 %v2654, %v2666
      %v2673 = vld [vmem:[#allocation2 + $0x154] sm:$0xff]
      %v2674 = vld [vmem:[#allocation2 + $0x15c] sm:$0xff]
      %v2675 = vld [vmem:[#allocation2 + $0x164] sm:$0xff]
      %v2676 = vld [vmem:[#allocation2 + $0x16c] sm:$0xff]
      %v2677 = vld [vmem:[#allocation2 + $0x174] sm:$0xff]
      %v2678 = vld [vmem:[#allocation2 + $0x17c] sm:$0xff]
      %v2679 = vmul.f32 %v2673, %v716
      %v2680 = vmul.f32 %v2674, %v716
      %v2681 = vmul.f32 %v2675, %v716
      %v2682 = vmul.f32 %v2676, %v716
      %v2683 = vmul.f32 %v2677, %v716
      %v2684 = vmul.f32 %v2678, %v716
      %v2685 = vadd.f32 %v2667, %v2679
      %v2686 = vadd.f32 %v2668, %v2680
      %v2687 = vadd.f32 %v2669, %v2681
      %v2688 = vadd.f32 %v2670, %v2682
      %v2689 = vadd.f32 %v2671, %v2683
      %v2690 = vadd.f32 %v2672, %v2684
      %v2691 = vld [vmem:[#allocation2 + $0x184] sm:$0xff]
      %v2692 = vld [vmem:[#allocation2 + $0x18c] sm:$0xff]
      %v2693 = vmul.f32 %v2675, %v735
      %v2694 = vmul.f32 %v2676, %v735
      %v2695 = vmul.f32 %v2677, %v735
      %v2696 = vmul.f32 %v2678, %v735
      %v2697 = vmul.f32 %v2691, %v735
      %v2698 = vmul.f32 %v2692, %v735
      %v2699 = vadd.f32 %v2685, %v2693
      %v2700 = vadd.f32 %v2686, %v2694
      %v2701 = vadd.f32 %v2687, %v2695
      %v2702 = vadd.f32 %v2688, %v2696
      %v2703 = vadd.f32 %v2689, %v2697
      %v2704 = vadd.f32 %v2690, %v2698
      %v2705 = vld [vmem:[#allocation2 + $0x165] sm:$0xff]
      %v2706 = vld [vmem:[#allocation2 + $0x16d] sm:$0xff]
      %v2707 = vld [vmem:[#allocation2 + $0x175] sm:$0xff]
      %v2708 = vld [vmem:[#allocation2 + $0x17d] sm:$0xff]
      %v2709 = vld [vmem:[#allocation2 + $0x185] sm:$0xff]
      %v2710 = vld [vmem:[#allocation2 + $0x18d] sm:$0xff]
      %v2711 = vmul.f32 %v2705, %v760
      %v2712 = vmul.f32 %v2706, %v760
      %v2713 = vmul.f32 %v2707, %v760
      %v2714 = vmul.f32 %v2708, %v760
      %v2715 = vmul.f32 %v2709, %v760
      %v2716 = vmul.f32 %v2710, %v760
      %v2717 = vadd.f32 %v2699, %v2711
      %v2718 = vadd.f32 %v2700, %v2712
      %v2719 = vadd.f32 %v2701, %v2713
      %v2720 = vadd.f32 %v2702, %v2714
      %v2721 = vadd.f32 %v2703, %v2715
      %v2722 = vadd.f32 %v2704, %v2716
      %v2723 = vld [vmem:[#allocation2 + $0x166] sm:$0xff]
      %v2724 = vld [vmem:[#allocation2 + $0x16e] sm:$0xff]
      %v2725 = vld [vmem:[#allocation2 + $0x176] sm:$0xff]
      %v2726 = vld [vmem:[#allocation2 + $0x17e] sm:$0xff]
      %v2727 = vld [vmem:[#allocation2 + $0x186] sm:$0xff]
      %v2728 = vld [vmem:[#allocation2 + $0x18e] sm:$0xff]
      %v2729 = vmul.f32 %v2723, %v785
      %v2730 = vmul.f32 %v2724, %v785
      %v2731 = vmul.f32 %v2725, %v785
      %v2732 = vmul.f32 %v2726, %v785
      %v2733 = vmul.f32 %v2727, %v785
      %v2734 = vmul.f32 %v2728, %v785
      %v2735 = vadd.f32 %v2717, %v2729
      %v2736 = vadd.f32 %v2718, %v2730
      %v2737 = vadd.f32 %v2719, %v2731
      %v2738 = vadd.f32 %v2720, %v2732
      %v2739 = vadd.f32 %v2721, %v2733
      %v2740 = vadd.f32 %v2722, %v2734
      %v2741 = vadd.s32 %v803, 301
      %v2742 = vadd.s32 %v804, 301
      %v2743 = vadd.s32 %v805, 301
      %v2744 = vadd.s32 %v806, 301
      %v2745 = vadd.s32 %v807, 301
      %v2746 = vadd.s32 %v808, 301
      %v2747 = vcvt.s32.f32 %v2741
      %v2748 = vcvt.s32.f32 %v2742
      %v2749 = vcvt.s32.f32 %v2743
      %v2750 = vcvt.s32.f32 %v2744
      %v2751 = vcvt.s32.f32 %v2745
      %v2752 = vcvt.s32.f32 %v2746
      %v2753 = vadd.f32 %v2747, 0.5
      %v2754 = vadd.f32 %v2748, 0.5
      %v2755 = vadd.f32 %v2749, 0.5
      %v2756 = vadd.f32 %v2750, 0.5
      %v2757 = vadd.f32 %v2751, 0.5
      %v2758 = vadd.f32 %v2752, 0.5
      %v2759 = vmul.f32 %v2753, 0.055555556
      %v2760 = vmul.f32 %v2754, 0.055555556
      %v2761 = vmul.f32 %v2755, 0.055555556
      %v2762 = vmul.f32 %v2756, 0.055555556
      %v2763 = vmul.f32 %v2757, 0.055555556
      %v2764 = vmul.f32 %v2758, 0.055555556
      %v2765 = vfloor.f32 %v2759
      %v2766 = vfloor.f32 %v2760
      %v2767 = vfloor.f32 %v2761
      %v2768 = vfloor.f32 %v2762
      %v2769 = vfloor.f32 %v2763
      %v2770 = vfloor.f32 %v2764
      %v2771 = vmul.f32 %v2765, 18.0
      %v2772 = vmul.f32 %v2766, 18.0
      %v2773 = vmul.f32 %v2767, 18.0
      %v2774 = vmul.f32 %v2768, 18.0
      %v2775 = vmul.f32 %v2769, 18.0
      %v2776 = vmul.f32 %v2770, 18.0
      %v2777 = vsub.f32 %v2747, %v2771
      %v2778 = vsub.f32 %v2748, %v2772
      %v2779 = vsub.f32 %v2749, %v2773
      %v2780 = vsub.f32 %v2750, %v2774
      %v2781 = vsub.f32 %v2751, %v2775
      %v2782 = vsub.f32 %v2752, %v2776
      %vm2783 = vcmp.ge.f32.partialorder %v2747, 0.0
      %vm2784 = vcmp.ge.f32.partialorder %v2748, 0.0
      %vm2785 = vcmp.ge.f32.partialorder %v2749, 0.0
      %vm2786 = vcmp.ge.f32.partialorder %v2750, 0.0
      %vm2787 = vcmp.ge.f32.partialorder %v2751, 0.0
      %vm2788 = vcmp.ge.f32.partialorder %v2752, 0.0
      %vm2789 = vcmp.lt.f32.partialorder %v2747, 324.0
      %vm2790 = vcmp.lt.f32.partialorder %v2748, 324.0
      %vm2791 = vcmp.lt.f32.partialorder %v2749, 324.0
      %vm2792 = vcmp.lt.f32.partialorder %v2750, 324.0
      %vm2793 = vcmp.lt.f32.partialorder %v2751, 324.0
      %vm2794 = vcmp.lt.f32.partialorder %v2752, 324.0
      %vm2795 = vmand %vm2783, %vm2789
      %vm2796 = vmand %vm2784, %vm2790
      %vm2797 = vmand %vm2785, %vm2791
      %vm2798 = vmand %vm2786, %vm2792
      %vm2799 = vmand %vm2787, %vm2793
      %vm2800 = vmand %vm2788, %vm2794
      %vm2801 = vcmp.ge.f32.partialorder %v2765, 1.0
      %vm2802 = vcmp.ge.f32.partialorder %v2766, 1.0
      %vm2803 = vcmp.ge.f32.partialorder %v2767, 1.0
      %vm2804 = vcmp.ge.f32.partialorder %v2768, 1.0
      %vm2805 = vcmp.ge.f32.partialorder %v2769, 1.0
      %vm2806 = vcmp.ge.f32.partialorder %v2770, 1.0
      %vm2807 = vmand %vm2795, %vm2801
      %vm2808 = vmand %vm2796, %vm2802
      %vm2809 = vmand %vm2797, %vm2803
      %vm2810 = vmand %vm2798, %vm2804
      %vm2811 = vmand %vm2799, %vm2805
      %vm2812 = vmand %vm2800, %vm2806
      %vm2813 = vcmp.le.f32.partialorder %v2765, 16.0
      %vm2814 = vcmp.le.f32.partialorder %v2766, 16.0
      %vm2815 = vcmp.le.f32.partialorder %v2767, 16.0
      %vm2816 = vcmp.le.f32.partialorder %v2768, 16.0
      %vm2817 = vcmp.le.f32.partialorder %v2769, 16.0
      %vm2818 = vcmp.le.f32.partialorder %v2770, 16.0
      %vm2819 = vmand %vm2807, %vm2813
      %vm2820 = vmand %vm2808, %vm2814
      %vm2821 = vmand %vm2809, %vm2815
      %vm2822 = vmand %vm2810, %vm2816
      %vm2823 = vmand %vm2811, %vm2817
      %vm2824 = vmand %vm2812, %vm2818
      %vm2825 = vcmp.ge.f32.partialorder %v2777, 1.0
      %vm2826 = vcmp.ge.f32.partialorder %v2778, 1.0
      %vm2827 = vcmp.ge.f32.partialorder %v2779, 1.0
      %vm2828 = vcmp.ge.f32.partialorder %v2780, 1.0
      %vm2829 = vcmp.ge.f32.partialorder %v2781, 1.0
      %vm2830 = vcmp.ge.f32.partialorder %v2782, 1.0
      %vm2831 = vmand %vm2819, %vm2825
      %vm2832 = vmand %vm2820, %vm2826
      %vm2833 = vmand %vm2821, %vm2827
      %vm2834 = vmand %vm2822, %vm2828
      %vm2835 = vmand %vm2823, %vm2829
      %vm2836 = vmand %vm2824, %vm2830
      %vm2837 = vcmp.le.f32.partialorder %v2777, 16.0
      %vm2838 = vcmp.le.f32.partialorder %v2778, 16.0
      %vm2839 = vcmp.le.f32.partialorder %v2779, 16.0
      %vm2840 = vcmp.le.f32.partialorder %v2780, 16.0
      %vm2841 = vcmp.le.f32.partialorder %v2781, 16.0
      %vm2842 = vcmp.le.f32.partialorder %v2782, 16.0
      %vm2843 = vmand %vm2831, %vm2837
      %vm2844 = vmand %vm2832, %vm2838
      %vm2845 = vmand %vm2833, %vm2839
      %vm2846 = vmand %vm2834, %vm2840
      %vm2847 = vmand %vm2835, %vm2841
      %vm2848 = vmand %vm2836, %vm2842
      %v2849 = vmax.f32 %v2735, 0.0
      %v2850 = vmax.f32 %v2736, 0.0
      %v2851 = vmax.f32 %v2737, 0.0
      %v2852 = vmax.f32 %v2738, 0.0
      %v2853 = vmax.f32 %v2739, 0.0
      %v2854 = vmax.f32 %v2740, 0.0
      %v2855 = vsel %vm2843, 1, 0
      %v2856 = vsel %vm2844, 1, 0
      %v2857 = vsel %vm2845, 1, 0
      %v2858 = vsel %vm2846, 1, 0
      %v2859 = vsel %vm2847, 1, 0
      %v2860 = vsel %vm2848, 1, 0
      %vm2861 = vcmp.eq.s32.totalorder %v2855, 1
      %vm2862 = vcmp.eq.s32.totalorder %v2856, 1
      %vm2863 = vcmp.eq.s32.totalorder %v2857, 1
      %vm2864 = vcmp.eq.s32.totalorder %v2858, 1
      %vm2865 = vcmp.eq.s32.totalorder %v2859, 1
      %vm2866 = vcmp.eq.s32.totalorder %v2860, 1
      %v2867 = vsel %vm2861, %v2849, 0.0
      %v2868 = vsel %vm2862, %v2850, 0.0
      %v2869 = vsel %vm2863, %v2851, 0.0
      %v2870 = vsel %vm2864, %v2852, 0.0
      %v2871 = vsel %vm2865, %v2853, 0.0
      %v2872 = vsel %vm2866, %v2854, 0.0
      %v2873 = vpack.c.bf16 %v2867, %v2867
      %v2874 = vpack.c.bf16 %v2868, %v2868
      %v2875 = vpack.c.bf16 %v2869, %v2869
      %v2876 = vpack.c.bf16 %v2870, %v2870
      %v2877 = vpack.c.bf16 %v2871, %v2871
      %v2878 = vpack.c.bf16 %v2872, %v2872
      %2879 = vst [vmem:[#allocation3 + $0xa0] sm:$0xf] %v2873
      %2880 = vst [vmem:[#allocation3 + $0xa4] sm:$0xf] %v2874
      %2881 = vst [vmem:[#allocation3 + $0xa8] sm:$0xf] %v2875
      %2882 = vst [vmem:[#allocation3 + $0xac] sm:$0xf] %v2876
      %2883 = vst [vmem:[#allocation3 + $0xb0] sm:$0xf] %v2877
      %2884 = vst [vmem:[#allocation3 + $0xb4] sm:$0xf] %v2878
      %vm2885 = vcmask 1043584
      %2886 = vst.msk [vmem:[#allocation4 + $0x4] sm:$0xf] %vm2885, 0
      %2887 = vst.msk [vmem:[#allocation4 + $0xc] sm:$0xf] %vm2885, 0
      %2888 = vst.msk [vmem:[#allocation4 + $0x14] sm:$0xf] %vm2885, 0
      %2889 = vst.msk [vmem:[#allocation4 + $0x1c] sm:$0xf] %vm2885, 0
      %2890 = vst.msk [vmem:[#allocation4 + $0x24] sm:$0xf] %vm2885, 0
      %2891 = vst.msk [vmem:[#allocation4 + $0x2c] sm:$0xf] %vm2885, 0
      %2892 = vst.msk [vmem:[#allocation4 + $0x34] sm:$0xf] %vm2885, 0
      %2893 = vst.msk [vmem:[#allocation4 + $0x3c] sm:$0xf] %vm2885, 0
      %2894 = vst.msk [vmem:[#allocation4 + $0x44] sm:$0xf] %vm2885, 0
      %2895 = vst.msk [vmem:[#allocation4 + $0x4c] sm:$0xf] %vm2885, 0
      %2896 = vst.msk [vmem:[#allocation4 + $0x54] sm:$0xf] %vm2885, 0
      %2897 = vst.msk [vmem:[#allocation4 + $0x5c] sm:$0xf] %vm2885, 0
      %2898 = vst.msk [vmem:[#allocation4 + $0x64] sm:$0xf] %vm2885, 0
      %2899 = vst.msk [vmem:[#allocation4 + $0x6c] sm:$0xf] %vm2885, 0
      %2900 = vst.msk [vmem:[#allocation4 + $0x74] sm:$0xf] %vm2885, 0
      %2901 = vst.msk [vmem:[#allocation4 + $0x7c] sm:$0xf] %vm2885, 0
      %2902 = vst.msk [vmem:[#allocation4 + $0x84] sm:$0xf] %vm2885, 0
      %2903 = vst.msk [vmem:[#allocation4 + $0x8c] sm:$0xf] %vm2885, 0
      %2904 = vst.msk [vmem:[#allocation4 + $0x94] sm:$0xf] %vm2885, 0
      %2905 = vst.msk [vmem:[#allocation4 + $0x9c] sm:$0xf] %vm2885, 0
      %2906 = vst.msk [vmem:[#allocation4 + $0xa4] sm:$0xf] %vm2885, 0
      %2907 = vst.msk [vmem:[#allocation4 + $0xac] sm:$0xf] %vm2885, 0
      %2908 = vst.msk [vmem:[#allocation4 + $0xb4] sm:$0xf] %vm2885, 0
      %2909 = vst.msk [vmem:[#allocation4 + $0xbc] sm:$0xf] %vm2885, 0
      %2910 = vst.msk [vmem:[#allocation4 + $0xc4] sm:$0xf] %vm2885, 0
      %2911 = vst.msk [vmem:[#allocation4 + $0xcc] sm:$0xf] %vm2885, 0
      %2912 = vst.msk [vmem:[#allocation4 + $0xd4] sm:$0xf] %vm2885, 0
      %2913 = vst.msk [vmem:[#allocation4 + $0xdc] sm:$0xf] %vm2885, 0
      %2914 = vst.msk [vmem:[#allocation4 + $0xe4] sm:$0xf] %vm2885, 0
      %2915 = vst.msk [vmem:[#allocation4 + $0xec] sm:$0xf] %vm2885, 0
      %2916 = vst.msk [vmem:[#allocation4 + $0xf4] sm:$0xf] %vm2885, 0
      %2917 = vst.msk [vmem:[#allocation4 + $0xfc] sm:$0xf] %vm2885, 0
      %2918 = vst.msk [vmem:[#allocation4 + $0x104] sm:$0xf] %vm2885, 0
      %2919 = vst.msk [vmem:[#allocation4 + $0x10c] sm:$0xf] %vm2885, 0
      %2920 = vst.msk [vmem:[#allocation4 + $0x114] sm:$0xf] %vm2885, 0
      %2921 = vst.msk [vmem:[#allocation4 + $0x11c] sm:$0xf] %vm2885, 0
      %2922 = vst.msk [vmem:[#allocation4 + $0x124] sm:$0xf] %vm2885, 0
      %2923 = vst.msk [vmem:[#allocation4 + $0x12c] sm:$0xf] %vm2885, 0
      %2924 = vst.msk [vmem:[#allocation4 + $0x134] sm:$0xf] %vm2885, 0
      %2925 = vst.msk [vmem:[#allocation4 + $0x13c] sm:$0xf] %vm2885, 0
      %2926 = vst.msk [vmem:[#allocation4 + $0x144] sm:$0xf] %vm2885, 0
      %v2927 = vld [vmem:[#allocation3] sm:$0xf]
      %v2928 = vld [vmem:[#allocation3 + $0x4] sm:$0xf]
      %v2929 = vld [vmem:[#allocation3 + $0x8] sm:$0xf]
      %v2930 = vld [vmem:[#allocation3 + $0xc] sm:$0xf]
      %v2931 = vld [vmem:[#allocation3 + $0x10] sm:$0xf]
      %v2932 = vld [vmem:[#allocation3 + $0x14] sm:$0xf]
      %v2933 = vld [vmem:[#allocation3 + $0x18] sm:$0xf]
      %v2934 = vld [vmem:[#allocation3 + $0x1c] sm:$0xf]
      %v2935 = vld [vmem:[#allocation3 + $0x20] sm:$0xf]
      %v2936 = vld [vmem:[#allocation3 + $0x24] sm:$0xf]
      %v2937 = vld [vmem:[#allocation3 + $0x28] sm:$0xf]
      %v2938 = vld [vmem:[#allocation3 + $0x2c] sm:$0xf]
      %v2939 = vld [vmem:[#allocation3 + $0x30] sm:$0xf]
      %v2940 = vld [vmem:[#allocation3 + $0x34] sm:$0xf]
      %v2941 = vld [vmem:[#allocation3 + $0x38] sm:$0xf]
      %v2942 = vld [vmem:[#allocation3 + $0x3c] sm:$0xf]
      %v2943 = vld [vmem:[#allocation3 + $0x40] sm:$0xf]
      %v2944 = vld [vmem:[#allocation3 + $0x44] sm:$0xf]
      %v2945 = vld [vmem:[#allocation3 + $0x48] sm:$0xf]
      %v2946 = vld [vmem:[#allocation3 + $0x4c] sm:$0xf]
      %v2947 = vld [vmem:[#allocation3 + $0x50] sm:$0xf]
      %v2948 = vld [vmem:[#allocation3 + $0x54] sm:$0xf]
      %v2949 = vld [vmem:[#allocation3 + $0x58] sm:$0xf]
      %v2950 = vld [vmem:[#allocation3 + $0x5c] sm:$0xf]
      %v2951 = vld [vmem:[#allocation3 + $0x60] sm:$0xf]
      %v2952 = vld [vmem:[#allocation3 + $0x64] sm:$0xf]
      %v2953 = vld [vmem:[#allocation3 + $0x68] sm:$0xf]
      %v2954 = vld [vmem:[#allocation3 + $0x6c] sm:$0xf]
      %v2955 = vld [vmem:[#allocation3 + $0x70] sm:$0xf]
      %v2956 = vld [vmem:[#allocation3 + $0x74] sm:$0xf]
      %v2957 = vld [vmem:[#allocation3 + $0x78] sm:$0xf]
      %v2958 = vld [vmem:[#allocation3 + $0x7c] sm:$0xf]
      %v2959 = vld [vmem:[#allocation3 + $0x80] sm:$0xf]
      %v2960 = vld [vmem:[#allocation3 + $0x84] sm:$0xf]
      %v2961 = vld [vmem:[#allocation3 + $0x88] sm:$0xf]
      %v2962 = vld [vmem:[#allocation3 + $0x8c] sm:$0xf]
      %v2963 = vld [vmem:[#allocation3 + $0x90] sm:$0xf]
      %v2964 = vld [vmem:[#allocation3 + $0x94] sm:$0xf]
      %v2965 = vld [vmem:[#allocation3 + $0x98] sm:$0xf]
      %v2966 = vld [vmem:[#allocation3 + $0x9c] sm:$0xf]
      %v2967 = vld [vmem:[#allocation3 + $0xa0] sm:$0xf]
      %vm2968 = vcmask 125952
      %2969 = vst.msk [vmem:[#allocation4] sm:$0xf] %vm2968, %v2927
      %2970 = vst.msk [vmem:[#allocation4 + $0x8] sm:$0xf] %vm2968, %v2928
      %2971 = vst.msk [vmem:[#allocation4 + $0x10] sm:$0xf] %vm2968, %v2929
      %2972 = vst.msk [vmem:[#allocation4 + $0x18] sm:$0xf] %vm2968, %v2930
      %2973 = vst.msk [vmem:[#allocation4 + $0x20] sm:$0xf] %vm2968, %v2931
      %2974 = vst.msk [vmem:[#allocation4 + $0x28] sm:$0xf] %vm2968, %v2932
      %2975 = vst.msk [vmem:[#allocation4 + $0x30] sm:$0xf] %vm2968, %v2933
      %2976 = vst.msk [vmem:[#allocation4 + $0x38] sm:$0xf] %vm2968, %v2934
      %2977 = vst.msk [vmem:[#allocation4 + $0x40] sm:$0xf] %vm2968, %v2935
      %2978 = vst.msk [vmem:[#allocation4 + $0x48] sm:$0xf] %vm2968, %v2936
      %2979 = vst.msk [vmem:[#allocation4 + $0x50] sm:$0xf] %vm2968, %v2937
      %2980 = vst.msk [vmem:[#allocation4 + $0x58] sm:$0xf] %vm2968, %v2938
      %2981 = vst.msk [vmem:[#allocation4 + $0x60] sm:$0xf] %vm2968, %v2939
      %2982 = vst.msk [vmem:[#allocation4 + $0x68] sm:$0xf] %vm2968, %v2940
      %2983 = vst.msk [vmem:[#allocation4 + $0x70] sm:$0xf] %vm2968, %v2941
      %2984 = vst.msk [vmem:[#allocation4 + $0x78] sm:$0xf] %vm2968, %v2942
      %2985 = vst.msk [vmem:[#allocation4 + $0x80] sm:$0xf] %vm2968, %v2943
      %2986 = vst.msk [vmem:[#allocation4 + $0x88] sm:$0xf] %vm2968, %v2944
      %2987 = vst.msk [vmem:[#allocation4 + $0x90] sm:$0xf] %vm2968, %v2945
      %2988 = vst.msk [vmem:[#allocation4 + $0x98] sm:$0xf] %vm2968, %v2946
      %2989 = vst.msk [vmem:[#allocation4 + $0xa0] sm:$0xf] %vm2968, %v2947
      %2990 = vst.msk [vmem:[#allocation4 + $0xa8] sm:$0xf] %vm2968, %v2948
      %2991 = vst.msk [vmem:[#allocation4 + $0xb0] sm:$0xf] %vm2968, %v2949
      %2992 = vst.msk [vmem:[#allocation4 + $0xb8] sm:$0xf] %vm2968, %v2950
      %2993 = vst.msk [vmem:[#allocation4 + $0xc0] sm:$0xf] %vm2968, %v2951
      %2994 = vst.msk [vmem:[#allocation4 + $0xc8] sm:$0xf] %vm2968, %v2952
      %2995 = vst.msk [vmem:[#allocation4 + $0xd0] sm:$0xf] %vm2968, %v2953
      %2996 = vst.msk [vmem:[#allocation4 + $0xd8] sm:$0xf] %vm2968, %v2954
      %2997 = vst.msk [vmem:[#allocation4 + $0xe0] sm:$0xf] %vm2968, %v2955
      %2998 = vst.msk [vmem:[#allocation4 + $0xe8] sm:$0xf] %vm2968, %v2956
      %2999 = vst.msk [vmem:[#allocation4 + $0xf0] sm:$0xf] %vm2968, %v2957
      %3000 = vst.msk [vmem:[#allocation4 + $0xf8] sm:$0xf] %vm2968, %v2958
      %3001 = vst.msk [vmem:[#allocation4 + $0x100] sm:$0xf] %vm2968, %v2959
      %3002 = vst.msk [vmem:[#allocation4 + $0x108] sm:$0xf] %vm2968, %v2960
      %3003 = vst.msk [vmem:[#allocation4 + $0x110] sm:$0xf] %vm2968, %v2961
      %3004 = vst.msk [vmem:[#allocation4 + $0x118] sm:$0xf] %vm2968, %v2962
      %3005 = vst.msk [vmem:[#allocation4 + $0x120] sm:$0xf] %vm2968, %v2963
      %3006 = vst.msk [vmem:[#allocation4 + $0x128] sm:$0xf] %vm2968, %v2964
      %3007 = vst.msk [vmem:[#allocation4 + $0x130] sm:$0xf] %vm2968, %v2965
      %3008 = vst.msk [vmem:[#allocation4 + $0x138] sm:$0xf] %vm2968, %v2966
      %3009 = vst.msk [vmem:[#allocation4 + $0x140] sm:$0xf] %vm2968, %v2967
      %v3010 = vld [vmem:[#allocation3] sm:$0xf]
      %v3011 = vld [vmem:[#allocation3 + $0x4] sm:$0xf]
      %v3012 = vld [vmem:[#allocation3 + $0x8] sm:$0xf]
      %v3013 = vld [vmem:[#allocation3 + $0xc] sm:$0xf]
      %v3014 = vld [vmem:[#allocation3 + $0x10] sm:$0xf]
      %v3015 = vld [vmem:[#allocation3 + $0x14] sm:$0xf]
      %v3016 = vld [vmem:[#allocation3 + $0x18] sm:$0xf]
      %v3017 = vld [vmem:[#allocation3 + $0x1c] sm:$0xf]
      %v3018 = vld [vmem:[#allocation3 + $0x20] sm:$0xf]
      %v3019 = vld [vmem:[#allocation3 + $0x24] sm:$0xf]
      %v3020 = vld [vmem:[#allocation3 + $0x28] sm:$0xf]
      %v3021 = vld [vmem:[#allocation3 + $0x2c] sm:$0xf]
      %v3022 = vld [vmem:[#allocation3 + $0x30] sm:$0xf]
      %v3023 = vld [vmem:[#allocation3 + $0x34] sm:$0xf]
      %v3024 = vld [vmem:[#allocation3 + $0x38] sm:$0xf]
      %v3025 = vld [vmem:[#allocation3 + $0x3c] sm:$0xf]
      %v3026 = vld [vmem:[#allocation3 + $0x40] sm:$0xf]
      %v3027 = vld [vmem:[#allocation3 + $0x44] sm:$0xf]
      %v3028 = vld [vmem:[#allocation3 + $0x48] sm:$0xf]
      %v3029 = vld [vmem:[#allocation3 + $0x4c] sm:$0xf]
      %v3030 = vld [vmem:[#allocation3 + $0x50] sm:$0xf]
      %v3031 = vld [vmem:[#allocation3 + $0x54] sm:$0xf]
      %v3032 = vld [vmem:[#allocation3 + $0x58] sm:$0xf]
      %v3033 = vld [vmem:[#allocation3 + $0x5c] sm:$0xf]
      %v3034 = vld [vmem:[#allocation3 + $0x60] sm:$0xf]
      %v3035 = vld [vmem:[#allocation3 + $0x64] sm:$0xf]
      %v3036 = vld [vmem:[#allocation3 + $0x68] sm:$0xf]
      %v3037 = vld [vmem:[#allocation3 + $0x6c] sm:$0xf]
      %v3038 = vld [vmem:[#allocation3 + $0x70] sm:$0xf]
      %v3039 = vld [vmem:[#allocation3 + $0x74] sm:$0xf]
      %v3040 = vld [vmem:[#allocation3 + $0x78] sm:$0xf]
      %v3041 = vld [vmem:[#allocation3 + $0x7c] sm:$0xf]
      %v3042 = vld [vmem:[#allocation3 + $0x80] sm:$0xf]
      %v3043 = vld [vmem:[#allocation3 + $0x84] sm:$0xf]
      %v3044 = vld [vmem:[#allocation3 + $0x88] sm:$0xf]
      %v3045 = vld [vmem:[#allocation3 + $0x8c] sm:$0xf]
      %v3046 = vld [vmem:[#allocation3 + $0x90] sm:$0xf]
      %v3047 = vld [vmem:[#allocation3 + $0x94] sm:$0xf]
      %v3048 = vld [vmem:[#allocation3 + $0x98] sm:$0xf]
      %v3049 = vld [vmem:[#allocation3 + $0x9c] sm:$0xf]
      %v3050 = vld [vmem:[#allocation3 + $0xa0] sm:$0xf]
      %v3051 = vld [vmem:[#allocation3 + $0xa4] sm:$0x1]
      %vm3052 = vsmask.f32 3328
      %vm3053 = vsmask.f32 7440
      %vm3054 = vmor %vm3052, %vm3053
      %v3056 = vshrl.u32 %v3010, 16
      %v3058 = vrot.slane %v3056, 4
      %v3059 = vshll.u32 %v3010, 16
      %v3061 = vrot.slane %v3059, 5
      %v3062 = vor.u32 %v3058, %v3061
      %v3063 = vrot.slane %v3062, 4
      %v3065 = vshll.u32 %v3011, 16
      %v3067 = vrot.slane %v3065, 5
      %v3068 = vsel %vm3054, %v3063, %v3067
      %v3069 = vshrl.u32 %v3011, 16
      %v3071 = vrot.slane %v3069, 4
      %v3072 = vor.u32 %v3071, %v3067
      %v3073 = vrot.slane %v3072, 4
      %v3075 = vshll.u32 %v3012, 16
      %v3077 = vrot.slane %v3075, 5
      %v3078 = vsel %vm3054, %v3073, %v3077
      %v3079 = vshrl.u32 %v3012, 16
      %v3081 = vrot.slane %v3079, 4
      %v3082 = vor.u32 %v3081, %v3077
      %v3083 = vrot.slane %v3082, 4
      %v3085 = vshll.u32 %v3013, 16
      %v3087 = vrot.slane %v3085, 5
      %v3088 = vsel %vm3054, %v3083, %v3087
      %v3089 = vshrl.u32 %v3013, 16
      %v3091 = vrot.slane %v3089, 4
      %v3092 = vor.u32 %v3091, %v3087
      %v3093 = vrot.slane %v3092, 4
      %v3095 = vshll.u32 %v3014, 16
      %v3097 = vrot.slane %v3095, 5
      %v3098 = vsel %vm3054, %v3093, %v3097
      %v3099 = vshrl.u32 %v3014, 16
      %v3101 = vrot.slane %v3099, 4
      %v3102 = vor.u32 %v3101, %v3097
      %v3103 = vrot.slane %v3102, 4
      %v3105 = vshll.u32 %v3015, 16
      %v3107 = vrot.slane %v3105, 5
      %v3108 = vsel %vm3054, %v3103, %v3107
      %v3109 = vshrl.u32 %v3015, 16
      %v3111 = vrot.slane %v3109, 4
      %v3112 = vor.u32 %v3111, %v3107
      %v3113 = vrot.slane %v3112, 4
      %v3115 = vshll.u32 %v3016, 16
      %v3117 = vrot.slane %v3115, 5
      %v3118 = vsel %vm3054, %v3113, %v3117
      %v3119 = vshrl.u32 %v3016, 16
      %v3121 = vrot.slane %v3119, 4
      %v3122 = vor.u32 %v3121, %v3117
      %v3123 = vrot.slane %v3122, 4
      %v3125 = vshll.u32 %v3017, 16
      %v3127 = vrot.slane %v3125, 5
      %v3128 = vsel %vm3054, %v3123, %v3127
      %v3129 = vshrl.u32 %v3017, 16
      %v3131 = vrot.slane %v3129, 4
      %v3132 = vor.u32 %v3131, %v3127
      %v3133 = vrot.slane %v3132, 4
      %v3135 = vshll.u32 %v3018, 16
      %v3137 = vrot.slane %v3135, 5
      %v3138 = vsel %vm3054, %v3133, %v3137
      %v3139 = vshrl.u32 %v3018, 16
      %v3141 = vrot.slane %v3139, 4
      %v3142 = vor.u32 %v3141, %v3137
      %v3143 = vrot.slane %v3142, 4
      %v3145 = vshll.u32 %v3019, 16
      %v3147 = vrot.slane %v3145, 5
      %v3148 = vsel %vm3054, %v3143, %v3147
      %v3149 = vshrl.u32 %v3019, 16
      %v3151 = vrot.slane %v3149, 4
      %v3152 = vor.u32 %v3151, %v3147
      %v3153 = vrot.slane %v3152, 4
      %v3155 = vshll.u32 %v3020, 16
      %v3157 = vrot.slane %v3155, 5
      %v3158 = vsel %vm3054, %v3153, %v3157
      %v3159 = vshrl.u32 %v3020, 16
      %v3161 = vrot.slane %v3159, 4
      %v3162 = vor.u32 %v3161, %v3157
      %v3163 = vrot.slane %v3162, 4
      %v3165 = vshll.u32 %v3021, 16
      %v3167 = vrot.slane %v3165, 5
      %v3168 = vsel %vm3054, %v3163, %v3167
      %v3169 = vshrl.u32 %v3021, 16
      %v3171 = vrot.slane %v3169, 4
      %v3172 = vor.u32 %v3171, %v3167
      %v3173 = vrot.slane %v3172, 4
      %v3175 = vshll.u32 %v3022, 16
      %v3177 = vrot.slane %v3175, 5
      %v3178 = vsel %vm3054, %v3173, %v3177
      %v3179 = vshrl.u32 %v3022, 16
      %v3181 = vrot.slane %v3179, 4
      %v3182 = vor.u32 %v3181, %v3177
      %v3183 = vrot.slane %v3182, 4
      %v3185 = vshll.u32 %v3023, 16
      %v3187 = vrot.slane %v3185, 5
      %v3188 = vsel %vm3054, %v3183, %v3187
      %v3189 = vshrl.u32 %v3023, 16
      %v3191 = vrot.slane %v3189, 4
      %v3192 = vor.u32 %v3191, %v3187
      %v3193 = vrot.slane %v3192, 4
      %v3195 = vshll.u32 %v3024, 16
      %v3197 = vrot.slane %v3195, 5
      %v3198 = vsel %vm3054, %v3193, %v3197
      %v3199 = vshrl.u32 %v3024, 16
      %v3201 = vrot.slane %v3199, 4
      %v3202 = vor.u32 %v3201, %v3197
      %v3203 = vrot.slane %v3202, 4
      %v3205 = vshll.u32 %v3025, 16
      %v3207 = vrot.slane %v3205, 5
      %v3208 = vsel %vm3054, %v3203, %v3207
      %v3209 = vshrl.u32 %v3025, 16
      %v3211 = vrot.slane %v3209, 4
      %v3212 = vor.u32 %v3211, %v3207
      %v3213 = vrot.slane %v3212, 4
      %v3215 = vshll.u32 %v3026, 16
      %v3217 = vrot.slane %v3215, 5
      %v3218 = vsel %vm3054, %v3213, %v3217
      %v3219 = vshrl.u32 %v3026, 16
      %v3221 = vrot.slane %v3219, 4
      %v3222 = vor.u32 %v3221, %v3217
      %v3223 = vrot.slane %v3222, 4
      %v3225 = vshll.u32 %v3027, 16
      %v3227 = vrot.slane %v3225, 5
      %v3228 = vsel %vm3054, %v3223, %v3227
      %v3229 = vshrl.u32 %v3027, 16
      %v3231 = vrot.slane %v3229, 4
      %v3232 = vor.u32 %v3231, %v3227
      %v3233 = vrot.slane %v3232, 4
      %v3235 = vshll.u32 %v3028, 16
      %v3237 = vrot.slane %v3235, 5
      %v3238 = vsel %vm3054, %v3233, %v3237
      %v3239 = vshrl.u32 %v3028, 16
      %v3241 = vrot.slane %v3239, 4
      %v3242 = vor.u32 %v3241, %v3237
      %v3243 = vrot.slane %v3242, 4
      %v3245 = vshll.u32 %v3029, 16
      %v3247 = vrot.slane %v3245, 5
      %v3248 = vsel %vm3054, %v3243, %v3247
      %v3249 = vshrl.u32 %v3029, 16
      %v3251 = vrot.slane %v3249, 4
      %v3252 = vor.u32 %v3251, %v3247
      %v3253 = vrot.slane %v3252, 4
      %v3255 = vshll.u32 %v3030, 16
      %v3257 = vrot.slane %v3255, 5
      %v3258 = vsel %vm3054, %v3253, %v3257
      %v3259 = vshrl.u32 %v3030, 16
      %v3261 = vrot.slane %v3259, 4
      %v3262 = vor.u32 %v3261, %v3257
      %v3263 = vrot.slane %v3262, 4
      %v3265 = vshll.u32 %v3031, 16
      %v3267 = vrot.slane %v3265, 5
      %v3268 = vsel %vm3054, %v3263, %v3267
      %v3269 = vshrl.u32 %v3031, 16
      %v3271 = vrot.slane %v3269, 4
      %v3272 = vor.u32 %v3271, %v3267
      %v3273 = vrot.slane %v3272, 4
      %v3275 = vshll.u32 %v3032, 16
      %v3277 = vrot.slane %v3275, 5
      %v3278 = vsel %vm3054, %v3273, %v3277
      %v3279 = vshrl.u32 %v3032, 16
      %v3281 = vrot.slane %v3279, 4
      %v3282 = vor.u32 %v3281, %v3277
      %v3283 = vrot.slane %v3282, 4
      %v3285 = vshll.u32 %v3033, 16
      %v3287 = vrot.slane %v3285, 5
      %v3288 = vsel %vm3054, %v3283, %v3287
      %v3289 = vshrl.u32 %v3033, 16
      %v3291 = vrot.slane %v3289, 4
      %v3292 = vor.u32 %v3291, %v3287
      %v3293 = vrot.slane %v3292, 4
      %v3295 = vshll.u32 %v3034, 16
      %v3297 = vrot.slane %v3295, 5
      %v3298 = vsel %vm3054, %v3293, %v3297
      %v3299 = vshrl.u32 %v3034, 16
      %v3301 = vrot.slane %v3299, 4
      %v3302 = vor.u32 %v3301, %v3297
      %v3303 = vrot.slane %v3302, 4
      %v3305 = vshll.u32 %v3035, 16
      %v3307 = vrot.slane %v3305, 5
      %v3308 = vsel %vm3054, %v3303, %v3307
      %v3309 = vshrl.u32 %v3035, 16
      %v3311 = vrot.slane %v3309, 4
      %v3312 = vor.u32 %v3311, %v3307
      %v3313 = vrot.slane %v3312, 4
      %v3315 = vshll.u32 %v3036, 16
      %v3317 = vrot.slane %v3315, 5
      %v3318 = vsel %vm3054, %v3313, %v3317
      %v3319 = vshrl.u32 %v3036, 16
      %v3321 = vrot.slane %v3319, 4
      %v3322 = vor.u32 %v3321, %v3317
      %v3323 = vrot.slane %v3322, 4
      %v3325 = vshll.u32 %v3037, 16
      %v3327 = vrot.slane %v3325, 5
      %v3328 = vsel %vm3054, %v3323, %v3327
      %v3329 = vshrl.u32 %v3037, 16
      %v3331 = vrot.slane %v3329, 4
      %v3332 = vor.u32 %v3331, %v3327
      %v3333 = vrot.slane %v3332, 4
      %v3335 = vshll.u32 %v3038, 16
      %v3337 = vrot.slane %v3335, 5
      %v3338 = vsel %vm3054, %v3333, %v3337
      %v3339 = vshrl.u32 %v3038, 16
      %v3341 = vrot.slane %v3339, 4
      %v3342 = vor.u32 %v3341, %v3337
      %v3343 = vrot.slane %v3342, 4
      %v3345 = vshll.u32 %v3039, 16
      %v3347 = vrot.slane %v3345, 5
      %v3348 = vsel %vm3054, %v3343, %v3347
      %v3349 = vshrl.u32 %v3039, 16
      %v3351 = vrot.slane %v3349, 4
      %v3352 = vor.u32 %v3351, %v3347
      %v3353 = vrot.slane %v3352, 4
      %v3355 = vshll.u32 %v3040, 16
      %v3357 = vrot.slane %v3355, 5
      %v3358 = vsel %vm3054, %v3353, %v3357
      %v3359 = vshrl.u32 %v3040, 16
      %v3361 = vrot.slane %v3359, 4
      %v3362 = vor.u32 %v3361, %v3357
      %v3363 = vrot.slane %v3362, 4
      %v3365 = vshll.u32 %v3041, 16
      %v3367 = vrot.slane %v3365, 5
      %v3368 = vsel %vm3054, %v3363, %v3367
      %v3369 = vshrl.u32 %v3041, 16
      %v3371 = vrot.slane %v3369, 4
      %v3372 = vor.u32 %v3371, %v3367
      %v3373 = vrot.slane %v3372, 4
      %v3375 = vshll.u32 %v3042, 16
      %v3377 = vrot.slane %v3375, 5
      %v3378 = vsel %vm3054, %v3373, %v3377
      %v3379 = vshrl.u32 %v3042, 16
      %v3381 = vrot.slane %v3379, 4
      %v3382 = vor.u32 %v3381, %v3377
      %v3383 = vrot.slane %v3382, 4
      %v3385 = vshll.u32 %v3043, 16
      %v3387 = vrot.slane %v3385, 5
      %v3388 = vsel %vm3054, %v3383, %v3387
      %v3389 = vshrl.u32 %v3043, 16
      %v3391 = vrot.slane %v3389, 4
      %v3392 = vor.u32 %v3391, %v3387
      %v3393 = vrot.slane %v3392, 4
      %v3395 = vshll.u32 %v3044, 16
      %v3397 = vrot.slane %v3395, 5
      %v3398 = vsel %vm3054, %v3393, %v3397
      %v3399 = vshrl.u32 %v3044, 16
      %v3401 = vrot.slane %v3399, 4
      %v3402 = vor.u32 %v3401, %v3397
      %v3403 = vrot.slane %v3402, 4
      %v3405 = vshll.u32 %v3045, 16
      %v3407 = vrot.slane %v3405, 5
      %v3408 = vsel %vm3054, %v3403, %v3407
      %v3409 = vshrl.u32 %v3045, 16
      %v3411 = vrot.slane %v3409, 4
      %v3412 = vor.u32 %v3411, %v3407
      %v3413 = vrot.slane %v3412, 4
      %v3415 = vshll.u32 %v3046, 16
      %v3417 = vrot.slane %v3415, 5
      %v3418 = vsel %vm3054, %v3413, %v3417
      %v3419 = vshrl.u32 %v3046, 16
      %v3421 = vrot.slane %v3419, 4
      %v3422 = vor.u32 %v3421, %v3417
      %v3423 = vrot.slane %v3422, 4
      %v3425 = vshll.u32 %v3047, 16
      %v3427 = vrot.slane %v3425, 5
      %v3428 = vsel %vm3054, %v3423, %v3427
      %v3429 = vshrl.u32 %v3047, 16
      %v3431 = vrot.slane %v3429, 4
      %v3432 = vor.u32 %v3431, %v3427
      %v3433 = vrot.slane %v3432, 4
      %v3435 = vshll.u32 %v3048, 16
      %v3437 = vrot.slane %v3435, 5
      %v3438 = vsel %vm3054, %v3433, %v3437
      %v3439 = vshrl.u32 %v3048, 16
      %v3441 = vrot.slane %v3439, 4
      %v3442 = vor.u32 %v3441, %v3437
      %v3443 = vrot.slane %v3442, 4
      %v3445 = vshll.u32 %v3049, 16
      %v3447 = vrot.slane %v3445, 5
      %v3448 = vsel %vm3054, %v3443, %v3447
      %v3449 = vshrl.u32 %v3049, 16
      %v3451 = vrot.slane %v3449, 4
      %v3452 = vor.u32 %v3451, %v3447
      %v3453 = vrot.slane %v3452, 4
      %v3455 = vshll.u32 %v3050, 16
      %v3457 = vrot.slane %v3455, 5
      %v3458 = vsel %vm3054, %v3453, %v3457
      %v3459 = vshrl.u32 %v3050, 16
      %v3461 = vrot.slane %v3459, 4
      %v3462 = vor.u32 %v3461, %v3457
      %v3463 = vrot.slane %v3462, 4
      %v3465 = vshll.u32 %v3051, 16
      %v3467 = vrot.slane %v3465, 5
      %v3468 = vsel %vm3054, %v3463, %v3467
      %3469 = vrot.lane.b32.xlu0 %v3068, 16
      %v3470 = vpop.permute.xlu0 %3469
      %3471 = vrot.lane.b32.xlu0 %v3078, 16
      %v3472 = vpop.permute.xlu0 %3471
      %3473 = vrot.lane.b32.xlu0 %v3088, 16
      %v3474 = vpop.permute.xlu0 %3473
      %3475 = vrot.lane.b32.xlu0 %v3098, 16
      %v3476 = vpop.permute.xlu0 %3475
      %3477 = vrot.lane.b32.xlu0 %v3108, 16
      %v3478 = vpop.permute.xlu0 %3477
      %3479 = vrot.lane.b32.xlu0 %v3118, 16
      %v3480 = vpop.permute.xlu0 %3479
      %3481 = vrot.lane.b32.xlu0 %v3128, 16
      %v3482 = vpop.permute.xlu0 %3481
      %3483 = vrot.lane.b32.xlu0 %v3138, 16
      %v3484 = vpop.permute.xlu0 %3483
      %3485 = vrot.lane.b32.xlu0 %v3148, 16
      %v3486 = vpop.permute.xlu0 %3485
      %3487 = vrot.lane.b32.xlu0 %v3158, 16
      %v3488 = vpop.permute.xlu0 %3487
      %3489 = vrot.lane.b32.xlu0 %v3168, 16
      %v3490 = vpop.permute.xlu0 %3489
      %3491 = vrot.lane.b32.xlu0 %v3178, 16
      %v3492 = vpop.permute.xlu0 %3491
      %3493 = vrot.lane.b32.xlu0 %v3188, 16
      %v3494 = vpop.permute.xlu0 %3493
      %3495 = vrot.lane.b32.xlu0 %v3198, 16
      %v3496 = vpop.permute.xlu0 %3495
      %3497 = vrot.lane.b32.xlu0 %v3208, 16
      %v3498 = vpop.permute.xlu0 %3497
      %3499 = vrot.lane.b32.xlu0 %v3218, 16
      %v3500 = vpop.permute.xlu0 %3499
      %3501 = vrot.lane.b32.xlu0 %v3228, 16
      %v3502 = vpop.permute.xlu0 %3501
      %3503 = vrot.lane.b32.xlu0 %v3238, 16
      %v3504 = vpop.permute.xlu0 %3503
      %3505 = vrot.lane.b32.xlu0 %v3248, 16
      %v3506 = vpop.permute.xlu0 %3505
      %3507 = vrot.lane.b32.xlu0 %v3258, 16
      %v3508 = vpop.permute.xlu0 %3507
      %3509 = vrot.lane.b32.xlu0 %v3268, 16
      %v3510 = vpop.permute.xlu0 %3509
      %3511 = vrot.lane.b32.xlu0 %v3278, 16
      %v3512 = vpop.permute.xlu0 %3511
      %3513 = vrot.lane.b32.xlu0 %v3288, 16
      %v3514 = vpop.permute.xlu0 %3513
      %3515 = vrot.lane.b32.xlu0 %v3298, 16
      %v3516 = vpop.permute.xlu0 %3515
      %3517 = vrot.lane.b32.xlu0 %v3308, 16
      %v3518 = vpop.permute.xlu0 %3517
      %3519 = vrot.lane.b32.xlu0 %v3318, 16
      %v3520 = vpop.permute.xlu0 %3519
      %3521 = vrot.lane.b32.xlu0 %v3328, 16
      %v3522 = vpop.permute.xlu0 %3521
      %3523 = vrot.lane.b32.xlu0 %v3338, 16
      %v3524 = vpop.permute.xlu0 %3523
      %3525 = vrot.lane.b32.xlu0 %v3348, 16
      %v3526 = vpop.permute.xlu0 %3525
      %3527 = vrot.lane.b32.xlu0 %v3358, 16
      %v3528 = vpop.permute.xlu0 %3527
      %3529 = vrot.lane.b32.xlu0 %v3368, 16
      %v3530 = vpop.permute.xlu0 %3529
      %3531 = vrot.lane.b32.xlu0 %v3378, 16
      %v3532 = vpop.permute.xlu0 %3531
      %3533 = vrot.lane.b32.xlu0 %v3388, 16
      %v3534 = vpop.permute.xlu0 %3533
      %3535 = vrot.lane.b32.xlu0 %v3398, 16
      %v3536 = vpop.permute.xlu0 %3535
      %3537 = vrot.lane.b32.xlu0 %v3408, 16
      %v3538 = vpop.permute.xlu0 %3537
      %3539 = vrot.lane.b32.xlu0 %v3418, 16
      %v3540 = vpop.permute.xlu0 %3539
      %3541 = vrot.lane.b32.xlu0 %v3428, 16
      %v3542 = vpop.permute.xlu0 %3541
      %3543 = vrot.lane.b32.xlu0 %v3438, 16
      %v3544 = vpop.permute.xlu0 %3543
      %3545 = vrot.lane.b32.xlu0 %v3448, 16
      %v3546 = vpop.permute.xlu0 %3545
      %3547 = vrot.lane.b32.xlu0 %v3458, 16
      %v3548 = vpop.permute.xlu0 %3547
      %3549 = vrot.lane.b32.xlu0 %v3468, 16
      %v3550 = vpop.permute.xlu0 %3549
      %vm3592 = vcmask 257152
      %3593 = vst.msk [vmem:[#allocation4] sm:$0xf] %vm3592, %v3470
      %3594 = vst.msk [vmem:[#allocation4 + $0x8] sm:$0xf] %vm3592, %v3472
      %3595 = vst.msk [vmem:[#allocation4 + $0x10] sm:$0xf] %vm3592, %v3474
      %3596 = vst.msk [vmem:[#allocation4 + $0x18] sm:$0xf] %vm3592, %v3476
      %3597 = vst.msk [vmem:[#allocation4 + $0x20] sm:$0xf] %vm3592, %v3478
      %3598 = vst.msk [vmem:[#allocation4 + $0x28] sm:$0xf] %vm3592, %v3480
      %3599 = vst.msk [vmem:[#allocation4 + $0x30] sm:$0xf] %vm3592, %v3482
      %3600 = vst.msk [vmem:[#allocation4 + $0x38] sm:$0xf] %vm3592, %v3484
      %3601 = vst.msk [vmem:[#allocation4 + $0x40] sm:$0xf] %vm3592, %v3486
      %3602 = vst.msk [vmem:[#allocation4 + $0x48] sm:$0xf] %vm3592, %v3488
      %3603 = vst.msk [vmem:[#allocation4 + $0x50] sm:$0xf] %vm3592, %v3490
      %3604 = vst.msk [vmem:[#allocation4 + $0x58] sm:$0xf] %vm3592, %v3492
      %3605 = vst.msk [vmem:[#allocation4 + $0x60] sm:$0xf] %vm3592, %v3494
      %3606 = vst.msk [vmem:[#allocation4 + $0x68] sm:$0xf] %vm3592, %v3496
      %3607 = vst.msk [vmem:[#allocation4 + $0x70] sm:$0xf] %vm3592, %v3498
      %3608 = vst.msk [vmem:[#allocation4 + $0x78] sm:$0xf] %vm3592, %v3500
      %3609 = vst.msk [vmem:[#allocation4 + $0x80] sm:$0xf] %vm3592, %v3502
      %3610 = vst.msk [vmem:[#allocation4 + $0x88] sm:$0xf] %vm3592, %v3504
      %3611 = vst.msk [vmem:[#allocation4 + $0x90] sm:$0xf] %vm3592, %v3506
      %3612 = vst.msk [vmem:[#allocation4 + $0x98] sm:$0xf] %vm3592, %v3508
      %3613 = vst.msk [vmem:[#allocation4 + $0xa0] sm:$0xf] %vm3592, %v3510
      %3614 = vst.msk [vmem:[#allocation4 + $0xa8] sm:$0xf] %vm3592, %v3512
      %3615 = vst.msk [vmem:[#allocation4 + $0xb0] sm:$0xf] %vm3592, %v3514
      %3616 = vst.msk [vmem:[#allocation4 + $0xb8] sm:$0xf] %vm3592, %v3516
      %3617 = vst.msk [vmem:[#allocation4 + $0xc0] sm:$0xf] %vm3592, %v3518
      %3618 = vst.msk [vmem:[#allocation4 + $0xc8] sm:$0xf] %vm3592, %v3520
      %3619 = vst.msk [vmem:[#allocation4 + $0xd0] sm:$0xf] %vm3592, %v3522
      %3620 = vst.msk [vmem:[#allocation4 + $0xd8] sm:$0xf] %vm3592, %v3524
      %3621 = vst.msk [vmem:[#allocation4 + $0xe0] sm:$0xf] %vm3592, %v3526
      %3622 = vst.msk [vmem:[#allocation4 + $0xe8] sm:$0xf] %vm3592, %v3528
      %3623 = vst.msk [vmem:[#allocation4 + $0xf0] sm:$0xf] %vm3592, %v3530
      %3624 = vst.msk [vmem:[#allocation4 + $0xf8] sm:$0xf] %vm3592, %v3532
      %3625 = vst.msk [vmem:[#allocation4 + $0x100] sm:$0xf] %vm3592, %v3534
      %3626 = vst.msk [vmem:[#allocation4 + $0x108] sm:$0xf] %vm3592, %v3536
      %3627 = vst.msk [vmem:[#allocation4 + $0x110] sm:$0xf] %vm3592, %v3538
      %3628 = vst.msk [vmem:[#allocation4 + $0x118] sm:$0xf] %vm3592, %v3540
      %3629 = vst.msk [vmem:[#allocation4 + $0x120] sm:$0xf] %vm3592, %v3542
      %3630 = vst.msk [vmem:[#allocation4 + $0x128] sm:$0xf] %vm3592, %v3544
      %3631 = vst.msk [vmem:[#allocation4 + $0x130] sm:$0xf] %vm3592, %v3546
      %3632 = vst.msk [vmem:[#allocation4 + $0x138] sm:$0xf] %vm3592, %v3548
      %3633 = vst.msk [vmem:[#allocation4 + $0x140] sm:$0xf] %vm3592, %v3550
      %v3634 = vld [vmem:[#allocation3] sm:$0xe]
      %v3635 = vld [vmem:[#allocation3 + $0x4] sm:$0xf]
      %v3636 = vld [vmem:[#allocation3 + $0x8] sm:$0xf]
      %v3637 = vld [vmem:[#allocation3 + $0xc] sm:$0xf]
      %v3638 = vld [vmem:[#allocation3 + $0x10] sm:$0xf]
      %v3639 = vld [vmem:[#allocation3 + $0x14] sm:$0xf]
      %v3640 = vld [vmem:[#allocation3 + $0x18] sm:$0xf]
      %v3641 = vld [vmem:[#allocation3 + $0x1c] sm:$0xf]
      %v3642 = vld [vmem:[#allocation3 + $0x20] sm:$0xf]
      %v3643 = vld [vmem:[#allocation3 + $0x24] sm:$0xf]
      %v3644 = vld [vmem:[#allocation3 + $0x28] sm:$0xf]
      %v3645 = vld [vmem:[#allocation3 + $0x2c] sm:$0xf]
      %v3646 = vld [vmem:[#allocation3 + $0x30] sm:$0xf]
      %v3647 = vld [vmem:[#allocation3 + $0x34] sm:$0xf]
      %v3648 = vld [vmem:[#allocation3 + $0x38] sm:$0xf]
      %v3649 = vld [vmem:[#allocation3 + $0x3c] sm:$0xf]
      %v3650 = vld [vmem:[#allocation3 + $0x40] sm:$0xf]
      %v3651 = vld [vmem:[#allocation3 + $0x44] sm:$0xf]
      %v3652 = vld [vmem:[#allocation3 + $0x48] sm:$0xf]
      %v3653 = vld [vmem:[#allocation3 + $0x4c] sm:$0xf]
      %v3654 = vld [vmem:[#allocation3 + $0x50] sm:$0xf]
      %v3655 = vld [vmem:[#allocation3 + $0x54] sm:$0xf]
      %v3656 = vld [vmem:[#allocation3 + $0x58] sm:$0xf]
      %v3657 = vld [vmem:[#allocation3 + $0x5c] sm:$0xf]
      %v3658 = vld [vmem:[#allocation3 + $0x60] sm:$0xf]
      %v3659 = vld [vmem:[#allocation3 + $0x64] sm:$0xf]
      %v3660 = vld [vmem:[#allocation3 + $0x68] sm:$0xf]
      %v3661 = vld [vmem:[#allocation3 + $0x6c] sm:$0xf]
      %v3662 = vld [vmem:[#allocation3 + $0x70] sm:$0xf]
      %v3663 = vld [vmem:[#allocation3 + $0x74] sm:$0xf]
      %v3664 = vld [vmem:[#allocation3 + $0x78] sm:$0xf]
      %v3665 = vld [vmem:[#allocation3 + $0x7c] sm:$0xf]
      %v3666 = vld [vmem:[#allocation3 + $0x80] sm:$0xf]
      %v3667 = vld [vmem:[#allocation3 + $0x84] sm:$0xf]
      %v3668 = vld [vmem:[#allocation3 + $0x88] sm:$0xf]
      %v3669 = vld [vmem:[#allocation3 + $0x8c] sm:$0xf]
      %v3670 = vld [vmem:[#allocation3 + $0x90] sm:$0xf]
      %v3671 = vld [vmem:[#allocation3 + $0x94] sm:$0xf]
      %v3672 = vld [vmem:[#allocation3 + $0x98] sm:$0xf]
      %v3673 = vld [vmem:[#allocation3 + $0x9c] sm:$0xf]
      %v3674 = vld [vmem:[#allocation3 + $0xa0] sm:$0xf]
      %v3675 = vld [vmem:[#allocation3 + $0xa4] sm:$0x1]
      %vm3718 = vcmask 1042432
      %vm3719 = vcmask 1046532
      %vm3720 = vmor %vm3718, %vm3719
      %v3721 = vrot.slane %v3634, 5
      %v3722 = vrot.slane %v3721, 4
      %v3723 = vrot.slane %v3635, 5
      %v3724 = vsel %vm3720, %v3722, %v3723
      %v3725 = vrot.slane %v3723, 4
      %v3726 = vrot.slane %v3636, 5
      %v3727 = vsel %vm3720, %v3725, %v3726
      %v3728 = vrot.slane %v3726, 4
      %v3729 = vrot.slane %v3637, 5
      %v3730 = vsel %vm3720, %v3728, %v3729
      %v3731 = vrot.slane %v3729, 4
      %v3732 = vrot.slane %v3638, 5
      %v3733 = vsel %vm3720, %v3731, %v3732
      %v3734 = vrot.slane %v3732, 4
      %v3735 = vrot.slane %v3639, 5
      %v3736 = vsel %vm3720, %v3734, %v3735
      %v3737 = vrot.slane %v3735, 4
      %v3738 = vrot.slane %v3640, 5
      %v3739 = vsel %vm3720, %v3737, %v3738
      %v3740 = vrot.slane %v3738, 4
      %v3741 = vrot.slane %v3641, 5
      %v3742 = vsel %vm3720, %v3740, %v3741
      %v3743 = vrot.slane %v3741, 4
      %v3744 = vrot.slane %v3642, 5
      %v3745 = vsel %vm3720, %v3743, %v3744
      %v3746 = vrot.slane %v3744, 4
      %v3747 = vrot.slane %v3643, 5
      %v3748 = vsel %vm3720, %v3746, %v3747
      %v3749 = vrot.slane %v3747, 4
      %v3750 = vrot.slane %v3644, 5
      %v3751 = vsel %vm3720, %v3749, %v3750
      %v3752 = vrot.slane %v3750, 4
      %v3753 = vrot.slane %v3645, 5
      %v3754 = vsel %vm3720, %v3752, %v3753
      %v3755 = vrot.slane %v3753, 4
      %v3756 = vrot.slane %v3646, 5
      %v3757 = vsel %vm3720, %v3755, %v3756
      %v3758 = vrot.slane %v3756, 4
      %v3759 = vrot.slane %v3647, 5
      %v3760 = vsel %vm3720, %v3758, %v3759
      %v3761 = vrot.slane %v3759, 4
      %v3762 = vrot.slane %v3648, 5
      %v3763 = vsel %vm3720, %v3761, %v3762
      %v3764 = vrot.slane %v3762, 4
      %v3765 = vrot.slane %v3649, 5
      %v3766 = vsel %vm3720, %v3764, %v3765
      %v3767 = vrot.slane %v3765, 4
      %v3768 = vrot.slane %v3650, 5
      %v3769 = vsel %vm3720, %v3767, %v3768
      %v3770 = vrot.slane %v3768, 4
      %v3771 = vrot.slane %v3651, 5
      %v3772 = vsel %vm3720, %v3770, %v3771
      %v3773 = vrot.slane %v3771, 4
      %v3774 = vrot.slane %v3652, 5
      %v3775 = vsel %vm3720, %v3773, %v3774
      %v3776 = vrot.slane %v3774, 4
      %v3777 = vrot.slane %v3653, 5
      %v3778 = vsel %vm3720, %v3776, %v3777
      %v3779 = vrot.slane %v3777, 4
      %v3780 = vrot.slane %v3654, 5
      %v3781 = vsel %vm3720, %v3779, %v3780
      %v3782 = vrot.slane %v3780, 4
      %v3783 = vrot.slane %v3655, 5
      %v3784 = vsel %vm3720, %v3782, %v3783
      %v3785 = vrot.slane %v3783, 4
      %v3786 = vrot.slane %v3656, 5
      %v3787 = vsel %vm3720, %v3785, %v3786
      %v3788 = vrot.slane %v3786, 4
      %v3789 = vrot.slane %v3657, 5
      %v3790 = vsel %vm3720, %v3788, %v3789
      %v3791 = vrot.slane %v3789, 4
      %v3792 = vrot.slane %v3658, 5
      %v3793 = vsel %vm3720, %v3791, %v3792
      %v3794 = vrot.slane %v3792, 4
      %v3795 = vrot.slane %v3659, 5
      %v3796 = vsel %vm3720, %v3794, %v3795
      %v3797 = vrot.slane %v3795, 4
      %v3798 = vrot.slane %v3660, 5
      %v3799 = vsel %vm3720, %v3797, %v3798
      %v3800 = vrot.slane %v3798, 4
      %v3801 = vrot.slane %v3661, 5
      %v3802 = vsel %vm3720, %v3800, %v3801
      %v3803 = vrot.slane %v3801, 4
      %v3804 = vrot.slane %v3662, 5
      %v3805 = vsel %vm3720, %v3803, %v3804
      %v3806 = vrot.slane %v3804, 4
      %v3807 = vrot.slane %v3663, 5
      %v3808 = vsel %vm3720, %v3806, %v3807
      %v3809 = vrot.slane %v3807, 4
      %v3810 = vrot.slane %v3664, 5
      %v3811 = vsel %vm3720, %v3809, %v3810
      %v3812 = vrot.slane %v3810, 4
      %v3813 = vrot.slane %v3665, 5
      %v3814 = vsel %vm3720, %v3812, %v3813
      %v3815 = vrot.slane %v3813, 4
      %v3816 = vrot.slane %v3666, 5
      %v3817 = vsel %vm3720, %v3815, %v3816
      %v3818 = vrot.slane %v3816, 4
      %v3819 = vrot.slane %v3667, 5
      %v3820 = vsel %vm3720, %v3818, %v3819
      %v3821 = vrot.slane %v3819, 4
      %v3822 = vrot.slane %v3668, 5
      %v3823 = vsel %vm3720, %v3821, %v3822
      %v3824 = vrot.slane %v3822, 4
      %v3825 = vrot.slane %v3669, 5
      %v3826 = vsel %vm3720, %v3824, %v3825
      %v3827 = vrot.slane %v3825, 4
      %v3828 = vrot.slane %v3670, 5
      %v3829 = vsel %vm3720, %v3827, %v3828
      %v3830 = vrot.slane %v3828, 4
      %v3831 = vrot.slane %v3671, 5
      %v3832 = vsel %vm3720, %v3830, %v3831
      %v3833 = vrot.slane %v3831, 4
      %v3834 = vrot.slane %v3672, 5
      %v3835 = vsel %vm3720, %v3833, %v3834
      %v3836 = vrot.slane %v3834, 4
      %v3837 = vrot.slane %v3673, 5
      %v3838 = vsel %vm3720, %v3836, %v3837
      %v3839 = vrot.slane %v3837, 4
      %v3840 = vrot.slane %v3674, 5
      %v3841 = vsel %vm3720, %v3839, %v3840
      %v3842 = vrot.slane %v3840, 4
      %v3843 = vrot.slane %v3675, 5
      %v3844 = vsel %vm3720, %v3842, %v3843
      %3845 = vrot.lane.b32.xlu0 %v3724, 32
      %v3846 = vpop.permute.xlu0 %3845
      %3847 = vrot.lane.b32.xlu0 %v3727, 32
      %v3848 = vpop.permute.xlu0 %3847
      %3849 = vrot.lane.b32.xlu0 %v3730, 32
      %v3850 = vpop.permute.xlu0 %3849
      %3851 = vrot.lane.b32.xlu0 %v3733, 32
      %v3852 = vpop.permute.xlu0 %3851
      %3853 = vrot.lane.b32.xlu0 %v3736, 32
      %v3854 = vpop.permute.xlu0 %3853
      %3855 = vrot.lane.b32.xlu0 %v3739, 32
      %v3856 = vpop.permute.xlu0 %3855
      %3857 = vrot.lane.b32.xlu0 %v3742, 32
      %v3858 = vpop.permute.xlu0 %3857
      %3859 = vrot.lane.b32.xlu0 %v3745, 32
      %v3860 = vpop.permute.xlu0 %3859
      %3861 = vrot.lane.b32.xlu0 %v3748, 32
      %v3862 = vpop.permute.xlu0 %3861
      %3863 = vrot.lane.b32.xlu0 %v3751, 32
      %v3864 = vpop.permute.xlu0 %3863
      %3865 = vrot.lane.b32.xlu0 %v3754, 32
      %v3866 = vpop.permute.xlu0 %3865
      %3867 = vrot.lane.b32.xlu0 %v3757, 32
      %v3868 = vpop.permute.xlu0 %3867
      %3869 = vrot.lane.b32.xlu0 %v3760, 32
      %v3870 = vpop.permute.xlu0 %3869
      %3871 = vrot.lane.b32.xlu0 %v3763, 32
      %v3872 = vpop.permute.xlu0 %3871
      %3873 = vrot.lane.b32.xlu0 %v3766, 32
      %v3874 = vpop.permute.xlu0 %3873
      %3875 = vrot.lane.b32.xlu0 %v3769, 32
      %v3876 = vpop.permute.xlu0 %3875
      %3877 = vrot.lane.b32.xlu0 %v3772, 32
      %v3878 = vpop.permute.xlu0 %3877
      %3879 = vrot.lane.b32.xlu0 %v3775, 32
      %v3880 = vpop.permute.xlu0 %3879
      %3881 = vrot.lane.b32.xlu0 %v3778, 32
      %v3882 = vpop.permute.xlu0 %3881
      %3883 = vrot.lane.b32.xlu0 %v3781, 32
      %v3884 = vpop.permute.xlu0 %3883
      %3885 = vrot.lane.b32.xlu0 %v3784, 32
      %v3886 = vpop.permute.xlu0 %3885
      %3887 = vrot.lane.b32.xlu0 %v3787, 32
      %v3888 = vpop.permute.xlu0 %3887
      %3889 = vrot.lane.b32.xlu0 %v3790, 32
      %v3890 = vpop.permute.xlu0 %3889
      %3891 = vrot.lane.b32.xlu0 %v3793, 32
      %v3892 = vpop.permute.xlu0 %3891
      %3893 = vrot.lane.b32.xlu0 %v3796, 32
      %v3894 = vpop.permute.xlu0 %3893
      %3895 = vrot.lane.b32.xlu0 %v3799, 32
      %v3896 = vpop.permute.xlu0 %3895
      %3897 = vrot.lane.b32.xlu0 %v3802, 32
      %v3898 = vpop.permute.xlu0 %3897
      %3899 = vrot.lane.b32.xlu0 %v3805, 32
      %v3900 = vpop.permute.xlu0 %3899
      %3901 = vrot.lane.b32.xlu0 %v3808, 32
      %v3902 = vpop.permute.xlu0 %3901
      %3903 = vrot.lane.b32.xlu0 %v3811, 32
      %v3904 = vpop.permute.xlu0 %3903
      %3905 = vrot.lane.b32.xlu0 %v3814, 32
      %v3906 = vpop.permute.xlu0 %3905
      %3907 = vrot.lane.b32.xlu0 %v3817, 32
      %v3908 = vpop.permute.xlu0 %3907
      %3909 = vrot.lane.b32.xlu0 %v3820, 32
      %v3910 = vpop.permute.xlu0 %3909
      %3911 = vrot.lane.b32.xlu0 %v3823, 32
      %v3912 = vpop.permute.xlu0 %3911
      %3913 = vrot.lane.b32.xlu0 %v3826, 32
      %v3914 = vpop.permute.xlu0 %3913
      %3915 = vrot.lane.b32.xlu0 %v3829, 32
      %v3916 = vpop.permute.xlu0 %3915
      %3917 = vrot.lane.b32.xlu0 %v3832, 32
      %v3918 = vpop.permute.xlu0 %3917
      %3919 = vrot.lane.b32.xlu0 %v3835, 32
      %v3920 = vpop.permute.xlu0 %3919
      %3921 = vrot.lane.b32.xlu0 %v3838, 32
      %v3922 = vpop.permute.xlu0 %3921
      %3923 = vrot.lane.b32.xlu0 %v3841, 32
      %v3924 = vpop.permute.xlu0 %3923
      %3925 = vrot.lane.b32.xlu0 %v3844, 32
      %v3926 = vpop.permute.xlu0 %3925
      %vm3968 = vcmask 388352
      %3969 = vst.msk [vmem:[#allocation4] sm:$0xf] %vm3968, %v3846
      %3970 = vst.msk [vmem:[#allocation4 + $0x8] sm:$0xf] %vm3968, %v3848
      %3971 = vst.msk [vmem:[#allocation4 + $0x10] sm:$0xf] %vm3968, %v3850
      %3972 = vst.msk [vmem:[#allocation4 + $0x18] sm:$0xf] %vm3968, %v3852
      %3973 = vst.msk [vmem:[#allocation4 + $0x20] sm:$0xf] %vm3968, %v3854
      %3974 = vst.msk [vmem:[#allocation4 + $0x28] sm:$0xf] %vm3968, %v3856
      %3975 = vst.msk [vmem:[#allocation4 + $0x30] sm:$0xf] %vm3968, %v3858
      %3976 = vst.msk [vmem:[#allocation4 + $0x38] sm:$0xf] %vm3968, %v3860
      %3977 = vst.msk [vmem:[#allocation4 + $0x40] sm:$0xf] %vm3968, %v3862
      %3978 = vst.msk [vmem:[#allocation4 + $0x48] sm:$0xf] %vm3968, %v3864
      %3979 = vst.msk [vmem:[#allocation4 + $0x50] sm:$0xf] %vm3968, %v3866
      %3980 = vst.msk [vmem:[#allocation4 + $0x58] sm:$0xf] %vm3968, %v3868
      %3981 = vst.msk [vmem:[#allocation4 + $0x60] sm:$0xf] %vm3968, %v3870
      %3982 = vst.msk [vmem:[#allocation4 + $0x68] sm:$0xf] %vm3968, %v3872
      %3983 = vst.msk [vmem:[#allocation4 + $0x70] sm:$0xf] %vm3968, %v3874
      %3984 = vst.msk [vmem:[#allocation4 + $0x78] sm:$0xf] %vm3968, %v3876
      %3985 = vst.msk [vmem:[#allocation4 + $0x80] sm:$0xf] %vm3968, %v3878
      %3986 = vst.msk [vmem:[#allocation4 + $0x88] sm:$0xf] %vm3968, %v3880
      %3987 = vst.msk [vmem:[#allocation4 + $0x90] sm:$0xf] %vm3968, %v3882
      %3988 = vst.msk [vmem:[#allocation4 + $0x98] sm:$0xf] %vm3968, %v3884
      %3989 = vst.msk [vmem:[#allocation4 + $0xa0] sm:$0xf] %vm3968, %v3886
      %3990 = vst.msk [vmem:[#allocation4 + $0xa8] sm:$0xf] %vm3968, %v3888
      %3991 = vst.msk [vmem:[#allocation4 + $0xb0] sm:$0xf] %vm3968, %v3890
      %3992 = vst.msk [vmem:[#allocation4 + $0xb8] sm:$0xf] %vm3968, %v3892
      %3993 = vst.msk [vmem:[#allocation4 + $0xc0] sm:$0xf] %vm3968, %v3894
      %3994 = vst.msk [vmem:[#allocation4 + $0xc8] sm:$0xf] %vm3968, %v3896
      %3995 = vst.msk [vmem:[#allocation4 + $0xd0] sm:$0xf] %vm3968, %v3898
      %3996 = vst.msk [vmem:[#allocation4 + $0xd8] sm:$0xf] %vm3968, %v3900
      %3997 = vst.msk [vmem:[#allocation4 + $0xe0] sm:$0xf] %vm3968, %v3902
      %3998 = vst.msk [vmem:[#allocation4 + $0xe8] sm:$0xf] %vm3968, %v3904
      %3999 = vst.msk [vmem:[#allocation4 + $0xf0] sm:$0xf] %vm3968, %v3906
      %4000 = vst.msk [vmem:[#allocation4 + $0xf8] sm:$0xf] %vm3968, %v3908
      %4001 = vst.msk [vmem:[#allocation4 + $0x100] sm:$0xf] %vm3968, %v3910
      %4002 = vst.msk [vmem:[#allocation4 + $0x108] sm:$0xf] %vm3968, %v3912
      %4003 = vst.msk [vmem:[#allocation4 + $0x110] sm:$0xf] %vm3968, %v3914
      %4004 = vst.msk [vmem:[#allocation4 + $0x118] sm:$0xf] %vm3968, %v3916
      %4005 = vst.msk [vmem:[#allocation4 + $0x120] sm:$0xf] %vm3968, %v3918
      %4006 = vst.msk [vmem:[#allocation4 + $0x128] sm:$0xf] %vm3968, %v3920
      %4007 = vst.msk [vmem:[#allocation4 + $0x130] sm:$0xf] %vm3968, %v3922
      %4008 = vst.msk [vmem:[#allocation4 + $0x138] sm:$0xf] %vm3968, %v3924
      %4009 = vst.msk [vmem:[#allocation4 + $0x140] sm:$0xf] %vm3968, %v3926
      %v4010 = vld [vmem:[#allocation3 + $0x8] sm:$0xe]
      %v4011 = vld [vmem:[#allocation3 + $0xc] sm:$0xf]
      %v4012 = vld [vmem:[#allocation3 + $0x10] sm:$0xf]
      %v4013 = vld [vmem:[#allocation3 + $0x14] sm:$0xf]
      %v4014 = vld [vmem:[#allocation3 + $0x18] sm:$0xf]
      %v4015 = vld [vmem:[#allocation3 + $0x1c] sm:$0xf]
      %v4016 = vld [vmem:[#allocation3 + $0x20] sm:$0xf]
      %v4017 = vld [vmem:[#allocation3 + $0x24] sm:$0xf]
      %v4018 = vld [vmem:[#allocation3 + $0x28] sm:$0xf]
      %v4019 = vld [vmem:[#allocation3 + $0x2c] sm:$0xf]
      %v4020 = vld [vmem:[#allocation3 + $0x30] sm:$0xf]
      %v4021 = vld [vmem:[#allocation3 + $0x34] sm:$0xf]
      %v4022 = vld [vmem:[#allocation3 + $0x38] sm:$0xf]
      %v4023 = vld [vmem:[#allocation3 + $0x3c] sm:$0xf]
      %v4024 = vld [vmem:[#allocation3 + $0x40] sm:$0xf]
      %v4025 = vld [vmem:[#allocation3 + $0x44] sm:$0xf]
      %v4026 = vld [vmem:[#allocation3 + $0x48] sm:$0xf]
      %v4027 = vld [vmem:[#allocation3 + $0x4c] sm:$0xf]
      %v4028 = vld [vmem:[#allocation3 + $0x50] sm:$0xf]
      %v4029 = vld [vmem:[#allocation3 + $0x54] sm:$0xf]
      %v4030 = vld [vmem:[#allocation3 + $0x58] sm:$0xf]
      %v4031 = vld [vmem:[#allocation3 + $0x5c] sm:$0xf]
      %v4032 = vld [vmem:[#allocation3 + $0x60] sm:$0xf]
      %v4033 = vld [vmem:[#allocation3 + $0x64] sm:$0xf]
      %v4034 = vld [vmem:[#allocation3 + $0x68] sm:$0xf]
      %v4035 = vld [vmem:[#allocation3 + $0x6c] sm:$0xf]
      %v4036 = vld [vmem:[#allocation3 + $0x70] sm:$0xf]
      %v4037 = vld [vmem:[#allocation3 + $0x74] sm:$0xf]
      %v4038 = vld [vmem:[#allocation3 + $0x78] sm:$0xf]
      %v4039 = vld [vmem:[#allocation3 + $0x7c] sm:$0xf]
      %v4040 = vld [vmem:[#allocation3 + $0x80] sm:$0xf]
      %v4041 = vld [vmem:[#allocation3 + $0x84] sm:$0xf]
      %v4042 = vld [vmem:[#allocation3 + $0x88] sm:$0xf]
      %v4043 = vld [vmem:[#allocation3 + $0x8c] sm:$0xf]
      %v4044 = vld [vmem:[#allocation3 + $0x90] sm:$0xf]
      %v4045 = vld [vmem:[#allocation3 + $0x94] sm:$0xf]
      %v4046 = vld [vmem:[#allocation3 + $0x98] sm:$0xf]
      %v4047 = vld [vmem:[#allocation3 + $0x9c] sm:$0xf]
      %v4048 = vld [vmem:[#allocation3 + $0xa0] sm:$0xf]
      %v4049 = vld [vmem:[#allocation3 + $0xa4] sm:$0xf]
      %v4050 = vld [vmem:[#allocation3 + $0xa8] sm:$0xf]
      %v4051 = vld [vmem:[#allocation3 + $0xac] sm:$0x1]
      %v4094 = vrot.slane %v4010, 5
      %v4095 = vrot.slane %v4094, 4
      %v4096 = vrot.slane %v4011, 5
      %v4097 = vsel %vm3720, %v4095, %v4096
      %v4098 = vrot.slane %v4096, 4
      %v4099 = vrot.slane %v4012, 5
      %v4100 = vsel %vm3720, %v4098, %v4099
      %v4101 = vrot.slane %v4099, 4
      %v4102 = vrot.slane %v4013, 5
      %v4103 = vsel %vm3720, %v4101, %v4102
      %v4104 = vrot.slane %v4102, 4
      %v4105 = vrot.slane %v4014, 5
      %v4106 = vsel %vm3720, %v4104, %v4105
      %v4107 = vrot.slane %v4105, 4
      %v4108 = vrot.slane %v4015, 5
      %v4109 = vsel %vm3720, %v4107, %v4108
      %v4110 = vrot.slane %v4108, 4
      %v4111 = vrot.slane %v4016, 5
      %v4112 = vsel %vm3720, %v4110, %v4111
      %v4113 = vrot.slane %v4111, 4
      %v4114 = vrot.slane %v4017, 5
      %v4115 = vsel %vm3720, %v4113, %v4114
      %v4116 = vrot.slane %v4114, 4
      %v4117 = vrot.slane %v4018, 5
      %v4118 = vsel %vm3720, %v4116, %v4117
      %v4119 = vrot.slane %v4117, 4
      %v4120 = vrot.slane %v4019, 5
      %v4121 = vsel %vm3720, %v4119, %v4120
      %v4122 = vrot.slane %v4120, 4
      %v4123 = vrot.slane %v4020, 5
      %v4124 = vsel %vm3720, %v4122, %v4123
      %v4125 = vrot.slane %v4123, 4
      %v4126 = vrot.slane %v4021, 5
      %v4127 = vsel %vm3720, %v4125, %v4126
      %v4128 = vrot.slane %v4126, 4
      %v4129 = vrot.slane %v4022, 5
      %v4130 = vsel %vm3720, %v4128, %v4129
      %v4131 = vrot.slane %v4129, 4
      %v4132 = vrot.slane %v4023, 5
      %v4133 = vsel %vm3720, %v4131, %v4132
      %v4134 = vrot.slane %v4132, 4
      %v4135 = vrot.slane %v4024, 5
      %v4136 = vsel %vm3720, %v4134, %v4135
      %v4137 = vrot.slane %v4135, 4
      %v4138 = vrot.slane %v4025, 5
      %v4139 = vsel %vm3720, %v4137, %v4138
      %v4140 = vrot.slane %v4138, 4
      %v4141 = vrot.slane %v4026, 5
      %v4142 = vsel %vm3720, %v4140, %v4141
      %v4143 = vrot.slane %v4141, 4
      %v4144 = vrot.slane %v4027, 5
      %v4145 = vsel %vm3720, %v4143, %v4144
      %v4146 = vrot.slane %v4144, 4
      %v4147 = vrot.slane %v4028, 5
      %v4148 = vsel %vm3720, %v4146, %v4147
      %v4149 = vrot.slane %v4147, 4
      %v4150 = vrot.slane %v4029, 5
      %v4151 = vsel %vm3720, %v4149, %v4150
      %v4152 = vrot.slane %v4150, 4
      %v4153 = vrot.slane %v4030, 5
      %v4154 = vsel %vm3720, %v4152, %v4153
      %v4155 = vrot.slane %v4153, 4
      %v4156 = vrot.slane %v4031, 5
      %v4157 = vsel %vm3720, %v4155, %v4156
      %v4158 = vrot.slane %v4156, 4
      %v4159 = vrot.slane %v4032, 5
      %v4160 = vsel %vm3720, %v4158, %v4159
      %v4161 = vrot.slane %v4159, 4
      %v4162 = vrot.slane %v4033, 5
      %v4163 = vsel %vm3720, %v4161, %v4162
      %v4164 = vrot.slane %v4162, 4
      %v4165 = vrot.slane %v4034, 5
      %v4166 = vsel %vm3720, %v4164, %v4165
      %v4167 = vrot.slane %v4165, 4
      %v4168 = vrot.slane %v4035, 5
      %v4169 = vsel %vm3720, %v4167, %v4168
      %v4170 = vrot.slane %v4168, 4
      %v4171 = vrot.slane %v4036, 5
      %v4172 = vsel %vm3720, %v4170, %v4171
      %v4173 = vrot.slane %v4171, 4
      %v4174 = vrot.slane %v4037, 5
      %v4175 = vsel %vm3720, %v4173, %v4174
      %v4176 = vrot.slane %v4174, 4
      %v4177 = vrot.slane %v4038, 5
      %v4178 = vsel %vm3720, %v4176, %v4177
      %v4179 = vrot.slane %v4177, 4
      %v4180 = vrot.slane %v4039, 5
      %v4181 = vsel %vm3720, %v4179, %v4180
      %v4182 = vrot.slane %v4180, 4
      %v4183 = vrot.slane %v4040, 5
      %v4184 = vsel %vm3720, %v4182, %v4183
      %v4185 = vrot.slane %v4183, 4
      %v4186 = vrot.slane %v4041, 5
      %v4187 = vsel %vm3720, %v4185, %v4186
      %v4188 = vrot.slane %v4186, 4
      %v4189 = vrot.slane %v4042, 5
      %v4190 = vsel %vm3720, %v4188, %v4189
      %v4191 = vrot.slane %v4189, 4
      %v4192 = vrot.slane %v4043, 5
      %v4193 = vsel %vm3720, %v4191, %v4192
      %v4194 = vrot.slane %v4192, 4
      %v4195 = vrot.slane %v4044, 5
      %v4196 = vsel %vm3720, %v4194, %v4195
      %v4197 = vrot.slane %v4195, 4
      %v4198 = vrot.slane %v4045, 5
      %v4199 = vsel %vm3720, %v4197, %v4198
      %v4200 = vrot.slane %v4198, 4
      %v4201 = vrot.slane %v4046, 5
      %v4202 = vsel %vm3720, %v4200, %v4201
      %v4203 = vrot.slane %v4201, 4
      %v4204 = vrot.slane %v4047, 5
      %v4205 = vsel %vm3720, %v4203, %v4204
      %v4206 = vrot.slane %v4204, 4
      %v4207 = vrot.slane %v4048, 5
      %v4208 = vsel %vm3720, %v4206, %v4207
      %v4209 = vrot.slane %v4207, 4
      %v4210 = vrot.slane %v4049, 5
      %v4211 = vsel %vm3720, %v4209, %v4210
      %v4212 = vrot.slane %v4210, 4
      %v4213 = vrot.slane %v4050, 5
      %v4214 = vsel %vm3720, %v4212, %v4213
      %v4215 = vrot.slane %v4213, 4
      %v4216 = vrot.slane %v4051, 5
      %v4217 = vsel %vm3720, %v4215, %v4216
      %4218 = vrot.lane.b32.xlu0 %v4097, 48
      %v4219 = vpop.permute.xlu0 %4218
      %4220 = vrot.lane.b32.xlu0 %v4100, 48
      %v4221 = vpop.permute.xlu0 %4220
      %4222 = vrot.lane.b32.xlu0 %v4103, 48
      %v4223 = vpop.permute.xlu0 %4222
      %4224 = vrot.lane.b32.xlu0 %v4106, 48
      %v4225 = vpop.permute.xlu0 %4224
      %4226 = vrot.lane.b32.xlu0 %v4109, 48
      %v4227 = vpop.permute.xlu0 %4226
      %4228 = vrot.lane.b32.xlu0 %v4112, 48
      %v4229 = vpop.permute.xlu0 %4228
      %4230 = vrot.lane.b32.xlu0 %v4115, 48
      %v4231 = vpop.permute.xlu0 %4230
      %4232 = vrot.lane.b32.xlu0 %v4118, 48
      %v4233 = vpop.permute.xlu0 %4232
      %4234 = vrot.lane.b32.xlu0 %v4121, 48
      %v4235 = vpop.permute.xlu0 %4234
      %4236 = vrot.lane.b32.xlu0 %v4124, 48
      %v4237 = vpop.permute.xlu0 %4236
      %4238 = vrot.lane.b32.xlu0 %v4127, 48
      %v4239 = vpop.permute.xlu0 %4238
      %4240 = vrot.lane.b32.xlu0 %v4130, 48
      %v4241 = vpop.permute.xlu0 %4240
      %4242 = vrot.lane.b32.xlu0 %v4133, 48
      %v4243 = vpop.permute.xlu0 %4242
      %4244 = vrot.lane.b32.xlu0 %v4136, 48
      %v4245 = vpop.permute.xlu0 %4244
      %4246 = vrot.lane.b32.xlu0 %v4139, 48
      %v4247 = vpop.permute.xlu0 %4246
      %4248 = vrot.lane.b32.xlu0 %v4142, 48
      %v4249 = vpop.permute.xlu0 %4248
      %4250 = vrot.lane.b32.xlu0 %v4145, 48
      %v4251 = vpop.permute.xlu0 %4250
      %4252 = vrot.lane.b32.xlu0 %v4148, 48
      %v4253 = vpop.permute.xlu0 %4252
      %4254 = vrot.lane.b32.xlu0 %v4151, 48
      %v4255 = vpop.permute.xlu0 %4254
      %4256 = vrot.lane.b32.xlu0 %v4154, 48
      %v4257 = vpop.permute.xlu0 %4256
      %4258 = vrot.lane.b32.xlu0 %v4157, 48
      %v4259 = vpop.permute.xlu0 %4258
      %4260 = vrot.lane.b32.xlu0 %v4160, 48
      %v4261 = vpop.permute.xlu0 %4260
      %4262 = vrot.lane.b32.xlu0 %v4163, 48
      %v4263 = vpop.permute.xlu0 %4262
      %4264 = vrot.lane.b32.xlu0 %v4166, 48
      %v4265 = vpop.permute.xlu0 %4264
      %4266 = vrot.lane.b32.xlu0 %v4169, 48
      %v4267 = vpop.permute.xlu0 %4266
      %4268 = vrot.lane.b32.xlu0 %v4172, 48
      %v4269 = vpop.permute.xlu0 %4268
      %4270 = vrot.lane.b32.xlu0 %v4175, 48
      %v4271 = vpop.permute.xlu0 %4270
      %4272 = vrot.lane.b32.xlu0 %v4178, 48
      %v4273 = vpop.permute.xlu0 %4272
      %4274 = vrot.lane.b32.xlu0 %v4181, 48
      %v4275 = vpop.permute.xlu0 %4274
      %4276 = vrot.lane.b32.xlu0 %v4184, 48
      %v4277 = vpop.permute.xlu0 %4276
      %4278 = vrot.lane.b32.xlu0 %v4187, 48
      %v4279 = vpop.permute.xlu0 %4278
      %4280 = vrot.lane.b32.xlu0 %v4190, 48
      %v4281 = vpop.permute.xlu0 %4280
      %4282 = vrot.lane.b32.xlu0 %v4193, 48
      %v4283 = vpop.permute.xlu0 %4282
      %4284 = vrot.lane.b32.xlu0 %v4196, 48
      %v4285 = vpop.permute.xlu0 %4284
      %4286 = vrot.lane.b32.xlu0 %v4199, 48
      %v4287 = vpop.permute.xlu0 %4286
      %4288 = vrot.lane.b32.xlu0 %v4202, 48
      %v4289 = vpop.permute.xlu0 %4288
      %4290 = vrot.lane.b32.xlu0 %v4205, 48
      %v4291 = vpop.permute.xlu0 %4290
      %4292 = vrot.lane.b32.xlu0 %v4208, 48
      %v4293 = vpop.permute.xlu0 %4292
      %4294 = vrot.lane.b32.xlu0 %v4211, 48
      %v4295 = vpop.permute.xlu0 %4294
      %4296 = vrot.lane.b32.xlu0 %v4214, 48
      %v4297 = vpop.permute.xlu0 %4296
      %4298 = vrot.lane.b32.xlu0 %v4217, 48
      %v4299 = vpop.permute.xlu0 %4298
      %vm4341 = vcmask 519552
      %4342 = vst.msk [vmem:[#allocation4] sm:$0xf] %vm4341, %v4219
      %4343 = vst.msk [vmem:[#allocation4 + $0x8] sm:$0xf] %vm4341, %v4221
      %4344 = vst.msk [vmem:[#allocation4 + $0x10] sm:$0xf] %vm4341, %v4223
      %4345 = vst.msk [vmem:[#allocation4 + $0x18] sm:$0xf] %vm4341, %v4225
      %4346 = vst.msk [vmem:[#allocation4 + $0x20] sm:$0xf] %vm4341, %v4227
      %4347 = vst.msk [vmem:[#allocation4 + $0x28] sm:$0xf] %vm4341, %v4229
      %4348 = vst.msk [vmem:[#allocation4 + $0x30] sm:$0xf] %vm4341, %v4231
      %4349 = vst.msk [vmem:[#allocation4 + $0x38] sm:$0xf] %vm4341, %v4233
      %4350 = vst.msk [vmem:[#allocation4 + $0x40] sm:$0xf] %vm4341, %v4235
      %4351 = vst.msk [vmem:[#allocation4 + $0x48] sm:$0xf] %vm4341, %v4237
      %4352 = vst.msk [vmem:[#allocation4 + $0x50] sm:$0xf] %vm4341, %v4239
      %4353 = vst.msk [vmem:[#allocation4 + $0x58] sm:$0xf] %vm4341, %v4241
      %4354 = vst.msk [vmem:[#allocation4 + $0x60] sm:$0xf] %vm4341, %v4243
      %4355 = vst.msk [vmem:[#allocation4 + $0x68] sm:$0xf] %vm4341, %v4245
      %4356 = vst.msk [vmem:[#allocation4 + $0x70] sm:$0xf] %vm4341, %v4247
      %4357 = vst.msk [vmem:[#allocation4 + $0x78] sm:$0xf] %vm4341, %v4249
      %4358 = vst.msk [vmem:[#allocation4 + $0x80] sm:$0xf] %vm4341, %v4251
      %4359 = vst.msk [vmem:[#allocation4 + $0x88] sm:$0xf] %vm4341, %v4253
      %4360 = vst.msk [vmem:[#allocation4 + $0x90] sm:$0xf] %vm4341, %v4255
      %4361 = vst.msk [vmem:[#allocation4 + $0x98] sm:$0xf] %vm4341, %v4257
      %4362 = vst.msk [vmem:[#allocation4 + $0xa0] sm:$0xf] %vm4341, %v4259
      %4363 = vst.msk [vmem:[#allocation4 + $0xa8] sm:$0xf] %vm4341, %v4261
      %4364 = vst.msk [vmem:[#allocation4 + $0xb0] sm:$0xf] %vm4341, %v4263
      %4365 = vst.msk [vmem:[#allocation4 + $0xb8] sm:$0xf] %vm4341, %v4265
      %4366 = vst.msk [vmem:[#allocation4 + $0xc0] sm:$0xf] %vm4341, %v4267
      %4367 = vst.msk [vmem:[#allocation4 + $0xc8] sm:$0xf] %vm4341, %v4269
      %4368 = vst.msk [vmem:[#allocation4 + $0xd0] sm:$0xf] %vm4341, %v4271
      %4369 = vst.msk [vmem:[#allocation4 + $0xd8] sm:$0xf] %vm4341, %v4273
      %4370 = vst.msk [vmem:[#allocation4 + $0xe0] sm:$0xf] %vm4341, %v4275
      %4371 = vst.msk [vmem:[#allocation4 + $0xe8] sm:$0xf] %vm4341, %v4277
      %4372 = vst.msk [vmem:[#allocation4 + $0xf0] sm:$0xf] %vm4341, %v4279
      %4373 = vst.msk [vmem:[#allocation4 + $0xf8] sm:$0xf] %vm4341, %v4281
      %4374 = vst.msk [vmem:[#allocation4 + $0x100] sm:$0xf] %vm4341, %v4283
      %4375 = vst.msk [vmem:[#allocation4 + $0x108] sm:$0xf] %vm4341, %v4285
      %4376 = vst.msk [vmem:[#allocation4 + $0x110] sm:$0xf] %vm4341, %v4287
      %4377 = vst.msk [vmem:[#allocation4 + $0x118] sm:$0xf] %vm4341, %v4289
      %4378 = vst.msk [vmem:[#allocation4 + $0x120] sm:$0xf] %vm4341, %v4291
      %4379 = vst.msk [vmem:[#allocation4 + $0x128] sm:$0xf] %vm4341, %v4293
      %4380 = vst.msk [vmem:[#allocation4 + $0x130] sm:$0xf] %vm4341, %v4295
      %4381 = vst.msk [vmem:[#allocation4 + $0x138] sm:$0xf] %vm4341, %v4297
      %4382 = vst.msk [vmem:[#allocation4 + $0x140] sm:$0xf] %vm4341, %v4299
      %v4383 = vld [vmem:[#allocation3 + $0x8] sm:$0xe]
      %v4384 = vld [vmem:[#allocation3 + $0xc] sm:$0xf]
      %v4385 = vld [vmem:[#allocation3 + $0x10] sm:$0xf]
      %v4386 = vld [vmem:[#allocation3 + $0x14] sm:$0xf]
      %v4387 = vld [vmem:[#allocation3 + $0x18] sm:$0xf]
      %v4388 = vld [vmem:[#allocation3 + $0x1c] sm:$0xf]
      %v4389 = vld [vmem:[#allocation3 + $0x20] sm:$0xf]
      %v4390 = vld [vmem:[#allocation3 + $0x24] sm:$0xf]
      %v4391 = vld [vmem:[#allocation3 + $0x28] sm:$0xf]
      %v4392 = vld [vmem:[#allocation3 + $0x2c] sm:$0xf]
      %v4393 = vld [vmem:[#allocation3 + $0x30] sm:$0xf]
      %v4394 = vld [vmem:[#allocation3 + $0x34] sm:$0xf]
      %v4395 = vld [vmem:[#allocation3 + $0x38] sm:$0xf]
      %v4396 = vld [vmem:[#allocation3 + $0x3c] sm:$0xf]
      %v4397 = vld [vmem:[#allocation3 + $0x40] sm:$0xf]
      %v4398 = vld [vmem:[#allocation3 + $0x44] sm:$0xf]
      %v4399 = vld [vmem:[#allocation3 + $0x48] sm:$0xf]
      %v4400 = vld [vmem:[#allocation3 + $0x4c] sm:$0xf]
      %v4401 = vld [vmem:[#allocation3 + $0x50] sm:$0xf]
      %v4402 = vld [vmem:[#allocation3 + $0x54] sm:$0xf]
      %v4403 = vld [vmem:[#allocation3 + $0x58] sm:$0xf]
      %v4404 = vld [vmem:[#allocation3 + $0x5c] sm:$0xf]
      %v4405 = vld [vmem:[#allocation3 + $0x60] sm:$0xf]
      %v4406 = vld [vmem:[#allocation3 + $0x64] sm:$0xf]
      %v4407 = vld [vmem:[#allocation3 + $0x68] sm:$0xf]
      %v4408 = vld [vmem:[#allocation3 + $0x6c] sm:$0xf]
      %v4409 = vld [vmem:[#allocation3 + $0x70] sm:$0xf]
      %v4410 = vld [vmem:[#allocation3 + $0x74] sm:$0xf]
      %v4411 = vld [vmem:[#allocation3 + $0x78] sm:$0xf]
      %v4412 = vld [vmem:[#allocation3 + $0x7c] sm:$0xf]
      %v4413 = vld [vmem:[#allocation3 + $0x80] sm:$0xf]
      %v4414 = vld [vmem:[#allocation3 + $0x84] sm:$0xf]
      %v4415 = vld [vmem:[#allocation3 + $0x88] sm:$0xf]
      %v4416 = vld [vmem:[#allocation3 + $0x8c] sm:$0xf]
      %v4417 = vld [vmem:[#allocation3 + $0x90] sm:$0xf]
      %v4418 = vld [vmem:[#allocation3 + $0x94] sm:$0xf]
      %v4419 = vld [vmem:[#allocation3 + $0x98] sm:$0xf]
      %v4420 = vld [vmem:[#allocation3 + $0x9c] sm:$0xf]
      %v4421 = vld [vmem:[#allocation3 + $0xa0] sm:$0xf]
      %v4422 = vld [vmem:[#allocation3 + $0xa4] sm:$0xf]
      %v4423 = vld [vmem:[#allocation3 + $0xa8] sm:$0xf]
      %v4424 = vld [vmem:[#allocation3 + $0xac] sm:$0x3]
      %vm4425 = vsmask.f32 2304
      %vm4426 = vsmask.f32 6416
      %vm4427 = vmor %vm4425, %vm4426
      %v4429 = vshrl.u32 %v4383, 16
      %v4431 = vrot.slane %v4429, 5
      %v4432 = vshll.u32 %v4383, 16
      %v4434 = vrot.slane %v4432, 6
      %v4435 = vor.u32 %v4431, %v4434
      %v4436 = vrot.slane %v4435, 4
      %v4438 = vshrl.u32 %v4384, 16
      %v4440 = vrot.slane %v4438, 5
      %v4441 = vshll.u32 %v4384, 16
      %v4443 = vrot.slane %v4441, 6
      %v4444 = vor.u32 %v4440, %v4443
      %v4445 = vsel %vm4427, %v4436, %v4444
      %v4446 = vrot.slane %v4444, 4
      %v4448 = vshrl.u32 %v4385, 16
      %v4450 = vrot.slane %v4448, 5
      %v4451 = vshll.u32 %v4385, 16
      %v4453 = vrot.slane %v4451, 6
      %v4454 = vor.u32 %v4450, %v4453
      %v4455 = vsel %vm4427, %v4446, %v4454
      %v4456 = vrot.slane %v4454, 4
      %v4458 = vshrl.u32 %v4386, 16
      %v4460 = vrot.slane %v4458, 5
      %v4461 = vshll.u32 %v4386, 16
      %v4463 = vrot.slane %v4461, 6
      %v4464 = vor.u32 %v4460, %v4463
      %v4465 = vsel %vm4427, %v4456, %v4464
      %v4466 = vrot.slane %v4464, 4
      %v4468 = vshrl.u32 %v4387, 16
      %v4470 = vrot.slane %v4468, 5
      %v4471 = vshll.u32 %v4387, 16
      %v4473 = vrot.slane %v4471, 6
      %v4474 = vor.u32 %v4470, %v4473
      %v4475 = vsel %vm4427, %v4466, %v4474
      %v4476 = vrot.slane %v4474, 4
      %v4478 = vshrl.u32 %v4388, 16
      %v4480 = vrot.slane %v4478, 5
      %v4481 = vshll.u32 %v4388, 16
      %v4483 = vrot.slane %v4481, 6
      %v4484 = vor.u32 %v4480, %v4483
      %v4485 = vsel %vm4427, %v4476, %v4484
      %v4486 = vrot.slane %v4484, 4
      %v4488 = vshrl.u32 %v4389, 16
      %v4490 = vrot.slane %v4488, 5
      %v4491 = vshll.u32 %v4389, 16
      %v4493 = vrot.slane %v4491, 6
      %v4494 = vor.u32 %v4490, %v4493
      %v4495 = vsel %vm4427, %v4486, %v4494
      %v4496 = vrot.slane %v4494, 4
      %v4498 = vshrl.u32 %v4390, 16
      %v4500 = vrot.slane %v4498, 5
      %v4501 = vshll.u32 %v4390, 16
      %v4503 = vrot.slane %v4501, 6
      %v4504 = vor.u32 %v4500, %v4503
      %v4505 = vsel %vm4427, %v4496, %v4504
      %v4506 = vrot.slane %v4504, 4
      %v4508 = vshrl.u32 %v4391, 16
      %v4510 = vrot.slane %v4508, 5
      %v4511 = vshll.u32 %v4391, 16
      %v4513 = vrot.slane %v4511, 6
      %v4514 = vor.u32 %v4510, %v4513
      %v4515 = vsel %vm4427, %v4506, %v4514
      %v4516 = vrot.slane %v4514, 4
      %v4518 = vshrl.u32 %v4392, 16
      %v4520 = vrot.slane %v4518, 5
      %v4521 = vshll.u32 %v4392, 16
      %v4523 = vrot.slane %v4521, 6
      %v4524 = vor.u32 %v4520, %v4523
      %v4525 = vsel %vm4427, %v4516, %v4524
      %v4526 = vrot.slane %v4524, 4
      %v4528 = vshrl.u32 %v4393, 16
      %v4530 = vrot.slane %v4528, 5
      %v4531 = vshll.u32 %v4393, 16
      %v4533 = vrot.slane %v4531, 6
      %v4534 = vor.u32 %v4530, %v4533
      %v4535 = vsel %vm4427, %v4526, %v4534
      %v4536 = vrot.slane %v4534, 4
      %v4538 = vshrl.u32 %v4394, 16
      %v4540 = vrot.slane %v4538, 5
      %v4541 = vshll.u32 %v4394, 16
      %v4543 = vrot.slane %v4541, 6
      %v4544 = vor.u32 %v4540, %v4543
      %v4545 = vsel %vm4427, %v4536, %v4544
      %v4546 = vrot.slane %v4544, 4
      %v4548 = vshrl.u32 %v4395, 16
      %v4550 = vrot.slane %v4548, 5
      %v4551 = vshll.u32 %v4395, 16
      %v4553 = vrot.slane %v4551, 6
      %v4554 = vor.u32 %v4550, %v4553
      %v4555 = vsel %vm4427, %v4546, %v4554
      %v4556 = vrot.slane %v4554, 4
      %v4558 = vshrl.u32 %v4396, 16
      %v4560 = vrot.slane %v4558, 5
      %v4561 = vshll.u32 %v4396, 16
      %v4563 = vrot.slane %v4561, 6
      %v4564 = vor.u32 %v4560, %v4563
      %v4565 = vsel %vm4427, %v4556, %v4564
      %v4566 = vrot.slane %v4564, 4
      %v4568 = vshrl.u32 %v4397, 16
      %v4570 = vrot.slane %v4568, 5
      %v4571 = vshll.u32 %v4397, 16
      %v4573 = vrot.slane %v4571, 6
      %v4574 = vor.u32 %v4570, %v4573
      %v4575 = vsel %vm4427, %v4566, %v4574
      %v4576 = vrot.slane %v4574, 4
      %v4578 = vshrl.u32 %v4398, 16
      %v4580 = vrot.slane %v4578, 5
      %v4581 = vshll.u32 %v4398, 16
      %v4583 = vrot.slane %v4581, 6
      %v4584 = vor.u32 %v4580, %v4583
      %v4585 = vsel %vm4427, %v4576, %v4584
      %v4586 = vrot.slane %v4584, 4
      %v4588 = vshrl.u32 %v4399, 16
      %v4590 = vrot.slane %v4588, 5
      %v4591 = vshll.u32 %v4399, 16
      %v4593 = vrot.slane %v4591, 6
      %v4594 = vor.u32 %v4590, %v4593
      %v4595 = vsel %vm4427, %v4586, %v4594
      %v4596 = vrot.slane %v4594, 4
      %v4598 = vshrl.u32 %v4400, 16
      %v4600 = vrot.slane %v4598, 5
      %v4601 = vshll.u32 %v4400, 16
      %v4603 = vrot.slane %v4601, 6
      %v4604 = vor.u32 %v4600, %v4603
      %v4605 = vsel %vm4427, %v4596, %v4604
      %v4606 = vrot.slane %v4604, 4
      %v4608 = vshrl.u32 %v4401, 16
      %v4610 = vrot.slane %v4608, 5
      %v4611 = vshll.u32 %v4401, 16
      %v4613 = vrot.slane %v4611, 6
      %v4614 = vor.u32 %v4610, %v4613
      %v4615 = vsel %vm4427, %v4606, %v4614
      %v4616 = vrot.slane %v4614, 4
      %v4618 = vshrl.u32 %v4402, 16
      %v4620 = vrot.slane %v4618, 5
      %v4621 = vshll.u32 %v4402, 16
      %v4623 = vrot.slane %v4621, 6
      %v4624 = vor.u32 %v4620, %v4623
      %v4625 = vsel %vm4427, %v4616, %v4624
      %v4626 = vrot.slane %v4624, 4
      %v4628 = vshrl.u32 %v4403, 16
      %v4630 = vrot.slane %v4628, 5
      %v4631 = vshll.u32 %v4403, 16
      %v4633 = vrot.slane %v4631, 6
      %v4634 = vor.u32 %v4630, %v4633
      %v4635 = vsel %vm4427, %v4626, %v4634
      %v4636 = vrot.slane %v4634, 4
      %v4638 = vshrl.u32 %v4404, 16
      %v4640 = vrot.slane %v4638, 5
      %v4641 = vshll.u32 %v4404, 16
      %v4643 = vrot.slane %v4641, 6
      %v4644 = vor.u32 %v4640, %v4643
      %v4645 = vsel %vm4427, %v4636, %v4644
      %v4646 = vrot.slane %v4644, 4
      %v4648 = vshrl.u32 %v4405, 16
      %v4650 = vrot.slane %v4648, 5
      %v4651 = vshll.u32 %v4405, 16
      %v4653 = vrot.slane %v4651, 6
      %v4654 = vor.u32 %v4650, %v4653
      %v4655 = vsel %vm4427, %v4646, %v4654
      %v4656 = vrot.slane %v4654, 4
      %v4658 = vshrl.u32 %v4406, 16
      %v4660 = vrot.slane %v4658, 5
      %v4661 = vshll.u32 %v4406, 16
      %v4663 = vrot.slane %v4661, 6
      %v4664 = vor.u32 %v4660, %v4663
      %v4665 = vsel %vm4427, %v4656, %v4664
      %v4666 = vrot.slane %v4664, 4
      %v4668 = vshrl.u32 %v4407, 16
      %v4670 = vrot.slane %v4668, 5
      %v4671 = vshll.u32 %v4407, 16
      %v4673 = vrot.slane %v4671, 6
      %v4674 = vor.u32 %v4670, %v4673
      %v4675 = vsel %vm4427, %v4666, %v4674
      %v4676 = vrot.slane %v4674, 4
      %v4678 = vshrl.u32 %v4408, 16
      %v4680 = vrot.slane %v4678, 5
      %v4681 = vshll.u32 %v4408, 16
      %v4683 = vrot.slane %v4681, 6
      %v4684 = vor.u32 %v4680, %v4683
      %v4685 = vsel %vm4427, %v4676, %v4684
      %v4686 = vrot.slane %v4684, 4
      %v4688 = vshrl.u32 %v4409, 16
      %v4690 = vrot.slane %v4688, 5
      %v4691 = vshll.u32 %v4409, 16
      %v4693 = vrot.slane %v4691, 6
      %v4694 = vor.u32 %v4690, %v4693
      %v4695 = vsel %vm4427, %v4686, %v4694
      %v4696 = vrot.slane %v4694, 4
      %v4698 = vshrl.u32 %v4410, 16
      %v4700 = vrot.slane %v4698, 5
      %v4701 = vshll.u32 %v4410, 16
      %v4703 = vrot.slane %v4701, 6
      %v4704 = vor.u32 %v4700, %v4703
      %v4705 = vsel %vm4427, %v4696, %v4704
      %v4706 = vrot.slane %v4704, 4
      %v4708 = vshrl.u32 %v4411, 16
      %v4710 = vrot.slane %v4708, 5
      %v4711 = vshll.u32 %v4411, 16
      %v4713 = vrot.slane %v4711, 6
      %v4714 = vor.u32 %v4710, %v4713
      %v4715 = vsel %vm4427, %v4706, %v4714
      %v4716 = vrot.slane %v4714, 4
      %v4718 = vshrl.u32 %v4412, 16
      %v4720 = vrot.slane %v4718, 5
      %v4721 = vshll.u32 %v4412, 16
      %v4723 = vrot.slane %v4721, 6
      %v4724 = vor.u32 %v4720, %v4723
      %v4725 = vsel %vm4427, %v4716, %v4724
      %v4726 = vrot.slane %v4724, 4
      %v4728 = vshrl.u32 %v4413, 16
      %v4730 = vrot.slane %v4728, 5
      %v4731 = vshll.u32 %v4413, 16
      %v4733 = vrot.slane %v4731, 6
      %v4734 = vor.u32 %v4730, %v4733
      %v4735 = vsel %vm4427, %v4726, %v4734
      %v4736 = vrot.slane %v4734, 4
      %v4738 = vshrl.u32 %v4414, 16
      %v4740 = vrot.slane %v4738, 5
      %v4741 = vshll.u32 %v4414, 16
      %v4743 = vrot.slane %v4741, 6
      %v4744 = vor.u32 %v4740, %v4743
      %v4745 = vsel %vm4427, %v4736, %v4744
      %v4746 = vrot.slane %v4744, 4
      %v4748 = vshrl.u32 %v4415, 16
      %v4750 = vrot.slane %v4748, 5
      %v4751 = vshll.u32 %v4415, 16
      %v4753 = vrot.slane %v4751, 6
      %v4754 = vor.u32 %v4750, %v4753
      %v4755 = vsel %vm4427, %v4746, %v4754
      %v4756 = vrot.slane %v4754, 4
      %v4758 = vshrl.u32 %v4416, 16
      %v4760 = vrot.slane %v4758, 5
      %v4761 = vshll.u32 %v4416, 16
      %v4763 = vrot.slane %v4761, 6
      %v4764 = vor.u32 %v4760, %v4763
      %v4765 = vsel %vm4427, %v4756, %v4764
      %v4766 = vrot.slane %v4764, 4
      %v4768 = vshrl.u32 %v4417, 16
      %v4770 = vrot.slane %v4768, 5
      %v4771 = vshll.u32 %v4417, 16
      %v4773 = vrot.slane %v4771, 6
      %v4774 = vor.u32 %v4770, %v4773
      %v4775 = vsel %vm4427, %v4766, %v4774
      %v4776 = vrot.slane %v4774, 4
      %v4778 = vshrl.u32 %v4418, 16
      %v4780 = vrot.slane %v4778, 5
      %v4781 = vshll.u32 %v4418, 16
      %v4783 = vrot.slane %v4781, 6
      %v4784 = vor.u32 %v4780, %v4783
      %v4785 = vsel %vm4427, %v4776, %v4784
      %v4786 = vrot.slane %v4784, 4
      %v4788 = vshrl.u32 %v4419, 16
      %v4790 = vrot.slane %v4788, 5
      %v4791 = vshll.u32 %v4419, 16
      %v4793 = vrot.slane %v4791, 6
      %v4794 = vor.u32 %v4790, %v4793
      %v4795 = vsel %vm4427, %v4786, %v4794
      %v4796 = vrot.slane %v4794, 4
      %v4798 = vshrl.u32 %v4420, 16
      %v4800 = vrot.slane %v4798, 5
      %v4801 = vshll.u32 %v4420, 16
      %v4803 = vrot.slane %v4801, 6
      %v4804 = vor.u32 %v4800, %v4803
      %v4805 = vsel %vm4427, %v4796, %v4804
      %v4806 = vrot.slane %v4804, 4
      %v4808 = vshrl.u32 %v4421, 16
      %v4810 = vrot.slane %v4808, 5
      %v4811 = vshll.u32 %v4421, 16
      %v4813 = vrot.slane %v4811, 6
      %v4814 = vor.u32 %v4810, %v4813
      %v4815 = vsel %vm4427, %v4806, %v4814
      %v4816 = vrot.slane %v4814, 4
      %v4818 = vshrl.u32 %v4422, 16
      %v4820 = vrot.slane %v4818, 5
      %v4821 = vshll.u32 %v4422, 16
      %v4823 = vrot.slane %v4821, 6
      %v4824 = vor.u32 %v4820, %v4823
      %v4825 = vsel %vm4427, %v4816, %v4824
      %v4826 = vrot.slane %v4824, 4
      %v4828 = vshrl.u32 %v4423, 16
      %v4830 = vrot.slane %v4828, 5
      %v4831 = vshll.u32 %v4423, 16
      %v4833 = vrot.slane %v4831, 6
      %v4834 = vor.u32 %v4830, %v4833
      %v4835 = vsel %vm4427, %v4826, %v4834
      %v4836 = vrot.slane %v4834, 4
      %v4838 = vshrl.u32 %v4424, 16
      %v4840 = vrot.slane %v4838, 5
      %v4841 = vshll.u32 %v4424, 16
      %v4843 = vrot.slane %v4841, 6
      %v4844 = vor.u32 %v4840, %v4843
      %v4845 = vsel %vm4427, %v4836, %v4844
      %4846 = vrot.lane.b32.xlu0 %v4445, 64
      %v4847 = vpop.permute.xlu0 %4846
      %4848 = vrot.lane.b32.xlu0 %v4455, 64
      %v4849 = vpop.permute.xlu0 %4848
      %4850 = vrot.lane.b32.xlu0 %v4465, 64
      %v4851 = vpop.permute.xlu0 %4850
      %4852 = vrot.lane.b32.xlu0 %v4475, 64
      %v4853 = vpop.permute.xlu0 %4852
      %4854 = vrot.lane.b32.xlu0 %v4485, 64
      %v4855 = vpop.permute.xlu0 %4854
      %4856 = vrot.lane.b32.xlu0 %v4495, 64
      %v4857 = vpop.permute.xlu0 %4856
      %4858 = vrot.lane.b32.xlu0 %v4505, 64
      %v4859 = vpop.permute.xlu0 %4858
      %4860 = vrot.lane.b32.xlu0 %v4515, 64
      %v4861 = vpop.permute.xlu0 %4860
      %4862 = vrot.lane.b32.xlu0 %v4525, 64
      %v4863 = vpop.permute.xlu0 %4862
      %4864 = vrot.lane.b32.xlu0 %v4535, 64
      %v4865 = vpop.permute.xlu0 %4864
      %4866 = vrot.lane.b32.xlu0 %v4545, 64
      %v4867 = vpop.permute.xlu0 %4866
      %4868 = vrot.lane.b32.xlu0 %v4555, 64
      %v4869 = vpop.permute.xlu0 %4868
      %4870 = vrot.lane.b32.xlu0 %v4565, 64
      %v4871 = vpop.permute.xlu0 %4870
      %4872 = vrot.lane.b32.xlu0 %v4575, 64
      %v4873 = vpop.permute.xlu0 %4872
      %4874 = vrot.lane.b32.xlu0 %v4585, 64
      %v4875 = vpop.permute.xlu0 %4874
      %4876 = vrot.lane.b32.xlu0 %v4595, 64
      %v4877 = vpop.permute.xlu0 %4876
      %4878 = vrot.lane.b32.xlu0 %v4605, 64
      %v4879 = vpop.permute.xlu0 %4878
      %4880 = vrot.lane.b32.xlu0 %v4615, 64
      %v4881 = vpop.permute.xlu0 %4880
      %4882 = vrot.lane.b32.xlu0 %v4625, 64
      %v4883 = vpop.permute.xlu0 %4882
      %4884 = vrot.lane.b32.xlu0 %v4635, 64
      %v4885 = vpop.permute.xlu0 %4884
      %4886 = vrot.lane.b32.xlu0 %v4645, 64
      %v4887 = vpop.permute.xlu0 %4886
      %4888 = vrot.lane.b32.xlu0 %v4655, 64
      %v4889 = vpop.permute.xlu0 %4888
      %4890 = vrot.lane.b32.xlu0 %v4665, 64
      %v4891 = vpop.permute.xlu0 %4890
      %4892 = vrot.lane.b32.xlu0 %v4675, 64
      %v4893 = vpop.permute.xlu0 %4892
      %4894 = vrot.lane.b32.xlu0 %v4685, 64
      %v4895 = vpop.permute.xlu0 %4894
      %4896 = vrot.lane.b32.xlu0 %v4695, 64
      %v4897 = vpop.permute.xlu0 %4896
      %4898 = vrot.lane.b32.xlu0 %v4705, 64
      %v4899 = vpop.permute.xlu0 %4898
      %4900 = vrot.lane.b32.xlu0 %v4715, 64
      %v4901 = vpop.permute.xlu0 %4900
      %4902 = vrot.lane.b32.xlu0 %v4725, 64
      %v4903 = vpop.permute.xlu0 %4902
      %4904 = vrot.lane.b32.xlu0 %v4735, 64
      %v4905 = vpop.permute.xlu0 %4904
      %4906 = vrot.lane.b32.xlu0 %v4745, 64
      %v4907 = vpop.permute.xlu0 %4906
      %4908 = vrot.lane.b32.xlu0 %v4755, 64
      %v4909 = vpop.permute.xlu0 %4908
      %4910 = vrot.lane.b32.xlu0 %v4765, 64
      %v4911 = vpop.permute.xlu0 %4910
      %4912 = vrot.lane.b32.xlu0 %v4775, 64
      %v4913 = vpop.permute.xlu0 %4912
      %4914 = vrot.lane.b32.xlu0 %v4785, 64
      %v4915 = vpop.permute.xlu0 %4914
      %4916 = vrot.lane.b32.xlu0 %v4795, 64
      %v4917 = vpop.permute.xlu0 %4916
      %4918 = vrot.lane.b32.xlu0 %v4805, 64
      %v4919 = vpop.permute.xlu0 %4918
      %4920 = vrot.lane.b32.xlu0 %v4815, 64
      %v4921 = vpop.permute.xlu0 %4920
      %4922 = vrot.lane.b32.xlu0 %v4825, 64
      %v4923 = vpop.permute.xlu0 %4922
      %4924 = vrot.lane.b32.xlu0 %v4835, 64
      %v4925 = vpop.permute.xlu0 %4924
      %4926 = vrot.lane.b32.xlu0 %v4845, 64
      %v4927 = vpop.permute.xlu0 %4926
      %vm4969 = vcmask 650752
      %4970 = vst.msk [vmem:[#allocation4] sm:$0xf] %vm4969, %v4847
      %4971 = vst.msk [vmem:[#allocation4 + $0x8] sm:$0xf] %vm4969, %v4849
      %4972 = vst.msk [vmem:[#allocation4 + $0x10] sm:$0xf] %vm4969, %v4851
      %4973 = vst.msk [vmem:[#allocation4 + $0x18] sm:$0xf] %vm4969, %v4853
      %4974 = vst.msk [vmem:[#allocation4 + $0x20] sm:$0xf] %vm4969, %v4855
      %4975 = vst.msk [vmem:[#allocation4 + $0x28] sm:$0xf] %vm4969, %v4857
      %4976 = vst.msk [vmem:[#allocation4 + $0x30] sm:$0xf] %vm4969, %v4859
      %4977 = vst.msk [vmem:[#allocation4 + $0x38] sm:$0xf] %vm4969, %v4861
      %4978 = vst.msk [vmem:[#allocation4 + $0x40] sm:$0xf] %vm4969, %v4863
      %4979 = vst.msk [vmem:[#allocation4 + $0x48] sm:$0xf] %vm4969, %v4865
      %4980 = vst.msk [vmem:[#allocation4 + $0x50] sm:$0xf] %vm4969, %v4867
      %4981 = vst.msk [vmem:[#allocation4 + $0x58] sm:$0xf] %vm4969, %v4869
      %4982 = vst.msk [vmem:[#allocation4 + $0x60] sm:$0xf] %vm4969, %v4871
      %4983 = vst.msk [vmem:[#allocation4 + $0x68] sm:$0xf] %vm4969, %v4873
      %4984 = vst.msk [vmem:[#allocation4 + $0x70] sm:$0xf] %vm4969, %v4875
      %4985 = vst.msk [vmem:[#allocation4 + $0x78] sm:$0xf] %vm4969, %v4877
      %4986 = vst.msk [vmem:[#allocation4 + $0x80] sm:$0xf] %vm4969, %v4879
      %4987 = vst.msk [vmem:[#allocation4 + $0x88] sm:$0xf] %vm4969, %v4881
      %4988 = vst.msk [vmem:[#allocation4 + $0x90] sm:$0xf] %vm4969, %v4883
      %4989 = vst.msk [vmem:[#allocation4 + $0x98] sm:$0xf] %vm4969, %v4885
      %4990 = vst.msk [vmem:[#allocation4 + $0xa0] sm:$0xf] %vm4969, %v4887
      %4991 = vst.msk [vmem:[#allocation4 + $0xa8] sm:$0xf] %vm4969, %v4889
      %4992 = vst.msk [vmem:[#allocation4 + $0xb0] sm:$0xf] %vm4969, %v4891
      %4993 = vst.msk [vmem:[#allocation4 + $0xb8] sm:$0xf] %vm4969, %v4893
      %4994 = vst.msk [vmem:[#allocation4 + $0xc0] sm:$0xf] %vm4969, %v4895
      %4995 = vst.msk [vmem:[#allocation4 + $0xc8] sm:$0xf] %vm4969, %v4897
      %4996 = vst.msk [vmem:[#allocation4 + $0xd0] sm:$0xf] %vm4969, %v4899
      %4997 = vst.msk [vmem:[#allocation4 + $0xd8] sm:$0xf] %vm4969, %v4901
      %4998 = vst.msk [vmem:[#allocation4 + $0xe0] sm:$0xf] %vm4969, %v4903
      %4999 = vst.msk [vmem:[#allocation4 + $0xe8] sm:$0xf] %vm4969, %v4905
      %5000 = vst.msk [vmem:[#allocation4 + $0xf0] sm:$0xf] %vm4969, %v4907
      %5001 = vst.msk [vmem:[#allocation4 + $0xf8] sm:$0xf] %vm4969, %v4909
      %5002 = vst.msk [vmem:[#allocation4 + $0x100] sm:$0xf] %vm4969, %v4911
      %5003 = vst.msk [vmem:[#allocation4 + $0x108] sm:$0xf] %vm4969, %v4913
      %5004 = vst.msk [vmem:[#allocation4 + $0x110] sm:$0xf] %vm4969, %v4915
      %5005 = vst.msk [vmem:[#allocation4 + $0x118] sm:$0xf] %vm4969, %v4917
      %5006 = vst.msk [vmem:[#allocation4 + $0x120] sm:$0xf] %vm4969, %v4919
      %5007 = vst.msk [vmem:[#allocation4 + $0x128] sm:$0xf] %vm4969, %v4921
      %5008 = vst.msk [vmem:[#allocation4 + $0x130] sm:$0xf] %vm4969, %v4923
      %5009 = vst.msk [vmem:[#allocation4 + $0x138] sm:$0xf] %vm4969, %v4925
      %5010 = vst.msk [vmem:[#allocation4 + $0x140] sm:$0xf] %vm4969, %v4927
      %v5011 = vld [vmem:[#allocation3 + $0x8] sm:$0xc]
      %v5012 = vld [vmem:[#allocation3 + $0xc] sm:$0xf]
      %v5013 = vld [vmem:[#allocation3 + $0x10] sm:$0xf]
      %v5014 = vld [vmem:[#allocation3 + $0x14] sm:$0xf]
      %v5015 = vld [vmem:[#allocation3 + $0x18] sm:$0xf]
      %v5016 = vld [vmem:[#allocation3 + $0x1c] sm:$0xf]
      %v5017 = vld [vmem:[#allocation3 + $0x20] sm:$0xf]
      %v5018 = vld [vmem:[#allocation3 + $0x24] sm:$0xf]
      %v5019 = vld [vmem:[#allocation3 + $0x28] sm:$0xf]
      %v5020 = vld [vmem:[#allocation3 + $0x2c] sm:$0xf]
      %v5021 = vld [vmem:[#allocation3 + $0x30] sm:$0xf]
      %v5022 = vld [vmem:[#allocation3 + $0x34] sm:$0xf]
      %v5023 = vld [vmem:[#allocation3 + $0x38] sm:$0xf]
      %v5024 = vld [vmem:[#allocation3 + $0x3c] sm:$0xf]
      %v5025 = vld [vmem:[#allocation3 + $0x40] sm:$0xf]
      %v5026 = vld [vmem:[#allocation3 + $0x44] sm:$0xf]
      %v5027 = vld [vmem:[#allocation3 + $0x48] sm:$0xf]
      %v5028 = vld [vmem:[#allocation3 + $0x4c] sm:$0xf]
      %v5029 = vld [vmem:[#allocation3 + $0x50] sm:$0xf]
      %v5030 = vld [vmem:[#allocation3 + $0x54] sm:$0xf]
      %v5031 = vld [vmem:[#allocation3 + $0x58] sm:$0xf]
      %v5032 = vld [vmem:[#allocation3 + $0x5c] sm:$0xf]
      %v5033 = vld [vmem:[#allocation3 + $0x60] sm:$0xf]
      %v5034 = vld [vmem:[#allocation3 + $0x64] sm:$0xf]
      %v5035 = vld [vmem:[#allocation3 + $0x68] sm:$0xf]
      %v5036 = vld [vmem:[#allocation3 + $0x6c] sm:$0xf]
      %v5037 = vld [vmem:[#allocation3 + $0x70] sm:$0xf]
      %v5038 = vld [vmem:[#allocation3 + $0x74] sm:$0xf]
      %v5039 = vld [vmem:[#allocation3 + $0x78] sm:$0xf]
      %v5040 = vld [vmem:[#allocation3 + $0x7c] sm:$0xf]
      %v5041 = vld [vmem:[#allocation3 + $0x80] sm:$0xf]
      %v5042 = vld [vmem:[#allocation3 + $0x84] sm:$0xf]
      %v5043 = vld [vmem:[#allocation3 + $0x88] sm:$0xf]
      %v5044 = vld [vmem:[#allocation3 + $0x8c] sm:$0xf]
      %v5045 = vld [vmem:[#allocation3 + $0x90] sm:$0xf]
      %v5046 = vld [vmem:[#allocation3 + $0x94] sm:$0xf]
      %v5047 = vld [vmem:[#allocation3 + $0x98] sm:$0xf]
      %v5048 = vld [vmem:[#allocation3 + $0x9c] sm:$0xf]
      %v5049 = vld [vmem:[#allocation3 + $0xa0] sm:$0xf]
      %v5050 = vld [vmem:[#allocation3 + $0xa4] sm:$0xf]
      %v5051 = vld [vmem:[#allocation3 + $0xa8] sm:$0xf]
      %v5052 = vld [vmem:[#allocation3 + $0xac] sm:$0x3]
      %vm5095 = vcmask 1041408
      %vm5096 = vcmask 1045508
      %vm5097 = vmor %vm5095, %vm5096
      %v5098 = vrot.slane %v5011, 6
      %v5099 = vrot.slane %v5098, 4
      %v5100 = vrot.slane %v5012, 6
      %v5101 = vsel %vm5097, %v5099, %v5100
      %v5102 = vrot.slane %v5100, 4
      %v5103 = vrot.slane %v5013, 6
      %v5104 = vsel %vm5097, %v5102, %v5103
      %v5105 = vrot.slane %v5103, 4
      %v5106 = vrot.slane %v5014, 6
      %v5107 = vsel %vm5097, %v5105, %v5106
      %v5108 = vrot.slane %v5106, 4
      %v5109 = vrot.slane %v5015, 6
      %v5110 = vsel %vm5097, %v5108, %v5109
      %v5111 = vrot.slane %v5109, 4
      %v5112 = vrot.slane %v5016, 6
      %v5113 = vsel %vm5097, %v5111, %v5112
      %v5114 = vrot.slane %v5112, 4
      %v5115 = vrot.slane %v5017, 6
      %v5116 = vsel %vm5097, %v5114, %v5115
      %v5117 = vrot.slane %v5115, 4
      %v5118 = vrot.slane %v5018, 6
      %v5119 = vsel %vm5097, %v5117, %v5118
      %v5120 = vrot.slane %v5118, 4
      %v5121 = vrot.slane %v5019, 6
      %v5122 = vsel %vm5097, %v5120, %v5121
      %v5123 = vrot.slane %v5121, 4
      %v5124 = vrot.slane %v5020, 6
      %v5125 = vsel %vm5097, %v5123, %v5124
      %v5126 = vrot.slane %v5124, 4
      %v5127 = vrot.slane %v5021, 6
      %v5128 = vsel %vm5097, %v5126, %v5127
      %v5129 = vrot.slane %v5127, 4
      %v5130 = vrot.slane %v5022, 6
      %v5131 = vsel %vm5097, %v5129, %v5130
      %v5132 = vrot.slane %v5130, 4
      %v5133 = vrot.slane %v5023, 6
      %v5134 = vsel %vm5097, %v5132, %v5133
      %v5135 = vrot.slane %v5133, 4
      %v5136 = vrot.slane %v5024, 6
      %v5137 = vsel %vm5097, %v5135, %v5136
      %v5138 = vrot.slane %v5136, 4
      %v5139 = vrot.slane %v5025, 6
      %v5140 = vsel %vm5097, %v5138, %v5139
      %v5141 = vrot.slane %v5139, 4
      %v5142 = vrot.slane %v5026, 6
      %v5143 = vsel %vm5097, %v5141, %v5142
      %v5144 = vrot.slane %v5142, 4
      %v5145 = vrot.slane %v5027, 6
      %v5146 = vsel %vm5097, %v5144, %v5145
      %v5147 = vrot.slane %v5145, 4
      %v5148 = vrot.slane %v5028, 6
      %v5149 = vsel %vm5097, %v5147, %v5148
      %v5150 = vrot.slane %v5148, 4
      %v5151 = vrot.slane %v5029, 6
      %v5152 = vsel %vm5097, %v5150, %v5151
      %v5153 = vrot.slane %v5151, 4
      %v5154 = vrot.slane %v5030, 6
      %v5155 = vsel %vm5097, %v5153, %v5154
      %v5156 = vrot.slane %v5154, 4
      %v5157 = vrot.slane %v5031, 6
      %v5158 = vsel %vm5097, %v5156, %v5157
      %v5159 = vrot.slane %v5157, 4
      %v5160 = vrot.slane %v5032, 6
      %v5161 = vsel %vm5097, %v5159, %v5160
      %v5162 = vrot.slane %v5160, 4
      %v5163 = vrot.slane %v5033, 6
      %v5164 = vsel %vm5097, %v5162, %v5163
      %v5165 = vrot.slane %v5163, 4
      %v5166 = vrot.slane %v5034, 6
      %v5167 = vsel %vm5097, %v5165, %v5166
      %v5168 = vrot.slane %v5166, 4
      %v5169 = vrot.slane %v5035, 6
      %v5170 = vsel %vm5097, %v5168, %v5169
      %v5171 = vrot.slane %v5169, 4
      %v5172 = vrot.slane %v5036, 6
      %v5173 = vsel %vm5097, %v5171, %v5172
      %v5174 = vrot.slane %v5172, 4
      %v5175 = vrot.slane %v5037, 6
      %v5176 = vsel %vm5097, %v5174, %v5175
      %v5177 = vrot.slane %v5175, 4
      %v5178 = vrot.slane %v5038, 6
      %v5179 = vsel %vm5097, %v5177, %v5178
      %v5180 = vrot.slane %v5178, 4
      %v5181 = vrot.slane %v5039, 6
      %v5182 = vsel %vm5097, %v5180, %v5181
      %v5183 = vrot.slane %v5181, 4
      %v5184 = vrot.slane %v5040, 6
      %v5185 = vsel %vm5097, %v5183, %v5184
      %v5186 = vrot.slane %v5184, 4
      %v5187 = vrot.slane %v5041, 6
      %v5188 = vsel %vm5097, %v5186, %v5187
      %v5189 = vrot.slane %v5187, 4
      %v5190 = vrot.slane %v5042, 6
      %v5191 = vsel %vm5097, %v5189, %v5190
      %v5192 = vrot.slane %v5190, 4
      %v5193 = vrot.slane %v5043, 6
      %v5194 = vsel %vm5097, %v5192, %v5193
      %v5195 = vrot.slane %v5193, 4
      %v5196 = vrot.slane %v5044, 6
      %v5197 = vsel %vm5097, %v5195, %v5196
      %v5198 = vrot.slane %v5196, 4
      %v5199 = vrot.slane %v5045, 6
      %v5200 = vsel %vm5097, %v5198, %v5199
      %v5201 = vrot.slane %v5199, 4
      %v5202 = vrot.slane %v5046, 6
      %v5203 = vsel %vm5097, %v5201, %v5202
      %v5204 = vrot.slane %v5202, 4
      %v5205 = vrot.slane %v5047, 6
      %v5206 = vsel %vm5097, %v5204, %v5205
      %v5207 = vrot.slane %v5205, 4
      %v5208 = vrot.slane %v5048, 6
      %v5209 = vsel %vm5097, %v5207, %v5208
      %v5210 = vrot.slane %v5208, 4
      %v5211 = vrot.slane %v5049, 6
      %v5212 = vsel %vm5097, %v5210, %v5211
      %v5213 = vrot.slane %v5211, 4
      %v5214 = vrot.slane %v5050, 6
      %v5215 = vsel %vm5097, %v5213, %v5214
      %v5216 = vrot.slane %v5214, 4
      %v5217 = vrot.slane %v5051, 6
      %v5218 = vsel %vm5097, %v5216, %v5217
      %v5219 = vrot.slane %v5217, 4
      %v5220 = vrot.slane %v5052, 6
      %v5221 = vsel %vm5097, %v5219, %v5220
      %5222 = vrot.lane.b32.xlu0 %v5101, 80
      %v5223 = vpop.permute.xlu0 %5222
      %5224 = vrot.lane.b32.xlu0 %v5104, 80
      %v5225 = vpop.permute.xlu0 %5224
      %5226 = vrot.lane.b32.xlu0 %v5107, 80
      %v5227 = vpop.permute.xlu0 %5226
      %5228 = vrot.lane.b32.xlu0 %v5110, 80
      %v5229 = vpop.permute.xlu0 %5228
      %5230 = vrot.lane.b32.xlu0 %v5113, 80
      %v5231 = vpop.permute.xlu0 %5230
      %5232 = vrot.lane.b32.xlu0 %v5116, 80
      %v5233 = vpop.permute.xlu0 %5232
      %5234 = vrot.lane.b32.xlu0 %v5119, 80
      %v5235 = vpop.permute.xlu0 %5234
      %5236 = vrot.lane.b32.xlu0 %v5122, 80
      %v5237 = vpop.permute.xlu0 %5236
      %5238 = vrot.lane.b32.xlu0 %v5125, 80
      %v5239 = vpop.permute.xlu0 %5238
      %5240 = vrot.lane.b32.xlu0 %v5128, 80
      %v5241 = vpop.permute.xlu0 %5240
      %5242 = vrot.lane.b32.xlu0 %v5131, 80
      %v5243 = vpop.permute.xlu0 %5242
      %5244 = vrot.lane.b32.xlu0 %v5134, 80
      %v5245 = vpop.permute.xlu0 %5244
      %5246 = vrot.lane.b32.xlu0 %v5137, 80
      %v5247 = vpop.permute.xlu0 %5246
      %5248 = vrot.lane.b32.xlu0 %v5140, 80
      %v5249 = vpop.permute.xlu0 %5248
      %5250 = vrot.lane.b32.xlu0 %v5143, 80
      %v5251 = vpop.permute.xlu0 %5250
      %5252 = vrot.lane.b32.xlu0 %v5146, 80
      %v5253 = vpop.permute.xlu0 %5252
      %5254 = vrot.lane.b32.xlu0 %v5149, 80
      %v5255 = vpop.permute.xlu0 %5254
      %5256 = vrot.lane.b32.xlu0 %v5152, 80
      %v5257 = vpop.permute.xlu0 %5256
      %5258 = vrot.lane.b32.xlu0 %v5155, 80
      %v5259 = vpop.permute.xlu0 %5258
      %5260 = vrot.lane.b32.xlu0 %v5158, 80
      %v5261 = vpop.permute.xlu0 %5260
      %5262 = vrot.lane.b32.xlu0 %v5161, 80
      %v5263 = vpop.permute.xlu0 %5262
      %5264 = vrot.lane.b32.xlu0 %v5164, 80
      %v5265 = vpop.permute.xlu0 %5264
      %5266 = vrot.lane.b32.xlu0 %v5167, 80
      %v5267 = vpop.permute.xlu0 %5266
      %5268 = vrot.lane.b32.xlu0 %v5170, 80
      %v5269 = vpop.permute.xlu0 %5268
      %5270 = vrot.lane.b32.xlu0 %v5173, 80
      %v5271 = vpop.permute.xlu0 %5270
      %5272 = vrot.lane.b32.xlu0 %v5176, 80
      %v5273 = vpop.permute.xlu0 %5272
      %5274 = vrot.lane.b32.xlu0 %v5179, 80
      %v5275 = vpop.permute.xlu0 %5274
      %5276 = vrot.lane.b32.xlu0 %v5182, 80
      %v5277 = vpop.permute.xlu0 %5276
      %5278 = vrot.lane.b32.xlu0 %v5185, 80
      %v5279 = vpop.permute.xlu0 %5278
      %5280 = vrot.lane.b32.xlu0 %v5188, 80
      %v5281 = vpop.permute.xlu0 %5280
      %5282 = vrot.lane.b32.xlu0 %v5191, 80
      %v5283 = vpop.permute.xlu0 %5282
      %5284 = vrot.lane.b32.xlu0 %v5194, 80
      %v5285 = vpop.permute.xlu0 %5284
      %5286 = vrot.lane.b32.xlu0 %v5197, 80
      %v5287 = vpop.permute.xlu0 %5286
      %5288 = vrot.lane.b32.xlu0 %v5200, 80
      %v5289 = vpop.permute.xlu0 %5288
      %5290 = vrot.lane.b32.xlu0 %v5203, 80
      %v5291 = vpop.permute.xlu0 %5290
      %5292 = vrot.lane.b32.xlu0 %v5206, 80
      %v5293 = vpop.permute.xlu0 %5292
      %5294 = vrot.lane.b32.xlu0 %v5209, 80
      %v5295 = vpop.permute.xlu0 %5294
      %5296 = vrot.lane.b32.xlu0 %v5212, 80
      %v5297 = vpop.permute.xlu0 %5296
      %5298 = vrot.lane.b32.xlu0 %v5215, 80
      %v5299 = vpop.permute.xlu0 %5298
      %5300 = vrot.lane.b32.xlu0 %v5218, 80
      %v5301 = vpop.permute.xlu0 %5300
      %5302 = vrot.lane.b32.xlu0 %v5221, 80
      %v5303 = vpop.permute.xlu0 %5302
      %vm5345 = vcmask 781952
      %5346 = vst.msk [vmem:[#allocation4] sm:$0xf] %vm5345, %v5223
      %5347 = vst.msk [vmem:[#allocation4 + $0x8] sm:$0xf] %vm5345, %v5225
      %5348 = vst.msk [vmem:[#allocation4 + $0x10] sm:$0xf] %vm5345, %v5227
      %5349 = vst.msk [vmem:[#allocation4 + $0x18] sm:$0xf] %vm5345, %v5229
      %5350 = vst.msk [vmem:[#allocation4 + $0x20] sm:$0xf] %vm5345, %v5231
      %5351 = vst.msk [vmem:[#allocation4 + $0x28] sm:$0xf] %vm5345, %v5233
      %5352 = vst.msk [vmem:[#allocation4 + $0x30] sm:$0xf] %vm5345, %v5235
      %5353 = vst.msk [vmem:[#allocation4 + $0x38] sm:$0xf] %vm5345, %v5237
      %5354 = vst.msk [vmem:[#allocation4 + $0x40] sm:$0xf] %vm5345, %v5239
      %5355 = vst.msk [vmem:[#allocation4 + $0x48] sm:$0xf] %vm5345, %v5241
      %5356 = vst.msk [vmem:[#allocation4 + $0x50] sm:$0xf] %vm5345, %v5243
      %5357 = vst.msk [vmem:[#allocation4 + $0x58] sm:$0xf] %vm5345, %v5245
      %5358 = vst.msk [vmem:[#allocation4 + $0x60] sm:$0xf] %vm5345, %v5247
      %5359 = vst.msk [vmem:[#allocation4 + $0x68] sm:$0xf] %vm5345, %v5249
      %5360 = vst.msk [vmem:[#allocation4 + $0x70] sm:$0xf] %vm5345, %v5251
      %5361 = vst.msk [vmem:[#allocation4 + $0x78] sm:$0xf] %vm5345, %v5253
      %5362 = vst.msk [vmem:[#allocation4 + $0x80] sm:$0xf] %vm5345, %v5255
      %5363 = vst.msk [vmem:[#allocation4 + $0x88] sm:$0xf] %vm5345, %v5257
      %5364 = vst.msk [vmem:[#allocation4 + $0x90] sm:$0xf] %vm5345, %v5259
      %5365 = vst.msk [vmem:[#allocation4 + $0x98] sm:$0xf] %vm5345, %v5261
      %5366 = vst.msk [vmem:[#allocation4 + $0xa0] sm:$0xf] %vm5345, %v5263
      %5367 = vst.msk [vmem:[#allocation4 + $0xa8] sm:$0xf] %vm5345, %v5265
      %5368 = vst.msk [vmem:[#allocation4 + $0xb0] sm:$0xf] %vm5345, %v5267
      %5369 = vst.msk [vmem:[#allocation4 + $0xb8] sm:$0xf] %vm5345, %v5269
      %5370 = vst.msk [vmem:[#allocation4 + $0xc0] sm:$0xf] %vm5345, %v5271
      %5371 = vst.msk [vmem:[#allocation4 + $0xc8] sm:$0xf] %vm5345, %v5273
      %5372 = vst.msk [vmem:[#allocation4 + $0xd0] sm:$0xf] %vm5345, %v5275
      %5373 = vst.msk [vmem:[#allocation4 + $0xd8] sm:$0xf] %vm5345, %v5277
      %5374 = vst.msk [vmem:[#allocation4 + $0xe0] sm:$0xf] %vm5345, %v5279
      %5375 = vst.msk [vmem:[#allocation4 + $0xe8] sm:$0xf] %vm5345, %v5281
      %5376 = vst.msk [vmem:[#allocation4 + $0xf0] sm:$0xf] %vm5345, %v5283
      %5377 = vst.msk [vmem:[#allocation4 + $0xf8] sm:$0xf] %vm5345, %v5285
      %5378 = vst.msk [vmem:[#allocation4 + $0x100] sm:$0xf] %vm5345, %v5287
      %5379 = vst.msk [vmem:[#allocation4 + $0x108] sm:$0xf] %vm5345, %v5289
      %5380 = vst.msk [vmem:[#allocation4 + $0x110] sm:$0xf] %vm5345, %v5291
      %5381 = vst.msk [vmem:[#allocation4 + $0x118] sm:$0xf] %vm5345, %v5293
      %5382 = vst.msk [vmem:[#allocation4 + $0x120] sm:$0xf] %vm5345, %v5295
      %5383 = vst.msk [vmem:[#allocation4 + $0x128] sm:$0xf] %vm5345, %v5297
      %5384 = vst.msk [vmem:[#allocation4 + $0x130] sm:$0xf] %vm5345, %v5299
      %5385 = vst.msk [vmem:[#allocation4 + $0x138] sm:$0xf] %vm5345, %v5301
      %5386 = vst.msk [vmem:[#allocation4 + $0x140] sm:$0xf] %vm5345, %v5303
      %v5387 = vld [vmem:[#allocation3 + $0x10] sm:$0xc]
      %v5388 = vld [vmem:[#allocation3 + $0x14] sm:$0xf]
      %v5389 = vld [vmem:[#allocation3 + $0x18] sm:$0xf]
      %v5390 = vld [vmem:[#allocation3 + $0x1c] sm:$0xf]
      %v5391 = vld [vmem:[#allocation3 + $0x20] sm:$0xf]
      %v5392 = vld [vmem:[#allocation3 + $0x24] sm:$0xf]
      %v5393 = vld [vmem:[#allocation3 + $0x28] sm:$0xf]
      %v5394 = vld [vmem:[#allocation3 + $0x2c] sm:$0xf]
      %v5395 = vld [vmem:[#allocation3 + $0x30] sm:$0xf]
      %v5396 = vld [vmem:[#allocation3 + $0x34] sm:$0xf]
      %v5397 = vld [vmem:[#allocation3 + $0x38] sm:$0xf]
      %v5398 = vld [vmem:[#allocation3 + $0x3c] sm:$0xf]
      %v5399 = vld [vmem:[#allocation3 + $0x40] sm:$0xf]
      %v5400 = vld [vmem:[#allocation3 + $0x44] sm:$0xf]
      %v5401 = vld [vmem:[#allocation3 + $0x48] sm:$0xf]
      %v5402 = vld [vmem:[#allocation3 + $0x4c] sm:$0xf]
      %v5403 = vld [vmem:[#allocation3 + $0x50] sm:$0xf]
      %v5404 = vld [vmem:[#allocation3 + $0x54] sm:$0xf]
      %v5405 = vld [vmem:[#allocation3 + $0x58] sm:$0xf]
      %v5406 = vld [vmem:[#allocation3 + $0x5c] sm:$0xf]
      %v5407 = vld [vmem:[#allocation3 + $0x60] sm:$0xf]
      %v5408 = vld [vmem:[#allocation3 + $0x64] sm:$0xf]
      %v5409 = vld [vmem:[#allocation3 + $0x68] sm:$0xf]
      %v5410 = vld [vmem:[#allocation3 + $0x6c] sm:$0xf]
      %v5411 = vld [vmem:[#allocation3 + $0x70] sm:$0xf]
      %v5412 = vld [vmem:[#allocation3 + $0x74] sm:$0xf]
      %v5413 = vld [vmem:[#allocation3 + $0x78] sm:$0xf]
      %v5414 = vld [vmem:[#allocation3 + $0x7c] sm:$0xf]
      %v5415 = vld [vmem:[#allocation3 + $0x80] sm:$0xf]
      %v5416 = vld [vmem:[#allocation3 + $0x84] sm:$0xf]
      %v5417 = vld [vmem:[#allocation3 + $0x88] sm:$0xf]
      %v5418 = vld [vmem:[#allocation3 + $0x8c] sm:$0xf]
      %v5419 = vld [vmem:[#allocation3 + $0x90] sm:$0xf]
      %v5420 = vld [vmem:[#allocation3 + $0x94] sm:$0xf]
      %v5421 = vld [vmem:[#allocation3 + $0x98] sm:$0xf]
      %v5422 = vld [vmem:[#allocation3 + $0x9c] sm:$0xf]
      %v5423 = vld [vmem:[#allocation3 + $0xa0] sm:$0xf]
      %v5424 = vld [vmem:[#allocation3 + $0xa4] sm:$0xf]
      %v5425 = vld [vmem:[#allocation3 + $0xa8] sm:$0xf]
      %v5426 = vld [vmem:[#allocation3 + $0xac] sm:$0xf]
      %v5427 = vld [vmem:[#allocation3 + $0xb0] sm:$0xf]
      %v5428 = vld [vmem:[#allocation3 + $0xb4] sm:$0x3]
      %v5471 = vrot.slane %v5387, 6
      %v5472 = vrot.slane %v5471, 4
      %v5473 = vrot.slane %v5388, 6
      %v5474 = vsel %vm5097, %v5472, %v5473
      %v5475 = vrot.slane %v5473, 4
      %v5476 = vrot.slane %v5389, 6
      %v5477 = vsel %vm5097, %v5475, %v5476
      %v5478 = vrot.slane %v5476, 4
      %v5479 = vrot.slane %v5390, 6
      %v5480 = vsel %vm5097, %v5478, %v5479
      %v5481 = vrot.slane %v5479, 4
      %v5482 = vrot.slane %v5391, 6
      %v5483 = vsel %vm5097, %v5481, %v5482
      %v5484 = vrot.slane %v5482, 4
      %v5485 = vrot.slane %v5392, 6
      %v5486 = vsel %vm5097, %v5484, %v5485
      %v5487 = vrot.slane %v5485, 4
      %v5488 = vrot.slane %v5393, 6
      %v5489 = vsel %vm5097, %v5487, %v5488
      %v5490 = vrot.slane %v5488, 4
      %v5491 = vrot.slane %v5394, 6
      %v5492 = vsel %vm5097, %v5490, %v5491
      %v5493 = vrot.slane %v5491, 4
      %v5494 = vrot.slane %v5395, 6
      %v5495 = vsel %vm5097, %v5493, %v5494
      %v5496 = vrot.slane %v5494, 4
      %v5497 = vrot.slane %v5396, 6
      %v5498 = vsel %vm5097, %v5496, %v5497
      %v5499 = vrot.slane %v5497, 4
      %v5500 = vrot.slane %v5397, 6
      %v5501 = vsel %vm5097, %v5499, %v5500
      %v5502 = vrot.slane %v5500, 4
      %v5503 = vrot.slane %v5398, 6
      %v5504 = vsel %vm5097, %v5502, %v5503
      %v5505 = vrot.slane %v5503, 4
      %v5506 = vrot.slane %v5399, 6
      %v5507 = vsel %vm5097, %v5505, %v5506
      %v5508 = vrot.slane %v5506, 4
      %v5509 = vrot.slane %v5400, 6
      %v5510 = vsel %vm5097, %v5508, %v5509
      %v5511 = vrot.slane %v5509, 4
      %v5512 = vrot.slane %v5401, 6
      %v5513 = vsel %vm5097, %v5511, %v5512
      %v5514 = vrot.slane %v5512, 4
      %v5515 = vrot.slane %v5402, 6
      %v5516 = vsel %vm5097, %v5514, %v5515
      %v5517 = vrot.slane %v5515, 4
      %v5518 = vrot.slane %v5403, 6
      %v5519 = vsel %vm5097, %v5517, %v5518
      %v5520 = vrot.slane %v5518, 4
      %v5521 = vrot.slane %v5404, 6
      %v5522 = vsel %vm5097, %v5520, %v5521
      %v5523 = vrot.slane %v5521, 4
      %v5524 = vrot.slane %v5405, 6
      %v5525 = vsel %vm5097, %v5523, %v5524
      %v5526 = vrot.slane %v5524, 4
      %v5527 = vrot.slane %v5406, 6
      %v5528 = vsel %vm5097, %v5526, %v5527
      %v5529 = vrot.slane %v5527, 4
      %v5530 = vrot.slane %v5407, 6
      %v5531 = vsel %vm5097, %v5529, %v5530
      %v5532 = vrot.slane %v5530, 4
      %v5533 = vrot.slane %v5408, 6
      %v5534 = vsel %vm5097, %v5532, %v5533
      %v5535 = vrot.slane %v5533, 4
      %v5536 = vrot.slane %v5409, 6
      %v5537 = vsel %vm5097, %v5535, %v5536
      %v5538 = vrot.slane %v5536, 4
      %v5539 = vrot.slane %v5410, 6
      %v5540 = vsel %vm5097, %v5538, %v5539
      %v5541 = vrot.slane %v5539, 4
      %v5542 = vrot.slane %v5411, 6
      %v5543 = vsel %vm5097, %v5541, %v5542
      %v5544 = vrot.slane %v5542, 4
      %v5545 = vrot.slane %v5412, 6
      %v5546 = vsel %vm5097, %v5544, %v5545
      %v5547 = vrot.slane %v5545, 4
      %v5548 = vrot.slane %v5413, 6
      %v5549 = vsel %vm5097, %v5547, %v5548
      %v5550 = vrot.slane %v5548, 4
      %v5551 = vrot.slane %v5414, 6
      %v5552 = vsel %vm5097, %v5550, %v5551
      %v5553 = vrot.slane %v5551, 4
      %v5554 = vrot.slane %v5415, 6
      %v5555 = vsel %vm5097, %v5553, %v5554
      %v5556 = vrot.slane %v5554, 4
      %v5557 = vrot.slane %v5416, 6
      %v5558 = vsel %vm5097, %v5556, %v5557
      %v5559 = vrot.slane %v5557, 4
      %v5560 = vrot.slane %v5417, 6
      %v5561 = vsel %vm5097, %v5559, %v5560
      %v5562 = vrot.slane %v5560, 4
      %v5563 = vrot.slane %v5418, 6
      %v5564 = vsel %vm5097, %v5562, %v5563
      %v5565 = vrot.slane %v5563, 4
      %v5566 = vrot.slane %v5419, 6
      %v5567 = vsel %vm5097, %v5565, %v5566
      %v5568 = vrot.slane %v5566, 4
      %v5569 = vrot.slane %v5420, 6
      %v5570 = vsel %vm5097, %v5568, %v5569
      %v5571 = vrot.slane %v5569, 4
      %v5572 = vrot.slane %v5421, 6
      %v5573 = vsel %vm5097, %v5571, %v5572
      %v5574 = vrot.slane %v5572, 4
      %v5575 = vrot.slane %v5422, 6
      %v5576 = vsel %vm5097, %v5574, %v5575
      %v5577 = vrot.slane %v5575, 4
      %v5578 = vrot.slane %v5423, 6
      %v5579 = vsel %vm5097, %v5577, %v5578
      %v5580 = vrot.slane %v5578, 4
      %v5581 = vrot.slane %v5424, 6
      %v5582 = vsel %vm5097, %v5580, %v5581
      %v5583 = vrot.slane %v5581, 4
      %v5584 = vrot.slane %v5425, 6
      %v5585 = vsel %vm5097, %v5583, %v5584
      %v5586 = vrot.slane %v5584, 4
      %v5587 = vrot.slane %v5426, 6
      %v5588 = vsel %vm5097, %v5586, %v5587
      %v5589 = vrot.slane %v5587, 4
      %v5590 = vrot.slane %v5427, 6
      %v5591 = vsel %vm5097, %v5589, %v5590
      %v5592 = vrot.slane %v5590, 4
      %v5593 = vrot.slane %v5428, 6
      %v5594 = vsel %vm5097, %v5592, %v5593
      %5595 = vrot.lane.b32.xlu0 %v5474, 96
      %v5596 = vpop.permute.xlu0 %5595
      %5597 = vrot.lane.b32.xlu0 %v5477, 96
      %v5598 = vpop.permute.xlu0 %5597
      %5599 = vrot.lane.b32.xlu0 %v5480, 96
      %v5600 = vpop.permute.xlu0 %5599
      %5601 = vrot.lane.b32.xlu0 %v5483, 96
      %v5602 = vpop.permute.xlu0 %5601
      %5603 = vrot.lane.b32.xlu0 %v5486, 96
      %v5604 = vpop.permute.xlu0 %5603
      %5605 = vrot.lane.b32.xlu0 %v5489, 96
      %v5606 = vpop.permute.xlu0 %5605
      %5607 = vrot.lane.b32.xlu0 %v5492, 96
      %v5608 = vpop.permute.xlu0 %5607
      %5609 = vrot.lane.b32.xlu0 %v5495, 96
      %v5610 = vpop.permute.xlu0 %5609
      %5611 = vrot.lane.b32.xlu0 %v5498, 96
      %v5612 = vpop.permute.xlu0 %5611
      %5613 = vrot.lane.b32.xlu0 %v5501, 96
      %v5614 = vpop.permute.xlu0 %5613
      %5615 = vrot.lane.b32.xlu0 %v5504, 96
      %v5616 = vpop.permute.xlu0 %5615
      %5617 = vrot.lane.b32.xlu0 %v5507, 96
      %v5618 = vpop.permute.xlu0 %5617
      %5619 = vrot.lane.b32.xlu0 %v5510, 96
      %v5620 = vpop.permute.xlu0 %5619
      %5621 = vrot.lane.b32.xlu0 %v5513, 96
      %v5622 = vpop.permute.xlu0 %5621
      %5623 = vrot.lane.b32.xlu0 %v5516, 96
      %v5624 = vpop.permute.xlu0 %5623
      %5625 = vrot.lane.b32.xlu0 %v5519, 96
      %v5626 = vpop.permute.xlu0 %5625
      %5627 = vrot.lane.b32.xlu0 %v5522, 96
      %v5628 = vpop.permute.xlu0 %5627
      %5629 = vrot.lane.b32.xlu0 %v5525, 96
      %v5630 = vpop.permute.xlu0 %5629
      %5631 = vrot.lane.b32.xlu0 %v5528, 96
      %v5632 = vpop.permute.xlu0 %5631
      %5633 = vrot.lane.b32.xlu0 %v5531, 96
      %v5634 = vpop.permute.xlu0 %5633
      %5635 = vrot.lane.b32.xlu0 %v5534, 96
      %v5636 = vpop.permute.xlu0 %5635
      %5637 = vrot.lane.b32.xlu0 %v5537, 96
      %v5638 = vpop.permute.xlu0 %5637
      %5639 = vrot.lane.b32.xlu0 %v5540, 96
      %v5640 = vpop.permute.xlu0 %5639
      %5641 = vrot.lane.b32.xlu0 %v5543, 96
      %v5642 = vpop.permute.xlu0 %5641
      %5643 = vrot.lane.b32.xlu0 %v5546, 96
      %v5644 = vpop.permute.xlu0 %5643
      %5645 = vrot.lane.b32.xlu0 %v5549, 96
      %v5646 = vpop.permute.xlu0 %5645
      %5647 = vrot.lane.b32.xlu0 %v5552, 96
      %v5648 = vpop.permute.xlu0 %5647
      %5649 = vrot.lane.b32.xlu0 %v5555, 96
      %v5650 = vpop.permute.xlu0 %5649
      %5651 = vrot.lane.b32.xlu0 %v5558, 96
      %v5652 = vpop.permute.xlu0 %5651
      %5653 = vrot.lane.b32.xlu0 %v5561, 96
      %v5654 = vpop.permute.xlu0 %5653
      %5655 = vrot.lane.b32.xlu0 %v5564, 96
      %v5656 = vpop.permute.xlu0 %5655
      %5657 = vrot.lane.b32.xlu0 %v5567, 96
      %v5658 = vpop.permute.xlu0 %5657
      %5659 = vrot.lane.b32.xlu0 %v5570, 96
      %v5660 = vpop.permute.xlu0 %5659
      %5661 = vrot.lane.b32.xlu0 %v5573, 96
      %v5662 = vpop.permute.xlu0 %5661
      %5663 = vrot.lane.b32.xlu0 %v5576, 96
      %v5664 = vpop.permute.xlu0 %5663
      %5665 = vrot.lane.b32.xlu0 %v5579, 96
      %v5666 = vpop.permute.xlu0 %5665
      %5667 = vrot.lane.b32.xlu0 %v5582, 96
      %v5668 = vpop.permute.xlu0 %5667
      %5669 = vrot.lane.b32.xlu0 %v5585, 96
      %v5670 = vpop.permute.xlu0 %5669
      %5671 = vrot.lane.b32.xlu0 %v5588, 96
      %v5672 = vpop.permute.xlu0 %5671
      %5673 = vrot.lane.b32.xlu0 %v5591, 96
      %v5674 = vpop.permute.xlu0 %5673
      %5675 = vrot.lane.b32.xlu0 %v5594, 96
      %v5676 = vpop.permute.xlu0 %5675
      %vm5718 = vcmask 913152
      %5719 = vst.msk [vmem:[#allocation4] sm:$0xf] %vm5718, %v5596
      %5720 = vst.msk [vmem:[#allocation4 + $0x8] sm:$0xf] %vm5718, %v5598
      %5721 = vst.msk [vmem:[#allocation4 + $0x10] sm:$0xf] %vm5718, %v5600
      %5722 = vst.msk [vmem:[#allocation4 + $0x18] sm:$0xf] %vm5718, %v5602
      %5723 = vst.msk [vmem:[#allocation4 + $0x20] sm:$0xf] %vm5718, %v5604
      %5724 = vst.msk [vmem:[#allocation4 + $0x28] sm:$0xf] %vm5718, %v5606
      %5725 = vst.msk [vmem:[#allocation4 + $0x30] sm:$0xf] %vm5718, %v5608
      %5726 = vst.msk [vmem:[#allocation4 + $0x38] sm:$0xf] %vm5718, %v5610
      %5727 = vst.msk [vmem:[#allocation4 + $0x40] sm:$0xf] %vm5718, %v5612
      %5728 = vst.msk [vmem:[#allocation4 + $0x48] sm:$0xf] %vm5718, %v5614
      %5729 = vst.msk [vmem:[#allocation4 + $0x50] sm:$0xf] %vm5718, %v5616
      %5730 = vst.msk [vmem:[#allocation4 + $0x58] sm:$0xf] %vm5718, %v5618
      %5731 = vst.msk [vmem:[#allocation4 + $0x60] sm:$0xf] %vm5718, %v5620
      %5732 = vst.msk [vmem:[#allocation4 + $0x68] sm:$0xf] %vm5718, %v5622
      %5733 = vst.msk [vmem:[#allocation4 + $0x70] sm:$0xf] %vm5718, %v5624
      %5734 = vst.msk [vmem:[#allocation4 + $0x78] sm:$0xf] %vm5718, %v5626
      %5735 = vst.msk [vmem:[#allocation4 + $0x80] sm:$0xf] %vm5718, %v5628
      %5736 = vst.msk [vmem:[#allocation4 + $0x88] sm:$0xf] %vm5718, %v5630
      %5737 = vst.msk [vmem:[#allocation4 + $0x90] sm:$0xf] %vm5718, %v5632
      %5738 = vst.msk [vmem:[#allocation4 + $0x98] sm:$0xf] %vm5718, %v5634
      %5739 = vst.msk [vmem:[#allocation4 + $0xa0] sm:$0xf] %vm5718, %v5636
      %5740 = vst.msk [vmem:[#allocation4 + $0xa8] sm:$0xf] %vm5718, %v5638
      %5741 = vst.msk [vmem:[#allocation4 + $0xb0] sm:$0xf] %vm5718, %v5640
      %5742 = vst.msk [vmem:[#allocation4 + $0xb8] sm:$0xf] %vm5718, %v5642
      %5743 = vst.msk [vmem:[#allocation4 + $0xc0] sm:$0xf] %vm5718, %v5644
      %5744 = vst.msk [vmem:[#allocation4 + $0xc8] sm:$0xf] %vm5718, %v5646
      %5745 = vst.msk [vmem:[#allocation4 + $0xd0] sm:$0xf] %vm5718, %v5648
      %5746 = vst.msk [vmem:[#allocation4 + $0xd8] sm:$0xf] %vm5718, %v5650
      %5747 = vst.msk [vmem:[#allocation4 + $0xe0] sm:$0xf] %vm5718, %v5652
      %5748 = vst.msk [vmem:[#allocation4 + $0xe8] sm:$0xf] %vm5718, %v5654
      %5749 = vst.msk [vmem:[#allocation4 + $0xf0] sm:$0xf] %vm5718, %v5656
      %5750 = vst.msk [vmem:[#allocation4 + $0xf8] sm:$0xf] %vm5718, %v5658
      %5751 = vst.msk [vmem:[#allocation4 + $0x100] sm:$0xf] %vm5718, %v5660
      %5752 = vst.msk [vmem:[#allocation4 + $0x108] sm:$0xf] %vm5718, %v5662
      %5753 = vst.msk [vmem:[#allocation4 + $0x110] sm:$0xf] %vm5718, %v5664
      %5754 = vst.msk [vmem:[#allocation4 + $0x118] sm:$0xf] %vm5718, %v5666
      %5755 = vst.msk [vmem:[#allocation4 + $0x120] sm:$0xf] %vm5718, %v5668
      %5756 = vst.msk [vmem:[#allocation4 + $0x128] sm:$0xf] %vm5718, %v5670
      %5757 = vst.msk [vmem:[#allocation4 + $0x130] sm:$0xf] %vm5718, %v5672
      %5758 = vst.msk [vmem:[#allocation4 + $0x138] sm:$0xf] %vm5718, %v5674
      %5759 = vst.msk [vmem:[#allocation4 + $0x140] sm:$0xf] %vm5718, %v5676
      %v5760 = vld [vmem:[#allocation3 + $0x10] sm:$0xc]
      %v5761 = vld [vmem:[#allocation3 + $0x14] sm:$0xf]
      %v5762 = vld [vmem:[#allocation3 + $0x18] sm:$0xf]
      %v5763 = vld [vmem:[#allocation3 + $0x1c] sm:$0xf]
      %v5764 = vld [vmem:[#allocation3 + $0x20] sm:$0xf]
      %v5765 = vld [vmem:[#allocation3 + $0x24] sm:$0xf]
      %v5766 = vld [vmem:[#allocation3 + $0x28] sm:$0xf]
      %v5767 = vld [vmem:[#allocation3 + $0x2c] sm:$0xf]
      %v5768 = vld [vmem:[#allocation3 + $0x30] sm:$0xf]
      %v5769 = vld [vmem:[#allocation3 + $0x34] sm:$0xf]
      %v5770 = vld [vmem:[#allocation3 + $0x38] sm:$0xf]
      %v5771 = vld [vmem:[#allocation3 + $0x3c] sm:$0xf]
      %v5772 = vld [vmem:[#allocation3 + $0x40] sm:$0xf]
      %v5773 = vld [vmem:[#allocation3 + $0x44] sm:$0xf]
      %v5774 = vld [vmem:[#allocation3 + $0x48] sm:$0xf]
      %v5775 = vld [vmem:[#allocation3 + $0x4c] sm:$0xf]
      %v5776 = vld [vmem:[#allocation3 + $0x50] sm:$0xf]
      %v5777 = vld [vmem:[#allocation3 + $0x54] sm:$0xf]
      %v5778 = vld [vmem:[#allocation3 + $0x58] sm:$0xf]
      %v5779 = vld [vmem:[#allocation3 + $0x5c] sm:$0xf]
      %v5780 = vld [vmem:[#allocation3 + $0x60] sm:$0xf]
      %v5781 = vld [vmem:[#allocation3 + $0x64] sm:$0xf]
      %v5782 = vld [vmem:[#allocation3 + $0x68] sm:$0xf]
      %v5783 = vld [vmem:[#allocation3 + $0x6c] sm:$0xf]
      %v5784 = vld [vmem:[#allocation3 + $0x70] sm:$0xf]
      %v5785 = vld [vmem:[#allocation3 + $0x74] sm:$0xf]
      %v5786 = vld [vmem:[#allocation3 + $0x78] sm:$0xf]
      %v5787 = vld [vmem:[#allocation3 + $0x7c] sm:$0xf]
      %v5788 = vld [vmem:[#allocation3 + $0x80] sm:$0xf]
      %v5789 = vld [vmem:[#allocation3 + $0x84] sm:$0xf]
      %v5790 = vld [vmem:[#allocation3 + $0x88] sm:$0xf]
      %v5791 = vld [vmem:[#allocation3 + $0x8c] sm:$0xf]
      %v5792 = vld [vmem:[#allocation3 + $0x90] sm:$0xf]
      %v5793 = vld [vmem:[#allocation3 + $0x94] sm:$0xf]
      %v5794 = vld [vmem:[#allocation3 + $0x98] sm:$0xf]
      %v5795 = vld [vmem:[#allocation3 + $0x9c] sm:$0xf]
      %v5796 = vld [vmem:[#allocation3 + $0xa0] sm:$0xf]
      %v5797 = vld [vmem:[#allocation3 + $0xa4] sm:$0xf]
      %v5798 = vld [vmem:[#allocation3 + $0xa8] sm:$0xf]
      %v5799 = vld [vmem:[#allocation3 + $0xac] sm:$0xf]
      %v5800 = vld [vmem:[#allocation3 + $0xb0] sm:$0xf]
      %v5801 = vld [vmem:[#allocation3 + $0xb4] sm:$0x7]
      %vm5802 = vsmask.f32 1280
      %vm5803 = vsmask.f32 5392
      %vm5804 = vmor %vm5802, %vm5803
      %v5806 = vshrl.u32 %v5760, 16
      %v5808 = vrot.slane %v5806, 6
      %v5809 = vshll.u32 %v5760, 16
      %v5811 = vrot.slane %v5809, 7
      %v5812 = vor.u32 %v5808, %v5811
      %v5813 = vrot.slane %v5812, 4
      %v5815 = vshrl.u32 %v5761, 16
      %v5817 = vrot.slane %v5815, 6
      %v5818 = vshll.u32 %v5761, 16
      %v5820 = vrot.slane %v5818, 7
      %v5821 = vor.u32 %v5817, %v5820
      %v5822 = vsel %vm5804, %v5813, %v5821
      %v5823 = vrot.slane %v5821, 4
      %v5825 = vshrl.u32 %v5762, 16
      %v5827 = vrot.slane %v5825, 6
      %v5828 = vshll.u32 %v5762, 16
      %v5830 = vrot.slane %v5828, 7
      %v5831 = vor.u32 %v5827, %v5830
      %v5832 = vsel %vm5804, %v5823, %v5831
      %v5833 = vrot.slane %v5831, 4
      %v5835 = vshrl.u32 %v5763, 16
      %v5837 = vrot.slane %v5835, 6
      %v5838 = vshll.u32 %v5763, 16
      %v5840 = vrot.slane %v5838, 7
      %v5841 = vor.u32 %v5837, %v5840
      %v5842 = vsel %vm5804, %v5833, %v5841
      %v5843 = vrot.slane %v5841, 4
      %v5845 = vshrl.u32 %v5764, 16
      %v5847 = vrot.slane %v5845, 6
      %v5848 = vshll.u32 %v5764, 16
      %v5850 = vrot.slane %v5848, 7
      %v5851 = vor.u32 %v5847, %v5850
      %v5852 = vsel %vm5804, %v5843, %v5851
      %v5853 = vrot.slane %v5851, 4
      %v5855 = vshrl.u32 %v5765, 16
      %v5857 = vrot.slane %v5855, 6
      %v5858 = vshll.u32 %v5765, 16
      %v5860 = vrot.slane %v5858, 7
      %v5861 = vor.u32 %v5857, %v5860
      %v5862 = vsel %vm5804, %v5853, %v5861
      %v5863 = vrot.slane %v5861, 4
      %v5865 = vshrl.u32 %v5766, 16
      %v5867 = vrot.slane %v5865, 6
      %v5868 = vshll.u32 %v5766, 16
      %v5870 = vrot.slane %v5868, 7
      %v5871 = vor.u32 %v5867, %v5870
      %v5872 = vsel %vm5804, %v5863, %v5871
      %v5873 = vrot.slane %v5871, 4
      %v5875 = vshrl.u32 %v5767, 16
      %v5877 = vrot.slane %v5875, 6
      %v5878 = vshll.u32 %v5767, 16
      %v5880 = vrot.slane %v5878, 7
      %v5881 = vor.u32 %v5877, %v5880
      %v5882 = vsel %vm5804, %v5873, %v5881
      %v5883 = vrot.slane %v5881, 4
      %v5885 = vshrl.u32 %v5768, 16
      %v5887 = vrot.slane %v5885, 6
      %v5888 = vshll.u32 %v5768, 16
      %v5890 = vrot.slane %v5888, 7
      %v5891 = vor.u32 %v5887, %v5890
      %v5892 = vsel %vm5804, %v5883, %v5891
      %v5893 = vrot.slane %v5891, 4
      %v5895 = vshrl.u32 %v5769, 16
      %v5897 = vrot.slane %v5895, 6
      %v5898 = vshll.u32 %v5769, 16
      %v5900 = vrot.slane %v5898, 7
      %v5901 = vor.u32 %v5897, %v5900
      %v5902 = vsel %vm5804, %v5893, %v5901
      %v5903 = vrot.slane %v5901, 4
      %v5905 = vshrl.u32 %v5770, 16
      %v5907 = vrot.slane %v5905, 6
      %v5908 = vshll.u32 %v5770, 16
      %v5910 = vrot.slane %v5908, 7
      %v5911 = vor.u32 %v5907, %v5910
      %v5912 = vsel %vm5804, %v5903, %v5911
      %v5913 = vrot.slane %v5911, 4
      %v5915 = vshrl.u32 %v5771, 16
      %v5917 = vrot.slane %v5915, 6
      %v5918 = vshll.u32 %v5771, 16
      %v5920 = vrot.slane %v5918, 7
      %v5921 = vor.u32 %v5917, %v5920
      %v5922 = vsel %vm5804, %v5913, %v5921
      %v5923 = vrot.slane %v5921, 4
      %v5925 = vshrl.u32 %v5772, 16
      %v5927 = vrot.slane %v5925, 6
      %v5928 = vshll.u32 %v5772, 16
      %v5930 = vrot.slane %v5928, 7
      %v5931 = vor.u32 %v5927, %v5930
      %v5932 = vsel %vm5804, %v5923, %v5931
      %v5933 = vrot.slane %v5931, 4
      %v5935 = vshrl.u32 %v5773, 16
      %v5937 = vrot.slane %v5935, 6
      %v5938 = vshll.u32 %v5773, 16
      %v5940 = vrot.slane %v5938, 7
      %v5941 = vor.u32 %v5937, %v5940
      %v5942 = vsel %vm5804, %v5933, %v5941
      %v5943 = vrot.slane %v5941, 4
      %v5945 = vshrl.u32 %v5774, 16
      %v5947 = vrot.slane %v5945, 6
      %v5948 = vshll.u32 %v5774, 16
      %v5950 = vrot.slane %v5948, 7
      %v5951 = vor.u32 %v5947, %v5950
      %v5952 = vsel %vm5804, %v5943, %v5951
      %v5953 = vrot.slane %v5951, 4
      %v5955 = vshrl.u32 %v5775, 16
      %v5957 = vrot.slane %v5955, 6
      %v5958 = vshll.u32 %v5775, 16
      %v5960 = vrot.slane %v5958, 7
      %v5961 = vor.u32 %v5957, %v5960
      %v5962 = vsel %vm5804, %v5953, %v5961
      %v5963 = vrot.slane %v5961, 4
      %v5965 = vshrl.u32 %v5776, 16
      %v5967 = vrot.slane %v5965, 6
      %v5968 = vshll.u32 %v5776, 16
      %v5970 = vrot.slane %v5968, 7
      %v5971 = vor.u32 %v5967, %v5970
      %v5972 = vsel %vm5804, %v5963, %v5971
      %v5973 = vrot.slane %v5971, 4
      %v5975 = vshrl.u32 %v5777, 16
      %v5977 = vrot.slane %v5975, 6
      %v5978 = vshll.u32 %v5777, 16
      %v5980 = vrot.slane %v5978, 7
      %v5981 = vor.u32 %v5977, %v5980
      %v5982 = vsel %vm5804, %v5973, %v5981
      %v5983 = vrot.slane %v5981, 4
      %v5985 = vshrl.u32 %v5778, 16
      %v5987 = vrot.slane %v5985, 6
      %v5988 = vshll.u32 %v5778, 16
      %v5990 = vrot.slane %v5988, 7
      %v5991 = vor.u32 %v5987, %v5990
      %v5992 = vsel %vm5804, %v5983, %v5991
      %v5993 = vrot.slane %v5991, 4
      %v5995 = vshrl.u32 %v5779, 16
      %v5997 = vrot.slane %v5995, 6
      %v5998 = vshll.u32 %v5779, 16
      %v6000 = vrot.slane %v5998, 7
      %v6001 = vor.u32 %v5997, %v6000
      %v6002 = vsel %vm5804, %v5993, %v6001
      %v6003 = vrot.slane %v6001, 4
      %v6005 = vshrl.u32 %v5780, 16
      %v6007 = vrot.slane %v6005, 6
      %v6008 = vshll.u32 %v5780, 16
      %v6010 = vrot.slane %v6008, 7
      %v6011 = vor.u32 %v6007, %v6010
      %v6012 = vsel %vm5804, %v6003, %v6011
      %v6013 = vrot.slane %v6011, 4
      %v6015 = vshrl.u32 %v5781, 16
      %v6017 = vrot.slane %v6015, 6
      %v6018 = vshll.u32 %v5781, 16
      %v6020 = vrot.slane %v6018, 7
      %v6021 = vor.u32 %v6017, %v6020
      %v6022 = vsel %vm5804, %v6013, %v6021
      %v6023 = vrot.slane %v6021, 4
      %v6025 = vshrl.u32 %v5782, 16
      %v6027 = vrot.slane %v6025, 6
      %v6028 = vshll.u32 %v5782, 16
      %v6030 = vrot.slane %v6028, 7
      %v6031 = vor.u32 %v6027, %v6030
      %v6032 = vsel %vm5804, %v6023, %v6031
      %v6033 = vrot.slane %v6031, 4
      %v6035 = vshrl.u32 %v5783, 16
      %v6037 = vrot.slane %v6035, 6
      %v6038 = vshll.u32 %v5783, 16
      %v6040 = vrot.slane %v6038, 7
      %v6041 = vor.u32 %v6037, %v6040
      %v6042 = vsel %vm5804, %v6033, %v6041
      %v6043 = vrot.slane %v6041, 4
      %v6045 = vshrl.u32 %v5784, 16
      %v6047 = vrot.slane %v6045, 6
      %v6048 = vshll.u32 %v5784, 16
      %v6050 = vrot.slane %v6048, 7
      %v6051 = vor.u32 %v6047, %v6050
      %v6052 = vsel %vm5804, %v6043, %v6051
      %v6053 = vrot.slane %v6051, 4
      %v6055 = vshrl.u32 %v5785, 16
      %v6057 = vrot.slane %v6055, 6
      %v6058 = vshll.u32 %v5785, 16
      %v6060 = vrot.slane %v6058, 7
      %v6061 = vor.u32 %v6057, %v6060
      %v6062 = vsel %vm5804, %v6053, %v6061
      %v6063 = vrot.slane %v6061, 4
      %v6065 = vshrl.u32 %v5786, 16
      %v6067 = vrot.slane %v6065, 6
      %v6068 = vshll.u32 %v5786, 16
      %v6070 = vrot.slane %v6068, 7
      %v6071 = vor.u32 %v6067, %v6070
      %v6072 = vsel %vm5804, %v6063, %v6071
      %v6073 = vrot.slane %v6071, 4
      %v6075 = vshrl.u32 %v5787, 16
      %v6077 = vrot.slane %v6075, 6
      %v6078 = vshll.u32 %v5787, 16
      %v6080 = vrot.slane %v6078, 7
      %v6081 = vor.u32 %v6077, %v6080
      %v6082 = vsel %vm5804, %v6073, %v6081
      %v6083 = vrot.slane %v6081, 4
      %v6085 = vshrl.u32 %v5788, 16
      %v6087 = vrot.slane %v6085, 6
      %v6088 = vshll.u32 %v5788, 16
      %v6090 = vrot.slane %v6088, 7
      %v6091 = vor.u32 %v6087, %v6090
      %v6092 = vsel %vm5804, %v6083, %v6091
      %v6093 = vrot.slane %v6091, 4
      %v6095 = vshrl.u32 %v5789, 16
      %v6097 = vrot.slane %v6095, 6
      %v6098 = vshll.u32 %v5789, 16
      %v6100 = vrot.slane %v6098, 7
      %v6101 = vor.u32 %v6097, %v6100
      %v6102 = vsel %vm5804, %v6093, %v6101
      %v6103 = vrot.slane %v6101, 4
      %v6105 = vshrl.u32 %v5790, 16
      %v6107 = vrot.slane %v6105, 6
      %v6108 = vshll.u32 %v5790, 16
      %v6110 = vrot.slane %v6108, 7
      %v6111 = vor.u32 %v6107, %v6110
      %v6112 = vsel %vm5804, %v6103, %v6111
      %v6113 = vrot.slane %v6111, 4
      %v6115 = vshrl.u32 %v5791, 16
      %v6117 = vrot.slane %v6115, 6
      %v6118 = vshll.u32 %v5791, 16
      %v6120 = vrot.slane %v6118, 7
      %v6121 = vor.u32 %v6117, %v6120
      %v6122 = vsel %vm5804, %v6113, %v6121
      %v6123 = vrot.slane %v6121, 4
      %v6125 = vshrl.u32 %v5792, 16
      %v6127 = vrot.slane %v6125, 6
      %v6128 = vshll.u32 %v5792, 16
      %v6130 = vrot.slane %v6128, 7
      %v6131 = vor.u32 %v6127, %v6130
      %v6132 = vsel %vm5804, %v6123, %v6131
      %v6133 = vrot.slane %v6131, 4
      %v6135 = vshrl.u32 %v5793, 16
      %v6137 = vrot.slane %v6135, 6
      %v6138 = vshll.u32 %v5793, 16
      %v6140 = vrot.slane %v6138, 7
      %v6141 = vor.u32 %v6137, %v6140
      %v6142 = vsel %vm5804, %v6133, %v6141
      %v6143 = vrot.slane %v6141, 4
      %v6145 = vshrl.u32 %v5794, 16
      %v6147 = vrot.slane %v6145, 6
      %v6148 = vshll.u32 %v5794, 16
      %v6150 = vrot.slane %v6148, 7
      %v6151 = vor.u32 %v6147, %v6150
      %v6152 = vsel %vm5804, %v6143, %v6151
      %v6153 = vrot.slane %v6151, 4
      %v6155 = vshrl.u32 %v5795, 16
      %v6157 = vrot.slane %v6155, 6
      %v6158 = vshll.u32 %v5795, 16
      %v6160 = vrot.slane %v6158, 7
      %v6161 = vor.u32 %v6157, %v6160
      %v6162 = vsel %vm5804, %v6153, %v6161
      %v6163 = vrot.slane %v6161, 4
      %v6165 = vshrl.u32 %v5796, 16
      %v6167 = vrot.slane %v6165, 6
      %v6168 = vshll.u32 %v5796, 16
      %v6170 = vrot.slane %v6168, 7
      %v6171 = vor.u32 %v6167, %v6170
      %v6172 = vsel %vm5804, %v6163, %v6171
      %v6173 = vrot.slane %v6171, 4
      %v6175 = vshrl.u32 %v5797, 16
      %v6177 = vrot.slane %v6175, 6
      %v6178 = vshll.u32 %v5797, 16
      %v6180 = vrot.slane %v6178, 7
      %v6181 = vor.u32 %v6177, %v6180
      %v6182 = vsel %vm5804, %v6173, %v6181
      %v6183 = vrot.slane %v6181, 4
      %v6185 = vshrl.u32 %v5798, 16
      %v6187 = vrot.slane %v6185, 6
      %v6188 = vshll.u32 %v5798, 16
      %v6190 = vrot.slane %v6188, 7
      %v6191 = vor.u32 %v6187, %v6190
      %v6192 = vsel %vm5804, %v6183, %v6191
      %v6193 = vrot.slane %v6191, 4
      %v6195 = vshrl.u32 %v5799, 16
      %v6197 = vrot.slane %v6195, 6
      %v6198 = vshll.u32 %v5799, 16
      %v6200 = vrot.slane %v6198, 7
      %v6201 = vor.u32 %v6197, %v6200
      %v6202 = vsel %vm5804, %v6193, %v6201
      %v6203 = vrot.slane %v6201, 4
      %v6205 = vshrl.u32 %v5800, 16
      %v6207 = vrot.slane %v6205, 6
      %v6208 = vshll.u32 %v5800, 16
      %v6210 = vrot.slane %v6208, 7
      %v6211 = vor.u32 %v6207, %v6210
      %v6212 = vsel %vm5804, %v6203, %v6211
      %v6213 = vrot.slane %v6211, 4
      %v6215 = vshrl.u32 %v5801, 16
      %v6217 = vrot.slane %v6215, 6
      %v6218 = vshll.u32 %v5801, 16
      %v6220 = vrot.slane %v6218, 7
      %v6221 = vor.u32 %v6217, %v6220
      %v6222 = vsel %vm5804, %v6213, %v6221
      %6223 = vrot.lane.b32.xlu0 %v5822, 112
      %v6224 = vpop.permute.xlu0 %6223
      %6225 = vrot.lane.b32.xlu0 %v5832, 112
      %v6226 = vpop.permute.xlu0 %6225
      %6227 = vrot.lane.b32.xlu0 %v5842, 112
      %v6228 = vpop.permute.xlu0 %6227
      %6229 = vrot.lane.b32.xlu0 %v5852, 112
      %v6230 = vpop.permute.xlu0 %6229
      %6231 = vrot.lane.b32.xlu0 %v5862, 112
      %v6232 = vpop.permute.xlu0 %6231
      %6233 = vrot.lane.b32.xlu0 %v5872, 112
      %v6234 = vpop.permute.xlu0 %6233
      %6235 = vrot.lane.b32.xlu0 %v5882, 112
      %v6236 = vpop.permute.xlu0 %6235
      %6237 = vrot.lane.b32.xlu0 %v5892, 112
      %v6238 = vpop.permute.xlu0 %6237
      %6239 = vrot.lane.b32.xlu0 %v5902, 112
      %v6240 = vpop.permute.xlu0 %6239
      %6241 = vrot.lane.b32.xlu0 %v5912, 112
      %v6242 = vpop.permute.xlu0 %6241
      %6243 = vrot.lane.b32.xlu0 %v5922, 112
      %v6244 = vpop.permute.xlu0 %6243
      %6245 = vrot.lane.b32.xlu0 %v5932, 112
      %v6246 = vpop.permute.xlu0 %6245
      %6247 = vrot.lane.b32.xlu0 %v5942, 112
      %v6248 = vpop.permute.xlu0 %6247
      %6249 = vrot.lane.b32.xlu0 %v5952, 112
      %v6250 = vpop.permute.xlu0 %6249
      %6251 = vrot.lane.b32.xlu0 %v5962, 112
      %v6252 = vpop.permute.xlu0 %6251
      %6253 = vrot.lane.b32.xlu0 %v5972, 112
      %v6254 = vpop.permute.xlu0 %6253
      %6255 = vrot.lane.b32.xlu0 %v5982, 112
      %v6256 = vpop.permute.xlu0 %6255
      %6257 = vrot.lane.b32.xlu0 %v5992, 112
      %v6258 = vpop.permute.xlu0 %6257
      %6259 = vrot.lane.b32.xlu0 %v6002, 112
      %v6260 = vpop.permute.xlu0 %6259
      %6261 = vrot.lane.b32.xlu0 %v6012, 112
      %v6262 = vpop.permute.xlu0 %6261
      %6263 = vrot.lane.b32.xlu0 %v6022, 112
      %v6264 = vpop.permute.xlu0 %6263
      %6265 = vrot.lane.b32.xlu0 %v6032, 112
      %v6266 = vpop.permute.xlu0 %6265
      %6267 = vrot.lane.b32.xlu0 %v6042, 112
      %v6268 = vpop.permute.xlu0 %6267
      %6269 = vrot.lane.b32.xlu0 %v6052, 112
      %v6270 = vpop.permute.xlu0 %6269
      %6271 = vrot.lane.b32.xlu0 %v6062, 112
      %v6272 = vpop.permute.xlu0 %6271
      %6273 = vrot.lane.b32.xlu0 %v6072, 112
      %v6274 = vpop.permute.xlu0 %6273
      %6275 = vrot.lane.b32.xlu0 %v6082, 112
      %v6276 = vpop.permute.xlu0 %6275
      %6277 = vrot.lane.b32.xlu0 %v6092, 112
      %v6278 = vpop.permute.xlu0 %6277
      %6279 = vrot.lane.b32.xlu0 %v6102, 112
      %v6280 = vpop.permute.xlu0 %6279
      %6281 = vrot.lane.b32.xlu0 %v6112, 112
      %v6282 = vpop.permute.xlu0 %6281
      %6283 = vrot.lane.b32.xlu0 %v6122, 112
      %v6284 = vpop.permute.xlu0 %6283
      %6285 = vrot.lane.b32.xlu0 %v6132, 112
      %v6286 = vpop.permute.xlu0 %6285
      %6287 = vrot.lane.b32.xlu0 %v6142, 112
      %v6288 = vpop.permute.xlu0 %6287
      %6289 = vrot.lane.b32.xlu0 %v6152, 112
      %v6290 = vpop.permute.xlu0 %6289
      %6291 = vrot.lane.b32.xlu0 %v6162, 112
      %v6292 = vpop.permute.xlu0 %6291
      %6293 = vrot.lane.b32.xlu0 %v6172, 112
      %v6294 = vpop.permute.xlu0 %6293
      %6295 = vrot.lane.b32.xlu0 %v6182, 112
      %v6296 = vpop.permute.xlu0 %6295
      %6297 = vrot.lane.b32.xlu0 %v6192, 112
      %v6298 = vpop.permute.xlu0 %6297
      %6299 = vrot.lane.b32.xlu0 %v6202, 112
      %v6300 = vpop.permute.xlu0 %6299
      %6301 = vrot.lane.b32.xlu0 %v6212, 112
      %v6302 = vpop.permute.xlu0 %6301
      %6303 = vrot.lane.b32.xlu0 %v6222, 112
      %v6304 = vpop.permute.xlu0 %6303
      %vm6346 = vcmask 1044352
      %6347 = vst.msk [vmem:[#allocation4] sm:$0xf] %vm6346, %v6224
      %6348 = vst.msk [vmem:[#allocation4 + $0x8] sm:$0xf] %vm6346, %v6226
      %6349 = vst.msk [vmem:[#allocation4 + $0x10] sm:$0xf] %vm6346, %v6228
      %6350 = vst.msk [vmem:[#allocation4 + $0x18] sm:$0xf] %vm6346, %v6230
      %6351 = vst.msk [vmem:[#allocation4 + $0x20] sm:$0xf] %vm6346, %v6232
      %6352 = vst.msk [vmem:[#allocation4 + $0x28] sm:$0xf] %vm6346, %v6234
      %6353 = vst.msk [vmem:[#allocation4 + $0x30] sm:$0xf] %vm6346, %v6236
      %6354 = vst.msk [vmem:[#allocation4 + $0x38] sm:$0xf] %vm6346, %v6238
      %6355 = vst.msk [vmem:[#allocation4 + $0x40] sm:$0xf] %vm6346, %v6240
      %6356 = vst.msk [vmem:[#allocation4 + $0x48] sm:$0xf] %vm6346, %v6242
      %6357 = vst.msk [vmem:[#allocation4 + $0x50] sm:$0xf] %vm6346, %v6244
      %6358 = vst.msk [vmem:[#allocation4 + $0x58] sm:$0xf] %vm6346, %v6246
      %6359 = vst.msk [vmem:[#allocation4 + $0x60] sm:$0xf] %vm6346, %v6248
      %6360 = vst.msk [vmem:[#allocation4 + $0x68] sm:$0xf] %vm6346, %v6250
      %6361 = vst.msk [vmem:[#allocation4 + $0x70] sm:$0xf] %vm6346, %v6252
      %6362 = vst.msk [vmem:[#allocation4 + $0x78] sm:$0xf] %vm6346, %v6254
      %6363 = vst.msk [vmem:[#allocation4 + $0x80] sm:$0xf] %vm6346, %v6256
      %6364 = vst.msk [vmem:[#allocation4 + $0x88] sm:$0xf] %vm6346, %v6258
      %6365 = vst.msk [vmem:[#allocation4 + $0x90] sm:$0xf] %vm6346, %v6260
      %6366 = vst.msk [vmem:[#allocation4 + $0x98] sm:$0xf] %vm6346, %v6262
      %6367 = vst.msk [vmem:[#allocation4 + $0xa0] sm:$0xf] %vm6346, %v6264
      %6368 = vst.msk [vmem:[#allocation4 + $0xa8] sm:$0xf] %vm6346, %v6266
      %6369 = vst.msk [vmem:[#allocation4 + $0xb0] sm:$0xf] %vm6346, %v6268
      %6370 = vst.msk [vmem:[#allocation4 + $0xb8] sm:$0xf] %vm6346, %v6270
      %6371 = vst.msk [vmem:[#allocation4 + $0xc0] sm:$0xf] %vm6346, %v6272
      %6372 = vst.msk [vmem:[#allocation4 + $0xc8] sm:$0xf] %vm6346, %v6274
      %6373 = vst.msk [vmem:[#allocation4 + $0xd0] sm:$0xf] %vm6346, %v6276
      %6374 = vst.msk [vmem:[#allocation4 + $0xd8] sm:$0xf] %vm6346, %v6278
      %6375 = vst.msk [vmem:[#allocation4 + $0xe0] sm:$0xf] %vm6346, %v6280
      %6376 = vst.msk [vmem:[#allocation4 + $0xe8] sm:$0xf] %vm6346, %v6282
      %6377 = vst.msk [vmem:[#allocation4 + $0xf0] sm:$0xf] %vm6346, %v6284
      %6378 = vst.msk [vmem:[#allocation4 + $0xf8] sm:$0xf] %vm6346, %v6286
      %6379 = vst.msk [vmem:[#allocation4 + $0x100] sm:$0xf] %vm6346, %v6288
      %6380 = vst.msk [vmem:[#allocation4 + $0x108] sm:$0xf] %vm6346, %v6290
      %6381 = vst.msk [vmem:[#allocation4 + $0x110] sm:$0xf] %vm6346, %v6292
      %6382 = vst.msk [vmem:[#allocation4 + $0x118] sm:$0xf] %vm6346, %v6294
      %6383 = vst.msk [vmem:[#allocation4 + $0x120] sm:$0xf] %vm6346, %v6296
      %6384 = vst.msk [vmem:[#allocation4 + $0x128] sm:$0xf] %vm6346, %v6298
      %6385 = vst.msk [vmem:[#allocation4 + $0x130] sm:$0xf] %vm6346, %v6300
      %6386 = vst.msk [vmem:[#allocation4 + $0x138] sm:$0xf] %vm6346, %v6302
      %6387 = vst.msk [vmem:[#allocation4 + $0x140] sm:$0xf] %vm6346, %v6304
      %v6388 = vld [vmem:[#allocation3 + $0x10] sm:$0x8]
      %v6389 = vld [vmem:[#allocation3 + $0x14] sm:$0xf]
      %v6390 = vld [vmem:[#allocation3 + $0x18] sm:$0xf]
      %v6391 = vld [vmem:[#allocation3 + $0x1c] sm:$0xf]
      %v6392 = vld [vmem:[#allocation3 + $0x20] sm:$0xf]
      %v6393 = vld [vmem:[#allocation3 + $0x24] sm:$0xf]
      %v6394 = vld [vmem:[#allocation3 + $0x28] sm:$0xf]
      %v6395 = vld [vmem:[#allocation3 + $0x2c] sm:$0xf]
      %v6396 = vld [vmem:[#allocation3 + $0x30] sm:$0xf]
      %v6397 = vld [vmem:[#allocation3 + $0x34] sm:$0xf]
      %v6398 = vld [vmem:[#allocation3 + $0x38] sm:$0xf]
      %v6399 = vld [vmem:[#allocation3 + $0x3c] sm:$0xf]
      %v6400 = vld [vmem:[#allocation3 + $0x40] sm:$0xf]
      %v6401 = vld [vmem:[#allocation3 + $0x44] sm:$0xf]
      %v6402 = vld [vmem:[#allocation3 + $0x48] sm:$0xf]
      %v6403 = vld [vmem:[#allocation3 + $0x4c] sm:$0xf]
      %v6404 = vld [vmem:[#allocation3 + $0x50] sm:$0xf]
      %v6405 = vld [vmem:[#allocation3 + $0x54] sm:$0xf]
      %v6406 = vld [vmem:[#allocation3 + $0x58] sm:$0xf]
      %v6407 = vld [vmem:[#allocation3 + $0x5c] sm:$0xf]
      %v6408 = vld [vmem:[#allocation3 + $0x60] sm:$0xf]
      %v6409 = vld [vmem:[#allocation3 + $0x64] sm:$0xf]
      %v6410 = vld [vmem:[#allocation3 + $0x68] sm:$0xf]
      %v6411 = vld [vmem:[#allocation3 + $0x6c] sm:$0xf]
      %v6412 = vld [vmem:[#allocation3 + $0x70] sm:$0xf]
      %v6413 = vld [vmem:[#allocation3 + $0x74] sm:$0xf]
      %v6414 = vld [vmem:[#allocation3 + $0x78] sm:$0xf]
      %v6415 = vld [vmem:[#allocation3 + $0x7c] sm:$0xf]
      %v6416 = vld [vmem:[#allocation3 + $0x80] sm:$0xf]
      %v6417 = vld [vmem:[#allocation3 + $0x84] sm:$0xf]
      %v6418 = vld [vmem:[#allocation3 + $0x88] sm:$0xf]
      %v6419 = vld [vmem:[#allocation3 + $0x8c] sm:$0xf]
      %v6420 = vld [vmem:[#allocation3 + $0x90] sm:$0xf]
      %v6421 = vld [vmem:[#allocation3 + $0x94] sm:$0xf]
      %v6422 = vld [vmem:[#allocation3 + $0x98] sm:$0xf]
      %v6423 = vld [vmem:[#allocation3 + $0x9c] sm:$0xf]
      %v6424 = vld [vmem:[#allocation3 + $0xa0] sm:$0xf]
      %v6425 = vld [vmem:[#allocation3 + $0xa4] sm:$0xf]
      %v6426 = vld [vmem:[#allocation3 + $0xa8] sm:$0xf]
      %v6427 = vld [vmem:[#allocation3 + $0xac] sm:$0xf]
      %v6428 = vld [vmem:[#allocation3 + $0xb0] sm:$0xf]
      %v6429 = vld [vmem:[#allocation3 + $0xb4] sm:$0x7]
      %vm6472 = vcmask 1040384
      %vm6473 = vcmask 1044484
      %vm6474 = vmor %vm6472, %vm6473
      %v6475 = vrot.slane %v6388, 7
      %v6476 = vrot.slane %v6475, 4
      %v6477 = vrot.slane %v6389, 7
      %v6478 = vsel %vm6474, %v6476, %v6477
      %v6479 = vrot.slane %v6477, 4
      %v6480 = vrot.slane %v6390, 7
      %v6481 = vsel %vm6474, %v6479, %v6480
      %v6482 = vrot.slane %v6480, 4
      %v6483 = vrot.slane %v6391, 7
      %v6484 = vsel %vm6474, %v6482, %v6483
      %v6485 = vrot.slane %v6483, 4
      %v6486 = vrot.slane %v6392, 7
      %v6487 = vsel %vm6474, %v6485, %v6486
      %v6488 = vrot.slane %v6486, 4
      %v6489 = vrot.slane %v6393, 7
      %v6490 = vsel %vm6474, %v6488, %v6489
      %v6491 = vrot.slane %v6489, 4
      %v6492 = vrot.slane %v6394, 7
      %v6493 = vsel %vm6474, %v6491, %v6492
      %v6494 = vrot.slane %v6492, 4
      %v6495 = vrot.slane %v6395, 7
      %v6496 = vsel %vm6474, %v6494, %v6495
      %v6497 = vrot.slane %v6495, 4
      %v6498 = vrot.slane %v6396, 7
      %v6499 = vsel %vm6474, %v6497, %v6498
      %v6500 = vrot.slane %v6498, 4
      %v6501 = vrot.slane %v6397, 7
      %v6502 = vsel %vm6474, %v6500, %v6501
      %v6503 = vrot.slane %v6501, 4
      %v6504 = vrot.slane %v6398, 7
      %v6505 = vsel %vm6474, %v6503, %v6504
      %v6506 = vrot.slane %v6504, 4
      %v6507 = vrot.slane %v6399, 7
      %v6508 = vsel %vm6474, %v6506, %v6507
      %v6509 = vrot.slane %v6507, 4
      %v6510 = vrot.slane %v6400, 7
      %v6511 = vsel %vm6474, %v6509, %v6510
      %v6512 = vrot.slane %v6510, 4
      %v6513 = vrot.slane %v6401, 7
      %v6514 = vsel %vm6474, %v6512, %v6513
      %v6515 = vrot.slane %v6513, 4
      %v6516 = vrot.slane %v6402, 7
      %v6517 = vsel %vm6474, %v6515, %v6516
      %v6518 = vrot.slane %v6516, 4
      %v6519 = vrot.slane %v6403, 7
      %v6520 = vsel %vm6474, %v6518, %v6519
      %v6521 = vrot.slane %v6519, 4
      %v6522 = vrot.slane %v6404, 7
      %v6523 = vsel %vm6474, %v6521, %v6522
      %v6524 = vrot.slane %v6522, 4
      %v6525 = vrot.slane %v6405, 7
      %v6526 = vsel %vm6474, %v6524, %v6525
      %v6527 = vrot.slane %v6525, 4
      %v6528 = vrot.slane %v6406, 7
      %v6529 = vsel %vm6474, %v6527, %v6528
      %v6530 = vrot.slane %v6528, 4
      %v6531 = vrot.slane %v6407, 7
      %v6532 = vsel %vm6474, %v6530, %v6531
      %v6533 = vrot.slane %v6531, 4
      %v6534 = vrot.slane %v6408, 7
      %v6535 = vsel %vm6474, %v6533, %v6534
      %v6536 = vrot.slane %v6534, 4
      %v6537 = vrot.slane %v6409, 7
      %v6538 = vsel %vm6474, %v6536, %v6537
      %v6539 = vrot.slane %v6537, 4
      %v6540 = vrot.slane %v6410, 7
      %v6541 = vsel %vm6474, %v6539, %v6540
      %v6542 = vrot.slane %v6540, 4
      %v6543 = vrot.slane %v6411, 7
      %v6544 = vsel %vm6474, %v6542, %v6543
      %v6545 = vrot.slane %v6543, 4
      %v6546 = vrot.slane %v6412, 7
      %v6547 = vsel %vm6474, %v6545, %v6546
      %v6548 = vrot.slane %v6546, 4
      %v6549 = vrot.slane %v6413, 7
      %v6550 = vsel %vm6474, %v6548, %v6549
      %v6551 = vrot.slane %v6549, 4
      %v6552 = vrot.slane %v6414, 7
      %v6553 = vsel %vm6474, %v6551, %v6552
      %v6554 = vrot.slane %v6552, 4
      %v6555 = vrot.slane %v6415, 7
      %v6556 = vsel %vm6474, %v6554, %v6555
      %v6557 = vrot.slane %v6555, 4
      %v6558 = vrot.slane %v6416, 7
      %v6559 = vsel %vm6474, %v6557, %v6558
      %v6560 = vrot.slane %v6558, 4
      %v6561 = vrot.slane %v6417, 7
      %v6562 = vsel %vm6474, %v6560, %v6561
      %v6563 = vrot.slane %v6561, 4
      %v6564 = vrot.slane %v6418, 7
      %v6565 = vsel %vm6474, %v6563, %v6564
      %v6566 = vrot.slane %v6564, 4
      %v6567 = vrot.slane %v6419, 7
      %v6568 = vsel %vm6474, %v6566, %v6567
      %v6569 = vrot.slane %v6567, 4
      %v6570 = vrot.slane %v6420, 7
      %v6571 = vsel %vm6474, %v6569, %v6570
      %v6572 = vrot.slane %v6570, 4
      %v6573 = vrot.slane %v6421, 7
      %v6574 = vsel %vm6474, %v6572, %v6573
      %v6575 = vrot.slane %v6573, 4
      %v6576 = vrot.slane %v6422, 7
      %v6577 = vsel %vm6474, %v6575, %v6576
      %v6578 = vrot.slane %v6576, 4
      %v6579 = vrot.slane %v6423, 7
      %v6580 = vsel %vm6474, %v6578, %v6579
      %v6581 = vrot.slane %v6579, 4
      %v6582 = vrot.slane %v6424, 7
      %v6583 = vsel %vm6474, %v6581, %v6582
      %v6584 = vrot.slane %v6582, 4
      %v6585 = vrot.slane %v6425, 7
      %v6586 = vsel %vm6474, %v6584, %v6585
      %v6587 = vrot.slane %v6585, 4
      %v6588 = vrot.slane %v6426, 7
      %v6589 = vsel %vm6474, %v6587, %v6588
      %v6590 = vrot.slane %v6588, 4
      %v6591 = vrot.slane %v6427, 7
      %v6592 = vsel %vm6474, %v6590, %v6591
      %v6593 = vrot.slane %v6591, 4
      %v6594 = vrot.slane %v6428, 7
      %v6595 = vsel %vm6474, %v6593, %v6594
      %v6596 = vrot.slane %v6594, 4
      %v6597 = vrot.slane %v6429, 7
      %v6598 = vsel %vm6474, %v6596, %v6597
      %6640 = vst.msk [vmem:[#allocation4 + $0x4] sm:$0xf] %vm2968, %v6478
      %6641 = vst.msk [vmem:[#allocation4 + $0xc] sm:$0xf] %vm2968, %v6481
      %6642 = vst.msk [vmem:[#allocation4 + $0x14] sm:$0xf] %vm2968, %v6484
      %6643 = vst.msk [vmem:[#allocation4 + $0x1c] sm:$0xf] %vm2968, %v6487
      %6644 = vst.msk [vmem:[#allocation4 + $0x24] sm:$0xf] %vm2968, %v6490
      %6645 = vst.msk [vmem:[#allocation4 + $0x2c] sm:$0xf] %vm2968, %v6493
      %6646 = vst.msk [vmem:[#allocation4 + $0x34] sm:$0xf] %vm2968, %v6496
      %6647 = vst.msk [vmem:[#allocation4 + $0x3c] sm:$0xf] %vm2968, %v6499
      %6648 = vst.msk [vmem:[#allocation4 + $0x44] sm:$0xf] %vm2968, %v6502
      %6649 = vst.msk [vmem:[#allocation4 + $0x4c] sm:$0xf] %vm2968, %v6505
      %6650 = vst.msk [vmem:[#allocation4 + $0x54] sm:$0xf] %vm2968, %v6508
      %6651 = vst.msk [vmem:[#allocation4 + $0x5c] sm:$0xf] %vm2968, %v6511
      %6652 = vst.msk [vmem:[#allocation4 + $0x64] sm:$0xf] %vm2968, %v6514
      %6653 = vst.msk [vmem:[#allocation4 + $0x6c] sm:$0xf] %vm2968, %v6517
      %6654 = vst.msk [vmem:[#allocation4 + $0x74] sm:$0xf] %vm2968, %v6520
      %6655 = vst.msk [vmem:[#allocation4 + $0x7c] sm:$0xf] %vm2968, %v6523
      %6656 = vst.msk [vmem:[#allocation4 + $0x84] sm:$0xf] %vm2968, %v6526
      %6657 = vst.msk [vmem:[#allocation4 + $0x8c] sm:$0xf] %vm2968, %v6529
      %6658 = vst.msk [vmem:[#allocation4 + $0x94] sm:$0xf] %vm2968, %v6532
      %6659 = vst.msk [vmem:[#allocation4 + $0x9c] sm:$0xf] %vm2968, %v6535
      %6660 = vst.msk [vmem:[#allocation4 + $0xa4] sm:$0xf] %vm2968, %v6538
      %6661 = vst.msk [vmem:[#allocation4 + $0xac] sm:$0xf] %vm2968, %v6541
      %6662 = vst.msk [vmem:[#allocation4 + $0xb4] sm:$0xf] %vm2968, %v6544
      %6663 = vst.msk [vmem:[#allocation4 + $0xbc] sm:$0xf] %vm2968, %v6547
      %6664 = vst.msk [vmem:[#allocation4 + $0xc4] sm:$0xf] %vm2968, %v6550
      %6665 = vst.msk [vmem:[#allocation4 + $0xcc] sm:$0xf] %vm2968, %v6553
      %6666 = vst.msk [vmem:[#allocation4 + $0xd4] sm:$0xf] %vm2968, %v6556
      %6667 = vst.msk [vmem:[#allocation4 + $0xdc] sm:$0xf] %vm2968, %v6559
      %6668 = vst.msk [vmem:[#allocation4 + $0xe4] sm:$0xf] %vm2968, %v6562
      %6669 = vst.msk [vmem:[#allocation4 + $0xec] sm:$0xf] %vm2968, %v6565
      %6670 = vst.msk [vmem:[#allocation4 + $0xf4] sm:$0xf] %vm2968, %v6568
      %6671 = vst.msk [vmem:[#allocation4 + $0xfc] sm:$0xf] %vm2968, %v6571
      %6672 = vst.msk [vmem:[#allocation4 + $0x104] sm:$0xf] %vm2968, %v6574
      %6673 = vst.msk [vmem:[#allocation4 + $0x10c] sm:$0xf] %vm2968, %v6577
      %6674 = vst.msk [vmem:[#allocation4 + $0x114] sm:$0xf] %vm2968, %v6580
      %6675 = vst.msk [vmem:[#allocation4 + $0x11c] sm:$0xf] %vm2968, %v6583
      %6676 = vst.msk [vmem:[#allocation4 + $0x124] sm:$0xf] %vm2968, %v6586
      %6677 = vst.msk [vmem:[#allocation4 + $0x12c] sm:$0xf] %vm2968, %v6589
      %6678 = vst.msk [vmem:[#allocation4 + $0x134] sm:$0xf] %vm2968, %v6592
      %6679 = vst.msk [vmem:[#allocation4 + $0x13c] sm:$0xf] %vm2968, %v6595
      %6680 = vst.msk [vmem:[#allocation4 + $0x144] sm:$0xf] %vm2968, %v6598
      %v6681 = vld [vmem:[#allocation4] sm:$0xff]
      %v6682 = vld [vmem:[#allocation4 + $0x8] sm:$0xff]
      %v6683 = vld [vmem:[#allocation4 + $0x10] sm:$0xff]
      %v6684 = vld [vmem:[#allocation4 + $0x18] sm:$0xff]
      %v6685 = vld [vmem:[#allocation4 + $0x20] sm:$0xff]
      %v6686 = vld [vmem:[#allocation4 + $0x28] sm:$0xff]
      %v6687 = vld [vmem:[#allocation4 + $0x30] sm:$0xff]
      %v6688 = vld [vmem:[#allocation4 + $0x38] sm:$0xff]
      %v6689 = vld [vmem:[#allocation4 + $0x40] sm:$0xff]
      %v6690 = vld [vmem:[#allocation4 + $0x48] sm:$0xff]
      %v6691 = vld [vmem:[#allocation4 + $0x50] sm:$0xff]
      %v6692 = vld [vmem:[#allocation4 + $0x58] sm:$0xff]
      %v6693 = vld [vmem:[#allocation4 + $0x60] sm:$0xff]
      %v6694 = vld [vmem:[#allocation4 + $0x68] sm:$0xff]
      %v6695 = vld [vmem:[#allocation4 + $0x70] sm:$0xff]
      %v6696 = vld [vmem:[#allocation4 + $0x78] sm:$0xff]
      %v6697 = vld [vmem:[#allocation4 + $0x80] sm:$0xff]
      %v6698 = vld [vmem:[#allocation4 + $0x88] sm:$0xff]
      %v6699 = vld [vmem:[#allocation4 + $0x90] sm:$0xff]
      %v6700 = vld [vmem:[#allocation4 + $0x98] sm:$0xff]
      %v6701 = vld [vmem:[#allocation4 + $0xa0] sm:$0xff]
      %v6702 = vld [vmem:[#allocation4 + $0xa8] sm:$0xff]
      %v6703 = vld [vmem:[#allocation4 + $0xb0] sm:$0xff]
      %v6704 = vld [vmem:[#allocation4 + $0xb8] sm:$0xff]
      %v6705 = vld [vmem:[#allocation4 + $0xc0] sm:$0xff]
      %v6706 = vld [vmem:[#allocation4 + $0xc8] sm:$0xff]
      %v6707 = vld [vmem:[#allocation4 + $0xd0] sm:$0xff]
      %v6708 = vld [vmem:[#allocation4 + $0xd8] sm:$0xff]
      %v6709 = vld [vmem:[#allocation4 + $0xe0] sm:$0xff]
      %v6710 = vld [vmem:[#allocation4 + $0xe8] sm:$0xff]
      %v6711 = vld [vmem:[#allocation4 + $0xf0] sm:$0xff]
      %v6712 = vld [vmem:[#allocation4 + $0xf8] sm:$0xff]
      %v6713 = vld [vmem:[#allocation4 + $0x100] sm:$0xff]
      %v6714 = vld [vmem:[#allocation4 + $0x108] sm:$0xff]
      %v6715 = vld [vmem:[#allocation4 + $0x110] sm:$0xff]
      %v6716 = vld [vmem:[#allocation4 + $0x118] sm:$0xff]
      %v6717 = vld [vmem:[#allocation4 + $0x120] sm:$0xff]
      %v6718 = vld [vmem:[#allocation4 + $0x128] sm:$0xff]
      %v6719 = vld [vmem:[#allocation4 + $0x130] sm:$0xff]
      %v6720 = vld [vmem:[#allocation4 + $0x138] sm:$0xff]
      %v6721 = vld [vmem:[#allocation4 + $0x140] sm:$0xff]
      %v6722 = vld [vmem:[%s3] sm:$0xf]
      %v6723 = vld [vmem:[%s3 + $0x4] sm:$0xf]
      %v6724 = vld [vmem:[%s3 + $0x8] sm:$0xf]
      %v6725 = vld [vmem:[%s3 + $0xc] sm:$0xf]
      %v6726 = vld [vmem:[%s3 + $0x10] sm:$0xf]
      %v6727 = vld [vmem:[%s3 + $0x14] sm:$0xf]
      %v6728 = vld [vmem:[%s3 + $0x18] sm:$0xf]
      %v6729 = vld [vmem:[%s3 + $0x1c] sm:$0xf]
      %v6730 = vld [vmem:[%s3 + $0x20] sm:$0xf]
      %v6731 = vld [vmem:[%s3 + $0x24] sm:$0xf]
      %v6732 = vld [vmem:[%s3 + $0x28] sm:$0xf]
      %v6733 = vld [vmem:[%s3 + $0x2c] sm:$0xf]
      %v6734 = vld [vmem:[%s3 + $0x30] sm:$0xf]
      %v6735 = vld [vmem:[%s3 + $0x34] sm:$0xf]
      %v6736 = vld [vmem:[%s3 + $0x38] sm:$0xf]
      %v6737 = vld [vmem:[%s3 + $0x3c] sm:$0xf]
      %v6738 = vld [vmem:[%s3 + $0x40] sm:$0xf]
      %v6739 = vld [vmem:[%s3 + $0x44] sm:$0xf]
      %v6740 = vld [vmem:[%s3 + $0x48] sm:$0xf]
      %v6741 = vld [vmem:[%s3 + $0x4c] sm:$0xf]
      %v6742 = vld [vmem:[%s3 + $0x50] sm:$0xf]
      %v6743 = vld [vmem:[%s3 + $0x54] sm:$0xf]
      %v6744 = vld [vmem:[%s3 + $0x58] sm:$0xf]
      %v6745 = vld [vmem:[%s3 + $0x5c] sm:$0xf]
      %v6746 = vld [vmem:[%s3 + $0x60] sm:$0xf]
      %v6747 = vld [vmem:[%s3 + $0x64] sm:$0xf]
      %v6748 = vld [vmem:[%s3 + $0x68] sm:$0xf]
      %v6749 = vld [vmem:[%s3 + $0x6c] sm:$0xf]
      %v6750 = vld [vmem:[%s3 + $0x70] sm:$0xf]
      %v6751 = vld [vmem:[%s3 + $0x74] sm:$0xf]
      %v6752 = vld [vmem:[%s3 + $0x78] sm:$0xf]
      %v6753 = vld [vmem:[%s3 + $0x7c] sm:$0xf]
      %v6754 = vld [vmem:[%s4] sm:$0x1]
      %v6756 = vperm.slane %v6754, 0
      %v6799 = vunpack.c.l.b16 %v6681
      %v6800 = vunpack.c.h.b16 %v6681
      %v6801 = vunpack.c.l.b16 %v6682
      %v6802 = vunpack.c.h.b16 %v6682
      %v6803 = vunpack.c.l.b16 %v6683
      %v6804 = vunpack.c.h.b16 %v6683
      %v6805 = vunpack.c.l.b16 %v6684
      %v6806 = vunpack.c.h.b16 %v6684
      %v6807 = vunpack.c.l.b16 %v6685
      %v6808 = vunpack.c.h.b16 %v6685
      %v6809 = vunpack.c.l.b16 %v6686
      %v6810 = vunpack.c.h.b16 %v6686
      %v6811 = vunpack.c.l.b16 %v6687
      %v6812 = vunpack.c.h.b16 %v6687
      %v6813 = vunpack.c.l.b16 %v6688
      %v6814 = vunpack.c.h.b16 %v6688
      %v6815 = vunpack.c.l.b16 %v6689
      %v6816 = vunpack.c.h.b16 %v6689
      %v6817 = vunpack.c.l.b16 %v6690
      %v6818 = vunpack.c.h.b16 %v6690
      %v6819 = vunpack.c.l.b16 %v6691
      %v6820 = vunpack.c.h.b16 %v6691
      %v6821 = vunpack.c.l.b16 %v6692
      %v6822 = vunpack.c.h.b16 %v6692
      %v6823 = vunpack.c.l.b16 %v6693
      %v6824 = vunpack.c.h.b16 %v6693
      %v6825 = vunpack.c.l.b16 %v6694
      %v6826 = vunpack.c.h.b16 %v6694
      %v6827 = vunpack.c.l.b16 %v6695
      %v6828 = vunpack.c.h.b16 %v6695
      %v6829 = vunpack.c.l.b16 %v6696
      %v6830 = vunpack.c.h.b16 %v6696
      %v6831 = vunpack.c.l.b16 %v6697
      %v6832 = vunpack.c.h.b16 %v6697
      %v6833 = vunpack.c.l.b16 %v6698
      %v6834 = vunpack.c.h.b16 %v6698
      %v6835 = vunpack.c.l.b16 %v6699
      %v6836 = vunpack.c.h.b16 %v6699
      %v6837 = vunpack.c.l.b16 %v6700
      %v6838 = vunpack.c.h.b16 %v6700
      %v6839 = vunpack.c.l.b16 %v6701
      %v6840 = vunpack.c.h.b16 %v6701
      %v6841 = vunpack.c.l.b16 %v6702
      %v6842 = vunpack.c.h.b16 %v6702
      %v6843 = vunpack.c.l.b16 %v6703
      %v6844 = vunpack.c.h.b16 %v6703
      %v6845 = vunpack.c.l.b16 %v6704
      %v6846 = vunpack.c.h.b16 %v6704
      %v6847 = vunpack.c.l.b16 %v6705
      %v6848 = vunpack.c.h.b16 %v6705
      %v6849 = vunpack.c.l.b16 %v6706
      %v6850 = vunpack.c.h.b16 %v6706
      %v6851 = vunpack.c.l.b16 %v6707
      %v6852 = vunpack.c.h.b16 %v6707
      %v6853 = vunpack.c.l.b16 %v6708
      %v6854 = vunpack.c.h.b16 %v6708
      %v6855 = vunpack.c.l.b16 %v6709
      %v6856 = vunpack.c.h.b16 %v6709
      %v6857 = vunpack.c.l.b16 %v6710
      %v6858 = vunpack.c.h.b16 %v6710
      %v6859 = vunpack.c.l.b16 %v6711
      %v6860 = vunpack.c.h.b16 %v6711
      %v6861 = vunpack.c.l.b16 %v6712
      %v6862 = vunpack.c.h.b16 %v6712
      %v6863 = vunpack.c.l.b16 %v6713
      %v6864 = vunpack.c.h.b16 %v6713
      %v6865 = vunpack.c.l.b16 %v6714
      %v6866 = vunpack.c.h.b16 %v6714
      %v6867 = vunpack.c.l.b16 %v6715
      %v6868 = vunpack.c.h.b16 %v6715
      %v6869 = vunpack.c.l.b16 %v6716
      %v6870 = vunpack.c.h.b16 %v6716
      %v6871 = vunpack.c.l.b16 %v6717
      %v6872 = vunpack.c.h.b16 %v6717
      %v6873 = vunpack.c.l.b16 %v6718
      %v6874 = vunpack.c.h.b16 %v6718
      %v6875 = vunpack.c.l.b16 %v6719
      %v6876 = vunpack.c.h.b16 %v6719
      %v6877 = vunpack.c.l.b16 %v6720
      %v6878 = vunpack.c.h.b16 %v6720
      %v6879 = vunpack.c.l.b16 %v6721
      %v6880 = vunpack.c.h.b16 %v6721
      %v6881 = vpack.c.b16 %v6801, %v6799
      %v6882 = vpack.c.b16 %v6802, %v6800
      %v6883 = vpack.c.b16 %v6805, %v6803
      %v6884 = vpack.c.b16 %v6806, %v6804
      %v6885 = vpack.c.b16 %v6809, %v6807
      %v6886 = vpack.c.b16 %v6810, %v6808
      %v6887 = vpack.c.b16 %v6813, %v6811
      %v6888 = vpack.c.b16 %v6814, %v6812
      %v6889 = vpack.c.b16 %v6817, %v6815
      %v6890 = vpack.c.b16 %v6818, %v6816
      %v6891 = vpack.c.b16 %v6821, %v6819
      %v6892 = vpack.c.b16 %v6822, %v6820
      %v6893 = vpack.c.b16 %v6825, %v6823
      %v6894 = vpack.c.b16 %v6826, %v6824
      %v6895 = vpack.c.b16 %v6829, %v6827
      %v6896 = vpack.c.b16 %v6830, %v6828
      %v6897 = vpack.c.b16 %v6833, %v6831
      %v6898 = vpack.c.b16 %v6834, %v6832
      %v6899 = vpack.c.b16 %v6837, %v6835
      %v6900 = vpack.c.b16 %v6838, %v6836
      %v6901 = vpack.c.b16 %v6841, %v6839
      %v6902 = vpack.c.b16 %v6842, %v6840
      %v6903 = vpack.c.b16 %v6845, %v6843
      %v6904 = vpack.c.b16 %v6846, %v6844
      %v6905 = vpack.c.b16 %v6849, %v6847
      %v6906 = vpack.c.b16 %v6850, %v6848
      %v6907 = vpack.c.b16 %v6853, %v6851
      %v6908 = vpack.c.b16 %v6854, %v6852
      %v6909 = vpack.c.b16 %v6857, %v6855
      %v6910 = vpack.c.b16 %v6858, %v6856
      %v6911 = vpack.c.b16 %v6861, %v6859
      %v6912 = vpack.c.b16 %v6862, %v6860
      %v6913 = vpack.c.b16 %v6865, %v6863
      %v6914 = vpack.c.b16 %v6866, %v6864
      %v6915 = vpack.c.b16 %v6869, %v6867
      %v6916 = vpack.c.b16 %v6870, %v6868
      %v6917 = vpack.c.b16 %v6873, %v6871
      %v6918 = vpack.c.b16 %v6874, %v6872
      %v6919 = vpack.c.b16 %v6877, %v6875
      %v6920 = vpack.c.b16 %v6878, %v6876
      %v6921 = vpack.c.b16 %v6879, %v6879
      %v6922 = vpack.c.b16 %v6880, %v6880
      %v6997 = vunpack.c.l.b16 %v6722
      %v6998 = vunpack.c.l.b16 %v6723
      %v6999 = vunpack.c.l.b16 %v6724
      %v7000 = vunpack.c.l.b16 %v6725
      %v7001 = vunpack.c.l.b16 %v6726
      %v7002 = vunpack.c.l.b16 %v6727
      %v7003 = vunpack.c.l.b16 %v6728
      %v7004 = vunpack.c.l.b16 %v6729
      %v7005 = vunpack.c.l.b16 %v6730
      %v7006 = vunpack.c.l.b16 %v6731
      %v7007 = vunpack.c.l.b16 %v6732
      %v7008 = vunpack.c.l.b16 %v6733
      %v7009 = vunpack.c.l.b16 %v6734
      %v7010 = vunpack.c.l.b16 %v6735
      %v7011 = vunpack.c.l.b16 %v6736
      %v7012 = vunpack.c.l.b16 %v6737
      %v7013 = vunpack.c.l.b16 %v6738
      %v7014 = vunpack.c.l.b16 %v6739
      %v7015 = vunpack.c.l.b16 %v6740
      %v7016 = vunpack.c.l.b16 %v6741
      %v7017 = vunpack.c.l.b16 %v6742
      %v7018 = vunpack.c.l.b16 %v6743
      %v7019 = vunpack.c.l.b16 %v6744
      %v7020 = vunpack.c.l.b16 %v6745
      %v7021 = vunpack.c.l.b16 %v6746
      %v7022 = vunpack.c.l.b16 %v6747
      %v7023 = vunpack.c.l.b16 %v6748
      %v7024 = vunpack.c.l.b16 %v6749
      %v7025 = vunpack.c.l.b16 %v6750
      %v7026 = vunpack.c.l.b16 %v6751
      %v7027 = vunpack.c.l.b16 %v6752
      %v7028 = vunpack.c.l.b16 %v6753
      %v7029 = vpack.c.b16 %v6998, %v6997
      %v7030 = vpack.c.b16 %v7000, %v6999
      %v7031 = vpack.c.b16 %v7002, %v7001
      %v7032 = vpack.c.b16 %v7004, %v7003
      %v7033 = vpack.c.b16 %v7006, %v7005
      %v7034 = vpack.c.b16 %v7008, %v7007
      %v7035 = vpack.c.b16 %v7010, %v7009
      %v7036 = vpack.c.b16 %v7012, %v7011
      %v7037 = vpack.c.b16 %v7014, %v7013
      %v7038 = vpack.c.b16 %v7016, %v7015
      %v7039 = vpack.c.b16 %v7018, %v7017
      %v7040 = vpack.c.b16 %v7020, %v7019
      %v7041 = vpack.c.b16 %v7022, %v7021
      %v7042 = vpack.c.b16 %v7024, %v7023
      %v7043 = vpack.c.b16 %v7026, %v7025
      %v7044 = vpack.c.b16 %v7028, %v7027
      %7061 = vmatpush.bf16.msra.mxu0 %v7036
      %7062 = vmatpush.bf16.msra.mxu0 %v7035
      %7063 = vmatpush.bf16.msra.mxu0 %v7034
      %7064 = vmatpush.bf16.msra.mxu0 %v7033
      %7065 = vmatpush.bf16.msra.mxu0 %v7032
      %7066 = vmatpush.bf16.msra.mxu0 %v7031
      %7067 = vmatpush.bf16.msra.mxu0 %v7030
      %7068 = vmatpush.bf16.msra.mxu0 %v7029
      %7069 = vmatmul.bf16.gmra.mxu0 %v6881
      %v7070 = vpop.f32.mrf.mxu0
      %v7071 = vadd.f32 %v6756, %v7070
      %v7072 = vpop.f32.mrf.mxu0
      %v7073 = vadd.f32 %v6756, %v7072
      %7074 = vmatmul.bf16.gmra.mxu0 %v6883
      %v7075 = vpop.f32.mrf.mxu0
      %v7076 = vadd.f32 %v6756, %v7075
      %v7077 = vpop.f32.mrf.mxu0
      %v7078 = vadd.f32 %v6756, %v7077
      %7079 = vmatmul.bf16.gmra.mxu0 %v6885
      %v7080 = vpop.f32.mrf.mxu0
      %v7081 = vadd.f32 %v6756, %v7080
      %v7082 = vpop.f32.mrf.mxu0
      %v7083 = vadd.f32 %v6756, %v7082
      %7084 = vmatmul.bf16.gmra.mxu0 %v6887
      %v7085 = vpop.f32.mrf.mxu0
      %v7086 = vadd.f32 %v6756, %v7085
      %v7087 = vpop.f32.mrf.mxu0
      %v7088 = vadd.f32 %v6756, %v7087
      %7089 = vmatmul.bf16.gmra.mxu0 %v6889
      %v7090 = vpop.f32.mrf.mxu0
      %v7091 = vadd.f32 %v6756, %v7090
      %v7092 = vpop.f32.mrf.mxu0
      %v7093 = vadd.f32 %v6756, %v7092
      %7094 = vmatmul.bf16.gmra.mxu0 %v6891
      %v7095 = vpop.f32.mrf.mxu0
      %v7096 = vadd.f32 %v6756, %v7095
      %v7097 = vpop.f32.mrf.mxu0
      %v7098 = vadd.f32 %v6756, %v7097
      %7099 = vmatmul.bf16.gmra.mxu0 %v6893
      %v7100 = vpop.f32.mrf.mxu0
      %v7101 = vadd.f32 %v6756, %v7100
      %v7102 = vpop.f32.mrf.mxu0
      %v7103 = vadd.f32 %v6756, %v7102
      %7104 = vmatmul.bf16.gmra.mxu0 %v6895
      %v7105 = vpop.f32.mrf.mxu0
      %v7106 = vadd.f32 %v6756, %v7105
      %v7107 = vpop.f32.mrf.mxu0
      %v7108 = vadd.f32 %v6756, %v7107
      %7109 = vmatmul.bf16.gmra.mxu0 %v6897
      %v7110 = vpop.f32.mrf.mxu0
      %v7111 = vadd.f32 %v6756, %v7110
      %v7112 = vpop.f32.mrf.mxu0
      %v7113 = vadd.f32 %v6756, %v7112
      %7114 = vmatmul.bf16.gmra.mxu0 %v6899
      %v7115 = vpop.f32.mrf.mxu0
      %v7116 = vadd.f32 %v6756, %v7115
      %v7117 = vpop.f32.mrf.mxu0
      %v7118 = vadd.f32 %v6756, %v7117
      %7119 = vmatmul.bf16.gmra.mxu0 %v6901
      %v7120 = vpop.f32.mrf.mxu0
      %v7121 = vadd.f32 %v6756, %v7120
      %v7122 = vpop.f32.mrf.mxu0
      %v7123 = vadd.f32 %v6756, %v7122
      %7124 = vmatmul.bf16.gmra.mxu0 %v6903
      %v7125 = vpop.f32.mrf.mxu0
      %v7126 = vadd.f32 %v6756, %v7125
      %v7127 = vpop.f32.mrf.mxu0
      %v7128 = vadd.f32 %v6756, %v7127
      %7129 = vmatmul.bf16.gmra.mxu0 %v6905
      %v7130 = vpop.f32.mrf.mxu0
      %v7131 = vadd.f32 %v6756, %v7130
      %v7132 = vpop.f32.mrf.mxu0
      %v7133 = vadd.f32 %v6756, %v7132
      %7134 = vmatmul.bf16.gmra.mxu0 %v6907
      %v7135 = vpop.f32.mrf.mxu0
      %v7136 = vadd.f32 %v6756, %v7135
      %v7137 = vpop.f32.mrf.mxu0
      %v7138 = vadd.f32 %v6756, %v7137
      %7139 = vmatmul.bf16.gmra.mxu0 %v6909
      %v7140 = vpop.f32.mrf.mxu0
      %v7141 = vadd.f32 %v6756, %v7140
      %v7142 = vpop.f32.mrf.mxu0
      %v7143 = vadd.f32 %v6756, %v7142
      %7144 = vmatmul.bf16.gmra.mxu0 %v6911
      %v7145 = vpop.f32.mrf.mxu0
      %v7146 = vadd.f32 %v6756, %v7145
      %v7147 = vpop.f32.mrf.mxu0
      %v7148 = vadd.f32 %v6756, %v7147
      %7149 = vmatmul.bf16.gmra.mxu0 %v6913
      %v7150 = vpop.f32.mrf.mxu0
      %v7151 = vadd.f32 %v6756, %v7150
      %v7152 = vpop.f32.mrf.mxu0
      %v7153 = vadd.f32 %v6756, %v7152
      %7154 = vmatmul.bf16.gmra.mxu0 %v6915
      %v7155 = vpop.f32.mrf.mxu0
      %v7156 = vadd.f32 %v6756, %v7155
      %v7157 = vpop.f32.mrf.mxu0
      %v7158 = vadd.f32 %v6756, %v7157
      %7159 = vmatmul.bf16.gmra.mxu0 %v6917
      %v7160 = vpop.f32.mrf.mxu0
      %v7161 = vadd.f32 %v6756, %v7160
      %v7162 = vpop.f32.mrf.mxu0
      %v7163 = vadd.f32 %v6756, %v7162
      %7164 = vmatmul.bf16.gmra.mxu0 %v6919
      %v7165 = vpop.f32.mrf.mxu0
      %v7166 = vadd.f32 %v6756, %v7165
      %v7167 = vpop.f32.mrf.mxu0
      %v7168 = vadd.f32 %v6756, %v7167
      %7169 = vmatmul.bf16.gmra.mxu0 %v6921
      %v7170 = vpop.f32.mrf.mxu0
      %v7171 = vadd.f32 %v6756, %v7170
      %v7172 = vpop.f32.mrf.mxu0
      %7173 = vdwg.mxu0
      %7174 = vmatpush.bf16.msra.mxu0 %v7044
      %7175 = vmatpush.bf16.msra.mxu0 %v7043
      %7176 = vmatpush.bf16.msra.mxu0 %v7042
      %7177 = vmatpush.bf16.msra.mxu0 %v7041
      %7178 = vmatpush.bf16.msra.mxu0 %v7040
      %7179 = vmatpush.bf16.msra.mxu0 %v7039
      %7180 = vmatpush.bf16.msra.mxu0 %v7038
      %7181 = vmatpush.bf16.msra.mxu0 %v7037
      %7182 = vmatmul.bf16.gmra.mxu0 %v6882
      %v7183 = vpop.f32.mrf.mxu0
      %v7184 = vadd.f32 %v7071, %v7183
      %v7185 = vpop.f32.mrf.mxu0
      %v7186 = vadd.f32 %v7073, %v7185
      %7187 = vmatmul.bf16.gmra.mxu0 %v6884
      %v7188 = vpop.f32.mrf.mxu0
      %v7189 = vadd.f32 %v7076, %v7188
      %v7190 = vpop.f32.mrf.mxu0
      %v7191 = vadd.f32 %v7078, %v7190
      %7192 = vmatmul.bf16.gmra.mxu0 %v6886
      %v7193 = vpop.f32.mrf.mxu0
      %v7194 = vadd.f32 %v7081, %v7193
      %v7195 = vpop.f32.mrf.mxu0
      %v7196 = vadd.f32 %v7083, %v7195
      %7197 = vmatmul.bf16.gmra.mxu0 %v6888
      %v7198 = vpop.f32.mrf.mxu0
      %v7199 = vadd.f32 %v7086, %v7198
      %v7200 = vpop.f32.mrf.mxu0
      %v7201 = vadd.f32 %v7088, %v7200
      %7202 = vmatmul.bf16.gmra.mxu0 %v6890
      %v7203 = vpop.f32.mrf.mxu0
      %v7204 = vadd.f32 %v7091, %v7203
      %v7205 = vpop.f32.mrf.mxu0
      %v7206 = vadd.f32 %v7093, %v7205
      %7207 = vmatmul.bf16.gmra.mxu0 %v6892
      %v7208 = vpop.f32.mrf.mxu0
      %v7209 = vadd.f32 %v7096, %v7208
      %v7210 = vpop.f32.mrf.mxu0
      %v7211 = vadd.f32 %v7098, %v7210
      %7212 = vmatmul.bf16.gmra.mxu0 %v6894
      %v7213 = vpop.f32.mrf.mxu0
      %v7214 = vadd.f32 %v7101, %v7213
      %v7215 = vpop.f32.mrf.mxu0
      %v7216 = vadd.f32 %v7103, %v7215
      %7217 = vmatmul.bf16.gmra.mxu0 %v6896
      %v7218 = vpop.f32.mrf.mxu0
      %v7219 = vadd.f32 %v7106, %v7218
      %v7220 = vpop.f32.mrf.mxu0
      %v7221 = vadd.f32 %v7108, %v7220
      %7222 = vmatmul.bf16.gmra.mxu0 %v6898
      %v7223 = vpop.f32.mrf.mxu0
      %v7224 = vadd.f32 %v7111, %v7223
      %v7225 = vpop.f32.mrf.mxu0
      %v7226 = vadd.f32 %v7113, %v7225
      %7227 = vmatmul.bf16.gmra.mxu0 %v6900
      %v7228 = vpop.f32.mrf.mxu0
      %v7229 = vadd.f32 %v7116, %v7228
      %v7230 = vpop.f32.mrf.mxu0
      %v7231 = vadd.f32 %v7118, %v7230
      %7232 = vmatmul.bf16.gmra.mxu0 %v6902
      %v7233 = vpop.f32.mrf.mxu0
      %v7234 = vadd.f32 %v7121, %v7233
      %v7235 = vpop.f32.mrf.mxu0
      %v7236 = vadd.f32 %v7123, %v7235
      %7237 = vmatmul.bf16.gmra.mxu0 %v6904
      %v7238 = vpop.f32.mrf.mxu0
      %v7239 = vadd.f32 %v7126, %v7238
      %v7240 = vpop.f32.mrf.mxu0
      %v7241 = vadd.f32 %v7128, %v7240
      %7242 = vmatmul.bf16.gmra.mxu0 %v6906
      %v7243 = vpop.f32.mrf.mxu0
      %v7244 = vadd.f32 %v7131, %v7243
      %v7245 = vpop.f32.mrf.mxu0
      %v7246 = vadd.f32 %v7133, %v7245
      %7247 = vmatmul.bf16.gmra.mxu0 %v6908
      %v7248 = vpop.f32.mrf.mxu0
      %v7249 = vadd.f32 %v7136, %v7248
      %v7250 = vpop.f32.mrf.mxu0
      %v7251 = vadd.f32 %v7138, %v7250
      %7252 = vmatmul.bf16.gmra.mxu0 %v6910
      %v7253 = vpop.f32.mrf.mxu0
      %v7254 = vadd.f32 %v7141, %v7253
      %v7255 = vpop.f32.mrf.mxu0
      %v7256 = vadd.f32 %v7143, %v7255
      %7257 = vmatmul.bf16.gmra.mxu0 %v6912
      %v7258 = vpop.f32.mrf.mxu0
      %v7259 = vadd.f32 %v7146, %v7258
      %v7260 = vpop.f32.mrf.mxu0
      %v7261 = vadd.f32 %v7148, %v7260
      %7262 = vmatmul.bf16.gmra.mxu0 %v6914
      %v7263 = vpop.f32.mrf.mxu0
      %v7264 = vadd.f32 %v7151, %v7263
      %v7265 = vpop.f32.mrf.mxu0
      %v7266 = vadd.f32 %v7153, %v7265
      %7267 = vmatmul.bf16.gmra.mxu0 %v6916
      %v7268 = vpop.f32.mrf.mxu0
      %v7269 = vadd.f32 %v7156, %v7268
      %v7270 = vpop.f32.mrf.mxu0
      %v7271 = vadd.f32 %v7158, %v7270
      %7272 = vmatmul.bf16.gmra.mxu0 %v6918
      %v7273 = vpop.f32.mrf.mxu0
      %v7274 = vadd.f32 %v7161, %v7273
      %v7275 = vpop.f32.mrf.mxu0
      %v7276 = vadd.f32 %v7163, %v7275
      %7277 = vmatmul.bf16.gmra.mxu0 %v6920
      %v7278 = vpop.f32.mrf.mxu0
      %v7279 = vadd.f32 %v7166, %v7278
      %v7280 = vpop.f32.mrf.mxu0
      %v7281 = vadd.f32 %v7168, %v7280
      %7282 = vmatmul.bf16.gmra.mxu0 %v6922
      %v7283 = vpop.f32.mrf.mxu0
      %v7284 = vadd.f32 %v7171, %v7283
      %v7285 = vpop.f32.mrf.mxu0
      %7286 = vdwg.mxu0
      %v7287 = vadd.s32 %v803, 64
      %v7288 = vadd.s32 %v803, 72
      %v7289 = vadd.s32 %v803, 80
      %v7290 = vadd.s32 %v803, 88
      %v7291 = vadd.s32 %v803, 96
      %v7292 = vadd.s32 %v803, 104
      %v7293 = vadd.s32 %v803, 112
      %v7294 = vadd.s32 %v803, 120
      %v7295 = vadd.s32 %v803, 128
      %v7296 = vadd.s32 %v803, 136
      %v7297 = vadd.s32 %v803, 144
      %v7298 = vadd.s32 %v803, 152
      %v7299 = vadd.s32 %v803, 160
      %v7300 = vadd.s32 %v803, 168
      %v7301 = vadd.s32 %v803, 176
      %v7302 = vadd.s32 %v803, 184
      %v7303 = vadd.s32 %v803, 192
      %v7304 = vadd.s32 %v803, 200
      %v7305 = vadd.s32 %v803, 208
      %v7306 = vadd.s32 %v803, 216
      %v7307 = vadd.s32 %v803, 224
      %v7308 = vadd.s32 %v803, 232
      %v7309 = vadd.s32 %v803, 240
      %v7310 = vadd.s32 %v803, 248
      %v7311 = vadd.s32 %v803, 256
      %v7312 = vadd.s32 %v803, 264
      %v7313 = vadd.s32 %v803, 272
      %v7314 = vadd.s32 %v803, 280
      %v7315 = vadd.s32 %v803, 288
      %v7316 = vadd.s32 %v803, 296
      %v7317 = vadd.s32 %v803, 304
      %v7318 = vadd.s32 %v803, 312
      %v7319 = vadd.s32 %v803, 320
      %v7320 = vcvt.s32.f32 %v803
      %v7321 = vcvt.s32.f32 %v804
      %v7322 = vcvt.s32.f32 %v805
      %v7323 = vcvt.s32.f32 %v806
      %v7324 = vcvt.s32.f32 %v807
      %v7325 = vcvt.s32.f32 %v808
      %v7326 = vcvt.s32.f32 %v809
      %v7327 = vcvt.s32.f32 %v810
      %v7328 = vcvt.s32.f32 %v7287
      %v7329 = vcvt.s32.f32 %v7288
      %v7330 = vcvt.s32.f32 %v7289
      %v7331 = vcvt.s32.f32 %v7290
      %v7332 = vcvt.s32.f32 %v7291
      %v7333 = vcvt.s32.f32 %v7292
      %v7334 = vcvt.s32.f32 %v7293
      %v7335 = vcvt.s32.f32 %v7294
      %v7336 = vcvt.s32.f32 %v7295
      %v7337 = vcvt.s32.f32 %v7296
      %v7338 = vcvt.s32.f32 %v7297
      %v7339 = vcvt.s32.f32 %v7298
      %v7340 = vcvt.s32.f32 %v7299
      %v7341 = vcvt.s32.f32 %v7300
      %v7342 = vcvt.s32.f32 %v7301
      %v7343 = vcvt.s32.f32 %v7302
      %v7344 = vcvt.s32.f32 %v7303
      %v7345 = vcvt.s32.f32 %v7304
      %v7346 = vcvt.s32.f32 %v7305
      %v7347 = vcvt.s32.f32 %v7306
      %v7348 = vcvt.s32.f32 %v7307
      %v7349 = vcvt.s32.f32 %v7308
      %v7350 = vcvt.s32.f32 %v7309
      %v7351 = vcvt.s32.f32 %v7310
      %v7352 = vcvt.s32.f32 %v7311
      %v7353 = vcvt.s32.f32 %v7312
      %v7354 = vcvt.s32.f32 %v7313
      %v7355 = vcvt.s32.f32 %v7314
      %v7356 = vcvt.s32.f32 %v7315
      %v7357 = vcvt.s32.f32 %v7316
      %v7358 = vcvt.s32.f32 %v7317
      %v7359 = vcvt.s32.f32 %v7318
      %v7360 = vcvt.s32.f32 %v7319
      %v7361 = vadd.f32 %v7320, 0.5
      %v7362 = vadd.f32 %v7321, 0.5
      %v7363 = vadd.f32 %v7322, 0.5
      %v7364 = vadd.f32 %v7323, 0.5
      %v7365 = vadd.f32 %v7324, 0.5
      %v7366 = vadd.f32 %v7325, 0.5
      %v7367 = vadd.f32 %v7326, 0.5
      %v7368 = vadd.f32 %v7327, 0.5
      %v7369 = vadd.f32 %v7328, 0.5
      %v7370 = vadd.f32 %v7329, 0.5
      %v7371 = vadd.f32 %v7330, 0.5
      %v7372 = vadd.f32 %v7331, 0.5
      %v7373 = vadd.f32 %v7332, 0.5
      %v7374 = vadd.f32 %v7333, 0.5
      %v7375 = vadd.f32 %v7334, 0.5
      %v7376 = vadd.f32 %v7335, 0.5
      %v7377 = vadd.f32 %v7336, 0.5
      %v7378 = vadd.f32 %v7337, 0.5
      %v7379 = vadd.f32 %v7338, 0.5
      %v7380 = vadd.f32 %v7339, 0.5
      %v7381 = vadd.f32 %v7340, 0.5
      %v7382 = vadd.f32 %v7341, 0.5
      %v7383 = vadd.f32 %v7342, 0.5
      %v7384 = vadd.f32 %v7343, 0.5
      %v7385 = vadd.f32 %v7344, 0.5
      %v7386 = vadd.f32 %v7345, 0.5
      %v7387 = vadd.f32 %v7346, 0.5
      %v7388 = vadd.f32 %v7347, 0.5
      %v7389 = vadd.f32 %v7348, 0.5
      %v7390 = vadd.f32 %v7349, 0.5
      %v7391 = vadd.f32 %v7350, 0.5
      %v7392 = vadd.f32 %v7351, 0.5
      %v7393 = vadd.f32 %v7352, 0.5
      %v7394 = vadd.f32 %v7353, 0.5
      %v7395 = vadd.f32 %v7354, 0.5
      %v7396 = vadd.f32 %v7355, 0.5
      %v7397 = vadd.f32 %v7356, 0.5
      %v7398 = vadd.f32 %v7357, 0.5
      %v7399 = vadd.f32 %v7358, 0.5
      %v7400 = vadd.f32 %v7359, 0.5
      %v7401 = vadd.f32 %v7360, 0.5
      %v7402 = vmul.f32 %v7361, 0.055555556
      %v7403 = vmul.f32 %v7362, 0.055555556
      %v7404 = vmul.f32 %v7363, 0.055555556
      %v7405 = vmul.f32 %v7364, 0.055555556
      %v7406 = vmul.f32 %v7365, 0.055555556
      %v7407 = vmul.f32 %v7366, 0.055555556
      %v7408 = vmul.f32 %v7367, 0.055555556
      %v7409 = vmul.f32 %v7368, 0.055555556
      %v7410 = vmul.f32 %v7369, 0.055555556
      %v7411 = vmul.f32 %v7370, 0.055555556
      %v7412 = vmul.f32 %v7371, 0.055555556
      %v7413 = vmul.f32 %v7372, 0.055555556
      %v7414 = vmul.f32 %v7373, 0.055555556
      %v7415 = vmul.f32 %v7374, 0.055555556
      %v7416 = vmul.f32 %v7375, 0.055555556
      %v7417 = vmul.f32 %v7376, 0.055555556
      %v7418 = vmul.f32 %v7377, 0.055555556
      %v7419 = vmul.f32 %v7378, 0.055555556
      %v7420 = vmul.f32 %v7379, 0.055555556
      %v7421 = vmul.f32 %v7380, 0.055555556
      %v7422 = vmul.f32 %v7381, 0.055555556
      %v7423 = vmul.f32 %v7382, 0.055555556
      %v7424 = vmul.f32 %v7383, 0.055555556
      %v7425 = vmul.f32 %v7384, 0.055555556
      %v7426 = vmul.f32 %v7385, 0.055555556
      %v7427 = vmul.f32 %v7386, 0.055555556
      %v7428 = vmul.f32 %v7387, 0.055555556
      %v7429 = vmul.f32 %v7388, 0.055555556
      %v7430 = vmul.f32 %v7389, 0.055555556
      %v7431 = vmul.f32 %v7390, 0.055555556
      %v7432 = vmul.f32 %v7391, 0.055555556
      %v7433 = vmul.f32 %v7392, 0.055555556
      %v7434 = vmul.f32 %v7393, 0.055555556
      %v7435 = vmul.f32 %v7394, 0.055555556
      %v7436 = vmul.f32 %v7395, 0.055555556
      %v7437 = vmul.f32 %v7396, 0.055555556
      %v7438 = vmul.f32 %v7397, 0.055555556
      %v7439 = vmul.f32 %v7398, 0.055555556
      %v7440 = vmul.f32 %v7399, 0.055555556
      %v7441 = vmul.f32 %v7400, 0.055555556
      %v7442 = vmul.f32 %v7401, 0.055555556
      %v7443 = vfloor.f32 %v7402
      %v7444 = vfloor.f32 %v7403
      %v7445 = vfloor.f32 %v7404
      %v7446 = vfloor.f32 %v7405
      %v7447 = vfloor.f32 %v7406
      %v7448 = vfloor.f32 %v7407
      %v7449 = vfloor.f32 %v7408
      %v7450 = vfloor.f32 %v7409
      %v7451 = vfloor.f32 %v7410
      %v7452 = vfloor.f32 %v7411
      %v7453 = vfloor.f32 %v7412
      %v7454 = vfloor.f32 %v7413
      %v7455 = vfloor.f32 %v7414
      %v7456 = vfloor.f32 %v7415
      %v7457 = vfloor.f32 %v7416
      %v7458 = vfloor.f32 %v7417
      %v7459 = vfloor.f32 %v7418
      %v7460 = vfloor.f32 %v7419
      %v7461 = vfloor.f32 %v7420
      %v7462 = vfloor.f32 %v7421
      %v7463 = vfloor.f32 %v7422
      %v7464 = vfloor.f32 %v7423
      %v7465 = vfloor.f32 %v7424
      %v7466 = vfloor.f32 %v7425
      %v7467 = vfloor.f32 %v7426
      %v7468 = vfloor.f32 %v7427
      %v7469 = vfloor.f32 %v7428
      %v7470 = vfloor.f32 %v7429
      %v7471 = vfloor.f32 %v7430
      %v7472 = vfloor.f32 %v7431
      %v7473 = vfloor.f32 %v7432
      %v7474 = vfloor.f32 %v7433
      %v7475 = vfloor.f32 %v7434
      %v7476 = vfloor.f32 %v7435
      %v7477 = vfloor.f32 %v7436
      %v7478 = vfloor.f32 %v7437
      %v7479 = vfloor.f32 %v7438
      %v7480 = vfloor.f32 %v7439
      %v7481 = vfloor.f32 %v7440
      %v7482 = vfloor.f32 %v7441
      %v7483 = vfloor.f32 %v7442
      %v7484 = vmul.f32 %v7443, 18.0
      %v7485 = vmul.f32 %v7444, 18.0
      %v7486 = vmul.f32 %v7445, 18.0
      %v7487 = vmul.f32 %v7446, 18.0
      %v7488 = vmul.f32 %v7447, 18.0
      %v7489 = vmul.f32 %v7448, 18.0
      %v7490 = vmul.f32 %v7449, 18.0
      %v7491 = vmul.f32 %v7450, 18.0
      %v7492 = vmul.f32 %v7451, 18.0
      %v7493 = vmul.f32 %v7452, 18.0
      %v7494 = vmul.f32 %v7453, 18.0
      %v7495 = vmul.f32 %v7454, 18.0
      %v7496 = vmul.f32 %v7455, 18.0
      %v7497 = vmul.f32 %v7456, 18.0
      %v7498 = vmul.f32 %v7457, 18.0
      %v7499 = vmul.f32 %v7458, 18.0
      %v7500 = vmul.f32 %v7459, 18.0
      %v7501 = vmul.f32 %v7460, 18.0
      %v7502 = vmul.f32 %v7461, 18.0
      %v7503 = vmul.f32 %v7462, 18.0
      %v7504 = vmul.f32 %v7463, 18.0
      %v7505 = vmul.f32 %v7464, 18.0
      %v7506 = vmul.f32 %v7465, 18.0
      %v7507 = vmul.f32 %v7466, 18.0
      %v7508 = vmul.f32 %v7467, 18.0
      %v7509 = vmul.f32 %v7468, 18.0
      %v7510 = vmul.f32 %v7469, 18.0
      %v7511 = vmul.f32 %v7470, 18.0
      %v7512 = vmul.f32 %v7471, 18.0
      %v7513 = vmul.f32 %v7472, 18.0
      %v7514 = vmul.f32 %v7473, 18.0
      %v7515 = vmul.f32 %v7474, 18.0
      %v7516 = vmul.f32 %v7475, 18.0
      %v7517 = vmul.f32 %v7476, 18.0
      %v7518 = vmul.f32 %v7477, 18.0
      %v7519 = vmul.f32 %v7478, 18.0
      %v7520 = vmul.f32 %v7479, 18.0
      %v7521 = vmul.f32 %v7480, 18.0
      %v7522 = vmul.f32 %v7481, 18.0
      %v7523 = vmul.f32 %v7482, 18.0
      %v7524 = vmul.f32 %v7483, 18.0
      %v7525 = vsub.f32 %v7320, %v7484
      %v7526 = vsub.f32 %v7321, %v7485
      %v7527 = vsub.f32 %v7322, %v7486
      %v7528 = vsub.f32 %v7323, %v7487
      %v7529 = vsub.f32 %v7324, %v7488
      %v7530 = vsub.f32 %v7325, %v7489
      %v7531 = vsub.f32 %v7326, %v7490
      %v7532 = vsub.f32 %v7327, %v7491
      %v7533 = vsub.f32 %v7328, %v7492
      %v7534 = vsub.f32 %v7329, %v7493
      %v7535 = vsub.f32 %v7330, %v7494
      %v7536 = vsub.f32 %v7331, %v7495
      %v7537 = vsub.f32 %v7332, %v7496
      %v7538 = vsub.f32 %v7333, %v7497
      %v7539 = vsub.f32 %v7334, %v7498
      %v7540 = vsub.f32 %v7335, %v7499
      %v7541 = vsub.f32 %v7336, %v7500
      %v7542 = vsub.f32 %v7337, %v7501
      %v7543 = vsub.f32 %v7338, %v7502
      %v7544 = vsub.f32 %v7339, %v7503
      %v7545 = vsub.f32 %v7340, %v7504
      %v7546 = vsub.f32 %v7341, %v7505
      %v7547 = vsub.f32 %v7342, %v7506
      %v7548 = vsub.f32 %v7343, %v7507
      %v7549 = vsub.f32 %v7344, %v7508
      %v7550 = vsub.f32 %v7345, %v7509
      %v7551 = vsub.f32 %v7346, %v7510
      %v7552 = vsub.f32 %v7347, %v7511
      %v7553 = vsub.f32 %v7348, %v7512
      %v7554 = vsub.f32 %v7349, %v7513
      %v7555 = vsub.f32 %v7350, %v7514
      %v7556 = vsub.f32 %v7351, %v7515
      %v7557 = vsub.f32 %v7352, %v7516
      %v7558 = vsub.f32 %v7353, %v7517
      %v7559 = vsub.f32 %v7354, %v7518
      %v7560 = vsub.f32 %v7355, %v7519
      %v7561 = vsub.f32 %v7356, %v7520
      %v7562 = vsub.f32 %v7357, %v7521
      %v7563 = vsub.f32 %v7358, %v7522
      %v7564 = vsub.f32 %v7359, %v7523
      %v7565 = vsub.f32 %v7360, %v7524
      %vm7566 = vcmp.lt.f32.partialorder %v7320, 324.0
      %vm7567 = vcmp.lt.f32.partialorder %v7321, 324.0
      %vm7568 = vcmp.lt.f32.partialorder %v7322, 324.0
      %vm7569 = vcmp.lt.f32.partialorder %v7323, 324.0
      %vm7570 = vcmp.lt.f32.partialorder %v7324, 324.0
      %vm7571 = vcmp.lt.f32.partialorder %v7325, 324.0
      %vm7572 = vcmp.lt.f32.partialorder %v7326, 324.0
      %vm7573 = vcmp.lt.f32.partialorder %v7327, 324.0
      %vm7574 = vcmp.lt.f32.partialorder %v7328, 324.0
      %vm7575 = vcmp.lt.f32.partialorder %v7329, 324.0
      %vm7576 = vcmp.lt.f32.partialorder %v7330, 324.0
      %vm7577 = vcmp.lt.f32.partialorder %v7331, 324.0
      %vm7578 = vcmp.lt.f32.partialorder %v7332, 324.0
      %vm7579 = vcmp.lt.f32.partialorder %v7333, 324.0
      %vm7580 = vcmp.lt.f32.partialorder %v7334, 324.0
      %vm7581 = vcmp.lt.f32.partialorder %v7335, 324.0
      %vm7582 = vcmp.lt.f32.partialorder %v7336, 324.0
      %vm7583 = vcmp.lt.f32.partialorder %v7337, 324.0
      %vm7584 = vcmp.lt.f32.partialorder %v7338, 324.0
      %vm7585 = vcmp.lt.f32.partialorder %v7339, 324.0
      %vm7586 = vcmp.lt.f32.partialorder %v7340, 324.0
      %vm7587 = vcmp.lt.f32.partialorder %v7341, 324.0
      %vm7588 = vcmp.lt.f32.partialorder %v7342, 324.0
      %vm7589 = vcmp.lt.f32.partialorder %v7343, 324.0
      %vm7590 = vcmp.lt.f32.partialorder %v7344, 324.0
      %vm7591 = vcmp.lt.f32.partialorder %v7345, 324.0
      %vm7592 = vcmp.lt.f32.partialorder %v7346, 324.0
      %vm7593 = vcmp.lt.f32.partialorder %v7347, 324.0
      %vm7594 = vcmp.lt.f32.partialorder %v7348, 324.0
      %vm7595 = vcmp.lt.f32.partialorder %v7349, 324.0
      %vm7596 = vcmp.lt.f32.partialorder %v7350, 324.0
      %vm7597 = vcmp.lt.f32.partialorder %v7351, 324.0
      %vm7598 = vcmp.lt.f32.partialorder %v7352, 324.0
      %vm7599 = vcmp.lt.f32.partialorder %v7353, 324.0
      %vm7600 = vcmp.lt.f32.partialorder %v7354, 324.0
      %vm7601 = vcmp.lt.f32.partialorder %v7355, 324.0
      %vm7602 = vcmp.lt.f32.partialorder %v7356, 324.0
      %vm7603 = vcmp.lt.f32.partialorder %v7357, 324.0
      %vm7604 = vcmp.lt.f32.partialorder %v7358, 324.0
      %vm7605 = vcmp.lt.f32.partialorder %v7359, 324.0
      %vm7606 = vcmp.lt.f32.partialorder %v7360, 324.0
      %vm7607 = vcmp.ge.f32.partialorder %v7443, 1.0
      %vm7608 = vcmp.ge.f32.partialorder %v7444, 1.0
      %vm7609 = vcmp.ge.f32.partialorder %v7445, 1.0
      %vm7610 = vcmp.ge.f32.partialorder %v7446, 1.0
      %vm7611 = vcmp.ge.f32.partialorder %v7447, 1.0
      %vm7612 = vcmp.ge.f32.partialorder %v7448, 1.0
      %vm7613 = vcmp.ge.f32.partialorder %v7449, 1.0
      %vm7614 = vcmp.ge.f32.partialorder %v7450, 1.0
      %vm7615 = vcmp.ge.f32.partialorder %v7451, 1.0
      %vm7616 = vcmp.ge.f32.partialorder %v7452, 1.0
      %vm7617 = vcmp.ge.f32.partialorder %v7453, 1.0
      %vm7618 = vcmp.ge.f32.partialorder %v7454, 1.0
      %vm7619 = vcmp.ge.f32.partialorder %v7455, 1.0
      %vm7620 = vcmp.ge.f32.partialorder %v7456, 1.0
      %vm7621 = vcmp.ge.f32.partialorder %v7457, 1.0
      %vm7622 = vcmp.ge.f32.partialorder %v7458, 1.0
      %vm7623 = vcmp.ge.f32.partialorder %v7459, 1.0
      %vm7624 = vcmp.ge.f32.partialorder %v7460, 1.0
      %vm7625 = vcmp.ge.f32.partialorder %v7461, 1.0
      %vm7626 = vcmp.ge.f32.partialorder %v7462, 1.0
      %vm7627 = vcmp.ge.f32.partialorder %v7463, 1.0
      %vm7628 = vcmp.ge.f32.partialorder %v7464, 1.0
      %vm7629 = vcmp.ge.f32.partialorder %v7465, 1.0
      %vm7630 = vcmp.ge.f32.partialorder %v7466, 1.0
      %vm7631 = vcmp.ge.f32.partialorder %v7467, 1.0
      %vm7632 = vcmp.ge.f32.partialorder %v7468, 1.0
      %vm7633 = vcmp.ge.f32.partialorder %v7469, 1.0
      %vm7634 = vcmp.ge.f32.partialorder %v7470, 1.0
      %vm7635 = vcmp.ge.f32.partialorder %v7471, 1.0
      %vm7636 = vcmp.ge.f32.partialorder %v7472, 1.0
      %vm7637 = vcmp.ge.f32.partialorder %v7473, 1.0
      %vm7638 = vcmp.ge.f32.partialorder %v7474, 1.0
      %vm7639 = vcmp.ge.f32.partialorder %v7475, 1.0
      %vm7640 = vcmp.ge.f32.partialorder %v7476, 1.0
      %vm7641 = vcmp.ge.f32.partialorder %v7477, 1.0
      %vm7642 = vcmp.ge.f32.partialorder %v7478, 1.0
      %vm7643 = vcmp.ge.f32.partialorder %v7479, 1.0
      %vm7644 = vcmp.ge.f32.partialorder %v7480, 1.0
      %vm7645 = vcmp.ge.f32.partialorder %v7481, 1.0
      %vm7646 = vcmp.ge.f32.partialorder %v7482, 1.0
      %vm7647 = vcmp.ge.f32.partialorder %v7483, 1.0
      %vm7648 = vmand %vm7566, %vm7607
      %vm7649 = vmand %vm7567, %vm7608
      %vm7650 = vmand %vm7568, %vm7609
      %vm7651 = vmand %vm7569, %vm7610
      %vm7652 = vmand %vm7570, %vm7611
      %vm7653 = vmand %vm7571, %vm7612
      %vm7654 = vmand %vm7572, %vm7613
      %vm7655 = vmand %vm7573, %vm7614
      %vm7656 = vmand %vm7574, %vm7615
      %vm7657 = vmand %vm7575, %vm7616
      %vm7658 = vmand %vm7576, %vm7617
      %vm7659 = vmand %vm7577, %vm7618
      %vm7660 = vmand %vm7578, %vm7619
      %vm7661 = vmand %vm7579, %vm7620
      %vm7662 = vmand %vm7580, %vm7621
      %vm7663 = vmand %vm7581, %vm7622
      %vm7664 = vmand %vm7582, %vm7623
      %vm7665 = vmand %vm7583, %vm7624
      %vm7666 = vmand %vm7584, %vm7625
      %vm7667 = vmand %vm7585, %vm7626
      %vm7668 = vmand %vm7586, %vm7627
      %vm7669 = vmand %vm7587, %vm7628
      %vm7670 = vmand %vm7588, %vm7629
      %vm7671 = vmand %vm7589, %vm7630
      %vm7672 = vmand %vm7590, %vm7631
      %vm7673 = vmand %vm7591, %vm7632
      %vm7674 = vmand %vm7592, %vm7633
      %vm7675 = vmand %vm7593, %vm7634
      %vm7676 = vmand %vm7594, %vm7635
      %vm7677 = vmand %vm7595, %vm7636
      %vm7678 = vmand %vm7596, %vm7637
      %vm7679 = vmand %vm7597, %vm7638
      %vm7680 = vmand %vm7598, %vm7639
      %vm7681 = vmand %vm7599, %vm7640
      %vm7682 = vmand %vm7600, %vm7641
      %vm7683 = vmand %vm7601, %vm7642
      %vm7684 = vmand %vm7602, %vm7643
      %vm7685 = vmand %vm7603, %vm7644
      %vm7686 = vmand %vm7604, %vm7645
      %vm7687 = vmand %vm7605, %vm7646
      %vm7688 = vmand %vm7606, %vm7647
      %vm7689 = vcmp.le.f32.partialorder %v7443, 16.0
      %vm7690 = vcmp.le.f32.partialorder %v7444, 16.0
      %vm7691 = vcmp.le.f32.partialorder %v7445, 16.0
      %vm7692 = vcmp.le.f32.partialorder %v7446, 16.0
      %vm7693 = vcmp.le.f32.partialorder %v7447, 16.0
      %vm7694 = vcmp.le.f32.partialorder %v7448, 16.0
      %vm7695 = vcmp.le.f32.partialorder %v7449, 16.0
      %vm7696 = vcmp.le.f32.partialorder %v7450, 16.0
      %vm7697 = vcmp.le.f32.partialorder %v7451, 16.0
      %vm7698 = vcmp.le.f32.partialorder %v7452, 16.0
      %vm7699 = vcmp.le.f32.partialorder %v7453, 16.0
      %vm7700 = vcmp.le.f32.partialorder %v7454, 16.0
      %vm7701 = vcmp.le.f32.partialorder %v7455, 16.0
      %vm7702 = vcmp.le.f32.partialorder %v7456, 16.0
      %vm7703 = vcmp.le.f32.partialorder %v7457, 16.0
      %vm7704 = vcmp.le.f32.partialorder %v7458, 16.0
      %vm7705 = vcmp.le.f32.partialorder %v7459, 16.0
      %vm7706 = vcmp.le.f32.partialorder %v7460, 16.0
      %vm7707 = vcmp.le.f32.partialorder %v7461, 16.0
      %vm7708 = vcmp.le.f32.partialorder %v7462, 16.0
      %vm7709 = vcmp.le.f32.partialorder %v7463, 16.0
      %vm7710 = vcmp.le.f32.partialorder %v7464, 16.0
      %vm7711 = vcmp.le.f32.partialorder %v7465, 16.0
      %vm7712 = vcmp.le.f32.partialorder %v7466, 16.0
      %vm7713 = vcmp.le.f32.partialorder %v7467, 16.0
      %vm7714 = vcmp.le.f32.partialorder %v7468, 16.0
      %vm7715 = vcmp.le.f32.partialorder %v7469, 16.0
      %vm7716 = vcmp.le.f32.partialorder %v7470, 16.0
      %vm7717 = vcmp.le.f32.partialorder %v7471, 16.0
      %vm7718 = vcmp.le.f32.partialorder %v7472, 16.0
      %vm7719 = vcmp.le.f32.partialorder %v7473, 16.0
      %vm7720 = vcmp.le.f32.partialorder %v7474, 16.0
      %vm7721 = vcmp.le.f32.partialorder %v7475, 16.0
      %vm7722 = vcmp.le.f32.partialorder %v7476, 16.0
      %vm7723 = vcmp.le.f32.partialorder %v7477, 16.0
      %vm7724 = vcmp.le.f32.partialorder %v7478, 16.0
      %vm7725 = vcmp.le.f32.partialorder %v7479, 16.0
      %vm7726 = vcmp.le.f32.partialorder %v7480, 16.0
      %vm7727 = vcmp.le.f32.partialorder %v7481, 16.0
      %vm7728 = vcmp.le.f32.partialorder %v7482, 16.0
      %vm7729 = vcmp.le.f32.partialorder %v7483, 16.0
      %vm7730 = vmand %vm7648, %vm7689
      %vm7731 = vmand %vm7649, %vm7690
      %vm7732 = vmand %vm7650, %vm7691
      %vm7733 = vmand %vm7651, %vm7692
      %vm7734 = vmand %vm7652, %vm7693
      %vm7735 = vmand %vm7653, %vm7694
      %vm7736 = vmand %vm7654, %vm7695
      %vm7737 = vmand %vm7655, %vm7696
      %vm7738 = vmand %vm7656, %vm7697
      %vm7739 = vmand %vm7657, %vm7698
      %vm7740 = vmand %vm7658, %vm7699
      %vm7741 = vmand %vm7659, %vm7700
      %vm7742 = vmand %vm7660, %vm7701
      %vm7743 = vmand %vm7661, %vm7702
      %vm7744 = vmand %vm7662, %vm7703
      %vm7745 = vmand %vm7663, %vm7704
      %vm7746 = vmand %vm7664, %vm7705
      %vm7747 = vmand %vm7665, %vm7706
      %vm7748 = vmand %vm7666, %vm7707
      %vm7749 = vmand %vm7667, %vm7708
      %vm7750 = vmand %vm7668, %vm7709
      %vm7751 = vmand %vm7669, %vm7710
      %vm7752 = vmand %vm7670, %vm7711
      %vm7753 = vmand %vm7671, %vm7712
      %vm7754 = vmand %vm7672, %vm7713
      %vm7755 = vmand %vm7673, %vm7714
      %vm7756 = vmand %vm7674, %vm7715
      %vm7757 = vmand %vm7675, %vm7716
      %vm7758 = vmand %vm7676, %vm7717
      %vm7759 = vmand %vm7677, %vm7718
      %vm7760 = vmand %vm7678, %vm7719
      %vm7761 = vmand %vm7679, %vm7720
      %vm7762 = vmand %vm7680, %vm7721
      %vm7763 = vmand %vm7681, %vm7722
      %vm7764 = vmand %vm7682, %vm7723
      %vm7765 = vmand %vm7683, %vm7724
      %vm7766 = vmand %vm7684, %vm7725
      %vm7767 = vmand %vm7685, %vm7726
      %vm7768 = vmand %vm7686, %vm7727
      %vm7769 = vmand %vm7687, %vm7728
      %vm7770 = vmand %vm7688, %vm7729
      %vm7771 = vcmp.ge.f32.partialorder %v7525, 1.0
      %vm7772 = vcmp.ge.f32.partialorder %v7526, 1.0
      %vm7773 = vcmp.ge.f32.partialorder %v7527, 1.0
      %vm7774 = vcmp.ge.f32.partialorder %v7528, 1.0
      %vm7775 = vcmp.ge.f32.partialorder %v7529, 1.0
      %vm7776 = vcmp.ge.f32.partialorder %v7530, 1.0
      %vm7777 = vcmp.ge.f32.partialorder %v7531, 1.0
      %vm7778 = vcmp.ge.f32.partialorder %v7532, 1.0
      %vm7779 = vcmp.ge.f32.partialorder %v7533, 1.0
      %vm7780 = vcmp.ge.f32.partialorder %v7534, 1.0
      %vm7781 = vcmp.ge.f32.partialorder %v7535, 1.0
      %vm7782 = vcmp.ge.f32.partialorder %v7536, 1.0
      %vm7783 = vcmp.ge.f32.partialorder %v7537, 1.0
      %vm7784 = vcmp.ge.f32.partialorder %v7538, 1.0
      %vm7785 = vcmp.ge.f32.partialorder %v7539, 1.0
      %vm7786 = vcmp.ge.f32.partialorder %v7540, 1.0
      %vm7787 = vcmp.ge.f32.partialorder %v7541, 1.0
      %vm7788 = vcmp.ge.f32.partialorder %v7542, 1.0
      %vm7789 = vcmp.ge.f32.partialorder %v7543, 1.0
      %vm7790 = vcmp.ge.f32.partialorder %v7544, 1.0
      %vm7791 = vcmp.ge.f32.partialorder %v7545, 1.0
      %vm7792 = vcmp.ge.f32.partialorder %v7546, 1.0
      %vm7793 = vcmp.ge.f32.partialorder %v7547, 1.0
      %vm7794 = vcmp.ge.f32.partialorder %v7548, 1.0
      %vm7795 = vcmp.ge.f32.partialorder %v7549, 1.0
      %vm7796 = vcmp.ge.f32.partialorder %v7550, 1.0
      %vm7797 = vcmp.ge.f32.partialorder %v7551, 1.0
      %vm7798 = vcmp.ge.f32.partialorder %v7552, 1.0
      %vm7799 = vcmp.ge.f32.partialorder %v7553, 1.0
      %vm7800 = vcmp.ge.f32.partialorder %v7554, 1.0
      %vm7801 = vcmp.ge.f32.partialorder %v7555, 1.0
      %vm7802 = vcmp.ge.f32.partialorder %v7556, 1.0
      %vm7803 = vcmp.ge.f32.partialorder %v7557, 1.0
      %vm7804 = vcmp.ge.f32.partialorder %v7558, 1.0
      %vm7805 = vcmp.ge.f32.partialorder %v7559, 1.0
      %vm7806 = vcmp.ge.f32.partialorder %v7560, 1.0
      %vm7807 = vcmp.ge.f32.partialorder %v7561, 1.0
      %vm7808 = vcmp.ge.f32.partialorder %v7562, 1.0
      %vm7809 = vcmp.ge.f32.partialorder %v7563, 1.0
      %vm7810 = vcmp.ge.f32.partialorder %v7564, 1.0
      %vm7811 = vcmp.ge.f32.partialorder %v7565, 1.0
      %vm7812 = vmand %vm7730, %vm7771
      %vm7813 = vmand %vm7731, %vm7772
      %vm7814 = vmand %vm7732, %vm7773
      %vm7815 = vmand %vm7733, %vm7774
      %vm7816 = vmand %vm7734, %vm7775
      %vm7817 = vmand %vm7735, %vm7776
      %vm7818 = vmand %vm7736, %vm7777
      %vm7819 = vmand %vm7737, %vm7778
      %vm7820 = vmand %vm7738, %vm7779
      %vm7821 = vmand %vm7739, %vm7780
      %vm7822 = vmand %vm7740, %vm7781
      %vm7823 = vmand %vm7741, %vm7782
      %vm7824 = vmand %vm7742, %vm7783
      %vm7825 = vmand %vm7743, %vm7784
      %vm7826 = vmand %vm7744, %vm7785
      %vm7827 = vmand %vm7745, %vm7786
      %vm7828 = vmand %vm7746, %vm7787
      %vm7829 = vmand %vm7747, %vm7788
      %vm7830 = vmand %vm7748, %vm7789
      %vm7831 = vmand %vm7749, %vm7790
      %vm7832 = vmand %vm7750, %vm7791
      %vm7833 = vmand %vm7751, %vm7792
      %vm7834 = vmand %vm7752, %vm7793
      %vm7835 = vmand %vm7753, %vm7794
      %vm7836 = vmand %vm7754, %vm7795
      %vm7837 = vmand %vm7755, %vm7796
      %vm7838 = vmand %vm7756, %vm7797
      %vm7839 = vmand %vm7757, %vm7798
      %vm7840 = vmand %vm7758, %vm7799
      %vm7841 = vmand %vm7759, %vm7800
      %vm7842 = vmand %vm7760, %vm7801
      %vm7843 = vmand %vm7761, %vm7802
      %vm7844 = vmand %vm7762, %vm7803
      %vm7845 = vmand %vm7763, %vm7804
      %vm7846 = vmand %vm7764, %vm7805
      %vm7847 = vmand %vm7765, %vm7806
      %vm7848 = vmand %vm7766, %vm7807
      %vm7849 = vmand %vm7767, %vm7808
      %vm7850 = vmand %vm7768, %vm7809
      %vm7851 = vmand %vm7769, %vm7810
      %vm7852 = vmand %vm7770, %vm7811
      %vm7853 = vcmp.le.f32.partialorder %v7525, 16.0
      %vm7854 = vcmp.le.f32.partialorder %v7526, 16.0
      %vm7855 = vcmp.le.f32.partialorder %v7527, 16.0
      %vm7856 = vcmp.le.f32.partialorder %v7528, 16.0
      %vm7857 = vcmp.le.f32.partialorder %v7529, 16.0
      %vm7858 = vcmp.le.f32.partialorder %v7530, 16.0
      %vm7859 = vcmp.le.f32.partialorder %v7531, 16.0
      %vm7860 = vcmp.le.f32.partialorder %v7532, 16.0
      %vm7861 = vcmp.le.f32.partialorder %v7533, 16.0
      %vm7862 = vcmp.le.f32.partialorder %v7534, 16.0
      %vm7863 = vcmp.le.f32.partialorder %v7535, 16.0
      %vm7864 = vcmp.le.f32.partialorder %v7536, 16.0
      %vm7865 = vcmp.le.f32.partialorder %v7537, 16.0
      %vm7866 = vcmp.le.f32.partialorder %v7538, 16.0
      %vm7867 = vcmp.le.f32.partialorder %v7539, 16.0
      %vm7868 = vcmp.le.f32.partialorder %v7540, 16.0
      %vm7869 = vcmp.le.f32.partialorder %v7541, 16.0
      %vm7870 = vcmp.le.f32.partialorder %v7542, 16.0
      %vm7871 = vcmp.le.f32.partialorder %v7543, 16.0
      %vm7872 = vcmp.le.f32.partialorder %v7544, 16.0
      %vm7873 = vcmp.le.f32.partialorder %v7545, 16.0
      %vm7874 = vcmp.le.f32.partialorder %v7546, 16.0
      %vm7875 = vcmp.le.f32.partialorder %v7547, 16.0
      %vm7876 = vcmp.le.f32.partialorder %v7548, 16.0
      %vm7877 = vcmp.le.f32.partialorder %v7549, 16.0
      %vm7878 = vcmp.le.f32.partialorder %v7550, 16.0
      %vm7879 = vcmp.le.f32.partialorder %v7551, 16.0
      %vm7880 = vcmp.le.f32.partialorder %v7552, 16.0
      %vm7881 = vcmp.le.f32.partialorder %v7553, 16.0
      %vm7882 = vcmp.le.f32.partialorder %v7554, 16.0
      %vm7883 = vcmp.le.f32.partialorder %v7555, 16.0
      %vm7884 = vcmp.le.f32.partialorder %v7556, 16.0
      %vm7885 = vcmp.le.f32.partialorder %v7557, 16.0
      %vm7886 = vcmp.le.f32.partialorder %v7558, 16.0
      %vm7887 = vcmp.le.f32.partialorder %v7559, 16.0
      %vm7888 = vcmp.le.f32.partialorder %v7560, 16.0
      %vm7889 = vcmp.le.f32.partialorder %v7561, 16.0
      %vm7890 = vcmp.le.f32.partialorder %v7562, 16.0
      %vm7891 = vcmp.le.f32.partialorder %v7563, 16.0
      %vm7892 = vcmp.le.f32.partialorder %v7564, 16.0
      %vm7893 = vcmp.le.f32.partialorder %v7565, 16.0
      %vm7894 = vmand %vm7812, %vm7853
      %vm7895 = vmand %vm7813, %vm7854
      %vm7896 = vmand %vm7814, %vm7855
      %vm7897 = vmand %vm7815, %vm7856
      %vm7898 = vmand %vm7816, %vm7857
      %vm7899 = vmand %vm7817, %vm7858
      %vm7900 = vmand %vm7818, %vm7859
      %vm7901 = vmand %vm7819, %vm7860
      %vm7902 = vmand %vm7820, %vm7861
      %vm7903 = vmand %vm7821, %vm7862
      %vm7904 = vmand %vm7822, %vm7863
      %vm7905 = vmand %vm7823, %vm7864
      %vm7906 = vmand %vm7824, %vm7865
      %vm7907 = vmand %vm7825, %vm7866
      %vm7908 = vmand %vm7826, %vm7867
      %vm7909 = vmand %vm7827, %vm7868
      %vm7910 = vmand %vm7828, %vm7869
      %vm7911 = vmand %vm7829, %vm7870
      %vm7912 = vmand %vm7830, %vm7871
      %vm7913 = vmand %vm7831, %vm7872
      %vm7914 = vmand %vm7832, %vm7873
      %vm7915 = vmand %vm7833, %vm7874
      %vm7916 = vmand %vm7834, %vm7875
      %vm7917 = vmand %vm7835, %vm7876
      %vm7918 = vmand %vm7836, %vm7877
      %vm7919 = vmand %vm7837, %vm7878
      %vm7920 = vmand %vm7838, %vm7879
      %vm7921 = vmand %vm7839, %vm7880
      %vm7922 = vmand %vm7840, %vm7881
      %vm7923 = vmand %vm7841, %vm7882
      %vm7924 = vmand %vm7842, %vm7883
      %vm7925 = vmand %vm7843, %vm7884
      %vm7926 = vmand %vm7844, %vm7885
      %vm7927 = vmand %vm7845, %vm7886
      %vm7928 = vmand %vm7846, %vm7887
      %vm7929 = vmand %vm7847, %vm7888
      %vm7930 = vmand %vm7848, %vm7889
      %vm7931 = vmand %vm7849, %vm7890
      %vm7932 = vmand %vm7850, %vm7891
      %vm7933 = vmand %vm7851, %vm7892
      %vm7934 = vmand %vm7852, %vm7893
      %v7935 = vsel %vm7894, 1, 0
      %v7936 = vsel %vm7895, 1, 0
      %v7937 = vsel %vm7896, 1, 0
      %v7938 = vsel %vm7897, 1, 0
      %v7939 = vsel %vm7898, 1, 0
      %v7940 = vsel %vm7899, 1, 0
      %v7941 = vsel %vm7900, 1, 0
      %v7942 = vsel %vm7901, 1, 0
      %v7943 = vsel %vm7902, 1, 0
      %v7944 = vsel %vm7903, 1, 0
      %v7945 = vsel %vm7904, 1, 0
      %v7946 = vsel %vm7905, 1, 0
      %v7947 = vsel %vm7906, 1, 0
      %v7948 = vsel %vm7907, 1, 0
      %v7949 = vsel %vm7908, 1, 0
      %v7950 = vsel %vm7909, 1, 0
      %v7951 = vsel %vm7910, 1, 0
      %v7952 = vsel %vm7911, 1, 0
      %v7953 = vsel %vm7912, 1, 0
      %v7954 = vsel %vm7913, 1, 0
      %v7955 = vsel %vm7914, 1, 0
      %v7956 = vsel %vm7915, 1, 0
      %v7957 = vsel %vm7916, 1, 0
      %v7958 = vsel %vm7917, 1, 0
      %v7959 = vsel %vm7918, 1, 0
      %v7960 = vsel %vm7919, 1, 0
      %v7961 = vsel %vm7920, 1, 0
      %v7962 = vsel %vm7921, 1, 0
      %v7963 = vsel %vm7922, 1, 0
      %v7964 = vsel %vm7923, 1, 0
      %v7965 = vsel %vm7924, 1, 0
      %v7966 = vsel %vm7925, 1, 0
      %v7967 = vsel %vm7926, 1, 0
      %v7968 = vsel %vm7927, 1, 0
      %v7969 = vsel %vm7928, 1, 0
      %v7970 = vsel %vm7929, 1, 0
      %v7971 = vsel %vm7930, 1, 0
      %v7972 = vsel %vm7931, 1, 0
      %v7973 = vsel %vm7932, 1, 0
      %v7974 = vsel %vm7933, 1, 0
      %v7975 = vsel %vm7934, 1, 0
      %vm7976 = vcmp.eq.s32.totalorder %v7935, 1
      %vm7977 = vcmp.eq.s32.totalorder %v7936, 1
      %vm7978 = vcmp.eq.s32.totalorder %v7937, 1
      %vm7979 = vcmp.eq.s32.totalorder %v7938, 1
      %vm7980 = vcmp.eq.s32.totalorder %v7939, 1
      %vm7981 = vcmp.eq.s32.totalorder %v7940, 1
      %vm7982 = vcmp.eq.s32.totalorder %v7941, 1
      %vm7983 = vcmp.eq.s32.totalorder %v7942, 1
      %vm7984 = vcmp.eq.s32.totalorder %v7943, 1
      %vm7985 = vcmp.eq.s32.totalorder %v7944, 1
      %vm7986 = vcmp.eq.s32.totalorder %v7945, 1
      %vm7987 = vcmp.eq.s32.totalorder %v7946, 1
      %vm7988 = vcmp.eq.s32.totalorder %v7947, 1
      %vm7989 = vcmp.eq.s32.totalorder %v7948, 1
      %vm7990 = vcmp.eq.s32.totalorder %v7949, 1
      %vm7991 = vcmp.eq.s32.totalorder %v7950, 1
      %vm7992 = vcmp.eq.s32.totalorder %v7951, 1
      %vm7993 = vcmp.eq.s32.totalorder %v7952, 1
      %vm7994 = vcmp.eq.s32.totalorder %v7953, 1
      %vm7995 = vcmp.eq.s32.totalorder %v7954, 1
      %vm7996 = vcmp.eq.s32.totalorder %v7955, 1
      %vm7997 = vcmp.eq.s32.totalorder %v7956, 1
      %vm7998 = vcmp.eq.s32.totalorder %v7957, 1
      %vm7999 = vcmp.eq.s32.totalorder %v7958, 1
      %vm8000 = vcmp.eq.s32.totalorder %v7959, 1
      %vm8001 = vcmp.eq.s32.totalorder %v7960, 1
      %vm8002 = vcmp.eq.s32.totalorder %v7961, 1
      %vm8003 = vcmp.eq.s32.totalorder %v7962, 1
      %vm8004 = vcmp.eq.s32.totalorder %v7963, 1
      %vm8005 = vcmp.eq.s32.totalorder %v7964, 1
      %vm8006 = vcmp.eq.s32.totalorder %v7965, 1
      %vm8007 = vcmp.eq.s32.totalorder %v7966, 1
      %vm8008 = vcmp.eq.s32.totalorder %v7967, 1
      %vm8009 = vcmp.eq.s32.totalorder %v7968, 1
      %vm8010 = vcmp.eq.s32.totalorder %v7969, 1
      %vm8011 = vcmp.eq.s32.totalorder %v7970, 1
      %vm8012 = vcmp.eq.s32.totalorder %v7971, 1
      %vm8013 = vcmp.eq.s32.totalorder %v7972, 1
      %vm8014 = vcmp.eq.s32.totalorder %v7973, 1
      %vm8015 = vcmp.eq.s32.totalorder %v7974, 1
      %vm8016 = vcmp.eq.s32.totalorder %v7975, 1
      %v8017 = vsel %vm7976, %v7184, -1e+30
      %v8018 = vsel %vm7977, %v7186, -1e+30
      %v8019 = vsel %vm7978, %v7189, -1e+30
      %v8020 = vsel %vm7979, %v7191, -1e+30
      %v8021 = vsel %vm7980, %v7194, -1e+30
      %v8022 = vsel %vm7981, %v7196, -1e+30
      %v8023 = vsel %vm7982, %v7199, -1e+30
      %v8024 = vsel %vm7983, %v7201, -1e+30
      %v8025 = vsel %vm7984, %v7204, -1e+30
      %v8026 = vsel %vm7985, %v7206, -1e+30
      %v8027 = vsel %vm7986, %v7209, -1e+30
      %v8028 = vsel %vm7987, %v7211, -1e+30
      %v8029 = vsel %vm7988, %v7214, -1e+30
      %v8030 = vsel %vm7989, %v7216, -1e+30
      %v8031 = vsel %vm7990, %v7219, -1e+30
      %v8032 = vsel %vm7991, %v7221, -1e+30
      %v8033 = vsel %vm7992, %v7224, -1e+30
      %v8034 = vsel %vm7993, %v7226, -1e+30
      %v8035 = vsel %vm7994, %v7229, -1e+30
      %v8036 = vsel %vm7995, %v7231, -1e+30
      %v8037 = vsel %vm7996, %v7234, -1e+30
      %v8038 = vsel %vm7997, %v7236, -1e+30
      %v8039 = vsel %vm7998, %v7239, -1e+30
      %v8040 = vsel %vm7999, %v7241, -1e+30
      %v8041 = vsel %vm8000, %v7244, -1e+30
      %v8042 = vsel %vm8001, %v7246, -1e+30
      %v8043 = vsel %vm8002, %v7249, -1e+30
      %v8044 = vsel %vm8003, %v7251, -1e+30
      %v8045 = vsel %vm8004, %v7254, -1e+30
      %v8046 = vsel %vm8005, %v7256, -1e+30
      %v8047 = vsel %vm8006, %v7259, -1e+30
      %v8048 = vsel %vm8007, %v7261, -1e+30
      %v8049 = vsel %vm8008, %v7264, -1e+30
      %v8050 = vsel %vm8009, %v7266, -1e+30
      %v8051 = vsel %vm8010, %v7269, -1e+30
      %v8052 = vsel %vm8011, %v7271, -1e+30
      %v8053 = vsel %vm8012, %v7274, -1e+30
      %v8054 = vsel %vm8013, %v7276, -1e+30
      %v8055 = vsel %vm8014, %v7279, -1e+30
      %v8056 = vsel %vm8015, %v7281, -1e+30
      %v8057 = vsel %vm8016, %v7284, -1e+30
      %v8058 = vmax.f32 %v8017, %v8021
      %v8059 = vmax.f32 %v8018, %v8022
      %v8060 = vmax.f32 %v8019, %v8023
      %v8061 = vmax.f32 %v8020, %v8024
      %v8062 = vmax.f32 %v8058, %v8025
      %v8063 = vmax.f32 %v8059, %v8026
      %v8064 = vmax.f32 %v8060, %v8027
      %v8065 = vmax.f32 %v8061, %v8028
      %v8066 = vmax.f32 %v8062, %v8029
      %v8067 = vmax.f32 %v8063, %v8030
      %v8068 = vmax.f32 %v8064, %v8031
      %v8069 = vmax.f32 %v8065, %v8032
      %v8070 = vmax.f32 %v8066, %v8033
      %v8071 = vmax.f32 %v8067, %v8034
      %v8072 = vmax.f32 %v8068, %v8035
      %v8073 = vmax.f32 %v8069, %v8036
      %v8074 = vmax.f32 %v8070, %v8037
      %v8075 = vmax.f32 %v8071, %v8038
      %v8076 = vmax.f32 %v8072, %v8039
      %v8077 = vmax.f32 %v8073, %v8040
      %v8078 = vmax.f32 %v8074, %v8041
      %v8079 = vmax.f32 %v8075, %v8042
      %v8080 = vmax.f32 %v8076, %v8043
      %v8081 = vmax.f32 %v8077, %v8044
      %v8082 = vmax.f32 %v8078, %v8045
      %v8083 = vmax.f32 %v8079, %v8046
      %v8084 = vmax.f32 %v8080, %v8047
      %v8085 = vmax.f32 %v8081, %v8048
      %v8086 = vmax.f32 %v8082, %v8049
      %v8087 = vmax.f32 %v8083, %v8050
      %v8088 = vmax.f32 %v8084, %v8051
      %v8089 = vmax.f32 %v8085, %v8052
      %v8090 = vmax.f32 %v8086, %v8053
      %v8091 = vmax.f32 %v8087, %v8054
      %v8092 = vmax.f32 %v8088, %v8055
      %v8093 = vmax.f32 %v8089, %v8056
      %v8094 = vmax.f32 %v8090, %v8057
      %v8095 = vmax.f32 %v8094, %v8091
      %v8096 = vmax.f32 %v8092, %v8093
      %v8097 = vmax.f32 %v8095, %v8096
      %v8098 = vrot.slane %v8097, 4
      %v8099 = vmax.f32 %v8097, %v8098
      %v8100 = vrot.slane %v8099, 2
      %v8101 = vmax.f32 %v8099, %v8100
      %v8102 = vrot.slane %v8101, 1
      %v8103 = vmax.f32 %v8101, %v8102
      %v8104 = vsub.f32 %v8017, %v8103
      %v8105 = vsub.f32 %v8018, %v8103
      %v8106 = vsub.f32 %v8019, %v8103
      %v8107 = vsub.f32 %v8020, %v8103
      %v8108 = vsub.f32 %v8021, %v8103
      %v8109 = vsub.f32 %v8022, %v8103
      %v8110 = vsub.f32 %v8023, %v8103
      %v8111 = vsub.f32 %v8024, %v8103
      %v8112 = vsub.f32 %v8025, %v8103
      %v8113 = vsub.f32 %v8026, %v8103
      %v8114 = vsub.f32 %v8027, %v8103
      %v8115 = vsub.f32 %v8028, %v8103
      %v8116 = vsub.f32 %v8029, %v8103
      %v8117 = vsub.f32 %v8030, %v8103
      %v8118 = vsub.f32 %v8031, %v8103
      %v8119 = vsub.f32 %v8032, %v8103
      %v8120 = vsub.f32 %v8033, %v8103
      %v8121 = vsub.f32 %v8034, %v8103
      %v8122 = vsub.f32 %v8035, %v8103
      %v8123 = vsub.f32 %v8036, %v8103
      %v8124 = vsub.f32 %v8037, %v8103
      %v8125 = vsub.f32 %v8038, %v8103
      %v8126 = vsub.f32 %v8039, %v8103
      %v8127 = vsub.f32 %v8040, %v8103
      %v8128 = vsub.f32 %v8041, %v8103
      %v8129 = vsub.f32 %v8042, %v8103
      %v8130 = vsub.f32 %v8043, %v8103
      %v8131 = vsub.f32 %v8044, %v8103
      %v8132 = vsub.f32 %v8045, %v8103
      %v8133 = vsub.f32 %v8046, %v8103
      %v8134 = vsub.f32 %v8047, %v8103
      %v8135 = vsub.f32 %v8048, %v8103
      %v8136 = vsub.f32 %v8049, %v8103
      %v8137 = vsub.f32 %v8050, %v8103
      %v8138 = vsub.f32 %v8051, %v8103
      %v8139 = vsub.f32 %v8052, %v8103
      %v8140 = vsub.f32 %v8053, %v8103
      %v8141 = vsub.f32 %v8054, %v8103
      %v8142 = vsub.f32 %v8055, %v8103
      %v8143 = vsub.f32 %v8056, %v8103
      %v8144 = vsub.f32 %v8057, %v8103
      %v8145 = vmul.f32 %v8104, 1.442695
      %v8146 = vpow.pop %v8145
      %v8147 = vmul.f32 %v8105, 1.442695
      %v8148 = vpow.pop %v8147
      %v8149 = vmul.f32 %v8106, 1.442695
      %v8150 = vpow.pop %v8149
      %v8151 = vmul.f32 %v8107, 1.442695
      %v8152 = vpow.pop %v8151
      %v8153 = vmul.f32 %v8108, 1.442695
      %v8154 = vpow.pop %v8153
      %v8155 = vmul.f32 %v8109, 1.442695
      %v8156 = vpow.pop %v8155
      %v8157 = vmul.f32 %v8110, 1.442695
      %v8158 = vpow.pop %v8157
      %v8159 = vmul.f32 %v8111, 1.442695
      %v8160 = vpow.pop %v8159
      %v8161 = vmul.f32 %v8112, 1.442695
      %v8162 = vpow.pop %v8161
      %v8163 = vmul.f32 %v8113, 1.442695
      %v8164 = vpow.pop %v8163
      %v8165 = vmul.f32 %v8114, 1.442695
      %v8166 = vpow.pop %v8165
      %v8167 = vmul.f32 %v8115, 1.442695
      %v8168 = vpow.pop %v8167
      %v8169 = vmul.f32 %v8116, 1.442695
      %v8170 = vpow.pop %v8169
      %v8171 = vmul.f32 %v8117, 1.442695
      %v8172 = vpow.pop %v8171
      %v8173 = vmul.f32 %v8118, 1.442695
      %v8174 = vpow.pop %v8173
      %v8175 = vmul.f32 %v8119, 1.442695
      %v8176 = vpow.pop %v8175
      %v8177 = vmul.f32 %v8120, 1.442695
      %v8178 = vpow.pop %v8177
      %v8179 = vmul.f32 %v8121, 1.442695
      %v8180 = vpow.pop %v8179
      %v8181 = vmul.f32 %v8122, 1.442695
      %v8182 = vpow.pop %v8181
      %v8183 = vmul.f32 %v8123, 1.442695
      %v8184 = vpow.pop %v8183
      %v8185 = vmul.f32 %v8124, 1.442695
      %v8186 = vpow.pop %v8185
      %v8187 = vmul.f32 %v8125, 1.442695
      %v8188 = vpow.pop %v8187
      %v8189 = vmul.f32 %v8126, 1.442695
      %v8190 = vpow.pop %v8189
      %v8191 = vmul.f32 %v8127, 1.442695
      %v8192 = vpow.pop %v8191
      %v8193 = vmul.f32 %v8128, 1.442695
      %v8194 = vpow.pop %v8193
      %v8195 = vmul.f32 %v8129, 1.442695
      %v8196 = vpow.pop %v8195
      %v8197 = vmul.f32 %v8130, 1.442695
      %v8198 = vpow.pop %v8197
      %v8199 = vmul.f32 %v8131, 1.442695
      %v8200 = vpow.pop %v8199
      %v8201 = vmul.f32 %v8132, 1.442695
      %v8202 = vpow.pop %v8201
      %v8203 = vmul.f32 %v8133, 1.442695
      %v8204 = vpow.pop %v8203
      %v8205 = vmul.f32 %v8134, 1.442695
      %v8206 = vpow.pop %v8205
      %v8207 = vmul.f32 %v8135, 1.442695
      %v8208 = vpow.pop %v8207
      %v8209 = vmul.f32 %v8136, 1.442695
      %v8210 = vpow.pop %v8209
      %v8211 = vmul.f32 %v8137, 1.442695
      %v8212 = vpow.pop %v8211
      %v8213 = vmul.f32 %v8138, 1.442695
      %v8214 = vpow.pop %v8213
      %v8215 = vmul.f32 %v8139, 1.442695
      %v8216 = vpow.pop %v8215
      %v8217 = vmul.f32 %v8140, 1.442695
      %v8218 = vpow.pop %v8217
      %v8219 = vmul.f32 %v8141, 1.442695
      %v8220 = vpow.pop %v8219
      %v8221 = vmul.f32 %v8142, 1.442695
      %v8222 = vpow.pop %v8221
      %v8223 = vmul.f32 %v8143, 1.442695
      %v8224 = vpow.pop %v8223
      %v8225 = vmul.f32 %v8144, 1.442695
      %v8226 = vpow.pop %v8225
      %v8227 = vadd.f32 %v8146, %v8148
      %v8228 = vadd.f32 %v8227, %v8150
      %v8229 = vadd.f32 %v8228, %v8152
      %v8230 = vadd.f32 %v8229, %v8154
      %v8231 = vadd.f32 %v8230, %v8156
      %v8232 = vadd.f32 %v8231, %v8158
      %v8233 = vadd.f32 %v8232, %v8160
      %v8234 = vadd.f32 %v8233, %v8162
      %v8235 = vadd.f32 %v8234, %v8164
      %v8236 = vadd.f32 %v8235, %v8166
      %v8237 = vadd.f32 %v8236, %v8168
      %v8238 = vadd.f32 %v8237, %v8170
      %v8239 = vadd.f32 %v8238, %v8172
      %v8240 = vadd.f32 %v8239, %v8174
      %v8241 = vadd.f32 %v8240, %v8176
      %v8242 = vadd.f32 %v8241, %v8178
      %v8243 = vadd.f32 %v8242, %v8180
      %v8244 = vadd.f32 %v8243, %v8182
      %v8245 = vadd.f32 %v8244, %v8184
      %v8246 = vadd.f32 %v8245, %v8186
      %v8247 = vadd.f32 %v8246, %v8188
      %v8248 = vadd.f32 %v8247, %v8190
      %v8249 = vadd.f32 %v8248, %v8192
      %v8250 = vadd.f32 %v8249, %v8194
      %v8251 = vadd.f32 %v8250, %v8196
      %v8252 = vadd.f32 %v8251, %v8198
      %v8253 = vadd.f32 %v8252, %v8200
      %v8254 = vadd.f32 %v8253, %v8202
      %v8255 = vadd.f32 %v8254, %v8204
      %v8256 = vadd.f32 %v8255, %v8206
      %v8257 = vadd.f32 %v8256, %v8208
      %v8258 = vadd.f32 %v8257, %v8210
      %v8259 = vadd.f32 %v8258, %v8212
      %v8260 = vadd.f32 %v8259, %v8214
      %v8261 = vadd.f32 %v8260, %v8216
      %v8262 = vadd.f32 %v8261, %v8218
      %v8263 = vadd.f32 %v8262, %v8220
      %v8264 = vadd.f32 %v8263, %v8222
      %v8265 = vadd.f32 %v8264, %v8224
      %v8266 = vadd.f32 %v8265, %v8226
      %v8267 = vrot.slane %v8266, 4
      %v8268 = vadd.f32 %v8266, %v8267
      %v8269 = vrot.slane %v8268, 2
      %v8270 = vadd.f32 %v8268, %v8269
      %v8271 = vrot.slane %v8270, 1
      %v8272 = vadd.f32 %v8270, %v8271
      %v8273 = vsub.f32 %v7443, 1.0
      %v8274 = vsub.f32 %v7444, 1.0
      %v8275 = vsub.f32 %v7445, 1.0
      %v8276 = vsub.f32 %v7446, 1.0
      %v8277 = vsub.f32 %v7447, 1.0
      %v8278 = vsub.f32 %v7448, 1.0
      %v8279 = vsub.f32 %v7449, 1.0
      %v8280 = vsub.f32 %v7450, 1.0
      %v8281 = vsub.f32 %v7451, 1.0
      %v8282 = vsub.f32 %v7452, 1.0
      %v8283 = vsub.f32 %v7453, 1.0
      %v8284 = vsub.f32 %v7454, 1.0
      %v8285 = vsub.f32 %v7455, 1.0
      %v8286 = vsub.f32 %v7456, 1.0
      %v8287 = vsub.f32 %v7457, 1.0
      %v8288 = vsub.f32 %v7458, 1.0
      %v8289 = vsub.f32 %v7459, 1.0
      %v8290 = vsub.f32 %v7460, 1.0
      %v8291 = vsub.f32 %v7461, 1.0
      %v8292 = vsub.f32 %v7462, 1.0
      %v8293 = vsub.f32 %v7463, 1.0
      %v8294 = vsub.f32 %v7464, 1.0
      %v8295 = vsub.f32 %v7465, 1.0
      %v8296 = vsub.f32 %v7466, 1.0
      %v8297 = vsub.f32 %v7467, 1.0
      %v8298 = vsub.f32 %v7468, 1.0
      %v8299 = vsub.f32 %v7469, 1.0
      %v8300 = vsub.f32 %v7470, 1.0
      %v8301 = vsub.f32 %v7471, 1.0
      %v8302 = vsub.f32 %v7472, 1.0
      %v8303 = vsub.f32 %v7473, 1.0
      %v8304 = vsub.f32 %v7474, 1.0
      %v8305 = vsub.f32 %v7475, 1.0
      %v8306 = vsub.f32 %v7476, 1.0
      %v8307 = vsub.f32 %v7477, 1.0
      %v8308 = vsub.f32 %v7478, 1.0
      %v8309 = vsub.f32 %v7479, 1.0
      %v8310 = vsub.f32 %v7480, 1.0
      %v8311 = vsub.f32 %v7481, 1.0
      %v8312 = vsub.f32 %v7482, 1.0
      %v8313 = vsub.f32 %v7483, 1.0
      %v8314 = vmul.f32 %v8146, %v8273
      %v8315 = vmul.f32 %v8148, %v8274
      %v8316 = vmul.f32 %v8150, %v8275
      %v8317 = vmul.f32 %v8152, %v8276
      %v8318 = vmul.f32 %v8154, %v8277
      %v8319 = vmul.f32 %v8156, %v8278
      %v8320 = vmul.f32 %v8158, %v8279
      %v8321 = vmul.f32 %v8160, %v8280
      %v8322 = vmul.f32 %v8162, %v8281
      %v8323 = vmul.f32 %v8164, %v8282
      %v8324 = vmul.f32 %v8166, %v8283
      %v8325 = vmul.f32 %v8168, %v8284
      %v8326 = vmul.f32 %v8170, %v8285
      %v8327 = vmul.f32 %v8172, %v8286
      %v8328 = vmul.f32 %v8174, %v8287
      %v8329 = vmul.f32 %v8176, %v8288
      %v8330 = vmul.f32 %v8178, %v8289
      %v8331 = vmul.f32 %v8180, %v8290
      %v8332 = vmul.f32 %v8182, %v8291
      %v8333 = vmul.f32 %v8184, %v8292
      %v8334 = vmul.f32 %v8186, %v8293
      %v8335 = vmul.f32 %v8188, %v8294
      %v8336 = vmul.f32 %v8190, %v8295
      %v8337 = vmul.f32 %v8192, %v8296
      %v8338 = vmul.f32 %v8194, %v8297
      %v8339 = vmul.f32 %v8196, %v8298
      %v8340 = vmul.f32 %v8198, %v8299
      %v8341 = vmul.f32 %v8200, %v8300
      %v8342 = vmul.f32 %v8202, %v8301
      %v8343 = vmul.f32 %v8204, %v8302
      %v8344 = vmul.f32 %v8206, %v8303
      %v8345 = vmul.f32 %v8208, %v8304
      %v8346 = vmul.f32 %v8210, %v8305
      %v8347 = vmul.f32 %v8212, %v8306
      %v8348 = vmul.f32 %v8214, %v8307
      %v8349 = vmul.f32 %v8216, %v8308
      %v8350 = vmul.f32 %v8218, %v8309
      %v8351 = vmul.f32 %v8220, %v8310
      %v8352 = vmul.f32 %v8222, %v8311
      %v8353 = vmul.f32 %v8224, %v8312
      %v8354 = vmul.f32 %v8226, %v8313
      %v8355 = vadd.f32 %v8314, %v8315
      %v8356 = vadd.f32 %v8355, %v8316
      %v8357 = vadd.f32 %v8356, %v8317
      %v8358 = vadd.f32 %v8357, %v8318
      %v8359 = vadd.f32 %v8358, %v8319
      %v8360 = vadd.f32 %v8359, %v8320
      %v8361 = vadd.f32 %v8360, %v8321
      %v8362 = vadd.f32 %v8361, %v8322
      %v8363 = vadd.f32 %v8362, %v8323
      %v8364 = vadd.f32 %v8363, %v8324
      %v8365 = vadd.f32 %v8364, %v8325
      %v8366 = vadd.f32 %v8365, %v8326
      %v8367 = vadd.f32 %v8366, %v8327
      %v8368 = vadd.f32 %v8367, %v8328
      %v8369 = vadd.f32 %v8368, %v8329
      %v8370 = vadd.f32 %v8369, %v8330
      %v8371 = vadd.f32 %v8370, %v8331
      %v8372 = vadd.f32 %v8371, %v8332
      %v8373 = vadd.f32 %v8372, %v8333
      %v8374 = vadd.f32 %v8373, %v8334
      %v8375 = vadd.f32 %v8374, %v8335
      %v8376 = vadd.f32 %v8375, %v8336
      %v8377 = vadd.f32 %v8376, %v8337
      %v8378 = vadd.f32 %v8377, %v8338
      %v8379 = vadd.f32 %v8378, %v8339
      %v8380 = vadd.f32 %v8379, %v8340
      %v8381 = vadd.f32 %v8380, %v8341
      %v8382 = vadd.f32 %v8381, %v8342
      %v8383 = vadd.f32 %v8382, %v8343
      %v8384 = vadd.f32 %v8383, %v8344
      %v8385 = vadd.f32 %v8384, %v8345
      %v8386 = vadd.f32 %v8385, %v8346
      %v8387 = vadd.f32 %v8386, %v8347
      %v8388 = vadd.f32 %v8387, %v8348
      %v8389 = vadd.f32 %v8388, %v8349
      %v8390 = vadd.f32 %v8389, %v8350
      %v8391 = vadd.f32 %v8390, %v8351
      %v8392 = vadd.f32 %v8391, %v8352
      %v8393 = vadd.f32 %v8392, %v8353
      %v8394 = vadd.f32 %v8393, %v8354
      %v8395 = vrot.slane %v8394, 4
      %v8396 = vadd.f32 %v8394, %v8395
      %v8397 = vrot.slane %v8396, 2
      %v8398 = vadd.f32 %v8396, %v8397
      %v8399 = vrot.slane %v8398, 1
      %v8400 = vadd.f32 %v8398, %v8399
      %v8401 = vsub.f32 %v7525, 1.0
      %v8402 = vsub.f32 %v7526, 1.0
      %v8403 = vsub.f32 %v7527, 1.0
      %v8404 = vsub.f32 %v7528, 1.0
      %v8405 = vsub.f32 %v7529, 1.0
      %v8406 = vsub.f32 %v7530, 1.0
      %v8407 = vsub.f32 %v7531, 1.0
      %v8408 = vsub.f32 %v7532, 1.0
      %v8409 = vsub.f32 %v7533, 1.0
      %v8410 = vsub.f32 %v7534, 1.0
      %v8411 = vsub.f32 %v7535, 1.0
      %v8412 = vsub.f32 %v7536, 1.0
      %v8413 = vsub.f32 %v7537, 1.0
      %v8414 = vsub.f32 %v7538, 1.0
      %v8415 = vsub.f32 %v7539, 1.0
      %v8416 = vsub.f32 %v7540, 1.0
      %v8417 = vsub.f32 %v7541, 1.0
      %v8418 = vsub.f32 %v7542, 1.0
      %v8419 = vsub.f32 %v7543, 1.0
      %v8420 = vsub.f32 %v7544, 1.0
      %v8421 = vsub.f32 %v7545, 1.0
      %v8422 = vsub.f32 %v7546, 1.0
      %v8423 = vsub.f32 %v7547, 1.0
      %v8424 = vsub.f32 %v7548, 1.0
      %v8425 = vsub.f32 %v7549, 1.0
      %v8426 = vsub.f32 %v7550, 1.0
      %v8427 = vsub.f32 %v7551, 1.0
      %v8428 = vsub.f32 %v7552, 1.0
      %v8429 = vsub.f32 %v7553, 1.0
      %v8430 = vsub.f32 %v7554, 1.0
      %v8431 = vsub.f32 %v7555, 1.0
      %v8432 = vsub.f32 %v7556, 1.0
      %v8433 = vsub.f32 %v7557, 1.0
      %v8434 = vsub.f32 %v7558, 1.0
      %v8435 = vsub.f32 %v7559, 1.0
      %v8436 = vsub.f32 %v7560, 1.0
      %v8437 = vsub.f32 %v7561, 1.0
      %v8438 = vsub.f32 %v7562, 1.0
      %v8439 = vsub.f32 %v7563, 1.0
      %v8440 = vsub.f32 %v7564, 1.0
      %v8441 = vsub.f32 %v7565, 1.0
      %v8442 = vmul.f32 %v8146, %v8401
      %v8443 = vmul.f32 %v8148, %v8402
      %v8444 = vmul.f32 %v8150, %v8403
      %v8445 = vmul.f32 %v8152, %v8404
      %v8446 = vmul.f32 %v8154, %v8405
      %v8447 = vmul.f32 %v8156, %v8406
      %v8448 = vmul.f32 %v8158, %v8407
      %v8449 = vmul.f32 %v8160, %v8408
      %v8450 = vmul.f32 %v8162, %v8409
      %v8451 = vmul.f32 %v8164, %v8410
      %v8452 = vmul.f32 %v8166, %v8411
      %v8453 = vmul.f32 %v8168, %v8412
      %v8454 = vmul.f32 %v8170, %v8413
      %v8455 = vmul.f32 %v8172, %v8414
      %v8456 = vmul.f32 %v8174, %v8415
      %v8457 = vmul.f32 %v8176, %v8416
      %v8458 = vmul.f32 %v8178, %v8417
      %v8459 = vmul.f32 %v8180, %v8418
      %v8460 = vmul.f32 %v8182, %v8419
      %v8461 = vmul.f32 %v8184, %v8420
      %v8462 = vmul.f32 %v8186, %v8421
      %v8463 = vmul.f32 %v8188, %v8422
      %v8464 = vmul.f32 %v8190, %v8423
      %v8465 = vmul.f32 %v8192, %v8424
      %v8466 = vmul.f32 %v8194, %v8425
      %v8467 = vmul.f32 %v8196, %v8426
      %v8468 = vmul.f32 %v8198, %v8427
      %v8469 = vmul.f32 %v8200, %v8428
      %v8470 = vmul.f32 %v8202, %v8429
      %v8471 = vmul.f32 %v8204, %v8430
      %v8472 = vmul.f32 %v8206, %v8431
      %v8473 = vmul.f32 %v8208, %v8432
      %v8474 = vmul.f32 %v8210, %v8433
      %v8475 = vmul.f32 %v8212, %v8434
      %v8476 = vmul.f32 %v8214, %v8435
      %v8477 = vmul.f32 %v8216, %v8436
      %v8478 = vmul.f32 %v8218, %v8437
      %v8479 = vmul.f32 %v8220, %v8438
      %v8480 = vmul.f32 %v8222, %v8439
      %v8481 = vmul.f32 %v8224, %v8440
      %v8482 = vmul.f32 %v8226, %v8441
      %v8483 = vadd.f32 %v8442, %v8443
      %v8484 = vadd.f32 %v8483, %v8444
      %v8485 = vadd.f32 %v8484, %v8445
      %v8486 = vadd.f32 %v8485, %v8446
      %v8487 = vadd.f32 %v8486, %v8447
      %v8488 = vadd.f32 %v8487, %v8448
      %v8489 = vadd.f32 %v8488, %v8449
      %v8490 = vadd.f32 %v8489, %v8450
      %v8491 = vadd.f32 %v8490, %v8451
      %v8492 = vadd.f32 %v8491, %v8452
      %v8493 = vadd.f32 %v8492, %v8453
      %v8494 = vadd.f32 %v8493, %v8454
      %v8495 = vadd.f32 %v8494, %v8455
      %v8496 = vadd.f32 %v8495, %v8456
      %v8497 = vadd.f32 %v8496, %v8457
      %v8498 = vadd.f32 %v8497, %v8458
      %v8499 = vadd.f32 %v8498, %v8459
      %v8500 = vadd.f32 %v8499, %v8460
      %v8501 = vadd.f32 %v8500, %v8461
      %v8502 = vadd.f32 %v8501, %v8462
      %v8503 = vadd.f32 %v8502, %v8463
      %v8504 = vadd.f32 %v8503, %v8464
      %v8505 = vadd.f32 %v8504, %v8465
      %v8506 = vadd.f32 %v8505, %v8466
      %v8507 = vadd.f32 %v8506, %v8467
      %v8508 = vadd.f32 %v8507, %v8468
      %v8509 = vadd.f32 %v8508, %v8469
      %v8510 = vadd.f32 %v8509, %v8470
      %v8511 = vadd.f32 %v8510, %v8471
      %v8512 = vadd.f32 %v8511, %v8472
      %v8513 = vadd.f32 %v8512, %v8473
      %v8514 = vadd.f32 %v8513, %v8474
      %v8515 = vadd.f32 %v8514, %v8475
      %v8516 = vadd.f32 %v8515, %v8476
      %v8517 = vadd.f32 %v8516, %v8477
      %v8518 = vadd.f32 %v8517, %v8478
      %v8519 = vadd.f32 %v8518, %v8479
      %v8520 = vadd.f32 %v8519, %v8480
      %v8521 = vadd.f32 %v8520, %v8481
      %v8522 = vadd.f32 %v8521, %v8482
      %v8523 = vrot.slane %v8522, 4
      %v8524 = vadd.f32 %v8522, %v8523
      %v8525 = vrot.slane %v8524, 2
      %v8526 = vadd.f32 %v8524, %v8525
      %v8527 = vrot.slane %v8526, 1
      %v8528 = vadd.f32 %v8526, %v8527
      %v8529 = vrcp.pop %v8272
      %v8530 = vmul.f32 %v8272, %v8529
      %v8531 = vsub.f32 1.0, %v8530
      %v8532 = vmul.f32 %v8529, %v8531
      %v8533 = vadd.f32 %v8529, %v8532
      %vm8534 = vweird.f32 %v8272
      %vm8535 = vweird.f32 %v8529
      %vm8536 = vmor %vm8534, %vm8535
      %v8537 = vsel %vm8536, %v8529, %v8533
      %v8538 = vand.u32 2147483647, %v8272
      %vm8539 = vcmp.eq.f32.partialorder %v8538, 8.507059e+37
      %v8540 = vand.u32 %v8272, 2147483648
      %v8541 = vor.u32 1.1754944e-38, %v8540
      %v8542 = vsel %vm8539, %v8541, %v8537
      %v8543 = vmul.f32 1.0, %v8542
      %v8544 = vmul.f32 %v8400, %v8543
      %v8545 = vmul.f32 %v8528, %v8543
      %vm8546 = vcmask 1040384
      %v8547 = vsel %vm8546, %v8544, %v8545
      %vm8548 = vcmask 1041408
      %v8549 = vsel %vm8548, %v8547, 0.0
      %8550 = vst [vmem:[%s224] sm:$0xff] %v8549
      %p8551 = scmp.lt.s32.totalorder %s16, 3
      %s8552 = scalar_select %p8551, %s16, 3
      %s8553 = smul.addr %s8552, 8
      %s8554 = scalar_lea.vmem %s5, %s8553
      // Predicated region
      $region41: #{registration_forward.1} parent=39 // pred_check
        %p8555 = pneg %p144
      $region42: #{registration_forward.1} parent=39 // pred_check_branch
        %8557 = sbr.rel (%p8555) target = $region44
      $region43: #{registration_forward.1} parent=39 // pred_region
        _
      $region44: #{registration_forward.1} parent=39 // pred_fallthru
        _
    $region40: #{registration_forward.1} parent=5 // pred_fallthru
      _
    %p8558 = scmp.le.s32.totalorder 2, %s11
    // Predicated region
    $region45: #{registration_forward.1} parent=5 // pred_check
      %p8559 = pneg %p8558
    $region46: #{registration_forward.1} parent=5 // pred_check_branch
      %8561 = sbr.rel (%p8559) target = $region48
    $region47: #{registration_forward.1} parent=5 // pred_region
      %s8562 = ssub.s32 %s11, 2
      // Predicated region
      $region49: #{registration_forward.1} parent=47 // pred_check
        %p8563 = pneg %p150
      $region50: #{registration_forward.1} parent=47 // pred_check_branch
        %8565 = sbr.rel (%p8563) target = $region52
      $region51: #{registration_forward.1} parent=47 // pred_region
        %p8566 = scmp.lt.s32.totalorder %s17, 3
        %s8567 = scalar_select %p8566, %s17, 3
        %s8568 = smul.addr %s8567, 8
        %s8569 = scalar_lea.vmem %s5, %s8568
      $region52: #{registration_forward.1} parent=47 // pred_fallthru
        _
    $region48: #{registration_forward.1} parent=5 // pred_fallthru
      _
  $region6: #{registration_forward.1} parent=0 // loop_footer
    %s15 = sadd.s32 1, %s11
  $region7: #{registration_forward.1} parent=0 // loop_footer_branch
    %10 = sbr.rel target = $region3
  $region8: #{registration_forward.1} parent=0 // loop_exit
    _

</llo_original>
